<compile_context>
chip_gen: v7x
topology: tpu7x:2x2x1
jax: 0.10.0
libtpu: 0.0.40
codegen_flags: <defaults>
</compile_context>

<pallas_src>
from functools import partial

import numpy as np
import jax
import jax.numpy as jnp
from jax import lax
from jax.experimental import pallas as pl
from jax.experimental.pallas import tpu as pltpu

_LOG_2PI = float(np.log(2.0 * np.pi))


def _round_up(n, m):
    return ((n + m - 1) // m) * m


# ------------------------------ fused kernel -------------------------------------
def _dyn_esn_flow_kernel(mask_ref, x_ref, win_ref, wres_ref,
                         bmask_ref, omb_ref, w1x_ref, w1h_ref, b1_ref,
                         w2_ref, b2_ref, out_ref,
                         hstate_ref, xin_ref, hcond_ref, *,
                         chunk, batch, frame_dim, esn_pad, hid_pad,
                         n_layers, leak):
    c = pl.program_id(0)
    M = chunk * batch
    F = frame_dim
    Ep = esn_pad          # ESN dim padded to a multiple of 128 (lane dense)
    Hp = hid_pad          # 2*hidden_layer_dim padded to a multiple of 128

    @pl.when(c == 0)
    def _():
        hstate_ref[...] = jnp.zeros_like(hstate_ref)   # ESN initial hidden state = 0

    # ---------------- phase A: ESN recurrence for this chunk ----------------
    # One big input-projection matmul for the whole chunk (bf16 operands, f32 acc).
    x = x_ref[...].reshape(M, F)                                    # f32 (M, F)
    xin_ref[...] = jnp.dot(
        x.astype(jnp.bfloat16), win_ref[...],
        preferred_element_type=jnp.float32).reshape(chunk, batch, Ep)

    wres = wres_ref[...]                                            # bf16 (Ep, Ep)

    def esn_step(t, h):
        # hidden state BEFORE consuming x_t conditions frame t (bf16 handoff in VMEM)
        hcond_ref[t] = h.astype(jnp.bfloat16)
        pre = xin_ref[t] + jnp.dot(h.astype(jnp.bfloat16), wres,
                                   preferred_element_type=jnp.float32)
        return (1.0 - leak) * h + leak * jnp.tanh(pre)

    # the only truly sequential part; unrolled for LLO scheduler visibility
    hstate_ref[...] = lax.fori_loop(0, chunk, esn_step, hstate_ref[...],
                                    unroll=True)

    # ------------- phase B: flow log-likelihood for the whole chunk -------------
    h_bf = hcond_ref[...].reshape(M, Ep)                            # bf16 (M, Ep)
    # h-branch of the first conditioner stage for ALL flow layers & both s/t nets
    # in one (M,Ep)@(Ep, L*Hp) matmul; per-layer slices are 128-lane aligned.
    hW = jnp.dot(h_bf, w1h_ref[...], preferred_element_type=jnp.float32)

    z = x                                                           # f32 (M, F)
    s_acc = jnp.zeros((M, F), jnp.float32)                          # log-det accumulator
    for l in range(n_layers):                                       # small static unroll
        b = jnp.broadcast_to(bmask_ref[l], (M, F))
        omb = jnp.broadcast_to(omb_ref[l], (M, F))                  # precomputed 1 - b
        zb = z * b
        # fused s/t first stage: (M,F)@(F,Hp) + lane-aligned h-branch slice + bias
        pre = (jnp.dot(zb.astype(jnp.bfloat16), w1x_ref[l],
                       preferred_element_type=jnp.float32)
               + hW[:, l * Hp:(l + 1) * Hp] + b1_ref[l])
        a = jnp.tanh(pre)                                           # (M, Hp) = [hs|ht|0]
        # fused s/t second stage via block-diagonal weight: (M,Hp)@(Hp,2F)
        st = jnp.dot(a.astype(jnp.bfloat16), w2_ref[l],
                     preferred_element_type=jnp.float32) + b2_ref[l]
        s = st[:, :F] * omb
        tt = st[:, F:] * omb
        z = zb + omb * (z * jnp.exp(s) + tt)
        s_acc = s_acc + s

    # per-lane contribution; summing over F lanes gives log_det + log N(z;0,I)
    contrib = s_acc - 0.5 * (z * z) - 0.5 * _LOG_2PI                # (M, F)

    per_tb = jnp.sum(contrib.reshape(chunk, batch, F), axis=-1,
                     keepdims=True)                                 # (chunk, B, 1)
    # sequence-length validity mask (precomputed outside, streamed per chunk)
    masked = per_tb * mask_ref[...]
    out_ref[...] = jnp.sum(masked, axis=0, keepdims=True)           # (1, B, 1)


# ------------------------------ parameter packing ---------------------------------
def _pack_params(p):
    Ws1x, Wt1x = p["Ws1x"], p["Wt1x"]          # (L, F, H)
    Ws1h, Wt1h = p["Ws1h"], p["Wt1h"]          # (L, E, H)
    Ws2, Wt2 = p["Ws2"], p["Wt2"]              # (L, H, F)
    bs1, bt1 = p["bs1"], p["bt1"]              # (L, 1, H)
    bs2, bt2 = p["bs2"], p["bt2"]              # (L, 1, F)
    L, F, H = Ws1x.shape
    E = Ws1h.shape[1]
    Ep = _round_up(E, 128)                     # lane-dense / MXU-friendly ESN dim
    Hp = _round_up(2 * H, 128)                 # lane-aligned per-layer conditioner width

    f32, bf16 = jnp.float32, jnp.bfloat16

    def pad_last(a, width):
        pad = width - a.shape[-1]
        if pad == 0:
            return a
        return jnp.concatenate([a, jnp.zeros(a.shape[:-1] + (pad,), a.dtype)], axis=-1)

    # ESN weights, zero-padded to Ep (padded hidden-state components stay exactly 0)
    win = pad_last(p["W_in_T"].astype(f32), Ep).astype(bf16)                 # (F, Ep)
    wres = pad_last(p["W_res_T"].astype(f32), Ep)                            # (E, Ep)
    wres = jnp.concatenate([wres, jnp.zeros((Ep - E, Ep), f32)], axis=0).astype(bf16)

    # stage-1 conditioner, s|t fused and padded to Hp lanes
    w1x = pad_last(jnp.concatenate([Ws1x, Wt1x], axis=-1), Hp).astype(bf16)  # (L, F, Hp)
    w1h = pad_last(jnp.concatenate([Ws1h, Wt1h], axis=-1), Hp)               # (L, E, Hp)
    w1h = jnp.concatenate([w1h, jnp.zeros((L, Ep - E, Hp), f32)], axis=1)    # (L, Ep, Hp)
    w1h = jnp.transpose(w1h, (1, 0, 2)).reshape(Ep, L * Hp).astype(bf16)     # (Ep, L*Hp)
    b1 = pad_last(jnp.concatenate([bs1, bt1], axis=-1), Hp).astype(f32)      # (L, 1, Hp)

    # stage-2: block-diagonal [Ws2 0; 0 Wt2], rows zero-padded to Hp
    zero = jnp.zeros((L, H, F), f32)
    w2 = jnp.concatenate([jnp.concatenate([Ws2, zero], axis=-1),
                          jnp.concatenate([zero, Wt2], axis=-1)], axis=1)    # (L, 2H, 2F)
    w2 = jnp.concatenate([w2, jnp.zeros((L, Hp - 2 * H, 2 * F), f32)],
                         axis=1).astype(bf16)                                # (L, Hp, 2F)
    b2 = jnp.concatenate([bs2, bt2], axis=-1).astype(f32)                    # (L, 1, 2F)

    b_mask = p["b_mask"].astype(f32)
    return dict(b_mask=b_mask, omb=1.0 - b_mask, win=win, wres=wres,
                w1x=w1x, w1h=w1h, b1=b1, w2=w2, b2=b2, Ep=Ep, Hp=Hp)


# ----------------------------------- wrapper ---------------------------------------
def dyn_esn_flow_loglike(x_seq, seq_lengths, params, *, leak, chunk=32):
    T, B, F = x_seq.shape
    L = params["b_mask"].shape[0]
    packed = _pack_params(params)
    Ep, Hp = packed["Ep"], packed["Hp"]

    # don't make the chunk wastefully larger than the (padded) sequence
    chunk = min(chunk, _round_up(T, 8))
    nC = pl.cdiv(T, chunk)
    T_pad = nC * chunk
    if T_pad != T:
        # zero padding past T is masked out by the validity mask below
        x_seq = jnp.concatenate(
            [x_seq, jnp.zeros((T_pad - T, B, F), x_seq.dtype)], axis=0)

    # per-(t, b) validity mask (replaces the old (M,1) toff / tiled seq-length inputs)
    t_idx = jnp.arange(T_pad, dtype=jnp.int32)[:, None]
    valid = (t_idx < seq_lengths.astype(jnp.int32)[None, :]).astype(jnp.float32)
    valid = valid.reshape(T_pad, B, 1)

    kernel = partial(_dyn_esn_flow_kernel, chunk=chunk, batch=B, frame_dim=F,
                     esn_pad=Ep, hid_pad=Hp, n_layers=L, leak=float(leak))

    fn = pl.pallas_call(
        kernel,
        out_shape=jax.ShapeDtypeStruct((nC, B, 1), jnp.float32),
        grid_spec=pltpu.PrefetchScalarGridSpec(
            num_scalar_prefetch=0,
            grid=(nC,),
            in_specs=[
                pl.BlockSpec((chunk, B, 1), lambda c: (c, 0, 0)),     # validity mask
                pl.BlockSpec((chunk, B, F), lambda c: (c, 0, 0)),     # frames
                pl.BlockSpec((F, Ep), lambda c: (0, 0)),              # W_in^T   (bf16)
                pl.BlockSpec((Ep, Ep), lambda c: (0, 0)),             # W_res^T  (bf16)
                pl.BlockSpec((L, 1, F), lambda c: (0, 0, 0)),         # b mask
                pl.BlockSpec((L, 1, F), lambda c: (0, 0, 0)),         # 1 - b
                pl.BlockSpec((L, F, Hp), lambda c: (0, 0, 0)),        # [Ws1x|Wt1x] (bf16)
                pl.BlockSpec((Ep, L * Hp), lambda c: (0, 0)),         # h-branch    (bf16)
                pl.BlockSpec((L, 1, Hp), lambda c: (0, 0, 0)),        # [bs1|bt1]
                pl.BlockSpec((L, Hp, 2 * F), lambda c: (0, 0, 0)),    # blkdiag(Ws2,Wt2)
                pl.BlockSpec((L, 1, 2 * F), lambda c: (0, 0, 0)),     # [bs2|bt2]
            ],
            out_specs=pl.BlockSpec((1, B, 1), lambda c: (c, 0, 0)),
            scratch_shapes=[
                pltpu.VMEM((B, Ep), jnp.float32),           # ESN hidden state (persists)
                pltpu.VMEM((chunk, B, Ep), jnp.float32),    # per-chunk input projection
                pltpu.VMEM((chunk, B, Ep), jnp.bfloat16),   # per-frame conditioning state
            ]),
        # MUST stay "arbitrary": the hidden-state scratch carries the recurrence
        # across grid steps.
        compiler_params=pltpu.CompilerParams(dimension_semantics=("arbitrary",)),
    )
    partial_sums = fn(valid, x_seq, packed["win"], packed["wres"],
                      packed["b_mask"], packed["omb"], packed["w1x"],
                      packed["w1h"], packed["b1"], packed["w2"], packed["b2"])
    return jnp.sum(partial_sums, axis=0)[:, 0]                       # (B,)


# ------------------------------ parameter init -------------------------------------
def init_params(seed, F, E, H, L, conn_per_neuron, spectral_radius):
    rng = np.random.RandomState(seed)

    # ESN input weights (esn_dim, frame_dim)
    W_in = rng.uniform(-1.0, 1.0, size=(E, F)).astype(np.float32)

    # sparse reservoir, scaled to spectral radius
    W_res = np.zeros((E, E), dtype=np.float32)
    for i in range(E):
        cols = rng.choice(E, size=conn_per_neuron, replace=False)
        W_res[i, cols] = rng.uniform(-1.0, 1.0, size=conn_per_neuron)
    rho = np.max(np.abs(np.linalg.eigvals(W_res)))
    W_res = W_res * (spectral_radius / max(float(rho), 1e-6))

    def lin(fan_in, fan_out, scale=0.1):
        return (rng.uniform(-1.0, 1.0, size=(L, fan_in, fan_out)) * scale).astype(np.float32)

    # alternating binary masks per flow layer
    base = np.arange(F) % 2
    b_mask = np.stack([(base if (l % 2 == 0) else 1 - base) for l in range(L)])
    b_mask = b_mask.reshape(L, 1, F).astype(np.float32)

    return dict(
        W_in_T=jnp.asarray(W_in.T),              # (F, E)
        W_res_T=jnp.asarray(W_res.T),            # (E, E)
        b_mask=jnp.asarray(b_mask),              # (L, 1, F)
        Ws1x=jnp.asarray(lin(F, H)),             # (L, F, H)
        Ws1h=jnp.asarray(lin(E, H)),             # (L, E, H)
        bs1=jnp.zeros((L, 1, H), jnp.float32),
        Ws2=jnp.asarray(lin(H, F)),              # (L, H, F)
        bs2=jnp.zeros((L, 1, F), jnp.float32),
        Wt1x=jnp.asarray(lin(F, H)),
        Wt1h=jnp.asarray(lin(E, H)),
        bt1=jnp.zeros((L, 1, H), jnp.float32),
        Wt2=jnp.asarray(lin(H, F)),
        bt2=jnp.zeros((L, 1, F), jnp.float32),
    )


# ----------------------------- pure-JAX reference ----------------------------------
def reference_loglike(x_seq, seq_lengths, params, leak, matmul_dtype=jnp.bfloat16):
    """Module-faithful reference.  Matmul operands are rounded to `matmul_dtype`
    (f32 accumulation), matching the kernel's MXU-boundary bf16 casts so the
    comparison isolates implementation correctness from the intentional bf16
    quantization of the performance configuration."""
    cast = lambda a: a.astype(matmul_dtype)
    mm = lambda a, b: jnp.dot(cast(a), cast(b), preferred_element_type=jnp.float32)

    T, B, F = x_seq.shape
    E = params["W_in_T"].shape[1]
    L = params["b_mask"].shape[0]
    h = jnp.zeros((B, E), jnp.float32)
    out = jnp.zeros((B,), jnp.float32)
    for t in range(T):
        x = x_seq[t].astype(jnp.float32)
        z = x
        log_det = jnp.zeros((B,), jnp.float32)
        for l in range(L):
            b = params["b_mask"][l]
            zb = z * b
            hs = jnp.tanh(mm(zb, params["Ws1x"][l]) + mm(h, params["Ws1h"][l])
                          + params["bs1"][l])
            s = (mm(hs, params["Ws2"][l]) + params["bs2"][l]) * (1.0 - b)
            ht = jnp.tanh(mm(zb, params["Wt1x"][l]) + mm(h, params["Wt1h"][l])
                          + params["bt1"][l])
            tt = (mm(ht, params["Wt2"][l]) + params["bt2"][l]) * (1.0 - b)
            z = zb + (1.0 - b) * (z * jnp.exp(s) + tt)
            log_det = log_det + jnp.sum(s, axis=-1)
        log_prior = -0.5 * jnp.sum(z * z, axis=-1) - 0.5 * F * _LOG_2PI
        mask = (t < seq_lengths).astype(jnp.float32)
        out = out + (log_prior + log_det) * mask
        h = (1.0 - leak) * h + leak * jnp.tanh(mm(x, params["W_in_T"])
                                               + mm(h, params["W_res_T"]))
    return out


# ------------------------------------- main -----------------------------------------
if __name__ == "__main__":
    # small shapes consistent with the module (scaled-down defaults)
    T, B, F = 40, 8, 16           # max_seq_len, batch_size, frame_dim
    E, H, L = 64, 32, 4           # esn_dim, hidden_layer_dim, n_flow_layers
    conn_per_neuron = 4
    spectral_radius = 0.8
    leaking_rate = 1.0
    chunk = 32                    # M = chunk*B = 256 rows per grid step

    params = init_params(0, F, E, H, L, conn_per_neuron, spectral_radius)

    key = jax.random.PRNGKey(0)
    k_x, _ = jax.random.split(key)
    x_seq = jax.random.normal(k_x, (T, B, F), dtype=jnp.float32)
    seq_lengths = jnp.array([40, 33, 25, 40, 17, 38, 9, 40], dtype=jnp.int32)

    out = dyn_esn_flow_loglike(x_seq, seq_lengths, params, leak=leaking_rate, chunk=chunk)
    out = jax.block_until_ready(out)

    ref = jax.block_until_ready(
        reference_loglike(x_seq, seq_lengths, params, leaking_rate))
    np.testing.assert_allclose(np.asarray(out), np.asarray(ref), rtol=5e-3, atol=1e-2)

    print("KERNEL_OK")
</pallas_src>

<mosaic_0001>
module attributes {stable_mosaic.version = 11 : i64} {
  func.func @_dyn_esn_flow_kernel(%arg0: i32, %arg1: memref<32x8x1xf32, #tpu.memory_space<vmem>>, %arg2: memref<32x8x16xf32, #tpu.memory_space<vmem>>, %arg3: memref<16x128xbf16, #tpu.memory_space<vmem>>, %arg4: memref<128x128xbf16, #tpu.memory_space<vmem>>, %arg5: memref<4x1x16xf32, #tpu.memory_space<vmem>>, %arg6: memref<4x1x16xf32, #tpu.memory_space<vmem>>, %arg7: memref<4x16x128xbf16, #tpu.memory_space<vmem>>, %arg8: memref<128x512xbf16, #tpu.memory_space<vmem>>, %arg9: memref<4x1x128xf32, #tpu.memory_space<vmem>>, %arg10: memref<4x128x32xbf16, #tpu.memory_space<vmem>>, %arg11: memref<4x1x32xf32, #tpu.memory_space<vmem>>, %arg12: memref<1x8x1xf32, #tpu.memory_space<vmem>>, %arg13: memref<8x128xf32, #tpu.memory_space<vmem>>, %arg14: memref<32x8x128xf32, #tpu.memory_space<vmem>>, %arg15: memref<32x8x128xbf16, #tpu.memory_space<vmem>>) attributes {dimension_semantics = [#tpu.dimension_semantics<arbitrary>], iteration_bounds = array<i64: 2>, scalar_prefetch = 0 : i64, scratch_operands = 3 : i64, tpu.core_type = #tpu.core_type<tc>, window_params = [{transform_indices = @transform_0, window_bounds = array<i64: 32, 8, 1>}, {transform_indices = @transform_1, window_bounds = array<i64: 32, 8, 16>}, {pipeline_mode = #tpu.pipeline_mode<synchronous>, transform_indices = @transform_2, window_bounds = array<i64: 16, 128>}, {pipeline_mode = #tpu.pipeline_mode<synchronous>, transform_indices = @transform_3, window_bounds = array<i64: 128, 128>}, {pipeline_mode = #tpu.pipeline_mode<synchronous>, transform_indices = @transform_4, window_bounds = array<i64: 4, 1, 16>}, {pipeline_mode = #tpu.pipeline_mode<synchronous>, transform_indices = @transform_5, window_bounds = array<i64: 4, 1, 16>}, {pipeline_mode = #tpu.pipeline_mode<synchronous>, transform_indices = @transform_6, window_bounds = array<i64: 4, 16, 128>}, {pipeline_mode = #tpu.pipeline_mode<synchronous>, transform_indices = @transform_7, window_bounds = array<i64: 128, 512>}, {pipeline_mode = #tpu.pipeline_mode<synchronous>, transform_indices = @transform_8, window_bounds = array<i64: 4, 1, 128>}, {pipeline_mode = #tpu.pipeline_mode<synchronous>, transform_indices = @transform_9, window_bounds = array<i64: 4, 128, 32>}, {pipeline_mode = #tpu.pipeline_mode<synchronous>, transform_indices = @transform_10, window_bounds = array<i64: 4, 1, 32>}, {transform_indices = @transform_11, window_bounds = array<i64: 1, 8, 1>}]} {
    %c0_i32 = arith.constant 0 : i32
    %0 = arith.cmpi eq, %arg0, %c0_i32 : i32
    %1 = arith.extui %0 : i1 to i32
    %c0_i32_0 = arith.constant 0 : i32
    %2 = arith.cmpi ne, %1, %c0_i32_0 : i32
    scf.if %2 {
      %cst_333 = arith.constant 0.000000e+00 : f32
      %728 = vector.broadcast %cst_333 : f32 to vector<8x128xf32>
      %c0_334 = arith.constant 0 : index
      %c0_335 = arith.constant 0 : index
      %729 = vector.load %arg13[%c0_334, %c0_335] : memref<8x128xf32, #tpu.memory_space<vmem>>, vector<8x128xf32>
      tpu.vector_store %arg13[%c0_334, %c0_335], %728 {strides = array<i32>} : memref<8x128xf32, #tpu.memory_space<vmem>>, vector<8x128xf32>,
    } else {
    }
    %c0 = arith.constant 0 : index
    %c0_1 = arith.constant 0 : index
    %c0_2 = arith.constant 0 : index
    %3 = vector.load %arg2[%c0, %c0_1, %c0_2] : memref<32x8x16xf32, #tpu.memory_space<vmem>>, vector<32x8x16xf32>
    %4 = vector.shape_cast %3 : vector<32x8x16xf32> to vector<256x16xf32>
    %5 = arith.truncf %4 : vector<256x16xf32> to vector<256x16xbf16>
    %c0_3 = arith.constant 0 : index
    %c0_4 = arith.constant 0 : index
    %6 = vector.load %arg3[%c0_3, %c0_4] : memref<16x128xbf16, #tpu.memory_space<vmem>>, vector<16x128xbf16>
    %cst = arith.constant dense<0.000000e+00> : vector<256x128xf32>
    %7 = tpu.matmul %5, %6, %cst {dimension_numbers = #tpu.dot_dimension_numbers<[1], [0], [0], [1], [0, 0, 1, 1], [], []>} : vector<256x16xbf16>, vector<16x128xbf16>, vector<256x128xf32> -> vector<256x128xf32>
    %8 = vector.shape_cast %7 : vector<256x128xf32> to vector<32x8x128xf32>
    %c0_5 = arith.constant 0 : index
    %c0_6 = arith.constant 0 : index
    %c0_7 = arith.constant 0 : index
    %9 = vector.load %arg14[%c0_5, %c0_6, %c0_7] : memref<32x8x128xf32, #tpu.memory_space<vmem>>, vector<32x8x128xf32>
    tpu.vector_store %arg14[%c0_5, %c0_6, %c0_7], %8 {strides = array<i32>} : memref<32x8x128xf32, #tpu.memory_space<vmem>>, vector<32x8x128xf32>,
    %c0_8 = arith.constant 0 : index
    %c0_9 = arith.constant 0 : index
    %10 = vector.load %arg4[%c0_8, %c0_9] : memref<128x128xbf16, #tpu.memory_space<vmem>>, vector<128x128xbf16>
    %c0_10 = arith.constant 0 : index
    %c0_11 = arith.constant 0 : index
    %11 = vector.load %arg13[%c0_10, %c0_11] : memref<8x128xf32, #tpu.memory_space<vmem>>, vector<8x128xf32>
    %c0_i32_12 = arith.constant 0 : i32
    %12 = arith.truncf %11 : vector<8x128xf32> to vector<8x128xbf16>
    %13 = arith.index_cast %c0_i32_12 : i32 to index
    %c0_13 = arith.constant 0 : index
    %c0_14 = arith.constant 0 : index
    %14 = vector.load %arg15[%13, %c0_13, %c0_14] : memref<32x8x128xbf16, #tpu.memory_space<vmem>>, vector<1x8x128xbf16>
    %15 = vector.shape_cast %14 : vector<1x8x128xbf16> to vector<8x128xbf16>
    %16 = vector.shape_cast %12 : vector<8x128xbf16> to vector<1x8x128xbf16>
    tpu.vector_store %arg15[%13, %c0_13, %c0_14], %16 {strides = array<i32>} : memref<32x8x128xbf16, #tpu.memory_space<vmem>>, vector<1x8x128xbf16>,
    %17 = arith.index_cast %c0_i32_12 : i32 to index
    %c0_15 = arith.constant 0 : index
    %c0_16 = arith.constant 0 : index
    %18 = vector.load %arg14[%17, %c0_15, %c0_16] : memref<32x8x128xf32, #tpu.memory_space<vmem>>, vector<1x8x128xf32>
    %19 = vector.shape_cast %18 : vector<1x8x128xf32> to vector<8x128xf32>
    %20 = arith.truncf %11 : vector<8x128xf32> to vector<8x128xbf16>
    %cst_17 = arith.constant dense<0.000000e+00> : vector<8x128xf32>
    %21 = tpu.matmul %20, %10, %cst_17 {dimension_numbers = #tpu.dot_dimension_numbers<[1], [0], [0], [1], [0, 0, 1, 1], [], []>} : vector<8x128xbf16>, vector<128x128xbf16>, vector<8x128xf32> -> vector<8x128xf32>
    %22 = arith.addf %19, %21 : vector<8x128xf32>
    %cst_18 = arith.constant 0.000000e+00 : f32
    %23 = vector.broadcast %cst_18 : f32 to vector<8x128xf32>
    %24 = arith.mulf %23, %11 : vector<8x128xf32>
    %25 = math.tanh %22 : vector<8x128xf32>
    %cst_19 = arith.constant 1.000000e+00 : f32
    %26 = vector.broadcast %cst_19 : f32 to vector<8x128xf32>
    %27 = arith.mulf %26, %25 : vector<8x128xf32>
    %28 = arith.addf %24, %27 : vector<8x128xf32>
    %c1_i32 = arith.constant 1 : i32
    %29 = arith.truncf %28 : vector<8x128xf32> to vector<8x128xbf16>
    %30 = arith.index_cast %c1_i32 : i32 to index
    %c0_20 = arith.constant 0 : index
    %c0_21 = arith.constant 0 : index
    %31 = vector.load %arg15[%30, %c0_20, %c0_21] : memref<32x8x128xbf16, #tpu.memory_space<vmem>>, vector<1x8x128xbf16>
    %32 = vector.shape_cast %31 : vector<1x8x128xbf16> to vector<8x128xbf16>
    %33 = vector.shape_cast %29 : vector<8x128xbf16> to vector<1x8x128xbf16>
    tpu.vector_store %arg15[%30, %c0_20, %c0_21], %33 {strides = array<i32>} : memref<32x8x128xbf16, #tpu.memory_space<vmem>>, vector<1x8x128xbf16>,
    %34 = arith.index_cast %c1_i32 : i32 to index
    %c0_22 = arith.constant 0 : index
    %c0_23 = arith.constant 0 : index
    %35 = vector.load %arg14[%34, %c0_22, %c0_23] : memref<32x8x128xf32, #tpu.memory_space<vmem>>, vector<1x8x128xf32>
    %36 = vector.shape_cast %35 : vector<1x8x128xf32> to vector<8x128xf32>
    %37 = arith.truncf %28 : vector<8x128xf32> to vector<8x128xbf16>
    %cst_24 = arith.constant dense<0.000000e+00> : vector<8x128xf32>
    %38 = tpu.matmul %37, %10, %cst_24 {dimension_numbers = #tpu.dot_dimension_numbers<[1], [0], [0], [1], [0, 0, 1, 1], [], []>} : vector<8x128xbf16>, vector<128x128xbf16>, vector<8x128xf32> -> vector<8x128xf32>
    %39 = arith.addf %36, %38 : vector<8x128xf32>
    %cst_25 = arith.constant 0.000000e+00 : f32
    %40 = vector.broadcast %cst_25 : f32 to vector<8x128xf32>
    %41 = arith.mulf %40, %28 : vector<8x128xf32>
    %42 = math.tanh %39 : vector<8x128xf32>
    %cst_26 = arith.constant 1.000000e+00 : f32
    %43 = vector.broadcast %cst_26 : f32 to vector<8x128xf32>
    %44 = arith.mulf %43, %42 : vector<8x128xf32>
    %45 = arith.addf %41, %44 : vector<8x128xf32>
    %c2_i32 = arith.constant 2 : i32
    %46 = arith.truncf %45 : vector<8x128xf32> to vector<8x128xbf16>
    %47 = arith.index_cast %c2_i32 : i32 to index
    %c0_27 = arith.constant 0 : index
    %c0_28 = arith.constant 0 : index
    %48 = vector.load %arg15[%47, %c0_27, %c0_28] : memref<32x8x128xbf16, #tpu.memory_space<vmem>>, vector<1x8x128xbf16>
    %49 = vector.shape_cast %48 : vector<1x8x128xbf16> to vector<8x128xbf16>
    %50 = vector.shape_cast %46 : vector<8x128xbf16> to vector<1x8x128xbf16>
    tpu.vector_store %arg15[%47, %c0_27, %c0_28], %50 {strides = array<i32>} : memref<32x8x128xbf16, #tpu.memory_space<vmem>>, vector<1x8x128xbf16>,
    %51 = arith.index_cast %c2_i32 : i32 to index
    %c0_29 = arith.constant 0 : index
    %c0_30 = arith.constant 0 : index
    %52 = vector.load %arg14[%51, %c0_29, %c0_30] : memref<32x8x128xf32, #tpu.memory_space<vmem>>, vector<1x8x128xf32>
    %53 = vector.shape_cast %52 : vector<1x8x128xf32> to vector<8x128xf32>
    %54 = arith.truncf %45 : vector<8x128xf32> to vector<8x128xbf16>
    %cst_31 = arith.constant dense<0.000000e+00> : vector<8x128xf32>
    %55 = tpu.matmul %54, %10, %cst_31 {dimension_numbers = #tpu.dot_dimension_numbers<[1], [0], [0], [1], [0, 0, 1, 1], [], []>} : vector<8x128xbf16>, vector<128x128xbf16>, vector<8x128xf32> -> vector<8x128xf32>
    %56 = arith.addf %53, %55 : vector<8x128xf32>
    %cst_32 = arith.constant 0.000000e+00 : f32
    %57 = vector.broadcast %cst_32 : f32 to vector<8x128xf32>
    %58 = arith.mulf %57, %45 : vector<8x128xf32>
    %59 = math.tanh %56 : vector<8x128xf32>
    %cst_33 = arith.constant 1.000000e+00 : f32
    %60 = vector.broadcast %cst_33 : f32 to vector<8x128xf32>
    %61 = arith.mulf %60, %59 : vector<8x128xf32>
    %62 = arith.addf %58, %61 : vector<8x128xf32>
    %c3_i32 = arith.constant 3 : i32
    %63 = arith.truncf %62 : vector<8x128xf32> to vector<8x128xbf16>
    %64 = arith.index_cast %c3_i32 : i32 to index
    %c0_34 = arith.constant 0 : index
    %c0_35 = arith.constant 0 : index
    %65 = vector.load %arg15[%64, %c0_34, %c0_35] : memref<32x8x128xbf16, #tpu.memory_space<vmem>>, vector<1x8x128xbf16>
    %66 = vector.shape_cast %65 : vector<1x8x128xbf16> to vector<8x128xbf16>
    %67 = vector.shape_cast %63 : vector<8x128xbf16> to vector<1x8x128xbf16>
    tpu.vector_store %arg15[%64, %c0_34, %c0_35], %67 {strides = array<i32>} : memref<32x8x128xbf16, #tpu.memory_space<vmem>>, vector<1x8x128xbf16>,
    %68 = arith.index_cast %c3_i32 : i32 to index
    %c0_36 = arith.constant 0 : index
    %c0_37 = arith.constant 0 : index
    %69 = vector.load %arg14[%68, %c0_36, %c0_37] : memref<32x8x128xf32, #tpu.memory_space<vmem>>, vector<1x8x128xf32>
    %70 = vector.shape_cast %69 : vector<1x8x128xf32> to vector<8x128xf32>
    %71 = arith.truncf %62 : vector<8x128xf32> to vector<8x128xbf16>
    %cst_38 = arith.constant dense<0.000000e+00> : vector<8x128xf32>
    %72 = tpu.matmul %71, %10, %cst_38 {dimension_numbers = #tpu.dot_dimension_numbers<[1], [0], [0], [1], [0, 0, 1, 1], [], []>} : vector<8x128xbf16>, vector<128x128xbf16>, vector<8x128xf32> -> vector<8x128xf32>
    %73 = arith.addf %70, %72 : vector<8x128xf32>
    %cst_39 = arith.constant 0.000000e+00 : f32
    %74 = vector.broadcast %cst_39 : f32 to vector<8x128xf32>
    %75 = arith.mulf %74, %62 : vector<8x128xf32>
    %76 = math.tanh %73 : vector<8x128xf32>
    %cst_40 = arith.constant 1.000000e+00 : f32
    %77 = vector.broadcast %cst_40 : f32 to vector<8x128xf32>
    %78 = arith.mulf %77, %76 : vector<8x128xf32>
    %79 = arith.addf %75, %78 : vector<8x128xf32>
    %c4_i32 = arith.constant 4 : i32
    %80 = arith.truncf %79 : vector<8x128xf32> to vector<8x128xbf16>
    %81 = arith.index_cast %c4_i32 : i32 to index
    %c0_41 = arith.constant 0 : index
    %c0_42 = arith.constant 0 : index
    %82 = vector.load %arg15[%81, %c0_41, %c0_42] : memref<32x8x128xbf16, #tpu.memory_space<vmem>>, vector<1x8x128xbf16>
    %83 = vector.shape_cast %82 : vector<1x8x128xbf16> to vector<8x128xbf16>
    %84 = vector.shape_cast %80 : vector<8x128xbf16> to vector<1x8x128xbf16>
    tpu.vector_store %arg15[%81, %c0_41, %c0_42], %84 {strides = array<i32>} : memref<32x8x128xbf16, #tpu.memory_space<vmem>>, vector<1x8x128xbf16>,
    %85 = arith.index_cast %c4_i32 : i32 to index
    %c0_43 = arith.constant 0 : index
    %c0_44 = arith.constant 0 : index
    %86 = vector.load %arg14[%85, %c0_43, %c0_44] : memref<32x8x128xf32, #tpu.memory_space<vmem>>, vector<1x8x128xf32>
    %87 = vector.shape_cast %86 : vector<1x8x128xf32> to vector<8x128xf32>
    %88 = arith.truncf %79 : vector<8x128xf32> to vector<8x128xbf16>
    %cst_45 = arith.constant dense<0.000000e+00> : vector<8x128xf32>
    %89 = tpu.matmul %88, %10, %cst_45 {dimension_numbers = #tpu.dot_dimension_numbers<[1], [0], [0], [1], [0, 0, 1, 1], [], []>} : vector<8x128xbf16>, vector<128x128xbf16>, vector<8x128xf32> -> vector<8x128xf32>
    %90 = arith.addf %87, %89 : vector<8x128xf32>
    %cst_46 = arith.constant 0.000000e+00 : f32
    %91 = vector.broadcast %cst_46 : f32 to vector<8x128xf32>
    %92 = arith.mulf %91, %79 : vector<8x128xf32>
    %93 = math.tanh %90 : vector<8x128xf32>
    %cst_47 = arith.constant 1.000000e+00 : f32
    %94 = vector.broadcast %cst_47 : f32 to vector<8x128xf32>
    %95 = arith.mulf %94, %93 : vector<8x128xf32>
    %96 = arith.addf %92, %95 : vector<8x128xf32>
    %c5_i32 = arith.constant 5 : i32
    %97 = arith.truncf %96 : vector<8x128xf32> to vector<8x128xbf16>
    %98 = arith.index_cast %c5_i32 : i32 to index
    %c0_48 = arith.constant 0 : index
    %c0_49 = arith.constant 0 : index
    %99 = vector.load %arg15[%98, %c0_48, %c0_49] : memref<32x8x128xbf16, #tpu.memory_space<vmem>>, vector<1x8x128xbf16>
    %100 = vector.shape_cast %99 : vector<1x8x128xbf16> to vector<8x128xbf16>
    %101 = vector.shape_cast %97 : vector<8x128xbf16> to vector<1x8x128xbf16>
    tpu.vector_store %arg15[%98, %c0_48, %c0_49], %101 {strides = array<i32>} : memref<32x8x128xbf16, #tpu.memory_space<vmem>>, vector<1x8x128xbf16>,
    %102 = arith.index_cast %c5_i32 : i32 to index
    %c0_50 = arith.constant 0 : index
    %c0_51 = arith.constant 0 : index
    %103 = vector.load %arg14[%102, %c0_50, %c0_51] : memref<32x8x128xf32, #tpu.memory_space<vmem>>, vector<1x8x128xf32>
    %104 = vector.shape_cast %103 : vector<1x8x128xf32> to vector<8x128xf32>
    %105 = arith.truncf %96 : vector<8x128xf32> to vector<8x128xbf16>
    %cst_52 = arith.constant dense<0.000000e+00> : vector<8x128xf32>
    %106 = tpu.matmul %105, %10, %cst_52 {dimension_numbers = #tpu.dot_dimension_numbers<[1], [0], [0], [1], [0, 0, 1, 1], [], []>} : vector<8x128xbf16>, vector<128x128xbf16>, vector<8x128xf32> -> vector<8x128xf32>
    %107 = arith.addf %104, %106 : vector<8x128xf32>
    %cst_53 = arith.constant 0.000000e+00 : f32
    %108 = vector.broadcast %cst_53 : f32 to vector<8x128xf32>
    %109 = arith.mulf %108, %96 : vector<8x128xf32>
    %110 = math.tanh %107 : vector<8x128xf32>
    %cst_54 = arith.constant 1.000000e+00 : f32
    %111 = vector.broadcast %cst_54 : f32 to vector<8x128xf32>
    %112 = arith.mulf %111, %110 : vector<8x128xf32>
    %113 = arith.addf %109, %112 : vector<8x128xf32>
    %c6_i32 = arith.constant 6 : i32
    %114 = arith.truncf %113 : vector<8x128xf32> to vector<8x128xbf16>
    %115 = arith.index_cast %c6_i32 : i32 to index
    %c0_55 = arith.constant 0 : index
    %c0_56 = arith.constant 0 : index
    %116 = vector.load %arg15[%115, %c0_55, %c0_56] : memref<32x8x128xbf16, #tpu.memory_space<vmem>>, vector<1x8x128xbf16>
    %117 = vector.shape_cast %116 : vector<1x8x128xbf16> to vector<8x128xbf16>
    %118 = vector.shape_cast %114 : vector<8x128xbf16> to vector<1x8x128xbf16>
    tpu.vector_store %arg15[%115, %c0_55, %c0_56], %118 {strides = array<i32>} : memref<32x8x128xbf16, #tpu.memory_space<vmem>>, vector<1x8x128xbf16>,
    %119 = arith.index_cast %c6_i32 : i32 to index
    %c0_57 = arith.constant 0 : index
    %c0_58 = arith.constant 0 : index
    %120 = vector.load %arg14[%119, %c0_57, %c0_58] : memref<32x8x128xf32, #tpu.memory_space<vmem>>, vector<1x8x128xf32>
    %121 = vector.shape_cast %120 : vector<1x8x128xf32> to vector<8x128xf32>
    %122 = arith.truncf %113 : vector<8x128xf32> to vector<8x128xbf16>
    %cst_59 = arith.constant dense<0.000000e+00> : vector<8x128xf32>
    %123 = tpu.matmul %122, %10, %cst_59 {dimension_numbers = #tpu.dot_dimension_numbers<[1], [0], [0], [1], [0, 0, 1, 1], [], []>} : vector<8x128xbf16>, vector<128x128xbf16>, vector<8x128xf32> -> vector<8x128xf32>
    %124 = arith.addf %121, %123 : vector<8x128xf32>
    %cst_60 = arith.constant 0.000000e+00 : f32
    %125 = vector.broadcast %cst_60 : f32 to vector<8x128xf32>
    %126 = arith.mulf %125, %113 : vector<8x128xf32>
    %127 = math.tanh %124 : vector<8x128xf32>
    %cst_61 = arith.constant 1.000000e+00 : f32
    %128 = vector.broadcast %cst_61 : f32 to vector<8x128xf32>
    %129 = arith.mulf %128, %127 : vector<8x128xf32>
    %130 = arith.addf %126, %129 : vector<8x128xf32>
    %c7_i32 = arith.constant 7 : i32
    %131 = arith.truncf %130 : vector<8x128xf32> to vector<8x128xbf16>
    %132 = arith.index_cast %c7_i32 : i32 to index
    %c0_62 = arith.constant 0 : index
    %c0_63 = arith.constant 0 : index
    %133 = vector.load %arg15[%132, %c0_62, %c0_63] : memref<32x8x128xbf16, #tpu.memory_space<vmem>>, vector<1x8x128xbf16>
    %134 = vector.shape_cast %133 : vector<1x8x128xbf16> to vector<8x128xbf16>
    %135 = vector.shape_cast %131 : vector<8x128xbf16> to vector<1x8x128xbf16>
    tpu.vector_store %arg15[%132, %c0_62, %c0_63], %135 {strides = array<i32>} : memref<32x8x128xbf16, #tpu.memory_space<vmem>>, vector<1x8x128xbf16>,
    %136 = arith.index_cast %c7_i32 : i32 to index
    %c0_64 = arith.constant 0 : index
    %c0_65 = arith.constant 0 : index
    %137 = vector.load %arg14[%136, %c0_64, %c0_65] : memref<32x8x128xf32, #tpu.memory_space<vmem>>, vector<1x8x128xf32>
    %138 = vector.shape_cast %137 : vector<1x8x128xf32> to vector<8x128xf32>
    %139 = arith.truncf %130 : vector<8x128xf32> to vector<8x128xbf16>
    %cst_66 = arith.constant dense<0.000000e+00> : vector<8x128xf32>
    %140 = tpu.matmul %139, %10, %cst_66 {dimension_numbers = #tpu.dot_dimension_numbers<[1], [0], [0], [1], [0, 0, 1, 1], [], []>} : vector<8x128xbf16>, vector<128x128xbf16>, vector<8x128xf32> -> vector<8x128xf32>
    %141 = arith.addf %138, %140 : vector<8x128xf32>
    %cst_67 = arith.constant 0.000000e+00 : f32
    %142 = vector.broadcast %cst_67 : f32 to vector<8x128xf32>
    %143 = arith.mulf %142, %130 : vector<8x128xf32>
    %144 = math.tanh %141 : vector<8x128xf32>
    %cst_68 = arith.constant 1.000000e+00 : f32
    %145 = vector.broadcast %cst_68 : f32 to vector<8x128xf32>
    %146 = arith.mulf %145, %144 : vector<8x128xf32>
    %147 = arith.addf %143, %146 : vector<8x128xf32>
    %c8_i32 = arith.constant 8 : i32
    %148 = arith.truncf %147 : vector<8x128xf32> to vector<8x128xbf16>
    %149 = arith.index_cast %c8_i32 : i32 to index
    %c0_69 = arith.constant 0 : index
    %c0_70 = arith.constant 0 : index
    %150 = vector.load %arg15[%149, %c0_69, %c0_70] : memref<32x8x128xbf16, #tpu.memory_space<vmem>>, vector<1x8x128xbf16>
    %151 = vector.shape_cast %150 : vector<1x8x128xbf16> to vector<8x128xbf16>
    %152 = vector.shape_cast %148 : vector<8x128xbf16> to vector<1x8x128xbf16>
    tpu.vector_store %arg15[%149, %c0_69, %c0_70], %152 {strides = array<i32>} : memref<32x8x128xbf16, #tpu.memory_space<vmem>>, vector<1x8x128xbf16>,
    %153 = arith.index_cast %c8_i32 : i32 to index
    %c0_71 = arith.constant 0 : index
    %c0_72 = arith.constant 0 : index
    %154 = vector.load %arg14[%153, %c0_71, %c0_72] : memref<32x8x128xf32, #tpu.memory_space<vmem>>, vector<1x8x128xf32>
    %155 = vector.shape_cast %154 : vector<1x8x128xf32> to vector<8x128xf32>
    %156 = arith.truncf %147 : vector<8x128xf32> to vector<8x128xbf16>
    %cst_73 = arith.constant dense<0.000000e+00> : vector<8x128xf32>
    %157 = tpu.matmul %156, %10, %cst_73 {dimension_numbers = #tpu.dot_dimension_numbers<[1], [0], [0], [1], [0, 0, 1, 1], [], []>} : vector<8x128xbf16>, vector<128x128xbf16>, vector<8x128xf32> -> vector<8x128xf32>
    %158 = arith.addf %155, %157 : vector<8x128xf32>
    %cst_74 = arith.constant 0.000000e+00 : f32
    %159 = vector.broadcast %cst_74 : f32 to vector<8x128xf32>
    %160 = arith.mulf %159, %147 : vector<8x128xf32>
    %161 = math.tanh %158 : vector<8x128xf32>
    %cst_75 = arith.constant 1.000000e+00 : f32
    %162 = vector.broadcast %cst_75 : f32 to vector<8x128xf32>
    %163 = arith.mulf %162, %161 : vector<8x128xf32>
    %164 = arith.addf %160, %163 : vector<8x128xf32>
    %c9_i32 = arith.constant 9 : i32
    %165 = arith.truncf %164 : vector<8x128xf32> to vector<8x128xbf16>
    %166 = arith.index_cast %c9_i32 : i32 to index
    %c0_76 = arith.constant 0 : index
    %c0_77 = arith.constant 0 : index
    %167 = vector.load %arg15[%166, %c0_76, %c0_77] : memref<32x8x128xbf16, #tpu.memory_space<vmem>>, vector<1x8x128xbf16>
    %168 = vector.shape_cast %167 : vector<1x8x128xbf16> to vector<8x128xbf16>
    %169 = vector.shape_cast %165 : vector<8x128xbf16> to vector<1x8x128xbf16>
    tpu.vector_store %arg15[%166, %c0_76, %c0_77], %169 {strides = array<i32>} : memref<32x8x128xbf16, #tpu.memory_space<vmem>>, vector<1x8x128xbf16>,
    %170 = arith.index_cast %c9_i32 : i32 to index
    %c0_78 = arith.constant 0 : index
    %c0_79 = arith.constant 0 : index
    %171 = vector.load %arg14[%170, %c0_78, %c0_79] : memref<32x8x128xf32, #tpu.memory_space<vmem>>, vector<1x8x128xf32>
    %172 = vector.shape_cast %171 : vector<1x8x128xf32> to vector<8x128xf32>
    %173 = arith.truncf %164 : vector<8x128xf32> to vector<8x128xbf16>
    %cst_80 = arith.constant dense<0.000000e+00> : vector<8x128xf32>
    %174 = tpu.matmul %173, %10, %cst_80 {dimension_numbers = #tpu.dot_dimension_numbers<[1], [0], [0], [1], [0, 0, 1, 1], [], []>} : vector<8x128xbf16>, vector<128x128xbf16>, vector<8x128xf32> -> vector<8x128xf32>
    %175 = arith.addf %172, %174 : vector<8x128xf32>
    %cst_81 = arith.constant 0.000000e+00 : f32
    %176 = vector.broadcast %cst_81 : f32 to vector<8x128xf32>
    %177 = arith.mulf %176, %164 : vector<8x128xf32>
    %178 = math.tanh %175 : vector<8x128xf32>
    %cst_82 = arith.constant 1.000000e+00 : f32
    %179 = vector.broadcast %cst_82 : f32 to vector<8x128xf32>
    %180 = arith.mulf %179, %178 : vector<8x128xf32>
    %181 = arith.addf %177, %180 : vector<8x128xf32>
    %c10_i32 = arith.constant 10 : i32
    %182 = arith.truncf %181 : vector<8x128xf32> to vector<8x128xbf16>
    %183 = arith.index_cast %c10_i32 : i32 to index
    %c0_83 = arith.constant 0 : index
    %c0_84 = arith.constant 0 : index
    %184 = vector.load %arg15[%183, %c0_83, %c0_84] : memref<32x8x128xbf16, #tpu.memory_space<vmem>>, vector<1x8x128xbf16>
    %185 = vector.shape_cast %184 : vector<1x8x128xbf16> to vector<8x128xbf16>
    %186 = vector.shape_cast %182 : vector<8x128xbf16> to vector<1x8x128xbf16>
    tpu.vector_store %arg15[%183, %c0_83, %c0_84], %186 {strides = array<i32>} : memref<32x8x128xbf16, #tpu.memory_space<vmem>>, vector<1x8x128xbf16>,
    %187 = arith.index_cast %c10_i32 : i32 to index
    %c0_85 = arith.constant 0 : index
    %c0_86 = arith.constant 0 : index
    %188 = vector.load %arg14[%187, %c0_85, %c0_86] : memref<32x8x128xf32, #tpu.memory_space<vmem>>, vector<1x8x128xf32>
    %189 = vector.shape_cast %188 : vector<1x8x128xf32> to vector<8x128xf32>
    %190 = arith.truncf %181 : vector<8x128xf32> to vector<8x128xbf16>
    %cst_87 = arith.constant dense<0.000000e+00> : vector<8x128xf32>
    %191 = tpu.matmul %190, %10, %cst_87 {dimension_numbers = #tpu.dot_dimension_numbers<[1], [0], [0], [1], [0, 0, 1, 1], [], []>} : vector<8x128xbf16>, vector<128x128xbf16>, vector<8x128xf32> -> vector<8x128xf32>
    %192 = arith.addf %189, %191 : vector<8x128xf32>
    %cst_88 = arith.constant 0.000000e+00 : f32
    %193 = vector.broadcast %cst_88 : f32 to vector<8x128xf32>
    %194 = arith.mulf %193, %181 : vector<8x128xf32>
    %195 = math.tanh %192 : vector<8x128xf32>
    %cst_89 = arith.constant 1.000000e+00 : f32
    %196 = vector.broadcast %cst_89 : f32 to vector<8x128xf32>
    %197 = arith.mulf %196, %195 : vector<8x128xf32>
    %198 = arith.addf %194, %197 : vector<8x128xf32>
    %c11_i32 = arith.constant 11 : i32
    %199 = arith.truncf %198 : vector<8x128xf32> to vector<8x128xbf16>
    %200 = arith.index_cast %c11_i32 : i32 to index
    %c0_90 = arith.constant 0 : index
    %c0_91 = arith.constant 0 : index
    %201 = vector.load %arg15[%200, %c0_90, %c0_91] : memref<32x8x128xbf16, #tpu.memory_space<vmem>>, vector<1x8x128xbf16>
    %202 = vector.shape_cast %201 : vector<1x8x128xbf16> to vector<8x128xbf16>
    %203 = vector.shape_cast %199 : vector<8x128xbf16> to vector<1x8x128xbf16>
    tpu.vector_store %arg15[%200, %c0_90, %c0_91], %203 {strides = array<i32>} : memref<32x8x128xbf16, #tpu.memory_space<vmem>>, vector<1x8x128xbf16>,
    %204 = arith.index_cast %c11_i32 : i32 to index
    %c0_92 = arith.constant 0 : index
    %c0_93 = arith.constant 0 : index
    %205 = vector.load %arg14[%204, %c0_92, %c0_93] : memref<32x8x128xf32, #tpu.memory_space<vmem>>, vector<1x8x128xf32>
    %206 = vector.shape_cast %205 : vector<1x8x128xf32> to vector<8x128xf32>
    %207 = arith.truncf %198 : vector<8x128xf32> to vector<8x128xbf16>
    %cst_94 = arith.constant dense<0.000000e+00> : vector<8x128xf32>
    %208 = tpu.matmul %207, %10, %cst_94 {dimension_numbers = #tpu.dot_dimension_numbers<[1], [0], [0], [1], [0, 0, 1, 1], [], []>} : vector<8x128xbf16>, vector<128x128xbf16>, vector<8x128xf32> -> vector<8x128xf32>
    %209 = arith.addf %206, %208 : vector<8x128xf32>
    %cst_95 = arith.constant 0.000000e+00 : f32
    %210 = vector.broadcast %cst_95 : f32 to vector<8x128xf32>
    %211 = arith.mulf %210, %198 : vector<8x128xf32>
    %212 = math.tanh %209 : vector<8x128xf32>
    %cst_96 = arith.constant 1.000000e+00 : f32
    %213 = vector.broadcast %cst_96 : f32 to vector<8x128xf32>
    %214 = arith.mulf %213, %212 : vector<8x128xf32>
    %215 = arith.addf %211, %214 : vector<8x128xf32>
    %c12_i32 = arith.constant 12 : i32
    %216 = arith.truncf %215 : vector<8x128xf32> to vector<8x128xbf16>
    %217 = arith.index_cast %c12_i32 : i32 to index
    %c0_97 = arith.constant 0 : index
    %c0_98 = arith.constant 0 : index
    %218 = vector.load %arg15[%217, %c0_97, %c0_98] : memref<32x8x128xbf16, #tpu.memory_space<vmem>>, vector<1x8x128xbf16>
    %219 = vector.shape_cast %218 : vector<1x8x128xbf16> to vector<8x128xbf16>
    %220 = vector.shape_cast %216 : vector<8x128xbf16> to vector<1x8x128xbf16>
    tpu.vector_store %arg15[%217, %c0_97, %c0_98], %220 {strides = array<i32>} : memref<32x8x128xbf16, #tpu.memory_space<vmem>>, vector<1x8x128xbf16>,
    %221 = arith.index_cast %c12_i32 : i32 to index
    %c0_99 = arith.constant 0 : index
    %c0_100 = arith.constant 0 : index
    %222 = vector.load %arg14[%221, %c0_99, %c0_100] : memref<32x8x128xf32, #tpu.memory_space<vmem>>, vector<1x8x128xf32>
    %223 = vector.shape_cast %222 : vector<1x8x128xf32> to vector<8x128xf32>
    %224 = arith.truncf %215 : vector<8x128xf32> to vector<8x128xbf16>
    %cst_101 = arith.constant dense<0.000000e+00> : vector<8x128xf32>
    %225 = tpu.matmul %224, %10, %cst_101 {dimension_numbers = #tpu.dot_dimension_numbers<[1], [0], [0], [1], [0, 0, 1, 1], [], []>} : vector<8x128xbf16>, vector<128x128xbf16>, vector<8x128xf32> -> vector<8x128xf32>
    %226 = arith.addf %223, %225 : vector<8x128xf32>
    %cst_102 = arith.constant 0.000000e+00 : f32
    %227 = vector.broadcast %cst_102 : f32 to vector<8x128xf32>
    %228 = arith.mulf %227, %215 : vector<8x128xf32>
    %229 = math.tanh %226 : vector<8x128xf32>
    %cst_103 = arith.constant 1.000000e+00 : f32
    %230 = vector.broadcast %cst_103 : f32 to vector<8x128xf32>
    %231 = arith.mulf %230, %229 : vector<8x128xf32>
    %232 = arith.addf %228, %231 : vector<8x128xf32>
    %c13_i32 = arith.constant 13 : i32
    %233 = arith.truncf %232 : vector<8x128xf32> to vector<8x128xbf16>
    %234 = arith.index_cast %c13_i32 : i32 to index
    %c0_104 = arith.constant 0 : index
    %c0_105 = arith.constant 0 : index
    %235 = vector.load %arg15[%234, %c0_104, %c0_105] : memref<32x8x128xbf16, #tpu.memory_space<vmem>>, vector<1x8x128xbf16>
    %236 = vector.shape_cast %235 : vector<1x8x128xbf16> to vector<8x128xbf16>
    %237 = vector.shape_cast %233 : vector<8x128xbf16> to vector<1x8x128xbf16>
    tpu.vector_store %arg15[%234, %c0_104, %c0_105], %237 {strides = array<i32>} : memref<32x8x128xbf16, #tpu.memory_space<vmem>>, vector<1x8x128xbf16>,
    %238 = arith.index_cast %c13_i32 : i32 to index
    %c0_106 = arith.constant 0 : index
    %c0_107 = arith.constant 0 : index
    %239 = vector.load %arg14[%238, %c0_106, %c0_107] : memref<32x8x128xf32, #tpu.memory_space<vmem>>, vector<1x8x128xf32>
    %240 = vector.shape_cast %239 : vector<1x8x128xf32> to vector<8x128xf32>
    %241 = arith.truncf %232 : vector<8x128xf32> to vector<8x128xbf16>
    %cst_108 = arith.constant dense<0.000000e+00> : vector<8x128xf32>
    %242 = tpu.matmul %241, %10, %cst_108 {dimension_numbers = #tpu.dot_dimension_numbers<[1], [0], [0], [1], [0, 0, 1, 1], [], []>} : vector<8x128xbf16>, vector<128x128xbf16>, vector<8x128xf32> -> vector<8x128xf32>
    %243 = arith.addf %240, %242 : vector<8x128xf32>
    %cst_109 = arith.constant 0.000000e+00 : f32
    %244 = vector.broadcast %cst_109 : f32 to vector<8x128xf32>
    %245 = arith.mulf %244, %232 : vector<8x128xf32>
    %246 = math.tanh %243 : vector<8x128xf32>
    %cst_110 = arith.constant 1.000000e+00 : f32
    %247 = vector.broadcast %cst_110 : f32 to vector<8x128xf32>
    %248 = arith.mulf %247, %246 : vector<8x128xf32>
    %249 = arith.addf %245, %248 : vector<8x128xf32>
    %c14_i32 = arith.constant 14 : i32
    %250 = arith.truncf %249 : vector<8x128xf32> to vector<8x128xbf16>
    %251 = arith.index_cast %c14_i32 : i32 to index
    %c0_111 = arith.constant 0 : index
    %c0_112 = arith.constant 0 : index
    %252 = vector.load %arg15[%251, %c0_111, %c0_112] : memref<32x8x128xbf16, #tpu.memory_space<vmem>>, vector<1x8x128xbf16>
    %253 = vector.shape_cast %252 : vector<1x8x128xbf16> to vector<8x128xbf16>
    %254 = vector.shape_cast %250 : vector<8x128xbf16> to vector<1x8x128xbf16>
    tpu.vector_store %arg15[%251, %c0_111, %c0_112], %254 {strides = array<i32>} : memref<32x8x128xbf16, #tpu.memory_space<vmem>>, vector<1x8x128xbf16>,
    %255 = arith.index_cast %c14_i32 : i32 to index
    %c0_113 = arith.constant 0 : index
    %c0_114 = arith.constant 0 : index
    %256 = vector.load %arg14[%255, %c0_113, %c0_114] : memref<32x8x128xf32, #tpu.memory_space<vmem>>, vector<1x8x128xf32>
    %257 = vector.shape_cast %256 : vector<1x8x128xf32> to vector<8x128xf32>
    %258 = arith.truncf %249 : vector<8x128xf32> to vector<8x128xbf16>
    %cst_115 = arith.constant dense<0.000000e+00> : vector<8x128xf32>
    %259 = tpu.matmul %258, %10, %cst_115 {dimension_numbers = #tpu.dot_dimension_numbers<[1], [0], [0], [1], [0, 0, 1, 1], [], []>} : vector<8x128xbf16>, vector<128x128xbf16>, vector<8x128xf32> -> vector<8x128xf32>
    %260 = arith.addf %257, %259 : vector<8x128xf32>
    %cst_116 = arith.constant 0.000000e+00 : f32
    %261 = vector.broadcast %cst_116 : f32 to vector<8x128xf32>
    %262 = arith.mulf %261, %249 : vector<8x128xf32>
    %263 = math.tanh %260 : vector<8x128xf32>
    %cst_117 = arith.constant 1.000000e+00 : f32
    %264 = vector.broadcast %cst_117 : f32 to vector<8x128xf32>
    %265 = arith.mulf %264, %263 : vector<8x128xf32>
    %266 = arith.addf %262, %265 : vector<8x128xf32>
    %c15_i32 = arith.constant 15 : i32
    %267 = arith.truncf %266 : vector<8x128xf32> to vector<8x128xbf16>
    %268 = arith.index_cast %c15_i32 : i32 to index
    %c0_118 = arith.constant 0 : index
    %c0_119 = arith.constant 0 : index
    %269 = vector.load %arg15[%268, %c0_118, %c0_119] : memref<32x8x128xbf16, #tpu.memory_space<vmem>>, vector<1x8x128xbf16>
    %270 = vector.shape_cast %269 : vector<1x8x128xbf16> to vector<8x128xbf16>
    %271 = vector.shape_cast %267 : vector<8x128xbf16> to vector<1x8x128xbf16>
    tpu.vector_store %arg15[%268, %c0_118, %c0_119], %271 {strides = array<i32>} : memref<32x8x128xbf16, #tpu.memory_space<vmem>>, vector<1x8x128xbf16>,
    %272 = arith.index_cast %c15_i32 : i32 to index
    %c0_120 = arith.constant 0 : index
    %c0_121 = arith.constant 0 : index
    %273 = vector.load %arg14[%272, %c0_120, %c0_121] : memref<32x8x128xf32, #tpu.memory_space<vmem>>, vector<1x8x128xf32>
    %274 = vector.shape_cast %273 : vector<1x8x128xf32> to vector<8x128xf32>
    %275 = arith.truncf %266 : vector<8x128xf32> to vector<8x128xbf16>
    %cst_122 = arith.constant dense<0.000000e+00> : vector<8x128xf32>
    %276 = tpu.matmul %275, %10, %cst_122 {dimension_numbers = #tpu.dot_dimension_numbers<[1], [0], [0], [1], [0, 0, 1, 1], [], []>} : vector<8x128xbf16>, vector<128x128xbf16>, vector<8x128xf32> -> vector<8x128xf32>
    %277 = arith.addf %274, %276 : vector<8x128xf32>
    %cst_123 = arith.constant 0.000000e+00 : f32
    %278 = vector.broadcast %cst_123 : f32 to vector<8x128xf32>
    %279 = arith.mulf %278, %266 : vector<8x128xf32>
    %280 = math.tanh %277 : vector<8x128xf32>
    %cst_124 = arith.constant 1.000000e+00 : f32
    %281 = vector.broadcast %cst_124 : f32 to vector<8x128xf32>
    %282 = arith.mulf %281, %280 : vector<8x128xf32>
    %283 = arith.addf %279, %282 : vector<8x128xf32>
    %c16_i32 = arith.constant 16 : i32
    %284 = arith.truncf %283 : vector<8x128xf32> to vector<8x128xbf16>
    %285 = arith.index_cast %c16_i32 : i32 to index
    %c0_125 = arith.constant 0 : index
    %c0_126 = arith.constant 0 : index
    %286 = vector.load %arg15[%285, %c0_125, %c0_126] : memref<32x8x128xbf16, #tpu.memory_space<vmem>>, vector<1x8x128xbf16>
    %287 = vector.shape_cast %286 : vector<1x8x128xbf16> to vector<8x128xbf16>
    %288 = vector.shape_cast %284 : vector<8x128xbf16> to vector<1x8x128xbf16>
    tpu.vector_store %arg15[%285, %c0_125, %c0_126], %288 {strides = array<i32>} : memref<32x8x128xbf16, #tpu.memory_space<vmem>>, vector<1x8x128xbf16>,
    %289 = arith.index_cast %c16_i32 : i32 to index
    %c0_127 = arith.constant 0 : index
    %c0_128 = arith.constant 0 : index
    %290 = vector.load %arg14[%289, %c0_127, %c0_128] : memref<32x8x128xf32, #tpu.memory_space<vmem>>, vector<1x8x128xf32>
    %291 = vector.shape_cast %290 : vector<1x8x128xf32> to vector<8x128xf32>
    %292 = arith.truncf %283 : vector<8x128xf32> to vector<8x128xbf16>
    %cst_129 = arith.constant dense<0.000000e+00> : vector<8x128xf32>
    %293 = tpu.matmul %292, %10, %cst_129 {dimension_numbers = #tpu.dot_dimension_numbers<[1], [0], [0], [1], [0, 0, 1, 1], [], []>} : vector<8x128xbf16>, vector<128x128xbf16>, vector<8x128xf32> -> vector<8x128xf32>
    %294 = arith.addf %291, %293 : vector<8x128xf32>
    %cst_130 = arith.constant 0.000000e+00 : f32
    %295 = vector.broadcast %cst_130 : f32 to vector<8x128xf32>
    %296 = arith.mulf %295, %283 : vector<8x128xf32>
    %297 = math.tanh %294 : vector<8x128xf32>
    %cst_131 = arith.constant 1.000000e+00 : f32
    %298 = vector.broadcast %cst_131 : f32 to vector<8x128xf32>
    %299 = arith.mulf %298, %297 : vector<8x128xf32>
    %300 = arith.addf %296, %299 : vector<8x128xf32>
    %c17_i32 = arith.constant 17 : i32
    %301 = arith.truncf %300 : vector<8x128xf32> to vector<8x128xbf16>
    %302 = arith.index_cast %c17_i32 : i32 to index
    %c0_132 = arith.constant 0 : index
    %c0_133 = arith.constant 0 : index
    %303 = vector.load %arg15[%302, %c0_132, %c0_133] : memref<32x8x128xbf16, #tpu.memory_space<vmem>>, vector<1x8x128xbf16>
    %304 = vector.shape_cast %303 : vector<1x8x128xbf16> to vector<8x128xbf16>
    %305 = vector.shape_cast %301 : vector<8x128xbf16> to vector<1x8x128xbf16>
    tpu.vector_store %arg15[%302, %c0_132, %c0_133], %305 {strides = array<i32>} : memref<32x8x128xbf16, #tpu.memory_space<vmem>>, vector<1x8x128xbf16>,
    %306 = arith.index_cast %c17_i32 : i32 to index
    %c0_134 = arith.constant 0 : index
    %c0_135 = arith.constant 0 : index
    %307 = vector.load %arg14[%306, %c0_134, %c0_135] : memref<32x8x128xf32, #tpu.memory_space<vmem>>, vector<1x8x128xf32>
    %308 = vector.shape_cast %307 : vector<1x8x128xf32> to vector<8x128xf32>
    %309 = arith.truncf %300 : vector<8x128xf32> to vector<8x128xbf16>
    %cst_136 = arith.constant dense<0.000000e+00> : vector<8x128xf32>
    %310 = tpu.matmul %309, %10, %cst_136 {dimension_numbers = #tpu.dot_dimension_numbers<[1], [0], [0], [1], [0, 0, 1, 1], [], []>} : vector<8x128xbf16>, vector<128x128xbf16>, vector<8x128xf32> -> vector<8x128xf32>
    %311 = arith.addf %308, %310 : vector<8x128xf32>
    %cst_137 = arith.constant 0.000000e+00 : f32
    %312 = vector.broadcast %cst_137 : f32 to vector<8x128xf32>
    %313 = arith.mulf %312, %300 : vector<8x128xf32>
    %314 = math.tanh %311 : vector<8x128xf32>
    %cst_138 = arith.constant 1.000000e+00 : f32
    %315 = vector.broadcast %cst_138 : f32 to vector<8x128xf32>
    %316 = arith.mulf %315, %314 : vector<8x128xf32>
    %317 = arith.addf %313, %316 : vector<8x128xf32>
    %c18_i32 = arith.constant 18 : i32
    %318 = arith.truncf %317 : vector<8x128xf32> to vector<8x128xbf16>
    %319 = arith.index_cast %c18_i32 : i32 to index
    %c0_139 = arith.constant 0 : index
    %c0_140 = arith.constant 0 : index
    %320 = vector.load %arg15[%319, %c0_139, %c0_140] : memref<32x8x128xbf16, #tpu.memory_space<vmem>>, vector<1x8x128xbf16>
    %321 = vector.shape_cast %320 : vector<1x8x128xbf16> to vector<8x128xbf16>
    %322 = vector.shape_cast %318 : vector<8x128xbf16> to vector<1x8x128xbf16>
    tpu.vector_store %arg15[%319, %c0_139, %c0_140], %322 {strides = array<i32>} : memref<32x8x128xbf16, #tpu.memory_space<vmem>>, vector<1x8x128xbf16>,
    %323 = arith.index_cast %c18_i32 : i32 to index
    %c0_141 = arith.constant 0 : index
    %c0_142 = arith.constant 0 : index
    %324 = vector.load %arg14[%323, %c0_141, %c0_142] : memref<32x8x128xf32, #tpu.memory_space<vmem>>, vector<1x8x128xf32>
    %325 = vector.shape_cast %324 : vector<1x8x128xf32> to vector<8x128xf32>
    %326 = arith.truncf %317 : vector<8x128xf32> to vector<8x128xbf16>
    %cst_143 = arith.constant dense<0.000000e+00> : vector<8x128xf32>
    %327 = tpu.matmul %326, %10, %cst_143 {dimension_numbers = #tpu.dot_dimension_numbers<[1], [0], [0], [1], [0, 0, 1, 1], [], []>} : vector<8x128xbf16>, vector<128x128xbf16>, vector<8x128xf32> -> vector<8x128xf32>
    %328 = arith.addf %325, %327 : vector<8x128xf32>
    %cst_144 = arith.constant 0.000000e+00 : f32
    %329 = vector.broadcast %cst_144 : f32 to vector<8x128xf32>
    %330 = arith.mulf %329, %317 : vector<8x128xf32>
    %331 = math.tanh %328 : vector<8x128xf32>
    %cst_145 = arith.constant 1.000000e+00 : f32
    %332 = vector.broadcast %cst_145 : f32 to vector<8x128xf32>
    %333 = arith.mulf %332, %331 : vector<8x128xf32>
    %334 = arith.addf %330, %333 : vector<8x128xf32>
    %c19_i32 = arith.constant 19 : i32
    %335 = arith.truncf %334 : vector<8x128xf32> to vector<8x128xbf16>
    %336 = arith.index_cast %c19_i32 : i32 to index
    %c0_146 = arith.constant 0 : index
    %c0_147 = arith.constant 0 : index
    %337 = vector.load %arg15[%336, %c0_146, %c0_147] : memref<32x8x128xbf16, #tpu.memory_space<vmem>>, vector<1x8x128xbf16>
    %338 = vector.shape_cast %337 : vector<1x8x128xbf16> to vector<8x128xbf16>
    %339 = vector.shape_cast %335 : vector<8x128xbf16> to vector<1x8x128xbf16>
    tpu.vector_store %arg15[%336, %c0_146, %c0_147], %339 {strides = array<i32>} : memref<32x8x128xbf16, #tpu.memory_space<vmem>>, vector<1x8x128xbf16>,
    %340 = arith.index_cast %c19_i32 : i32 to index
    %c0_148 = arith.constant 0 : index
    %c0_149 = arith.constant 0 : index
    %341 = vector.load %arg14[%340, %c0_148, %c0_149] : memref<32x8x128xf32, #tpu.memory_space<vmem>>, vector<1x8x128xf32>
    %342 = vector.shape_cast %341 : vector<1x8x128xf32> to vector<8x128xf32>
    %343 = arith.truncf %334 : vector<8x128xf32> to vector<8x128xbf16>
    %cst_150 = arith.constant dense<0.000000e+00> : vector<8x128xf32>
    %344 = tpu.matmul %343, %10, %cst_150 {dimension_numbers = #tpu.dot_dimension_numbers<[1], [0], [0], [1], [0, 0, 1, 1], [], []>} : vector<8x128xbf16>, vector<128x128xbf16>, vector<8x128xf32> -> vector<8x128xf32>
    %345 = arith.addf %342, %344 : vector<8x128xf32>
    %cst_151 = arith.constant 0.000000e+00 : f32
    %346 = vector.broadcast %cst_151 : f32 to vector<8x128xf32>
    %347 = arith.mulf %346, %334 : vector<8x128xf32>
    %348 = math.tanh %345 : vector<8x128xf32>
    %cst_152 = arith.constant 1.000000e+00 : f32
    %349 = vector.broadcast %cst_152 : f32 to vector<8x128xf32>
    %350 = arith.mulf %349, %348 : vector<8x128xf32>
    %351 = arith.addf %347, %350 : vector<8x128xf32>
    %c20_i32 = arith.constant 20 : i32
    %352 = arith.truncf %351 : vector<8x128xf32> to vector<8x128xbf16>
    %353 = arith.index_cast %c20_i32 : i32 to index
    %c0_153 = arith.constant 0 : index
    %c0_154 = arith.constant 0 : index
    %354 = vector.load %arg15[%353, %c0_153, %c0_154] : memref<32x8x128xbf16, #tpu.memory_space<vmem>>, vector<1x8x128xbf16>
    %355 = vector.shape_cast %354 : vector<1x8x128xbf16> to vector<8x128xbf16>
    %356 = vector.shape_cast %352 : vector<8x128xbf16> to vector<1x8x128xbf16>
    tpu.vector_store %arg15[%353, %c0_153, %c0_154], %356 {strides = array<i32>} : memref<32x8x128xbf16, #tpu.memory_space<vmem>>, vector<1x8x128xbf16>,
    %357 = arith.index_cast %c20_i32 : i32 to index
    %c0_155 = arith.constant 0 : index
    %c0_156 = arith.constant 0 : index
    %358 = vector.load %arg14[%357, %c0_155, %c0_156] : memref<32x8x128xf32, #tpu.memory_space<vmem>>, vector<1x8x128xf32>
    %359 = vector.shape_cast %358 : vector<1x8x128xf32> to vector<8x128xf32>
    %360 = arith.truncf %351 : vector<8x128xf32> to vector<8x128xbf16>
    %cst_157 = arith.constant dense<0.000000e+00> : vector<8x128xf32>
    %361 = tpu.matmul %360, %10, %cst_157 {dimension_numbers = #tpu.dot_dimension_numbers<[1], [0], [0], [1], [0, 0, 1, 1], [], []>} : vector<8x128xbf16>, vector<128x128xbf16>, vector<8x128xf32> -> vector<8x128xf32>
    %362 = arith.addf %359, %361 : vector<8x128xf32>
    %cst_158 = arith.constant 0.000000e+00 : f32
    %363 = vector.broadcast %cst_158 : f32 to vector<8x128xf32>
    %364 = arith.mulf %363, %351 : vector<8x128xf32>
    %365 = math.tanh %362 : vector<8x128xf32>
    %cst_159 = arith.constant 1.000000e+00 : f32
    %366 = vector.broadcast %cst_159 : f32 to vector<8x128xf32>
    %367 = arith.mulf %366, %365 : vector<8x128xf32>
    %368 = arith.addf %364, %367 : vector<8x128xf32>
    %c21_i32 = arith.constant 21 : i32
    %369 = arith.truncf %368 : vector<8x128xf32> to vector<8x128xbf16>
    %370 = arith.index_cast %c21_i32 : i32 to index
    %c0_160 = arith.constant 0 : index
    %c0_161 = arith.constant 0 : index
    %371 = vector.load %arg15[%370, %c0_160, %c0_161] : memref<32x8x128xbf16, #tpu.memory_space<vmem>>, vector<1x8x128xbf16>
    %372 = vector.shape_cast %371 : vector<1x8x128xbf16> to vector<8x128xbf16>
    %373 = vector.shape_cast %369 : vector<8x128xbf16> to vector<1x8x128xbf16>
    tpu.vector_store %arg15[%370, %c0_160, %c0_161], %373 {strides = array<i32>} : memref<32x8x128xbf16, #tpu.memory_space<vmem>>, vector<1x8x128xbf16>,
    %374 = arith.index_cast %c21_i32 : i32 to index
    %c0_162 = arith.constant 0 : index
    %c0_163 = arith.constant 0 : index
    %375 = vector.load %arg14[%374, %c0_162, %c0_163] : memref<32x8x128xf32, #tpu.memory_space<vmem>>, vector<1x8x128xf32>
    %376 = vector.shape_cast %375 : vector<1x8x128xf32> to vector<8x128xf32>
    %377 = arith.truncf %368 : vector<8x128xf32> to vector<8x128xbf16>
    %cst_164 = arith.constant dense<0.000000e+00> : vector<8x128xf32>
    %378 = tpu.matmul %377, %10, %cst_164 {dimension_numbers = #tpu.dot_dimension_numbers<[1], [0], [0], [1], [0, 0, 1, 1], [], []>} : vector<8x128xbf16>, vector<128x128xbf16>, vector<8x128xf32> -> vector<8x128xf32>
    %379 = arith.addf %376, %378 : vector<8x128xf32>
    %cst_165 = arith.constant 0.000000e+00 : f32
    %380 = vector.broadcast %cst_165 : f32 to vector<8x128xf32>
    %381 = arith.mulf %380, %368 : vector<8x128xf32>
    %382 = math.tanh %379 : vector<8x128xf32>
    %cst_166 = arith.constant 1.000000e+00 : f32
    %383 = vector.broadcast %cst_166 : f32 to vector<8x128xf32>
    %384 = arith.mulf %383, %382 : vector<8x128xf32>
    %385 = arith.addf %381, %384 : vector<8x128xf32>
    %c22_i32 = arith.constant 22 : i32
    %386 = arith.truncf %385 : vector<8x128xf32> to vector<8x128xbf16>
    %387 = arith.index_cast %c22_i32 : i32 to index
    %c0_167 = arith.constant 0 : index
    %c0_168 = arith.constant 0 : index
    %388 = vector.load %arg15[%387, %c0_167, %c0_168] : memref<32x8x128xbf16, #tpu.memory_space<vmem>>, vector<1x8x128xbf16>
    %389 = vector.shape_cast %388 : vector<1x8x128xbf16> to vector<8x128xbf16>
    %390 = vector.shape_cast %386 : vector<8x128xbf16> to vector<1x8x128xbf16>
    tpu.vector_store %arg15[%387, %c0_167, %c0_168], %390 {strides = array<i32>} : memref<32x8x128xbf16, #tpu.memory_space<vmem>>, vector<1x8x128xbf16>,
    %391 = arith.index_cast %c22_i32 : i32 to index
    %c0_169 = arith.constant 0 : index
    %c0_170 = arith.constant 0 : index
    %392 = vector.load %arg14[%391, %c0_169, %c0_170] : memref<32x8x128xf32, #tpu.memory_space<vmem>>, vector<1x8x128xf32>
    %393 = vector.shape_cast %392 : vector<1x8x128xf32> to vector<8x128xf32>
    %394 = arith.truncf %385 : vector<8x128xf32> to vector<8x128xbf16>
    %cst_171 = arith.constant dense<0.000000e+00> : vector<8x128xf32>
    %395 = tpu.matmul %394, %10, %cst_171 {dimension_numbers = #tpu.dot_dimension_numbers<[1], [0], [0], [1], [0, 0, 1, 1], [], []>} : vector<8x128xbf16>, vector<128x128xbf16>, vector<8x128xf32> -> vector<8x128xf32>
    %396 = arith.addf %393, %395 : vector<8x128xf32>
    %cst_172 = arith.constant 0.000000e+00 : f32
    %397 = vector.broadcast %cst_172 : f32 to vector<8x128xf32>
    %398 = arith.mulf %397, %385 : vector<8x128xf32>
    %399 = math.tanh %396 : vector<8x128xf32>
    %cst_173 = arith.constant 1.000000e+00 : f32
    %400 = vector.broadcast %cst_173 : f32 to vector<8x128xf32>
    %401 = arith.mulf %400, %399 : vector<8x128xf32>
    %402 = arith.addf %398, %401 : vector<8x128xf32>
    %c23_i32 = arith.constant 23 : i32
    %403 = arith.truncf %402 : vector<8x128xf32> to vector<8x128xbf16>
    %404 = arith.index_cast %c23_i32 : i32 to index
    %c0_174 = arith.constant 0 : index
    %c0_175 = arith.constant 0 : index
    %405 = vector.load %arg15[%404, %c0_174, %c0_175] : memref<32x8x128xbf16, #tpu.memory_space<vmem>>, vector<1x8x128xbf16>
    %406 = vector.shape_cast %405 : vector<1x8x128xbf16> to vector<8x128xbf16>
    %407 = vector.shape_cast %403 : vector<8x128xbf16> to vector<1x8x128xbf16>
    tpu.vector_store %arg15[%404, %c0_174, %c0_175], %407 {strides = array<i32>} : memref<32x8x128xbf16, #tpu.memory_space<vmem>>, vector<1x8x128xbf16>,
    %408 = arith.index_cast %c23_i32 : i32 to index
    %c0_176 = arith.constant 0 : index
    %c0_177 = arith.constant 0 : index
    %409 = vector.load %arg14[%408, %c0_176, %c0_177] : memref<32x8x128xf32, #tpu.memory_space<vmem>>, vector<1x8x128xf32>
    %410 = vector.shape_cast %409 : vector<1x8x128xf32> to vector<8x128xf32>
    %411 = arith.truncf %402 : vector<8x128xf32> to vector<8x128xbf16>
    %cst_178 = arith.constant dense<0.000000e+00> : vector<8x128xf32>
    %412 = tpu.matmul %411, %10, %cst_178 {dimension_numbers = #tpu.dot_dimension_numbers<[1], [0], [0], [1], [0, 0, 1, 1], [], []>} : vector<8x128xbf16>, vector<128x128xbf16>, vector<8x128xf32> -> vector<8x128xf32>
    %413 = arith.addf %410, %412 : vector<8x128xf32>
    %cst_179 = arith.constant 0.000000e+00 : f32
    %414 = vector.broadcast %cst_179 : f32 to vector<8x128xf32>
    %415 = arith.mulf %414, %402 : vector<8x128xf32>
    %416 = math.tanh %413 : vector<8x128xf32>
    %cst_180 = arith.constant 1.000000e+00 : f32
    %417 = vector.broadcast %cst_180 : f32 to vector<8x128xf32>
    %418 = arith.mulf %417, %416 : vector<8x128xf32>
    %419 = arith.addf %415, %418 : vector<8x128xf32>
    %c24_i32 = arith.constant 24 : i32
    %420 = arith.truncf %419 : vector<8x128xf32> to vector<8x128xbf16>
    %421 = arith.index_cast %c24_i32 : i32 to index
    %c0_181 = arith.constant 0 : index
    %c0_182 = arith.constant 0 : index
    %422 = vector.load %arg15[%421, %c0_181, %c0_182] : memref<32x8x128xbf16, #tpu.memory_space<vmem>>, vector<1x8x128xbf16>
    %423 = vector.shape_cast %422 : vector<1x8x128xbf16> to vector<8x128xbf16>
    %424 = vector.shape_cast %420 : vector<8x128xbf16> to vector<1x8x128xbf16>
    tpu.vector_store %arg15[%421, %c0_181, %c0_182], %424 {strides = array<i32>} : memref<32x8x128xbf16, #tpu.memory_space<vmem>>, vector<1x8x128xbf16>,
    %425 = arith.index_cast %c24_i32 : i32 to index
    %c0_183 = arith.constant 0 : index
    %c0_184 = arith.constant 0 : index
    %426 = vector.load %arg14[%425, %c0_183, %c0_184] : memref<32x8x128xf32, #tpu.memory_space<vmem>>, vector<1x8x128xf32>
    %427 = vector.shape_cast %426 : vector<1x8x128xf32> to vector<8x128xf32>
    %428 = arith.truncf %419 : vector<8x128xf32> to vector<8x128xbf16>
    %cst_185 = arith.constant dense<0.000000e+00> : vector<8x128xf32>
    %429 = tpu.matmul %428, %10, %cst_185 {dimension_numbers = #tpu.dot_dimension_numbers<[1], [0], [0], [1], [0, 0, 1, 1], [], []>} : vector<8x128xbf16>, vector<128x128xbf16>, vector<8x128xf32> -> vector<8x128xf32>
    %430 = arith.addf %427, %429 : vector<8x128xf32>
    %cst_186 = arith.constant 0.000000e+00 : f32
    %431 = vector.broadcast %cst_186 : f32 to vector<8x128xf32>
    %432 = arith.mulf %431, %419 : vector<8x128xf32>
    %433 = math.tanh %430 : vector<8x128xf32>
    %cst_187 = arith.constant 1.000000e+00 : f32
    %434 = vector.broadcast %cst_187 : f32 to vector<8x128xf32>
    %435 = arith.mulf %434, %433 : vector<8x128xf32>
    %436 = arith.addf %432, %435 : vector<8x128xf32>
    %c25_i32 = arith.constant 25 : i32
    %437 = arith.truncf %436 : vector<8x128xf32> to vector<8x128xbf16>
    %438 = arith.index_cast %c25_i32 : i32 to index
    %c0_188 = arith.constant 0 : index
    %c0_189 = arith.constant 0 : index
    %439 = vector.load %arg15[%438, %c0_188, %c0_189] : memref<32x8x128xbf16, #tpu.memory_space<vmem>>, vector<1x8x128xbf16>
    %440 = vector.shape_cast %439 : vector<1x8x128xbf16> to vector<8x128xbf16>
    %441 = vector.shape_cast %437 : vector<8x128xbf16> to vector<1x8x128xbf16>
    tpu.vector_store %arg15[%438, %c0_188, %c0_189], %441 {strides = array<i32>} : memref<32x8x128xbf16, #tpu.memory_space<vmem>>, vector<1x8x128xbf16>,
    %442 = arith.index_cast %c25_i32 : i32 to index
    %c0_190 = arith.constant 0 : index
    %c0_191 = arith.constant 0 : index
    %443 = vector.load %arg14[%442, %c0_190, %c0_191] : memref<32x8x128xf32, #tpu.memory_space<vmem>>, vector<1x8x128xf32>
    %444 = vector.shape_cast %443 : vector<1x8x128xf32> to vector<8x128xf32>
    %445 = arith.truncf %436 : vector<8x128xf32> to vector<8x128xbf16>
    %cst_192 = arith.constant dense<0.000000e+00> : vector<8x128xf32>
    %446 = tpu.matmul %445, %10, %cst_192 {dimension_numbers = #tpu.dot_dimension_numbers<[1], [0], [0], [1], [0, 0, 1, 1], [], []>} : vector<8x128xbf16>, vector<128x128xbf16>, vector<8x128xf32> -> vector<8x128xf32>
    %447 = arith.addf %444, %446 : vector<8x128xf32>
    %cst_193 = arith.constant 0.000000e+00 : f32
    %448 = vector.broadcast %cst_193 : f32 to vector<8x128xf32>
    %449 = arith.mulf %448, %436 : vector<8x128xf32>
    %450 = math.tanh %447 : vector<8x128xf32>
    %cst_194 = arith.constant 1.000000e+00 : f32
    %451 = vector.broadcast %cst_194 : f32 to vector<8x128xf32>
    %452 = arith.mulf %451, %450 : vector<8x128xf32>
    %453 = arith.addf %449, %452 : vector<8x128xf32>
    %c26_i32 = arith.constant 26 : i32
    %454 = arith.truncf %453 : vector<8x128xf32> to vector<8x128xbf16>
    %455 = arith.index_cast %c26_i32 : i32 to index
    %c0_195 = arith.constant 0 : index
    %c0_196 = arith.constant 0 : index
    %456 = vector.load %arg15[%455, %c0_195, %c0_196] : memref<32x8x128xbf16, #tpu.memory_space<vmem>>, vector<1x8x128xbf16>
    %457 = vector.shape_cast %456 : vector<1x8x128xbf16> to vector<8x128xbf16>
    %458 = vector.shape_cast %454 : vector<8x128xbf16> to vector<1x8x128xbf16>
    tpu.vector_store %arg15[%455, %c0_195, %c0_196], %458 {strides = array<i32>} : memref<32x8x128xbf16, #tpu.memory_space<vmem>>, vector<1x8x128xbf16>,
    %459 = arith.index_cast %c26_i32 : i32 to index
    %c0_197 = arith.constant 0 : index
    %c0_198 = arith.constant 0 : index
    %460 = vector.load %arg14[%459, %c0_197, %c0_198] : memref<32x8x128xf32, #tpu.memory_space<vmem>>, vector<1x8x128xf32>
    %461 = vector.shape_cast %460 : vector<1x8x128xf32> to vector<8x128xf32>
    %462 = arith.truncf %453 : vector<8x128xf32> to vector<8x128xbf16>
    %cst_199 = arith.constant dense<0.000000e+00> : vector<8x128xf32>
    %463 = tpu.matmul %462, %10, %cst_199 {dimension_numbers = #tpu.dot_dimension_numbers<[1], [0], [0], [1], [0, 0, 1, 1], [], []>} : vector<8x128xbf16>, vector<128x128xbf16>, vector<8x128xf32> -> vector<8x128xf32>
    %464 = arith.addf %461, %463 : vector<8x128xf32>
    %cst_200 = arith.constant 0.000000e+00 : f32
    %465 = vector.broadcast %cst_200 : f32 to vector<8x128xf32>
    %466 = arith.mulf %465, %453 : vector<8x128xf32>
    %467 = math.tanh %464 : vector<8x128xf32>
    %cst_201 = arith.constant 1.000000e+00 : f32
    %468 = vector.broadcast %cst_201 : f32 to vector<8x128xf32>
    %469 = arith.mulf %468, %467 : vector<8x128xf32>
    %470 = arith.addf %466, %469 : vector<8x128xf32>
    %c27_i32 = arith.constant 27 : i32
    %471 = arith.truncf %470 : vector<8x128xf32> to vector<8x128xbf16>
    %472 = arith.index_cast %c27_i32 : i32 to index
    %c0_202 = arith.constant 0 : index
    %c0_203 = arith.constant 0 : index
    %473 = vector.load %arg15[%472, %c0_202, %c0_203] : memref<32x8x128xbf16, #tpu.memory_space<vmem>>, vector<1x8x128xbf16>
    %474 = vector.shape_cast %473 : vector<1x8x128xbf16> to vector<8x128xbf16>
    %475 = vector.shape_cast %471 : vector<8x128xbf16> to vector<1x8x128xbf16>
    tpu.vector_store %arg15[%472, %c0_202, %c0_203], %475 {strides = array<i32>} : memref<32x8x128xbf16, #tpu.memory_space<vmem>>, vector<1x8x128xbf16>,
    %476 = arith.index_cast %c27_i32 : i32 to index
    %c0_204 = arith.constant 0 : index
    %c0_205 = arith.constant 0 : index
    %477 = vector.load %arg14[%476, %c0_204, %c0_205] : memref<32x8x128xf32, #tpu.memory_space<vmem>>, vector<1x8x128xf32>
    %478 = vector.shape_cast %477 : vector<1x8x128xf32> to vector<8x128xf32>
    %479 = arith.truncf %470 : vector<8x128xf32> to vector<8x128xbf16>
    %cst_206 = arith.constant dense<0.000000e+00> : vector<8x128xf32>
    %480 = tpu.matmul %479, %10, %cst_206 {dimension_numbers = #tpu.dot_dimension_numbers<[1], [0], [0], [1], [0, 0, 1, 1], [], []>} : vector<8x128xbf16>, vector<128x128xbf16>, vector<8x128xf32> -> vector<8x128xf32>
    %481 = arith.addf %478, %480 : vector<8x128xf32>
    %cst_207 = arith.constant 0.000000e+00 : f32
    %482 = vector.broadcast %cst_207 : f32 to vector<8x128xf32>
    %483 = arith.mulf %482, %470 : vector<8x128xf32>
    %484 = math.tanh %481 : vector<8x128xf32>
    %cst_208 = arith.constant 1.000000e+00 : f32
    %485 = vector.broadcast %cst_208 : f32 to vector<8x128xf32>
    %486 = arith.mulf %485, %484 : vector<8x128xf32>
    %487 = arith.addf %483, %486 : vector<8x128xf32>
    %c28_i32 = arith.constant 28 : i32
    %488 = arith.truncf %487 : vector<8x128xf32> to vector<8x128xbf16>
    %489 = arith.index_cast %c28_i32 : i32 to index
    %c0_209 = arith.constant 0 : index
    %c0_210 = arith.constant 0 : index
    %490 = vector.load %arg15[%489, %c0_209, %c0_210] : memref<32x8x128xbf16, #tpu.memory_space<vmem>>, vector<1x8x128xbf16>
    %491 = vector.shape_cast %490 : vector<1x8x128xbf16> to vector<8x128xbf16>
    %492 = vector.shape_cast %488 : vector<8x128xbf16> to vector<1x8x128xbf16>
    tpu.vector_store %arg15[%489, %c0_209, %c0_210], %492 {strides = array<i32>} : memref<32x8x128xbf16, #tpu.memory_space<vmem>>, vector<1x8x128xbf16>,
    %493 = arith.index_cast %c28_i32 : i32 to index
    %c0_211 = arith.constant 0 : index
    %c0_212 = arith.constant 0 : index
    %494 = vector.load %arg14[%493, %c0_211, %c0_212] : memref<32x8x128xf32, #tpu.memory_space<vmem>>, vector<1x8x128xf32>
    %495 = vector.shape_cast %494 : vector<1x8x128xf32> to vector<8x128xf32>
    %496 = arith.truncf %487 : vector<8x128xf32> to vector<8x128xbf16>
    %cst_213 = arith.constant dense<0.000000e+00> : vector<8x128xf32>
    %497 = tpu.matmul %496, %10, %cst_213 {dimension_numbers = #tpu.dot_dimension_numbers<[1], [0], [0], [1], [0, 0, 1, 1], [], []>} : vector<8x128xbf16>, vector<128x128xbf16>, vector<8x128xf32> -> vector<8x128xf32>
    %498 = arith.addf %495, %497 : vector<8x128xf32>
    %cst_214 = arith.constant 0.000000e+00 : f32
    %499 = vector.broadcast %cst_214 : f32 to vector<8x128xf32>
    %500 = arith.mulf %499, %487 : vector<8x128xf32>
    %501 = math.tanh %498 : vector<8x128xf32>
    %cst_215 = arith.constant 1.000000e+00 : f32
    %502 = vector.broadcast %cst_215 : f32 to vector<8x128xf32>
    %503 = arith.mulf %502, %501 : vector<8x128xf32>
    %504 = arith.addf %500, %503 : vector<8x128xf32>
    %c29_i32 = arith.constant 29 : i32
    %505 = arith.truncf %504 : vector<8x128xf32> to vector<8x128xbf16>
    %506 = arith.index_cast %c29_i32 : i32 to index
    %c0_216 = arith.constant 0 : index
    %c0_217 = arith.constant 0 : index
    %507 = vector.load %arg15[%506, %c0_216, %c0_217] : memref<32x8x128xbf16, #tpu.memory_space<vmem>>, vector<1x8x128xbf16>
    %508 = vector.shape_cast %507 : vector<1x8x128xbf16> to vector<8x128xbf16>
    %509 = vector.shape_cast %505 : vector<8x128xbf16> to vector<1x8x128xbf16>
    tpu.vector_store %arg15[%506, %c0_216, %c0_217], %509 {strides = array<i32>} : memref<32x8x128xbf16, #tpu.memory_space<vmem>>, vector<1x8x128xbf16>,
    %510 = arith.index_cast %c29_i32 : i32 to index
    %c0_218 = arith.constant 0 : index
    %c0_219 = arith.constant 0 : index
    %511 = vector.load %arg14[%510, %c0_218, %c0_219] : memref<32x8x128xf32, #tpu.memory_space<vmem>>, vector<1x8x128xf32>
    %512 = vector.shape_cast %511 : vector<1x8x128xf32> to vector<8x128xf32>
    %513 = arith.truncf %504 : vector<8x128xf32> to vector<8x128xbf16>
    %cst_220 = arith.constant dense<0.000000e+00> : vector<8x128xf32>
    %514 = tpu.matmul %513, %10, %cst_220 {dimension_numbers = #tpu.dot_dimension_numbers<[1], [0], [0], [1], [0, 0, 1, 1], [], []>} : vector<8x128xbf16>, vector<128x128xbf16>, vector<8x128xf32> -> vector<8x128xf32>
    %515 = arith.addf %512, %514 : vector<8x128xf32>
    %cst_221 = arith.constant 0.000000e+00 : f32
    %516 = vector.broadcast %cst_221 : f32 to vector<8x128xf32>
    %517 = arith.mulf %516, %504 : vector<8x128xf32>
    %518 = math.tanh %515 : vector<8x128xf32>
    %cst_222 = arith.constant 1.000000e+00 : f32
    %519 = vector.broadcast %cst_222 : f32 to vector<8x128xf32>
    %520 = arith.mulf %519, %518 : vector<8x128xf32>
    %521 = arith.addf %517, %520 : vector<8x128xf32>
    %c30_i32 = arith.constant 30 : i32
    %522 = arith.truncf %521 : vector<8x128xf32> to vector<8x128xbf16>
    %523 = arith.index_cast %c30_i32 : i32 to index
    %c0_223 = arith.constant 0 : index
    %c0_224 = arith.constant 0 : index
    %524 = vector.load %arg15[%523, %c0_223, %c0_224] : memref<32x8x128xbf16, #tpu.memory_space<vmem>>, vector<1x8x128xbf16>
    %525 = vector.shape_cast %524 : vector<1x8x128xbf16> to vector<8x128xbf16>
    %526 = vector.shape_cast %522 : vector<8x128xbf16> to vector<1x8x128xbf16>
    tpu.vector_store %arg15[%523, %c0_223, %c0_224], %526 {strides = array<i32>} : memref<32x8x128xbf16, #tpu.memory_space<vmem>>, vector<1x8x128xbf16>,
    %527 = arith.index_cast %c30_i32 : i32 to index
    %c0_225 = arith.constant 0 : index
    %c0_226 = arith.constant 0 : index
    %528 = vector.load %arg14[%527, %c0_225, %c0_226] : memref<32x8x128xf32, #tpu.memory_space<vmem>>, vector<1x8x128xf32>
    %529 = vector.shape_cast %528 : vector<1x8x128xf32> to vector<8x128xf32>
    %530 = arith.truncf %521 : vector<8x128xf32> to vector<8x128xbf16>
    %cst_227 = arith.constant dense<0.000000e+00> : vector<8x128xf32>
    %531 = tpu.matmul %530, %10, %cst_227 {dimension_numbers = #tpu.dot_dimension_numbers<[1], [0], [0], [1], [0, 0, 1, 1], [], []>} : vector<8x128xbf16>, vector<128x128xbf16>, vector<8x128xf32> -> vector<8x128xf32>
    %532 = arith.addf %529, %531 : vector<8x128xf32>
    %cst_228 = arith.constant 0.000000e+00 : f32
    %533 = vector.broadcast %cst_228 : f32 to vector<8x128xf32>
    %534 = arith.mulf %533, %521 : vector<8x128xf32>
    %535 = math.tanh %532 : vector<8x128xf32>
    %cst_229 = arith.constant 1.000000e+00 : f32
    %536 = vector.broadcast %cst_229 : f32 to vector<8x128xf32>
    %537 = arith.mulf %536, %535 : vector<8x128xf32>
    %538 = arith.addf %534, %537 : vector<8x128xf32>
    %c31_i32 = arith.constant 31 : i32
    %539 = arith.truncf %538 : vector<8x128xf32> to vector<8x128xbf16>
    %540 = arith.index_cast %c31_i32 : i32 to index
    %c0_230 = arith.constant 0 : index
    %c0_231 = arith.constant 0 : index
    %541 = vector.load %arg15[%540, %c0_230, %c0_231] : memref<32x8x128xbf16, #tpu.memory_space<vmem>>, vector<1x8x128xbf16>
    %542 = vector.shape_cast %541 : vector<1x8x128xbf16> to vector<8x128xbf16>
    %543 = vector.shape_cast %539 : vector<8x128xbf16> to vector<1x8x128xbf16>
    tpu.vector_store %arg15[%540, %c0_230, %c0_231], %543 {strides = array<i32>} : memref<32x8x128xbf16, #tpu.memory_space<vmem>>, vector<1x8x128xbf16>,
    %544 = arith.index_cast %c31_i32 : i32 to index
    %c0_232 = arith.constant 0 : index
    %c0_233 = arith.constant 0 : index
    %545 = vector.load %arg14[%544, %c0_232, %c0_233] : memref<32x8x128xf32, #tpu.memory_space<vmem>>, vector<1x8x128xf32>
    %546 = vector.shape_cast %545 : vector<1x8x128xf32> to vector<8x128xf32>
    %547 = arith.truncf %538 : vector<8x128xf32> to vector<8x128xbf16>
    %cst_234 = arith.constant dense<0.000000e+00> : vector<8x128xf32>
    %548 = tpu.matmul %547, %10, %cst_234 {dimension_numbers = #tpu.dot_dimension_numbers<[1], [0], [0], [1], [0, 0, 1, 1], [], []>} : vector<8x128xbf16>, vector<128x128xbf16>, vector<8x128xf32> -> vector<8x128xf32>
    %549 = arith.addf %546, %548 : vector<8x128xf32>
    %cst_235 = arith.constant 0.000000e+00 : f32
    %550 = vector.broadcast %cst_235 : f32 to vector<8x128xf32>
    %551 = arith.mulf %550, %538 : vector<8x128xf32>
    %552 = math.tanh %549 : vector<8x128xf32>
    %cst_236 = arith.constant 1.000000e+00 : f32
    %553 = vector.broadcast %cst_236 : f32 to vector<8x128xf32>
    %554 = arith.mulf %553, %552 : vector<8x128xf32>
    %555 = arith.addf %551, %554 : vector<8x128xf32>
    %c32_i32 = arith.constant 32 : i32
    %c0_237 = arith.constant 0 : index
    %c0_238 = arith.constant 0 : index
    %556 = vector.load %arg13[%c0_237, %c0_238] : memref<8x128xf32, #tpu.memory_space<vmem>>, vector<8x128xf32>
    tpu.vector_store %arg13[%c0_237, %c0_238], %555 {strides = array<i32>} : memref<8x128xf32, #tpu.memory_space<vmem>>, vector<8x128xf32>,
    %c0_239 = arith.constant 0 : index
    %c0_240 = arith.constant 0 : index
    %c0_241 = arith.constant 0 : index
    %557 = vector.load %arg15[%c0_239, %c0_240, %c0_241] : memref<32x8x128xbf16, #tpu.memory_space<vmem>>, vector<32x8x128xbf16>
    %558 = vector.shape_cast %557 : vector<32x8x128xbf16> to vector<256x128xbf16>
    %c0_242 = arith.constant 0 : index
    %c0_243 = arith.constant 0 : index
    %559 = vector.load %arg8[%c0_242, %c0_243] : memref<128x512xbf16, #tpu.memory_space<vmem>>, vector<128x512xbf16>
    %cst_244 = arith.constant dense<0.000000e+00> : vector<256x512xf32>
    %560 = tpu.matmul %558, %559, %cst_244 {dimension_numbers = #tpu.dot_dimension_numbers<[1], [0], [0], [1], [0, 0, 1, 1], [], []>} : vector<256x128xbf16>, vector<128x512xbf16>, vector<256x512xf32> -> vector<256x512xf32>
    %cst_245 = arith.constant 0.000000e+00 : f32
    %561 = vector.broadcast %cst_245 : f32 to vector<256x16xf32>
    %c0_246 = arith.constant 0 : index
    %c0_247 = arith.constant 0 : index
    %c0_248 = arith.constant 0 : index
    %562 = vector.load %arg5[%c0_246, %c0_247, %c0_248] : memref<4x1x16xf32, #tpu.memory_space<vmem>>, vector<1x1x16xf32>
    %563 = vector.shape_cast %562 : vector<1x1x16xf32> to vector<1x16xf32>
    %564 = vector.shape_cast %563 : vector<1x16xf32> to vector<1x16xf32>
    %565 = vector.broadcast %564 : vector<1x16xf32> to vector<256x16xf32>
    %c0_249 = arith.constant 0 : index
    %c0_250 = arith.constant 0 : index
    %c0_251 = arith.constant 0 : index
    %566 = vector.load %arg6[%c0_249, %c0_250, %c0_251] : memref<4x1x16xf32, #tpu.memory_space<vmem>>, vector<1x1x16xf32>
    %567 = vector.shape_cast %566 : vector<1x1x16xf32> to vector<1x16xf32>
    %568 = vector.shape_cast %567 : vector<1x16xf32> to vector<1x16xf32>
    %569 = vector.broadcast %568 : vector<1x16xf32> to vector<256x16xf32>
    %570 = arith.mulf %4, %565 : vector<256x16xf32>
    %571 = arith.truncf %570 : vector<256x16xf32> to vector<256x16xbf16>
    %c0_252 = arith.constant 0 : index
    %c0_253 = arith.constant 0 : index
    %c0_254 = arith.constant 0 : index
    %572 = vector.load %arg7[%c0_252, %c0_253, %c0_254] : memref<4x16x128xbf16, #tpu.memory_space<vmem>>, vector<1x16x128xbf16>
    %573 = vector.shape_cast %572 : vector<1x16x128xbf16> to vector<16x128xbf16>
    %cst_255 = arith.constant dense<0.000000e+00> : vector<256x128xf32>
    %574 = tpu.matmul %571, %573, %cst_255 {dimension_numbers = #tpu.dot_dimension_numbers<[1], [0], [0], [1], [0, 0, 1, 1], [], []>} : vector<256x16xbf16>, vector<16x128xbf16>, vector<256x128xf32> -> vector<256x128xf32>
    %575 = vector.extract_strided_slice %560 {offsets = [0, 0], sizes = [256, 128], strides = [1, 1]} : vector<256x512xf32> to vector<256x128xf32>
    %576 = arith.addf %574, %575 : vector<256x128xf32>
    %c0_256 = arith.constant 0 : index
    %c0_257 = arith.constant 0 : index
    %c0_258 = arith.constant 0 : index
    %577 = vector.load %arg9[%c0_256, %c0_257, %c0_258] : memref<4x1x128xf32, #tpu.memory_space<vmem>>, vector<1x1x128xf32>
    %578 = vector.shape_cast %577 : vector<1x1x128xf32> to vector<1x128xf32>
    %579 = vector.broadcast %578 : vector<1x128xf32> to vector<256x128xf32>
    %580 = arith.addf %576, %579 : vector<256x128xf32>
    %581 = math.tanh %580 : vector<256x128xf32>
    %582 = arith.truncf %581 : vector<256x128xf32> to vector<256x128xbf16>
    %c0_259 = arith.constant 0 : index
    %c0_260 = arith.constant 0 : index
    %c0_261 = arith.constant 0 : index
    %583 = vector.load %arg10[%c0_259, %c0_260, %c0_261] : memref<4x128x32xbf16, #tpu.memory_space<vmem>>, vector<1x128x32xbf16>
    %584 = vector.shape_cast %583 : vector<1x128x32xbf16> to vector<128x32xbf16>
    %cst_262 = arith.constant dense<0.000000e+00> : vector<256x32xf32>
    %585 = tpu.matmul %582, %584, %cst_262 {dimension_numbers = #tpu.dot_dimension_numbers<[1], [0], [0], [1], [0, 0, 1, 1], [], []>} : vector<256x128xbf16>, vector<128x32xbf16>, vector<256x32xf32> -> vector<256x32xf32>
    %c0_263 = arith.constant 0 : index
    %c0_264 = arith.constant 0 : index
    %c0_265 = arith.constant 0 : index
    %586 = vector.load %arg11[%c0_263, %c0_264, %c0_265] : memref<4x1x32xf32, #tpu.memory_space<vmem>>, vector<1x1x32xf32>
    %587 = vector.shape_cast %586 : vector<1x1x32xf32> to vector<1x32xf32>
    %588 = vector.broadcast %587 : vector<1x32xf32> to vector<256x32xf32>
    %589 = arith.addf %585, %588 : vector<256x32xf32>
    %590 = vector.extract_strided_slice %589 {offsets = [0, 0], sizes = [256, 16], strides = [1, 1]} : vector<256x32xf32> to vector<256x16xf32>
    %591 = arith.mulf %590, %569 : vector<256x16xf32>
    %592 = vector.extract_strided_slice %589 {offsets = [0, 16], sizes = [256, 16], strides = [1, 1]} : vector<256x32xf32> to vector<256x16xf32>
    %593 = arith.mulf %592, %569 : vector<256x16xf32>
    %594 = math.exp %591 : vector<256x16xf32>
    %595 = arith.mulf %4, %594 : vector<256x16xf32>
    %596 = arith.addf %595, %593 : vector<256x16xf32>
    %597 = arith.mulf %569, %596 : vector<256x16xf32>
    %598 = arith.addf %570, %597 : vector<256x16xf32>
    %599 = arith.addf %561, %591 : vector<256x16xf32>
    %c1 = arith.constant 1 : index
    %c0_266 = arith.constant 0 : index
    %c0_267 = arith.constant 0 : index
    %600 = vector.load %arg5[%c1, %c0_266, %c0_267] : memref<4x1x16xf32, #tpu.memory_space<vmem>>, vector<1x1x16xf32>
    %601 = vector.shape_cast %600 : vector<1x1x16xf32> to vector<1x16xf32>
    %602 = vector.shape_cast %601 : vector<1x16xf32> to vector<1x16xf32>
    %603 = vector.broadcast %602 : vector<1x16xf32> to vector<256x16xf32>
    %c1_268 = arith.constant 1 : index
    %c0_269 = arith.constant 0 : index
    %c0_270 = arith.constant 0 : index
    %604 = vector.load %arg6[%c1_268, %c0_269, %c0_270] : memref<4x1x16xf32, #tpu.memory_space<vmem>>, vector<1x1x16xf32>
    %605 = vector.shape_cast %604 : vector<1x1x16xf32> to vector<1x16xf32>
    %606 = vector.shape_cast %605 : vector<1x16xf32> to vector<1x16xf32>
    %607 = vector.broadcast %606 : vector<1x16xf32> to vector<256x16xf32>
    %608 = arith.mulf %598, %603 : vector<256x16xf32>
    %609 = arith.truncf %608 : vector<256x16xf32> to vector<256x16xbf16>
    %c1_271 = arith.constant 1 : index
    %c0_272 = arith.constant 0 : index
    %c0_273 = arith.constant 0 : index
    %610 = vector.load %arg7[%c1_271, %c0_272, %c0_273] : memref<4x16x128xbf16, #tpu.memory_space<vmem>>, vector<1x16x128xbf16>
    %611 = vector.shape_cast %610 : vector<1x16x128xbf16> to vector<16x128xbf16>
    %cst_274 = arith.constant dense<0.000000e+00> : vector<256x128xf32>
    %612 = tpu.matmul %609, %611, %cst_274 {dimension_numbers = #tpu.dot_dimension_numbers<[1], [0], [0], [1], [0, 0, 1, 1], [], []>} : vector<256x16xbf16>, vector<16x128xbf16>, vector<256x128xf32> -> vector<256x128xf32>
    %613 = vector.extract_strided_slice %560 {offsets = [0, 128], sizes = [256, 128], strides = [1, 1]} : vector<256x512xf32> to vector<256x128xf32>
    %614 = arith.addf %612, %613 : vector<256x128xf32>
    %c1_275 = arith.constant 1 : index
    %c0_276 = arith.constant 0 : index
    %c0_277 = arith.constant 0 : index
    %615 = vector.load %arg9[%c1_275, %c0_276, %c0_277] : memref<4x1x128xf32, #tpu.memory_space<vmem>>, vector<1x1x128xf32>
    %616 = vector.shape_cast %615 : vector<1x1x128xf32> to vector<1x128xf32>
    %617 = vector.broadcast %616 : vector<1x128xf32> to vector<256x128xf32>
    %618 = arith.addf %614, %617 : vector<256x128xf32>
    %619 = math.tanh %618 : vector<256x128xf32>
    %620 = arith.truncf %619 : vector<256x128xf32> to vector<256x128xbf16>
    %c1_278 = arith.constant 1 : index
    %c0_279 = arith.constant 0 : index
    %c0_280 = arith.constant 0 : index
    %621 = vector.load %arg10[%c1_278, %c0_279, %c0_280] : memref<4x128x32xbf16, #tpu.memory_space<vmem>>, vector<1x128x32xbf16>
    %622 = vector.shape_cast %621 : vector<1x128x32xbf16> to vector<128x32xbf16>
    %cst_281 = arith.constant dense<0.000000e+00> : vector<256x32xf32>
    %623 = tpu.matmul %620, %622, %cst_281 {dimension_numbers = #tpu.dot_dimension_numbers<[1], [0], [0], [1], [0, 0, 1, 1], [], []>} : vector<256x128xbf16>, vector<128x32xbf16>, vector<256x32xf32> -> vector<256x32xf32>
    %c1_282 = arith.constant 1 : index
    %c0_283 = arith.constant 0 : index
    %c0_284 = arith.constant 0 : index
    %624 = vector.load %arg11[%c1_282, %c0_283, %c0_284] : memref<4x1x32xf32, #tpu.memory_space<vmem>>, vector<1x1x32xf32>
    %625 = vector.shape_cast %624 : vector<1x1x32xf32> to vector<1x32xf32>
    %626 = vector.broadcast %625 : vector<1x32xf32> to vector<256x32xf32>
    %627 = arith.addf %623, %626 : vector<256x32xf32>
    %628 = vector.extract_strided_slice %627 {offsets = [0, 0], sizes = [256, 16], strides = [1, 1]} : vector<256x32xf32> to vector<256x16xf32>
    %629 = arith.mulf %628, %607 : vector<256x16xf32>
    %630 = vector.extract_strided_slice %627 {offsets = [0, 16], sizes = [256, 16], strides = [1, 1]} : vector<256x32xf32> to vector<256x16xf32>
    %631 = arith.mulf %630, %607 : vector<256x16xf32>
    %632 = math.exp %629 : vector<256x16xf32>
    %633 = arith.mulf %598, %632 : vector<256x16xf32>
    %634 = arith.addf %633, %631 : vector<256x16xf32>
    %635 = arith.mulf %607, %634 : vector<256x16xf32>
    %636 = arith.addf %608, %635 : vector<256x16xf32>
    %637 = arith.addf %599, %629 : vector<256x16xf32>
    %c2 = arith.constant 2 : index
    %c0_285 = arith.constant 0 : index
    %c0_286 = arith.constant 0 : index
    %638 = vector.load %arg5[%c2, %c0_285, %c0_286] : memref<4x1x16xf32, #tpu.memory_space<vmem>>, vector<1x1x16xf32>
    %639 = vector.shape_cast %638 : vector<1x1x16xf32> to vector<1x16xf32>
    %640 = vector.shape_cast %639 : vector<1x16xf32> to vector<1x16xf32>
    %641 = vector.broadcast %640 : vector<1x16xf32> to vector<256x16xf32>
    %c2_287 = arith.constant 2 : index
    %c0_288 = arith.constant 0 : index
    %c0_289 = arith.constant 0 : index
    %642 = vector.load %arg6[%c2_287, %c0_288, %c0_289] : memref<4x1x16xf32, #tpu.memory_space<vmem>>, vector<1x1x16xf32>
    %643 = vector.shape_cast %642 : vector<1x1x16xf32> to vector<1x16xf32>
    %644 = vector.shape_cast %643 : vector<1x16xf32> to vector<1x16xf32>
    %645 = vector.broadcast %644 : vector<1x16xf32> to vector<256x16xf32>
    %646 = arith.mulf %636, %641 : vector<256x16xf32>
    %647 = arith.truncf %646 : vector<256x16xf32> to vector<256x16xbf16>
    %c2_290 = arith.constant 2 : index
    %c0_291 = arith.constant 0 : index
    %c0_292 = arith.constant 0 : index
    %648 = vector.load %arg7[%c2_290, %c0_291, %c0_292] : memref<4x16x128xbf16, #tpu.memory_space<vmem>>, vector<1x16x128xbf16>
    %649 = vector.shape_cast %648 : vector<1x16x128xbf16> to vector<16x128xbf16>
    %cst_293 = arith.constant dense<0.000000e+00> : vector<256x128xf32>
    %650 = tpu.matmul %647, %649, %cst_293 {dimension_numbers = #tpu.dot_dimension_numbers<[1], [0], [0], [1], [0, 0, 1, 1], [], []>} : vector<256x16xbf16>, vector<16x128xbf16>, vector<256x128xf32> -> vector<256x128xf32>
    %651 = vector.extract_strided_slice %560 {offsets = [0, 256], sizes = [256, 128], strides = [1, 1]} : vector<256x512xf32> to vector<256x128xf32>
    %652 = arith.addf %650, %651 : vector<256x128xf32>
    %c2_294 = arith.constant 2 : index
    %c0_295 = arith.constant 0 : index
    %c0_296 = arith.constant 0 : index
    %653 = vector.load %arg9[%c2_294, %c0_295, %c0_296] : memref<4x1x128xf32, #tpu.memory_space<vmem>>, vector<1x1x128xf32>
    %654 = vector.shape_cast %653 : vector<1x1x128xf32> to vector<1x128xf32>
    %655 = vector.broadcast %654 : vector<1x128xf32> to vector<256x128xf32>
    %656 = arith.addf %652, %655 : vector<256x128xf32>
    %657 = math.tanh %656 : vector<256x128xf32>
    %658 = arith.truncf %657 : vector<256x128xf32> to vector<256x128xbf16>
    %c2_297 = arith.constant 2 : index
    %c0_298 = arith.constant 0 : index
    %c0_299 = arith.constant 0 : index
    %659 = vector.load %arg10[%c2_297, %c0_298, %c0_299] : memref<4x128x32xbf16, #tpu.memory_space<vmem>>, vector<1x128x32xbf16>
    %660 = vector.shape_cast %659 : vector<1x128x32xbf16> to vector<128x32xbf16>
    %cst_300 = arith.constant dense<0.000000e+00> : vector<256x32xf32>
    %661 = tpu.matmul %658, %660, %cst_300 {dimension_numbers = #tpu.dot_dimension_numbers<[1], [0], [0], [1], [0, 0, 1, 1], [], []>} : vector<256x128xbf16>, vector<128x32xbf16>, vector<256x32xf32> -> vector<256x32xf32>
    %c2_301 = arith.constant 2 : index
    %c0_302 = arith.constant 0 : index
    %c0_303 = arith.constant 0 : index
    %662 = vector.load %arg11[%c2_301, %c0_302, %c0_303] : memref<4x1x32xf32, #tpu.memory_space<vmem>>, vector<1x1x32xf32>
    %663 = vector.shape_cast %662 : vector<1x1x32xf32> to vector<1x32xf32>
    %664 = vector.broadcast %663 : vector<1x32xf32> to vector<256x32xf32>
    %665 = arith.addf %661, %664 : vector<256x32xf32>
    %666 = vector.extract_strided_slice %665 {offsets = [0, 0], sizes = [256, 16], strides = [1, 1]} : vector<256x32xf32> to vector<256x16xf32>
    %667 = arith.mulf %666, %645 : vector<256x16xf32>
    %668 = vector.extract_strided_slice %665 {offsets = [0, 16], sizes = [256, 16], strides = [1, 1]} : vector<256x32xf32> to vector<256x16xf32>
    %669 = arith.mulf %668, %645 : vector<256x16xf32>
    %670 = math.exp %667 : vector<256x16xf32>
    %671 = arith.mulf %636, %670 : vector<256x16xf32>
    %672 = arith.addf %671, %669 : vector<256x16xf32>
    %673 = arith.mulf %645, %672 : vector<256x16xf32>
    %674 = arith.addf %646, %673 : vector<256x16xf32>
    %675 = arith.addf %637, %667 : vector<256x16xf32>
    %c3 = arith.constant 3 : index
    %c0_304 = arith.constant 0 : index
    %c0_305 = arith.constant 0 : index
    %676 = vector.load %arg5[%c3, %c0_304, %c0_305] : memref<4x1x16xf32, #tpu.memory_space<vmem>>, vector<1x1x16xf32>
    %677 = vector.shape_cast %676 : vector<1x1x16xf32> to vector<1x16xf32>
    %678 = vector.shape_cast %677 : vector<1x16xf32> to vector<1x16xf32>
    %679 = vector.broadcast %678 : vector<1x16xf32> to vector<256x16xf32>
    %c3_306 = arith.constant 3 : index
    %c0_307 = arith.constant 0 : index
    %c0_308 = arith.constant 0 : index
    %680 = vector.load %arg6[%c3_306, %c0_307, %c0_308] : memref<4x1x16xf32, #tpu.memory_space<vmem>>, vector<1x1x16xf32>
    %681 = vector.shape_cast %680 : vector<1x1x16xf32> to vector<1x16xf32>
    %682 = vector.shape_cast %681 : vector<1x16xf32> to vector<1x16xf32>
    %683 = vector.broadcast %682 : vector<1x16xf32> to vector<256x16xf32>
    %684 = arith.mulf %674, %679 : vector<256x16xf32>
    %685 = arith.truncf %684 : vector<256x16xf32> to vector<256x16xbf16>
    %c3_309 = arith.constant 3 : index
    %c0_310 = arith.constant 0 : index
    %c0_311 = arith.constant 0 : index
    %686 = vector.load %arg7[%c3_309, %c0_310, %c0_311] : memref<4x16x128xbf16, #tpu.memory_space<vmem>>, vector<1x16x128xbf16>
    %687 = vector.shape_cast %686 : vector<1x16x128xbf16> to vector<16x128xbf16>
    %cst_312 = arith.constant dense<0.000000e+00> : vector<256x128xf32>
    %688 = tpu.matmul %685, %687, %cst_312 {dimension_numbers = #tpu.dot_dimension_numbers<[1], [0], [0], [1], [0, 0, 1, 1], [], []>} : vector<256x16xbf16>, vector<16x128xbf16>, vector<256x128xf32> -> vector<256x128xf32>
    %689 = vector.extract_strided_slice %560 {offsets = [0, 384], sizes = [256, 128], strides = [1, 1]} : vector<256x512xf32> to vector<256x128xf32>
    %690 = arith.addf %688, %689 : vector<256x128xf32>
    %c3_313 = arith.constant 3 : index
    %c0_314 = arith.constant 0 : index
    %c0_315 = arith.constant 0 : index
    %691 = vector.load %arg9[%c3_313, %c0_314, %c0_315] : memref<4x1x128xf32, #tpu.memory_space<vmem>>, vector<1x1x128xf32>
    %692 = vector.shape_cast %691 : vector<1x1x128xf32> to vector<1x128xf32>
    %693 = vector.broadcast %692 : vector<1x128xf32> to vector<256x128xf32>
    %694 = arith.addf %690, %693 : vector<256x128xf32>
    %695 = math.tanh %694 : vector<256x128xf32>
    %696 = arith.truncf %695 : vector<256x128xf32> to vector<256x128xbf16>
    %c3_316 = arith.constant 3 : index
    %c0_317 = arith.constant 0 : index
    %c0_318 = arith.constant 0 : index
    %697 = vector.load %arg10[%c3_316, %c0_317, %c0_318] : memref<4x128x32xbf16, #tpu.memory_space<vmem>>, vector<1x128x32xbf16>
    %698 = vector.shape_cast %697 : vector<1x128x32xbf16> to vector<128x32xbf16>
    %cst_319 = arith.constant dense<0.000000e+00> : vector<256x32xf32>
    %699 = tpu.matmul %696, %698, %cst_319 {dimension_numbers = #tpu.dot_dimension_numbers<[1], [0], [0], [1], [0, 0, 1, 1], [], []>} : vector<256x128xbf16>, vector<128x32xbf16>, vector<256x32xf32> -> vector<256x32xf32>
    %c3_320 = arith.constant 3 : index
    %c0_321 = arith.constant 0 : index
    %c0_322 = arith.constant 0 : index
    %700 = vector.load %arg11[%c3_320, %c0_321, %c0_322] : memref<4x1x32xf32, #tpu.memory_space<vmem>>, vector<1x1x32xf32>
    %701 = vector.shape_cast %700 : vector<1x1x32xf32> to vector<1x32xf32>
    %702 = vector.broadcast %701 : vector<1x32xf32> to vector<256x32xf32>
    %703 = arith.addf %699, %702 : vector<256x32xf32>
    %704 = vector.extract_strided_slice %703 {offsets = [0, 0], sizes = [256, 16], strides = [1, 1]} : vector<256x32xf32> to vector<256x16xf32>
    %705 = arith.mulf %704, %683 : vector<256x16xf32>
    %706 = vector.extract_strided_slice %703 {offsets = [0, 16], sizes = [256, 16], strides = [1, 1]} : vector<256x32xf32> to vector<256x16xf32>
    %707 = arith.mulf %706, %683 : vector<256x16xf32>
    %708 = math.exp %705 : vector<256x16xf32>
    %709 = arith.mulf %674, %708 : vector<256x16xf32>
    %710 = arith.addf %709, %707 : vector<256x16xf32>
    %711 = arith.mulf %683, %710 : vector<256x16xf32>
    %712 = arith.addf %684, %711 : vector<256x16xf32>
    %713 = arith.addf %675, %705 : vector<256x16xf32>
    %714 = arith.mulf %712, %712 : vector<256x16xf32>
    %cst_323 = arith.constant 5.000000e-01 : f32
    %715 = vector.broadcast %cst_323 : f32 to vector<256x16xf32>
    %716 = arith.mulf %715, %714 : vector<256x16xf32>
    %717 = arith.subf %713, %716 : vector<256x16xf32>
    %cst_324 = arith.constant 0.918938517 : f32
    %718 = vector.broadcast %cst_324 : f32 to vector<256x16xf32>
    %719 = arith.subf %717, %718 : vector<256x16xf32>
    %720 = vector.shape_cast %719 : vector<256x16xf32> to vector<32x8x16xf32>
    %cst_325 = arith.constant dense<0.000000e+00> : vector<32x8xf32>
    %721 = vector.multi_reduction <add>, %720, %cst_325 [2] : vector<32x8x16xf32> to vector<32x8xf32>
    %722 = vector.shape_cast %721 : vector<32x8xf32> to vector<32x8x1xf32>
    %c0_326 = arith.constant 0 : index
    %c0_327 = arith.constant 0 : index
    %c0_328 = arith.constant 0 : index
    %723 = vector.load %arg1[%c0_326, %c0_327, %c0_328] : memref<32x8x1xf32, #tpu.memory_space<vmem>>, vector<32x8x1xf32>
    %724 = arith.mulf %722, %723 : vector<32x8x1xf32>
    %cst_329 = arith.constant dense<0.000000e+00> : vector<8x1xf32>
    %725 = vector.multi_reduction <add>, %724, %cst_329 [0] : vector<32x8x1xf32> to vector<8x1xf32>
    %726 = vector.shape_cast %725 : vector<8x1xf32> to vector<1x8x1xf32>
    %c0_330 = arith.constant 0 : index
    %c0_331 = arith.constant 0 : index
    %c0_332 = arith.constant 0 : index
    %727 = vector.load %arg12[%c0_330, %c0_331, %c0_332] : memref<1x8x1xf32, #tpu.memory_space<vmem>>, vector<1x8x1xf32>
    tpu.vector_store %arg12[%c0_330, %c0_331, %c0_332], %726 {strides = array<i32>} : memref<1x8x1xf32, #tpu.memory_space<vmem>>, vector<1x8x1xf32>,
    return
  }
  func.func @transform_0(%arg0: i32) -> (i32, i32, i32) {
    %c0_i32 = arith.constant 0 : i32
    %c0_i32_0 = arith.constant 0 : i32
    %c0_i32_1 = arith.constant 0 : i32
    return %arg0, %c0_i32, %c0_i32_0 : i32, i32, i32
  }
  func.func @transform_1(%arg0: i32) -> (i32, i32, i32) {
    %c0_i32 = arith.constant 0 : i32
    %c0_i32_0 = arith.constant 0 : i32
    %c0_i32_1 = arith.constant 0 : i32
    return %arg0, %c0_i32, %c0_i32_0 : i32, i32, i32
  }
  func.func @transform_2(%arg0: i32) -> (i32, i32) {
    %c0_i32 = arith.constant 0 : i32
    %c0_i32_0 = arith.constant 0 : i32
    %c0_i32_1 = arith.constant 0 : i32
    return %c0_i32, %c0_i32_0 : i32, i32
  }
  func.func @transform_3(%arg0: i32) -> (i32, i32) {
    %c0_i32 = arith.constant 0 : i32
    %c0_i32_0 = arith.constant 0 : i32
    %c0_i32_1 = arith.constant 0 : i32
    return %c0_i32, %c0_i32_0 : i32, i32
  }
  func.func @transform_4(%arg0: i32) -> (i32, i32, i32) {
    %c0_i32 = arith.constant 0 : i32
    %c0_i32_0 = arith.constant 0 : i32
    %c0_i32_1 = arith.constant 0 : i32
    %c0_i32_2 = arith.constant 0 : i32
    return %c0_i32, %c0_i32_0, %c0_i32_1 : i32, i32, i32
  }
  func.func @transform_5(%arg0: i32) -> (i32, i32, i32) {
    %c0_i32 = arith.constant 0 : i32
    %c0_i32_0 = arith.constant 0 : i32
    %c0_i32_1 = arith.constant 0 : i32
    %c0_i32_2 = arith.constant 0 : i32
    return %c0_i32, %c0_i32_0, %c0_i32_1 : i32, i32, i32
  }
  func.func @transform_6(%arg0: i32) -> (i32, i32, i32) {
    %c0_i32 = arith.constant 0 : i32
    %c0_i32_0 = arith.constant 0 : i32
    %c0_i32_1 = arith.constant 0 : i32
    %c0_i32_2 = arith.constant 0 : i32
    return %c0_i32, %c0_i32_0, %c0_i32_1 : i32, i32, i32
  }
  func.func @transform_7(%arg0: i32) -> (i32, i32) {
    %c0_i32 = arith.constant 0 : i32
    %c0_i32_0 = arith.constant 0 : i32
    %c0_i32_1 = arith.constant 0 : i32
    return %c0_i32, %c0_i32_0 : i32, i32
  }
  func.func @transform_8(%arg0: i32) -> (i32, i32, i32) {
    %c0_i32 = arith.constant 0 : i32
    %c0_i32_0 = arith.constant 0 : i32
    %c0_i32_1 = arith.constant 0 : i32
    %c0_i32_2 = arith.constant 0 : i32
    return %c0_i32, %c0_i32_0, %c0_i32_1 : i32, i32, i32
  }
  func.func @transform_9(%arg0: i32) -> (i32, i32, i32) {
    %c0_i32 = arith.constant 0 : i32
    %c0_i32_0 = arith.constant 0 : i32
    %c0_i32_1 = arith.constant 0 : i32
    %c0_i32_2 = arith.constant 0 : i32
    return %c0_i32, %c0_i32_0, %c0_i32_1 : i32, i32, i32
  }
  func.func @transform_10(%arg0: i32) -> (i32, i32, i32) {
    %c0_i32 = arith.constant 0 : i32
    %c0_i32_0 = arith.constant 0 : i32
    %c0_i32_1 = arith.constant 0 : i32
    %c0_i32_2 = arith.constant 0 : i32
    return %c0_i32, %c0_i32_0, %c0_i32_1 : i32, i32, i32
  }
  func.func @transform_11(%arg0: i32) -> (i32, i32, i32) {
    %c0_i32 = arith.constant 0 : i32
    %c0_i32_0 = arith.constant 0 : i32
    %c0_i32_1 = arith.constant 0 : i32
    return %arg0, %c0_i32, %c0_i32_0 : i32, i32, i32
  }
}

</mosaic_0001>

<llo_original>
// kernel: tpu_custom_call.1
$region0: #{tpu_custom_call.1}
  #allocation0 [shape = 'u32[]', space=smem, size = 0x4, offset = 0x4, fixed_abs, tag = 'smem constant byte address 0x4 - core index']
  #allocation1 [shape = 'u32[144,128]{1,0:T(1,128)}', space=vmem, size = 0x12000, scoped, tag = 'internal scratch']
  #allocation2 [shape = 'f32[8,128]{1,0:T(8,128)}', space=vmem, size = 0x1000, scoped, tag = 'scratch operand']
  #allocation3 [shape = 'f32[32,8,128]{2,1,0:T(8,128)}', space=vmem, size = 0x20000, scoped, tag = 'scratch operand']
  #allocation4 [shape = 'bf16[32,8,128]{2,1,0:T(8,128)(2,1)}', space=vmem, size = 0x10000, scoped, tag = 'scratch operand']
  %s0 = inlined_call_operand.vmem [shape: f32[64,8,1], index: 0, kind: input, shape index: {}]
  %s1 = inlined_call_operand.vmem [shape: f32[64,8,16], index: 1, kind: input, shape index: {}]
  %s2 = inlined_call_operand.vmem [shape: bf16[16,128], index: 2, kind: input, shape index: {}]
  %s3 = inlined_call_operand.vmem [shape: bf16[128,128], index: 3, kind: input, shape index: {}]
  %s4 = inlined_call_operand.vmem [shape: f32[4,1,16], index: 4, kind: input, shape index: {}]
  %s5 = inlined_call_operand.vmem [shape: f32[4,1,16], index: 5, kind: input, shape index: {}]
  %s6 = inlined_call_operand.vmem [shape: bf16[4,16,128], index: 6, kind: input, shape index: {}]
  %s7 = inlined_call_operand.vmem [shape: bf16[128,512], index: 7, kind: input, shape index: {}]
  %s8 = inlined_call_operand.vmem [shape: f32[4,1,128], index: 8, kind: input, shape index: {}]
  %s9 = inlined_call_operand.vmem [shape: bf16[4,128,32], index: 9, kind: input, shape index: {}]
  %s10 = inlined_call_operand.vmem [shape: f32[4,1,32], index: 10, kind: input, shape index: {}]
  %s11 = inlined_call_operand.vmem [shape: f32[2,8,1], index: 11, kind: output, shape index: {}]
  %s12 = sld [smem:[#allocation0]]
  $region81: #{tpu_custom_call.1} parent=0
    _
  %s14 = ssub.s32 1, %s12
  %s15 = scalar_select 0, %s14, %s12
  loop: start=0, step=1, limit=4
  $region2: #{tpu_custom_call.1} parent=0 // loop_pre_header
    _
  $region3: #{tpu_custom_call.1} parent=0 // loop_header
    %s17 = sphi 0, %s21
    %p18 = scmp.ge.s32.totalorder %s17, 4
    %s27 = sphi 0, %s29
    %s30 = sphi 0, %s27
    %s31 = sphi 0, %s30
    %s47 = sphi 0, %s31
    %s53 = sphi 0, %s55
    %s56 = sphi 0, %s53
    %s57 = sphi 0, %s56
    %s73 = sphi 0, %s57
    %s77 = sphi 0, %s77
    %s79 = sphi 0, %s77
    %s80 = sphi 0, %s79
    %s94 = sphi 0, %s80
    %s98 = sphi 0, %s98
    %s100 = sphi 0, %s98
    %s101 = sphi 0, %s100
    %s115 = sphi 0, %s101
    %s119 = sphi 0, %s119
    %s121 = sphi 0, %s119
    %s122 = sphi 0, %s121
    %s136 = sphi 0, %s122
    %s140 = sphi 0, %s140
    %s142 = sphi 0, %s140
    %s143 = sphi 0, %s142
    %s157 = sphi 0, %s143
    %s161 = sphi 0, %s161
    %s163 = sphi 0, %s161
    %s164 = sphi 0, %s163
    %s178 = sphi 0, %s164
    %s182 = sphi 0, %s182
    %s184 = sphi 0, %s182
    %s185 = sphi 0, %s184
    %s199 = sphi 0, %s185
    %s203 = sphi 0, %s203
    %s205 = sphi 0, %s203
    %s206 = sphi 0, %s205
    %s220 = sphi 0, %s206
    %s224 = sphi 0, %s224
    %s226 = sphi 0, %s224
    %s227 = sphi 0, %s226
    %s241 = sphi 0, %s227
    %s245 = sphi 0, %s245
    %s247 = sphi 0, %s245
    %s248 = sphi 0, %s247
    %s262 = sphi 0, %s248
    %s268 = sphi 0, %s270
    %s271 = sphi 0, %s268
    %s272 = sphi 0, %s271
    %s288 = sphi 0, %s272
  $region4: #{tpu_custom_call.1} parent=0 // loop_header_branch
    %20 = sbr.rel (%p18) target = $region8
  $region5: #{tpu_custom_call.1} parent=0 // loop_body
    %s22 = ssub.s32 %s17, 1
    %s23 = ssub.s32 %s17, 2
    %s24 = sadd.s32 %s17, 1
    %s25 = ssub.s32 %s17, %s24
    %p26 = scmp.eq.s32.totalorder %s25, 0
    %s28 = sadd.s32 %s27, 1
    %s29 = scalar_select %p26, %s27, %s28
    %p32 = pneg %p26
    %p33 = scmp.eq.s32.totalorder %s17, 1
    %p34 = por %p32, %p33
    %p35 = scmp.ne.s32.totalorder %s27, %s30
    %p36 = scmp.eq.s32.totalorder %s17, 0
    %p37 = por %p35, %p36
    %p38 = scmp.ne.s32.totalorder %s27, %s30
    %p39 = scmp.eq.s32.totalorder %s22, 1
    %p40 = por %p38, %p39
    %p41 = scmp.ne.s32.totalorder %s30, %s31
    %p42 = scmp.eq.s32.totalorder %s22, 0
    %p43 = por %p41, %p42
    %p44 = scmp.ne.s32.totalorder %s30, %s31
    %p45 = scmp.eq.s32.totalorder %s23, 1
    %p46 = por %p44, %p45
    %p48 = scmp.ne.s32.totalorder %s31, %s47
    %p49 = scmp.eq.s32.totalorder %s23, 0
    %p50 = por %p48, %p49
    %s51 = ssub.s32 %s17, %s24
    %p52 = scmp.eq.s32.totalorder %s51, 0
    %s54 = sadd.s32 %s53, 1
    %s55 = scalar_select %p52, %s53, %s54
    %p58 = pneg %p52
    %p59 = scmp.eq.s32.totalorder %s17, 1
    %p60 = por %p58, %p59
    %p61 = scmp.ne.s32.totalorder %s53, %s56
    %p62 = scmp.eq.s32.totalorder %s17, 0
    %p63 = por %p61, %p62
    %p64 = scmp.ne.s32.totalorder %s53, %s56
    %p65 = scmp.eq.s32.totalorder %s22, 1
    %p66 = por %p64, %p65
    %p67 = scmp.ne.s32.totalorder %s56, %s57
    %p68 = scmp.eq.s32.totalorder %s22, 0
    %p69 = por %p67, %p68
    %p70 = scmp.ne.s32.totalorder %s56, %s57
    %p71 = scmp.eq.s32.totalorder %s23, 1
    %p72 = por %p70, %p71
    %p74 = scmp.ne.s32.totalorder %s57, %s73
    %p75 = scmp.eq.s32.totalorder %s23, 0
    %p76 = por %p74, %p75
    %s78 = sadd.s32 %s77, 1
    %p81 = scmp.eq.s32.totalorder %s17, 1
    %p82 = scmp.ne.s32.totalorder %s77, %s79
    %p83 = scmp.eq.s32.totalorder %s17, 0
    %p84 = por %p82, %p83
    %p85 = scmp.ne.s32.totalorder %s77, %s79
    %p86 = scmp.eq.s32.totalorder %s22, 1
    %p87 = por %p85, %p86
    %p88 = scmp.ne.s32.totalorder %s79, %s80
    %p89 = scmp.eq.s32.totalorder %s22, 0
    %p90 = por %p88, %p89
    %p91 = scmp.ne.s32.totalorder %s79, %s80
    %p92 = scmp.eq.s32.totalorder %s23, 1
    %p93 = por %p91, %p92
    %p95 = scmp.ne.s32.totalorder %s80, %s94
    %p96 = scmp.eq.s32.totalorder %s23, 0
    %p97 = por %p95, %p96
    %s99 = sadd.s32 %s98, 1
    %p102 = scmp.eq.s32.totalorder %s17, 1
    %p103 = scmp.ne.s32.totalorder %s98, %s100
    %p104 = scmp.eq.s32.totalorder %s17, 0
    %p105 = por %p103, %p104
    %p106 = scmp.ne.s32.totalorder %s98, %s100
    %p107 = scmp.eq.s32.totalorder %s22, 1
    %p108 = por %p106, %p107
    %p109 = scmp.ne.s32.totalorder %s100, %s101
    %p110 = scmp.eq.s32.totalorder %s22, 0
    %p111 = por %p109, %p110
    %p112 = scmp.ne.s32.totalorder %s100, %s101
    %p113 = scmp.eq.s32.totalorder %s23, 1
    %p114 = por %p112, %p113
    %p116 = scmp.ne.s32.totalorder %s101, %s115
    %p117 = scmp.eq.s32.totalorder %s23, 0
    %p118 = por %p116, %p117
    %s120 = sadd.s32 %s119, 1
    %p123 = scmp.eq.s32.totalorder %s17, 1
    %p124 = scmp.ne.s32.totalorder %s119, %s121
    %p125 = scmp.eq.s32.totalorder %s17, 0
    %p126 = por %p124, %p125
    %p127 = scmp.ne.s32.totalorder %s119, %s121
    %p128 = scmp.eq.s32.totalorder %s22, 1
    %p129 = por %p127, %p128
    %p130 = scmp.ne.s32.totalorder %s121, %s122
    %p131 = scmp.eq.s32.totalorder %s22, 0
    %p132 = por %p130, %p131
    %p133 = scmp.ne.s32.totalorder %s121, %s122
    %p134 = scmp.eq.s32.totalorder %s23, 1
    %p135 = por %p133, %p134
    %p137 = scmp.ne.s32.totalorder %s122, %s136
    %p138 = scmp.eq.s32.totalorder %s23, 0
    %p139 = por %p137, %p138
    %s141 = sadd.s32 %s140, 1
    %p144 = scmp.eq.s32.totalorder %s17, 1
    %p145 = scmp.ne.s32.totalorder %s140, %s142
    %p146 = scmp.eq.s32.totalorder %s17, 0
    %p147 = por %p145, %p146
    %p148 = scmp.ne.s32.totalorder %s140, %s142
    %p149 = scmp.eq.s32.totalorder %s22, 1
    %p150 = por %p148, %p149
    %p151 = scmp.ne.s32.totalorder %s142, %s143
    %p152 = scmp.eq.s32.totalorder %s22, 0
    %p153 = por %p151, %p152
    %p154 = scmp.ne.s32.totalorder %s142, %s143
    %p155 = scmp.eq.s32.totalorder %s23, 1
    %p156 = por %p154, %p155
    %p158 = scmp.ne.s32.totalorder %s143, %s157
    %p159 = scmp.eq.s32.totalorder %s23, 0
    %p160 = por %p158, %p159
    %s162 = sadd.s32 %s161, 1
    %p165 = scmp.eq.s32.totalorder %s17, 1
    %p166 = scmp.ne.s32.totalorder %s161, %s163
    %p167 = scmp.eq.s32.totalorder %s17, 0
    %p168 = por %p166, %p167
    %p169 = scmp.ne.s32.totalorder %s161, %s163
    %p170 = scmp.eq.s32.totalorder %s22, 1
    %p171 = por %p169, %p170
    %p172 = scmp.ne.s32.totalorder %s163, %s164
    %p173 = scmp.eq.s32.totalorder %s22, 0
    %p174 = por %p172, %p173
    %p175 = scmp.ne.s32.totalorder %s163, %s164
    %p176 = scmp.eq.s32.totalorder %s23, 1
    %p177 = por %p175, %p176
    %p179 = scmp.ne.s32.totalorder %s164, %s178
    %p180 = scmp.eq.s32.totalorder %s23, 0
    %p181 = por %p179, %p180
    %s183 = sadd.s32 %s182, 1
    %p186 = scmp.eq.s32.totalorder %s17, 1
    %p187 = scmp.ne.s32.totalorder %s182, %s184
    %p188 = scmp.eq.s32.totalorder %s17, 0
    %p189 = por %p187, %p188
    %p190 = scmp.ne.s32.totalorder %s182, %s184
    %p191 = scmp.eq.s32.totalorder %s22, 1
    %p192 = por %p190, %p191
    %p193 = scmp.ne.s32.totalorder %s184, %s185
    %p194 = scmp.eq.s32.totalorder %s22, 0
    %p195 = por %p193, %p194
    %p196 = scmp.ne.s32.totalorder %s184, %s185
    %p197 = scmp.eq.s32.totalorder %s23, 1
    %p198 = por %p196, %p197
    %p200 = scmp.ne.s32.totalorder %s185, %s199
    %p201 = scmp.eq.s32.totalorder %s23, 0
    %p202 = por %p200, %p201
    %s204 = sadd.s32 %s203, 1
    %p207 = scmp.eq.s32.totalorder %s17, 1
    %p208 = scmp.ne.s32.totalorder %s203, %s205
    %p209 = scmp.eq.s32.totalorder %s17, 0
    %p210 = por %p208, %p209
    %p211 = scmp.ne.s32.totalorder %s203, %s205
    %p212 = scmp.eq.s32.totalorder %s22, 1
    %p213 = por %p211, %p212
    %p214 = scmp.ne.s32.totalorder %s205, %s206
    %p215 = scmp.eq.s32.totalorder %s22, 0
    %p216 = por %p214, %p215
    %p217 = scmp.ne.s32.totalorder %s205, %s206
    %p218 = scmp.eq.s32.totalorder %s23, 1
    %p219 = por %p217, %p218
    %p221 = scmp.ne.s32.totalorder %s206, %s220
    %p222 = scmp.eq.s32.totalorder %s23, 0
    %p223 = por %p221, %p222
    %s225 = sadd.s32 %s224, 1
    %p228 = scmp.eq.s32.totalorder %s17, 1
    %p229 = scmp.ne.s32.totalorder %s224, %s226
    %p230 = scmp.eq.s32.totalorder %s17, 0
    %p231 = por %p229, %p230
    %p232 = scmp.ne.s32.totalorder %s224, %s226
    %p233 = scmp.eq.s32.totalorder %s22, 1
    %p234 = por %p232, %p233
    %p235 = scmp.ne.s32.totalorder %s226, %s227
    %p236 = scmp.eq.s32.totalorder %s22, 0
    %p237 = por %p235, %p236
    %p238 = scmp.ne.s32.totalorder %s226, %s227
    %p239 = scmp.eq.s32.totalorder %s23, 1
    %p240 = por %p238, %p239
    %p242 = scmp.ne.s32.totalorder %s227, %s241
    %p243 = scmp.eq.s32.totalorder %s23, 0
    %p244 = por %p242, %p243
    %s246 = sadd.s32 %s245, 1
    %p249 = scmp.eq.s32.totalorder %s17, 1
    %p250 = scmp.ne.s32.totalorder %s245, %s247
    %p251 = scmp.eq.s32.totalorder %s17, 0
    %p252 = por %p250, %p251
    %p253 = scmp.ne.s32.totalorder %s245, %s247
    %p254 = scmp.eq.s32.totalorder %s22, 1
    %p255 = por %p253, %p254
    %p256 = scmp.ne.s32.totalorder %s247, %s248
    %p257 = scmp.eq.s32.totalorder %s22, 0
    %p258 = por %p256, %p257
    %p259 = scmp.ne.s32.totalorder %s247, %s248
    %p260 = scmp.eq.s32.totalorder %s23, 1
    %p261 = por %p259, %p260
    %p263 = scmp.ne.s32.totalorder %s248, %s262
    %p264 = scmp.eq.s32.totalorder %s23, 0
    %p265 = por %p263, %p264
    %s266 = ssub.s32 %s17, %s24
    %p267 = scmp.eq.s32.totalorder %s266, 0
    %s269 = sadd.s32 %s268, 1
    %s270 = scalar_select %p267, %s268, %s269
    %p273 = pneg %p267
    %p274 = scmp.eq.s32.totalorder %s17, 1
    %p275 = por %p273, %p274
    %p276 = scmp.ne.s32.totalorder %s268, %s271
    %p277 = scmp.eq.s32.totalorder %s17, 0
    %p278 = por %p276, %p277
    %p279 = scmp.ne.s32.totalorder %s268, %s271
    %p280 = scmp.eq.s32.totalorder %s22, 1
    %p281 = por %p279, %p280
    %p282 = scmp.ne.s32.totalorder %s271, %s272
    %p283 = scmp.eq.s32.totalorder %s22, 0
    %p284 = por %p282, %p283
    %p285 = scmp.ne.s32.totalorder %s271, %s272
    %p286 = scmp.eq.s32.totalorder %s23, 1
    %p287 = por %p285, %p286
    %p289 = scmp.ne.s32.totalorder %s272, %s288
    %p290 = scmp.eq.s32.totalorder %s23, 0
    %p291 = por %p289, %p290
    %p292 = scmp.le.s32.totalorder 1, %s17
    %p293 = scmp.lt.s32.totalorder %s17, 3
    %p294 = pnand %p292, %p293
    %p295 = pneg %p294
    // Predicated region
    $region9: #{tpu_custom_call.1} parent=5 // pred_check
      _
    $region10: #{tpu_custom_call.1} parent=5 // pred_check_branch
      %297 = sbr.rel (%p294) target = $region12
    $region11: #{tpu_custom_call.1} parent=5 // pred_region
      %s298 = ssub.s32 %s17, 1
      // Predicated region
      $region13: #{tpu_custom_call.1} parent=11 // pred_check
        %p299 = pneg %p90
      $region14: #{tpu_custom_call.1} parent=11 // pred_check_branch
        %301 = sbr.rel (%p299) target = $region16
      $region15: #{tpu_custom_call.1} parent=11 // pred_region
        _
      $region16: #{tpu_custom_call.1} parent=11 // pred_fallthru
        _
      // Predicated region
      $region17: #{tpu_custom_call.1} parent=11 // pred_check
        %p302 = pneg %p111
      $region18: #{tpu_custom_call.1} parent=11 // pred_check_branch
        %304 = sbr.rel (%p302) target = $region20
      $region19: #{tpu_custom_call.1} parent=11 // pred_region
        _
      $region20: #{tpu_custom_call.1} parent=11 // pred_fallthru
        _
      // Predicated region
      $region21: #{tpu_custom_call.1} parent=11 // pred_check
        %p305 = pneg %p132
      $region22: #{tpu_custom_call.1} parent=11 // pred_check_branch
        %307 = sbr.rel (%p305) target = $region24
      $region23: #{tpu_custom_call.1} parent=11 // pred_region
        _
      $region24: #{tpu_custom_call.1} parent=11 // pred_fallthru
        _
      // Predicated region
      $region25: #{tpu_custom_call.1} parent=11 // pred_check
        %p308 = pneg %p153
      $region26: #{tpu_custom_call.1} parent=11 // pred_check_branch
        %310 = sbr.rel (%p308) target = $region28
      $region27: #{tpu_custom_call.1} parent=11 // pred_region
        _
      $region28: #{tpu_custom_call.1} parent=11 // pred_fallthru
        _
      // Predicated region
      $region29: #{tpu_custom_call.1} parent=11 // pred_check
        %p311 = pneg %p174
      $region30: #{tpu_custom_call.1} parent=11 // pred_check_branch
        %313 = sbr.rel (%p311) target = $region32
      $region31: #{tpu_custom_call.1} parent=11 // pred_region
        _
      $region32: #{tpu_custom_call.1} parent=11 // pred_fallthru
        _
      // Predicated region
      $region33: #{tpu_custom_call.1} parent=11 // pred_check
        %p314 = pneg %p195
      $region34: #{tpu_custom_call.1} parent=11 // pred_check_branch
        %316 = sbr.rel (%p314) target = $region36
      $region35: #{tpu_custom_call.1} parent=11 // pred_region
        _
      $region36: #{tpu_custom_call.1} parent=11 // pred_fallthru
        _
      // Predicated region
      $region37: #{tpu_custom_call.1} parent=11 // pred_check
        %p317 = pneg %p216
      $region38: #{tpu_custom_call.1} parent=11 // pred_check_branch
        %319 = sbr.rel (%p317) target = $region40
      $region39: #{tpu_custom_call.1} parent=11 // pred_region
        _
      $region40: #{tpu_custom_call.1} parent=11 // pred_fallthru
        _
      // Predicated region
      $region41: #{tpu_custom_call.1} parent=11 // pred_check
        %p320 = pneg %p237
      $region42: #{tpu_custom_call.1} parent=11 // pred_check_branch
        %322 = sbr.rel (%p320) target = $region44
      $region43: #{tpu_custom_call.1} parent=11 // pred_region
        _
      $region44: #{tpu_custom_call.1} parent=11 // pred_fallthru
        _
      // Predicated region
      $region45: #{tpu_custom_call.1} parent=11 // pred_check
        %p323 = pneg %p258
      $region46: #{tpu_custom_call.1} parent=11 // pred_check_branch
        %325 = sbr.rel (%p323) target = $region48
      $region47: #{tpu_custom_call.1} parent=11 // pred_region
        _
      $region48: #{tpu_custom_call.1} parent=11 // pred_fallthru
        _
    $region12: #{tpu_custom_call.1} parent=5 // pred_fallthru
      _
    %p326 = scmp.lt.s32.totalorder %s17, 2
    // Predicated region
    $region49: #{tpu_custom_call.1} parent=5 // pred_check
      %p327 = pneg %p326
    $region50: #{tpu_custom_call.1} parent=5 // pred_check_branch
      %329 = sbr.rel (%p327) target = $region52
    $region51: #{tpu_custom_call.1} parent=5 // pred_region
      // Predicated region
      $region53: #{tpu_custom_call.1} parent=51 // pred_check
        %p330 = pneg %p37
      $region54: #{tpu_custom_call.1} parent=51 // pred_check_branch
        %332 = sbr.rel (%p330) target = $region56
      $region55: #{tpu_custom_call.1} parent=51 // pred_region
        %s333 = smul.u32 32, %s17
        %p334 = scmp.lt.s32.totalorder %s333, 63
        %s335 = scalar_select %p334, %s333, 63
        %s336 = smul.addr %s335, 8
        %s337 = scalar_lea.vmem %s0, %s336
        %s338 = smul.u32 32, %s17
      $region56: #{tpu_custom_call.1} parent=51 // pred_fallthru
        _
      // Predicated region
      $region57: #{tpu_custom_call.1} parent=51 // pred_check
        %p339 = pneg %p63
      $region58: #{tpu_custom_call.1} parent=51 // pred_check_branch
        %341 = sbr.rel (%p339) target = $region60
      $region59: #{tpu_custom_call.1} parent=51 // pred_region
        %s342 = smul.u32 32, %s17
        %p343 = scmp.lt.s32.totalorder %s342, 63
        %s344 = scalar_select %p343, %s342, 63
        %s345 = smul.addr %s344, 8
        %s346 = scalar_lea.vmem %s1, %s345
        %s347 = smul.u32 32, %s17
      $region60: #{tpu_custom_call.1} parent=51 // pred_fallthru
        _
    $region52: #{tpu_custom_call.1} parent=5 // pred_fallthru
      _
    %p348 = scmp.le.s32.totalorder 1, %s17
    %p349 = scmp.lt.s32.totalorder %s17, 3
    %p350 = pnand %p348, %p349
    %p351 = pneg %p350
    // Predicated region
    $region61: #{tpu_custom_call.1} parent=5 // pred_check
      _
    $region62: #{tpu_custom_call.1} parent=5 // pred_check_branch
      %353 = sbr.rel (%p350) target = $region64
    $region63: #{tpu_custom_call.1} parent=5 // pred_region
      %s354 = ssub.s32 %s17, 1
      %s355 = smul.u32 32, %s22
      %p356 = scmp.lt.s32.totalorder %s355, 63
      %s357 = scalar_select %p356, %s355, 63
      %s358 = smul.addr %s357, 8
      %s359 = scalar_lea.vmem %s0, %s358
      %p360 = pneg %p43
      %p361 = pneg %p40
      %s362 = smul.u32 32, %s22
      %p363 = scmp.lt.s32.totalorder %s362, 63
      %s364 = scalar_select %p363, %s362, 63
      %s365 = smul.addr %s364, 8
      %s366 = scalar_lea.vmem %s1, %s365
      %p367 = pneg %p69
      %p368 = pneg %p66
      %p369 = pneg %p90
      %p370 = pneg %p87
      %p371 = pneg %p111
      %p372 = pneg %p108
      %p373 = pneg %p132
      %p374 = pneg %p129
      %p375 = pneg %p153
      %p376 = pneg %p150
      %p377 = pneg %p174
      %p378 = pneg %p171
      %p379 = pneg %p195
      %p380 = pneg %p192
      %p381 = pneg %p216
      %p382 = pneg %p213
      %p383 = pneg %p237
      %p384 = pneg %p234
      %p385 = pneg %p258
      %p386 = pneg %p255
      %p387 = pneg %p284
      %p388 = pneg %p281
      %p389 = scmp.lt.s32.totalorder %s22, 1
      %s390 = scalar_select %p389, %s22, 1
      %s391 = smul.addr %s390, 8
      %s392 = scalar_lea.vmem %s11, %s391
      %s393 = smul.u32 32, %s22
      %p394 = scmp.lt.s32.totalorder %s393, 63
      %s395 = scalar_select %p394, %s393, 63
      %s396 = smul.addr %s395, 8
      %s397 = scalar_lea.vmem %s0, %s396
      %s398 = smul.u32 32, %s22
      %s399 = smul.u32 32, %s22
      %p400 = scmp.lt.s32.totalorder %s399, 63
      %s401 = scalar_select %p400, %s399, 63
      %s402 = smul.addr %s401, 8
      %s403 = scalar_lea.vmem %s1, %s402
      %s404 = smul.u32 32, %s22
      %p405 = scmp.lt.s32.totalorder %s22, 1
      %s406 = scalar_select %p405, %s22, 1
      %s407 = smul.addr %s406, 8
      %s408 = scalar_lea.vmem %s11, %s407
      %p410 = scmp.eq.s32.totalorder %s22, 0
      // Predicated region
      $region65: #{tpu_custom_call.1} parent=63 // pred_check
        %p411 = pneg %p410
      $region66: #{tpu_custom_call.1} parent=63 // pred_check_branch
        %413 = sbr.rel (%p411) target = $region68
      $region67: #{tpu_custom_call.1} parent=63 // pred_region
        %414 = vst [vmem:[#allocation2] sm:$0xff] 0.0
      $region68: #{tpu_custom_call.1} parent=63 // pred_fallthru
        _
      %v415 = vld [vmem:[%s403] sm:$0xff]
      %v416 = vld [vmem:[%s403 + $0x8] sm:$0xff]
      %v417 = vld [vmem:[%s403 + $0x10] sm:$0xff]
      %v418 = vld [vmem:[%s403 + $0x18] sm:$0xff]
      %v419 = vld [vmem:[%s403 + $0x20] sm:$0xff]
      %v420 = vld [vmem:[%s403 + $0x28] sm:$0xff]
      %v421 = vld [vmem:[%s403 + $0x30] sm:$0xff]
      %v422 = vld [vmem:[%s403 + $0x38] sm:$0xff]
      %v423 = vld [vmem:[%s403 + $0x40] sm:$0xff]
      %v424 = vld [vmem:[%s403 + $0x48] sm:$0xff]
      %v425 = vld [vmem:[%s403 + $0x50] sm:$0xff]
      %v426 = vld [vmem:[%s403 + $0x58] sm:$0xff]
      %v427 = vld [vmem:[%s403 + $0x60] sm:$0xff]
      %v428 = vld [vmem:[%s403 + $0x68] sm:$0xff]
      %v429 = vld [vmem:[%s403 + $0x70] sm:$0xff]
      %v430 = vld [vmem:[%s403 + $0x78] sm:$0xff]
      %v431 = vld [vmem:[%s403 + $0x80] sm:$0xff]
      %v432 = vld [vmem:[%s403 + $0x88] sm:$0xff]
      %v433 = vld [vmem:[%s403 + $0x90] sm:$0xff]
      %v434 = vld [vmem:[%s403 + $0x98] sm:$0xff]
      %v435 = vld [vmem:[%s403 + $0xa0] sm:$0xff]
      %v436 = vld [vmem:[%s403 + $0xa8] sm:$0xff]
      %v437 = vld [vmem:[%s403 + $0xb0] sm:$0xff]
      %v438 = vld [vmem:[%s403 + $0xb8] sm:$0xff]
      %v439 = vld [vmem:[%s403 + $0xc0] sm:$0xff]
      %v440 = vld [vmem:[%s403 + $0xc8] sm:$0xff]
      %v441 = vld [vmem:[%s403 + $0xd0] sm:$0xff]
      %v442 = vld [vmem:[%s403 + $0xd8] sm:$0xff]
      %v443 = vld [vmem:[%s403 + $0xe0] sm:$0xff]
      %v444 = vld [vmem:[%s403 + $0xe8] sm:$0xff]
      %v445 = vld [vmem:[%s403 + $0xf0] sm:$0xff]
      %v446 = vld [vmem:[%s403 + $0xf8] sm:$0xff]
      %v447 = vpack.c.bf16 %v416, %v415
      %v448 = vpack.c.bf16 %v418, %v417
      %v449 = vpack.c.bf16 %v420, %v419
      %v450 = vpack.c.bf16 %v422, %v421
      %v451 = vpack.c.bf16 %v424, %v423
      %v452 = vpack.c.bf16 %v426, %v425
      %v453 = vpack.c.bf16 %v428, %v427
      %v454 = vpack.c.bf16 %v430, %v429
      %v455 = vpack.c.bf16 %v432, %v431
      %v456 = vpack.c.bf16 %v434, %v433
      %v457 = vpack.c.bf16 %v436, %v435
      %v458 = vpack.c.bf16 %v438, %v437
      %v459 = vpack.c.bf16 %v440, %v439
      %v460 = vpack.c.bf16 %v442, %v441
      %v461 = vpack.c.bf16 %v444, %v443
      %v462 = vpack.c.bf16 %v446, %v445
      %v463 = vld [vmem:[%s2] sm:$0xf]
      %v464 = vld [vmem:[%s2 + $0x4] sm:$0xf]
      %v467 = vunpack.c.l.b16 %v463
      %v468 = vunpack.c.l.b16 %v464
      %v469 = vpack.c.b16 %v468, %v467
      %vm471 = vcmask 130048
      %v473 = vsel %vm471, %v447, 0
      %v476 = vsel %vm471, %v448, 0
      %v479 = vsel %vm471, %v449, 0
      %v482 = vsel %vm471, %v450, 0
      %v485 = vsel %vm471, %v451, 0
      %v488 = vsel %vm471, %v452, 0
      %v491 = vsel %vm471, %v453, 0
      %v494 = vsel %vm471, %v454, 0
      %v497 = vsel %vm471, %v455, 0
      %v500 = vsel %vm471, %v456, 0
      %v503 = vsel %vm471, %v457, 0
      %v506 = vsel %vm471, %v458, 0
      %v509 = vsel %vm471, %v459, 0
      %v512 = vsel %vm471, %v460, 0
      %v515 = vsel %vm471, %v461, 0
      %v518 = vsel %vm471, %v462, 0
      %520 = vmatprep.subr.bf16.mxu0 0
      %521 = vmatpush1.bf16.msra.mxu0 %v469
      %522 = vmatprep.subr.bf16.mxu0 0
      %523 = vmatpush1.bf16.msra.mxu0 0
      %524 = vmatprep.subr.bf16.mxu0 0
      %525 = vmatpush1.bf16.msra.mxu0 0
      %526 = vmatprep.subr.bf16.mxu0 0
      %527 = vmatpush1.bf16.msra.mxu0 0
      %528 = vmatprep.subr.bf16.mxu0 0
      %529 = vmatpush1.bf16.msra.mxu0 0
      %530 = vmatprep.subr.bf16.mxu0 0
      %531 = vmatpush1.bf16.msra.mxu0 0
      %532 = vmatprep.subr.bf16.mxu0 0
      %533 = vmatpush1.bf16.msra.mxu0 0
      %534 = vmatprep.subr.bf16.mxu0 0
      %535 = vmatpush1.bf16.msra.mxu0 0
      %536 = vmatprep.subr.bf16.mxu0 0
      %537 = vmatpush1.bf16.msra.mxu0 0
      %538 = vmatprep.subr.bf16.mxu0 0
      %539 = vmatpush1.bf16.msra.mxu0 0
      %540 = vmatprep.subr.bf16.mxu0 0
      %541 = vmatpush1.bf16.msra.mxu0 0
      %542 = vmatprep.subr.bf16.mxu0 0
      %543 = vmatpush1.bf16.msra.mxu0 0
      %544 = vmatprep.subr.bf16.mxu0 0
      %545 = vmatpush1.bf16.msra.mxu0 0
      %546 = vmatprep.subr.bf16.mxu0 0
      %547 = vmatpush1.bf16.msra.mxu0 0
      %548 = vmatprep.subr.bf16.mxu0 0
      %549 = vmatpush1.bf16.msra.mxu0 0
      %550 = vmatprep.subr.bf16.mxu0 0
      %551 = vmatpush1.bf16.msra.mxu0 0
      %552 = vmatprep.mubr.bf16.mxu0 0
      %553 = vmatmul.mubr.bf16.gmra.mrb[0].mxu0 %v473
      %v554 = vpop.f32.mrb[0].mxu0
      %v555 = vadd.f32 0.0, %v554
      %v556 = vpop.f32.mrb[0].mxu0
      %v557 = vpop.f32.mrb[0].mxu0
      %v558 = vadd.f32 0.0, %v557
      %v559 = vpop.f32.mrb[0].mxu0
      %560 = vmatprep.mubr.bf16.mxu0 0
      %561 = vmatmul.mubr.bf16.gmra.mrb[0].mxu0 %v476
      %v562 = vpop.f32.mrb[0].mxu0
      %v563 = vadd.f32 0.0, %v562
      %v564 = vpop.f32.mrb[0].mxu0
      %v565 = vpop.f32.mrb[0].mxu0
      %v566 = vadd.f32 0.0, %v565
      %v567 = vpop.f32.mrb[0].mxu0
      %568 = vmatprep.mubr.bf16.mxu0 0
      %569 = vmatmul.mubr.bf16.gmra.mrb[0].mxu0 %v479
      %v570 = vpop.f32.mrb[0].mxu0
      %v571 = vadd.f32 0.0, %v570
      %v572 = vpop.f32.mrb[0].mxu0
      %v573 = vpop.f32.mrb[0].mxu0
      %v574 = vadd.f32 0.0, %v573
      %v575 = vpop.f32.mrb[0].mxu0
      %576 = vmatprep.mubr.bf16.mxu0 0
      %577 = vmatmul.mubr.bf16.gmra.mrb[0].mxu0 %v482
      %v578 = vpop.f32.mrb[0].mxu0
      %v579 = vadd.f32 0.0, %v578
      %v580 = vpop.f32.mrb[0].mxu0
      %v581 = vpop.f32.mrb[0].mxu0
      %v582 = vadd.f32 0.0, %v581
      %v583 = vpop.f32.mrb[0].mxu0
      %584 = vmatprep.mubr.bf16.mxu0 0
      %585 = vmatmul.mubr.bf16.gmra.mrb[0].mxu0 %v485
      %v586 = vpop.f32.mrb[0].mxu0
      %v587 = vadd.f32 0.0, %v586
      %v588 = vpop.f32.mrb[0].mxu0
      %v589 = vpop.f32.mrb[0].mxu0
      %v590 = vadd.f32 0.0, %v589
      %v591 = vpop.f32.mrb[0].mxu0
      %592 = vmatprep.mubr.bf16.mxu0 0
      %593 = vmatmul.mubr.bf16.gmra.mrb[0].mxu0 %v488
      %v594 = vpop.f32.mrb[0].mxu0
      %v595 = vadd.f32 0.0, %v594
      %v596 = vpop.f32.mrb[0].mxu0
      %v597 = vpop.f32.mrb[0].mxu0
      %v598 = vadd.f32 0.0, %v597
      %v599 = vpop.f32.mrb[0].mxu0
      %600 = vmatprep.mubr.bf16.mxu0 0
      %601 = vmatmul.mubr.bf16.gmra.mrb[0].mxu0 %v491
      %v602 = vpop.f32.mrb[0].mxu0
      %v603 = vadd.f32 0.0, %v602
      %v604 = vpop.f32.mrb[0].mxu0
      %v605 = vpop.f32.mrb[0].mxu0
      %v606 = vadd.f32 0.0, %v605
      %v607 = vpop.f32.mrb[0].mxu0
      %608 = vmatprep.mubr.bf16.mxu0 0
      %609 = vmatmul.mubr.bf16.gmra.mrb[0].mxu0 %v494
      %v610 = vpop.f32.mrb[0].mxu0
      %v611 = vadd.f32 0.0, %v610
      %v612 = vpop.f32.mrb[0].mxu0
      %v613 = vpop.f32.mrb[0].mxu0
      %v614 = vadd.f32 0.0, %v613
      %v615 = vpop.f32.mrb[0].mxu0
      %616 = vmatprep.mubr.bf16.mxu0 0
      %617 = vmatmul.mubr.bf16.gmra.mrb[0].mxu0 %v497
      %v618 = vpop.f32.mrb[0].mxu0
      %v619 = vadd.f32 0.0, %v618
      %v620 = vpop.f32.mrb[0].mxu0
      %v621 = vpop.f32.mrb[0].mxu0
      %v622 = vadd.f32 0.0, %v621
      %v623 = vpop.f32.mrb[0].mxu0
      %624 = vmatprep.mubr.bf16.mxu0 0
      %625 = vmatmul.mubr.bf16.gmra.mrb[0].mxu0 %v500
      %v626 = vpop.f32.mrb[0].mxu0
      %v627 = vadd.f32 0.0, %v626
      %v628 = vpop.f32.mrb[0].mxu0
      %v629 = vpop.f32.mrb[0].mxu0
      %v630 = vadd.f32 0.0, %v629
      %v631 = vpop.f32.mrb[0].mxu0
      %632 = vmatprep.mubr.bf16.mxu0 0
      %633 = vmatmul.mubr.bf16.gmra.mrb[0].mxu0 %v503
      %v634 = vpop.f32.mrb[0].mxu0
      %v635 = vadd.f32 0.0, %v634
      %v636 = vpop.f32.mrb[0].mxu0
      %v637 = vpop.f32.mrb[0].mxu0
      %v638 = vadd.f32 0.0, %v637
      %v639 = vpop.f32.mrb[0].mxu0
      %640 = vmatprep.mubr.bf16.mxu0 0
      %641 = vmatmul.mubr.bf16.gmra.mrb[0].mxu0 %v506
      %v642 = vpop.f32.mrb[0].mxu0
      %v643 = vadd.f32 0.0, %v642
      %v644 = vpop.f32.mrb[0].mxu0
      %v645 = vpop.f32.mrb[0].mxu0
      %v646 = vadd.f32 0.0, %v645
      %v647 = vpop.f32.mrb[0].mxu0
      %648 = vmatprep.mubr.bf16.mxu0 0
      %649 = vmatmul.mubr.bf16.gmra.mrb[0].mxu0 %v509
      %v650 = vpop.f32.mrb[0].mxu0
      %v651 = vadd.f32 0.0, %v650
      %v652 = vpop.f32.mrb[0].mxu0
      %v653 = vpop.f32.mrb[0].mxu0
      %v654 = vadd.f32 0.0, %v653
      %v655 = vpop.f32.mrb[0].mxu0
      %656 = vmatprep.mubr.bf16.mxu0 0
      %657 = vmatmul.mubr.bf16.gmra.mrb[0].mxu0 %v512
      %v658 = vpop.f32.mrb[0].mxu0
      %v659 = vadd.f32 0.0, %v658
      %v660 = vpop.f32.mrb[0].mxu0
      %v661 = vpop.f32.mrb[0].mxu0
      %v662 = vadd.f32 0.0, %v661
      %v663 = vpop.f32.mrb[0].mxu0
      %664 = vmatprep.mubr.bf16.mxu0 0
      %665 = vmatmul.mubr.bf16.gmra.mrb[0].mxu0 %v515
      %v666 = vpop.f32.mrb[0].mxu0
      %v667 = vadd.f32 0.0, %v666
      %v668 = vpop.f32.mrb[0].mxu0
      %v669 = vpop.f32.mrb[0].mxu0
      %v670 = vadd.f32 0.0, %v669
      %v671 = vpop.f32.mrb[0].mxu0
      %672 = vmatprep.mubr.bf16.mxu0 0
      %673 = vmatmul.mubr.bf16.gmra.mrb[0].mxu0 %v518
      %v674 = vpop.f32.mrb[0].mxu0
      %v675 = vadd.f32 0.0, %v674
      %v676 = vpop.f32.mrb[0].mxu0
      %v677 = vpop.f32.mrb[0].mxu0
      %v678 = vadd.f32 0.0, %v677
      %v679 = vpop.f32.mrb[0].mxu0
      %680 = vdwg.mxu0
      %681 = vst [vmem:[#allocation3] sm:$0xff] %v555
      %682 = vst [vmem:[#allocation3 + $0x8] sm:$0xff] %v558
      %683 = vst [vmem:[#allocation3 + $0x10] sm:$0xff] %v563
      %684 = vst [vmem:[#allocation3 + $0x18] sm:$0xff] %v566
      %685 = vst [vmem:[#allocation3 + $0x20] sm:$0xff] %v571
      %686 = vst [vmem:[#allocation3 + $0x28] sm:$0xff] %v574
      %687 = vst [vmem:[#allocation3 + $0x30] sm:$0xff] %v579
      %688 = vst [vmem:[#allocation3 + $0x38] sm:$0xff] %v582
      %689 = vst [vmem:[#allocation3 + $0x40] sm:$0xff] %v587
      %690 = vst [vmem:[#allocation3 + $0x48] sm:$0xff] %v590
      %691 = vst [vmem:[#allocation3 + $0x50] sm:$0xff] %v595
      %692 = vst [vmem:[#allocation3 + $0x58] sm:$0xff] %v598
      %693 = vst [vmem:[#allocation3 + $0x60] sm:$0xff] %v603
      %694 = vst [vmem:[#allocation3 + $0x68] sm:$0xff] %v606
      %695 = vst [vmem:[#allocation3 + $0x70] sm:$0xff] %v611
      %696 = vst [vmem:[#allocation3 + $0x78] sm:$0xff] %v614
      %697 = vst [vmem:[#allocation3 + $0x80] sm:$0xff] %v619
      %698 = vst [vmem:[#allocation3 + $0x88] sm:$0xff] %v622
      %699 = vst [vmem:[#allocation3 + $0x90] sm:$0xff] %v627
      %700 = vst [vmem:[#allocation3 + $0x98] sm:$0xff] %v630
      %701 = vst [vmem:[#allocation3 + $0xa0] sm:$0xff] %v635
      %702 = vst [vmem:[#allocation3 + $0xa8] sm:$0xff] %v638
      %703 = vst [vmem:[#allocation3 + $0xb0] sm:$0xff] %v643
      %704 = vst [vmem:[#allocation3 + $0xb8] sm:$0xff] %v646
      %705 = vst [vmem:[#allocation3 + $0xc0] sm:$0xff] %v651
      %706 = vst [vmem:[#allocation3 + $0xc8] sm:$0xff] %v654
      %707 = vst [vmem:[#allocation3 + $0xd0] sm:$0xff] %v659
      %708 = vst [vmem:[#allocation3 + $0xd8] sm:$0xff] %v662
      %709 = vst [vmem:[#allocation3 + $0xe0] sm:$0xff] %v667
      %710 = vst [vmem:[#allocation3 + $0xe8] sm:$0xff] %v670
      %711 = vst [vmem:[#allocation3 + $0xf0] sm:$0xff] %v675
      %712 = vst [vmem:[#allocation3 + $0xf8] sm:$0xff] %v678
      %v713 = vld [vmem:[%s3] sm:$0xf]
      %v714 = vld [vmem:[%s3 + $0x4] sm:$0xf]
      %v715 = vld [vmem:[%s3 + $0x8] sm:$0xf]
      %v716 = vld [vmem:[%s3 + $0xc] sm:$0xf]
      %v717 = vld [vmem:[%s3 + $0x10] sm:$0xf]
      %v718 = vld [vmem:[%s3 + $0x14] sm:$0xf]
      %v719 = vld [vmem:[%s3 + $0x18] sm:$0xf]
      %v720 = vld [vmem:[%s3 + $0x1c] sm:$0xf]
      %v721 = vld [vmem:[%s3 + $0x20] sm:$0xf]
      %v722 = vld [vmem:[%s3 + $0x24] sm:$0xf]
      %v723 = vld [vmem:[%s3 + $0x28] sm:$0xf]
      %v724 = vld [vmem:[%s3 + $0x2c] sm:$0xf]
      %v725 = vld [vmem:[%s3 + $0x30] sm:$0xf]
      %v726 = vld [vmem:[%s3 + $0x34] sm:$0xf]
      %v727 = vld [vmem:[%s3 + $0x38] sm:$0xf]
      %v728 = vld [vmem:[%s3 + $0x3c] sm:$0xf]
      %v729 = vld [vmem:[#allocation2] sm:$0xff]
      %v730 = vpack.c.bf16 %v729, %v729
      %731 = vst [vmem:[#allocation4] sm:$0xf] %v730
      %v732 = vld [vmem:[#allocation3] sm:$0xff]
      %v749 = vunpack.c.l.b16 %v713
      %v750 = vunpack.c.l.b16 %v714
      %v751 = vunpack.c.l.b16 %v715
      %v752 = vunpack.c.l.b16 %v716
      %v753 = vunpack.c.l.b16 %v717
      %v754 = vunpack.c.l.b16 %v718
      %v755 = vunpack.c.l.b16 %v719
      %v756 = vunpack.c.l.b16 %v720
      %v757 = vunpack.c.l.b16 %v721
      %v758 = vunpack.c.l.b16 %v722
      %v759 = vunpack.c.l.b16 %v723
      %v760 = vunpack.c.l.b16 %v724
      %v761 = vunpack.c.l.b16 %v725
      %v762 = vunpack.c.l.b16 %v726
      %v763 = vunpack.c.l.b16 %v727
      %v764 = vunpack.c.l.b16 %v728
      %v765 = vpack.c.b16 %v750, %v749
      %v766 = vpack.c.b16 %v752, %v751
      %v767 = vpack.c.b16 %v754, %v753
      %v768 = vpack.c.b16 %v756, %v755
      %v769 = vpack.c.b16 %v758, %v757
      %v770 = vpack.c.b16 %v760, %v759
      %v771 = vpack.c.b16 %v762, %v761
      %v772 = vpack.c.b16 %v764, %v763
      %781 = vmatprep.subr.bf16.mxu0 0
      %782 = vmatpush1.bf16.msra.mxu0 %v765
      %783 = vmatprep.subr.bf16.mxu0 0
      %784 = vmatpush1.bf16.msra.mxu0 %v766
      %785 = vmatprep.subr.bf16.mxu0 0
      %786 = vmatpush1.bf16.msra.mxu0 %v767
      %787 = vmatprep.subr.bf16.mxu0 0
      %788 = vmatpush1.bf16.msra.mxu0 %v768
      %789 = vmatprep.subr.bf16.mxu0 0
      %790 = vmatpush1.bf16.msra.mxu0 %v769
      %791 = vmatprep.subr.bf16.mxu0 0
      %792 = vmatpush1.bf16.msra.mxu0 %v770
      %793 = vmatprep.subr.bf16.mxu0 0
      %794 = vmatpush1.bf16.msra.mxu0 %v771
      %795 = vmatprep.subr.bf16.mxu0 0
      %796 = vmatpush1.bf16.msra.mxu0 %v772
      %797 = vmatprep.subr.bf16.mxu0 0
      %798 = vmatpush1.bf16.msra.mxu0 0
      %799 = vmatprep.subr.bf16.mxu0 0
      %800 = vmatpush1.bf16.msra.mxu0 0
      %801 = vmatprep.subr.bf16.mxu0 0
      %802 = vmatpush1.bf16.msra.mxu0 0
      %803 = vmatprep.subr.bf16.mxu0 0
      %804 = vmatpush1.bf16.msra.mxu0 0
      %805 = vmatprep.subr.bf16.mxu0 0
      %806 = vmatpush1.bf16.msra.mxu0 0
      %807 = vmatprep.subr.bf16.mxu0 0
      %808 = vmatpush1.bf16.msra.mxu0 0
      %809 = vmatprep.subr.bf16.mxu0 0
      %810 = vmatpush1.bf16.msra.mxu0 0
      %811 = vmatprep.subr.bf16.mxu0 0
      %812 = vmatpush1.bf16.msra.mxu0 0
      %813 = vmatprep.mubr.bf16.mxu0 0
      %814 = vmatmul.mubr.bf16.gmra.mrb[0].mxu0 %v730
      %v815 = vpop.f32.mrb[0].mxu0
      %v816 = vadd.f32 0.0, %v815
      %v817 = vpop.f32.mrb[0].mxu0
      %v818 = vpop.f32.mrb[0].mxu0
      %v819 = vpop.f32.mrb[0].mxu0
      %820 = vdwg.mxu0
      %v821 = vadd.f32 %v732, %v816
      %v822 = vmul.f32 %v729, 0.0
      %v823 = vtanh.pop %v821
      %v824 = vadd.f32 %v822, %v823
      %v825 = vpack.c.bf16 %v824, %v824
      %s826 = scalar_lea.vmem [#allocation4], 4
      %827 = vst [vmem:[%s826] sm:$0xf] %v825
      %s828 = scalar_lea.vmem [#allocation3], 8
      %v829 = vld [vmem:[%s828] sm:$0xff]
      %830 = vmatprep.subr.bf16.mxu0 0
      %831 = vmatpush1.bf16.msra.mxu0 %v765
      %832 = vmatprep.subr.bf16.mxu0 0
      %833 = vmatpush1.bf16.msra.mxu0 %v766
      %834 = vmatprep.subr.bf16.mxu0 0
      %835 = vmatpush1.bf16.msra.mxu0 %v767
      %836 = vmatprep.subr.bf16.mxu0 0
      %837 = vmatpush1.bf16.msra.mxu0 %v768
      %838 = vmatprep.subr.bf16.mxu0 0
      %839 = vmatpush1.bf16.msra.mxu0 %v769
      %840 = vmatprep.subr.bf16.mxu0 0
      %841 = vmatpush1.bf16.msra.mxu0 %v770
      %842 = vmatprep.subr.bf16.mxu0 0
      %843 = vmatpush1.bf16.msra.mxu0 %v771
      %844 = vmatprep.subr.bf16.mxu0 0
      %845 = vmatpush1.bf16.msra.mxu0 %v772
      %846 = vmatprep.subr.bf16.mxu0 0
      %847 = vmatpush1.bf16.msra.mxu0 0
      %848 = vmatprep.subr.bf16.mxu0 0
      %849 = vmatpush1.bf16.msra.mxu0 0
      %850 = vmatprep.subr.bf16.mxu0 0
      %851 = vmatpush1.bf16.msra.mxu0 0
      %852 = vmatprep.subr.bf16.mxu0 0
      %853 = vmatpush1.bf16.msra.mxu0 0
      %854 = vmatprep.subr.bf16.mxu0 0
      %855 = vmatpush1.bf16.msra.mxu0 0
      %856 = vmatprep.subr.bf16.mxu0 0
      %857 = vmatpush1.bf16.msra.mxu0 0
      %858 = vmatprep.subr.bf16.mxu0 0
      %859 = vmatpush1.bf16.msra.mxu0 0
      %860 = vmatprep.subr.bf16.mxu0 0
      %861 = vmatpush1.bf16.msra.mxu0 0
      %862 = vmatprep.mubr.bf16.mxu0 0
      %863 = vmatmul.mubr.bf16.gmra.mrb[0].mxu0 %v825
      %v864 = vpop.f32.mrb[0].mxu0
      %v865 = vadd.f32 0.0, %v864
      %v866 = vpop.f32.mrb[0].mxu0
      %v867 = vpop.f32.mrb[0].mxu0
      %v868 = vpop.f32.mrb[0].mxu0
      %869 = vdwg.mxu0
      %v870 = vadd.f32 %v829, %v865
      %v871 = vmul.f32 %v824, 0.0
      %v872 = vtanh.pop %v870
      %v873 = vadd.f32 %v871, %v872
      %v874 = vpack.c.bf16 %v873, %v873
      %s875 = scalar_lea.vmem [#allocation4], 8
      %876 = vst [vmem:[%s875] sm:$0xf] %v874
      %s877 = scalar_lea.vmem [#allocation3], 16
      %v878 = vld [vmem:[%s877] sm:$0xff]
      %879 = vmatprep.subr.bf16.mxu0 0
      %880 = vmatpush1.bf16.msra.mxu0 %v765
      %881 = vmatprep.subr.bf16.mxu0 0
      %882 = vmatpush1.bf16.msra.mxu0 %v766
      %883 = vmatprep.subr.bf16.mxu0 0
      %884 = vmatpush1.bf16.msra.mxu0 %v767
      %885 = vmatprep.subr.bf16.mxu0 0
      %886 = vmatpush1.bf16.msra.mxu0 %v768
      %887 = vmatprep.subr.bf16.mxu0 0
      %888 = vmatpush1.bf16.msra.mxu0 %v769
      %889 = vmatprep.subr.bf16.mxu0 0
      %890 = vmatpush1.bf16.msra.mxu0 %v770
      %891 = vmatprep.subr.bf16.mxu0 0
      %892 = vmatpush1.bf16.msra.mxu0 %v771
      %893 = vmatprep.subr.bf16.mxu0 0
      %894 = vmatpush1.bf16.msra.mxu0 %v772
      %895 = vmatprep.subr.bf16.mxu0 0
      %896 = vmatpush1.bf16.msra.mxu0 0
      %897 = vmatprep.subr.bf16.mxu0 0
      %898 = vmatpush1.bf16.msra.mxu0 0
      %899 = vmatprep.subr.bf16.mxu0 0
      %900 = vmatpush1.bf16.msra.mxu0 0
      %901 = vmatprep.subr.bf16.mxu0 0
      %902 = vmatpush1.bf16.msra.mxu0 0
      %903 = vmatprep.subr.bf16.mxu0 0
      %904 = vmatpush1.bf16.msra.mxu0 0
      %905 = vmatprep.subr.bf16.mxu0 0
      %906 = vmatpush1.bf16.msra.mxu0 0
      %907 = vmatprep.subr.bf16.mxu0 0
      %908 = vmatpush1.bf16.msra.mxu0 0
      %909 = vmatprep.subr.bf16.mxu0 0
      %910 = vmatpush1.bf16.msra.mxu0 0
      %911 = vmatprep.mubr.bf16.mxu0 0
      %912 = vmatmul.mubr.bf16.gmra.mrb[0].mxu0 %v874
      %v913 = vpop.f32.mrb[0].mxu0
      %v914 = vadd.f32 0.0, %v913
      %v915 = vpop.f32.mrb[0].mxu0
      %v916 = vpop.f32.mrb[0].mxu0
      %v917 = vpop.f32.mrb[0].mxu0
      %918 = vdwg.mxu0
      %v919 = vadd.f32 %v878, %v914
      %v920 = vmul.f32 %v873, 0.0
      %v921 = vtanh.pop %v919
      %v922 = vadd.f32 %v920, %v921
      %v923 = vpack.c.bf16 %v922, %v922
      %s924 = scalar_lea.vmem [#allocation4], 12
      %925 = vst [vmem:[%s924] sm:$0xf] %v923
      %s926 = scalar_lea.vmem [#allocation3], 24
      %v927 = vld [vmem:[%s926] sm:$0xff]
      %928 = vmatprep.subr.bf16.mxu0 0
      %929 = vmatpush1.bf16.msra.mxu0 %v765
      %930 = vmatprep.subr.bf16.mxu0 0
      %931 = vmatpush1.bf16.msra.mxu0 %v766
      %932 = vmatprep.subr.bf16.mxu0 0
      %933 = vmatpush1.bf16.msra.mxu0 %v767
      %934 = vmatprep.subr.bf16.mxu0 0
      %935 = vmatpush1.bf16.msra.mxu0 %v768
      %936 = vmatprep.subr.bf16.mxu0 0
      %937 = vmatpush1.bf16.msra.mxu0 %v769
      %938 = vmatprep.subr.bf16.mxu0 0
      %939 = vmatpush1.bf16.msra.mxu0 %v770
      %940 = vmatprep.subr.bf16.mxu0 0
      %941 = vmatpush1.bf16.msra.mxu0 %v771
      %942 = vmatprep.subr.bf16.mxu0 0
      %943 = vmatpush1.bf16.msra.mxu0 %v772
      %944 = vmatprep.subr.bf16.mxu0 0
      %945 = vmatpush1.bf16.msra.mxu0 0
      %946 = vmatprep.subr.bf16.mxu0 0
      %947 = vmatpush1.bf16.msra.mxu0 0
      %948 = vmatprep.subr.bf16.mxu0 0
      %949 = vmatpush1.bf16.msra.mxu0 0
      %950 = vmatprep.subr.bf16.mxu0 0
      %951 = vmatpush1.bf16.msra.mxu0 0
      %952 = vmatprep.subr.bf16.mxu0 0
      %953 = vmatpush1.bf16.msra.mxu0 0
      %954 = vmatprep.subr.bf16.mxu0 0
      %955 = vmatpush1.bf16.msra.mxu0 0
      %956 = vmatprep.subr.bf16.mxu0 0
      %957 = vmatpush1.bf16.msra.mxu0 0
      %958 = vmatprep.subr.bf16.mxu0 0
      %959 = vmatpush1.bf16.msra.mxu0 0
      %960 = vmatprep.mubr.bf16.mxu0 0
      %961 = vmatmul.mubr.bf16.gmra.mrb[0].mxu0 %v923
      %v962 = vpop.f32.mrb[0].mxu0
      %v963 = vadd.f32 0.0, %v962
      %v964 = vpop.f32.mrb[0].mxu0
      %v965 = vpop.f32.mrb[0].mxu0
      %v966 = vpop.f32.mrb[0].mxu0
      %967 = vdwg.mxu0
      %v968 = vadd.f32 %v927, %v963
      %v969 = vmul.f32 %v922, 0.0
      %v970 = vtanh.pop %v968
      %v971 = vadd.f32 %v969, %v970
      %v972 = vpack.c.bf16 %v971, %v971
      %s973 = scalar_lea.vmem [#allocation4], 16
      %974 = vst [vmem:[%s973] sm:$0xf] %v972
      %s975 = scalar_lea.vmem [#allocation3], 32
      %v976 = vld [vmem:[%s975] sm:$0xff]
      %977 = vmatprep.subr.bf16.mxu0 0
      %978 = vmatpush1.bf16.msra.mxu0 %v765
      %979 = vmatprep.subr.bf16.mxu0 0
      %980 = vmatpush1.bf16.msra.mxu0 %v766
      %981 = vmatprep.subr.bf16.mxu0 0
      %982 = vmatpush1.bf16.msra.mxu0 %v767
      %983 = vmatprep.subr.bf16.mxu0 0
      %984 = vmatpush1.bf16.msra.mxu0 %v768
      %985 = vmatprep.subr.bf16.mxu0 0
      %986 = vmatpush1.bf16.msra.mxu0 %v769
      %987 = vmatprep.subr.bf16.mxu0 0
      %988 = vmatpush1.bf16.msra.mxu0 %v770
      %989 = vmatprep.subr.bf16.mxu0 0
      %990 = vmatpush1.bf16.msra.mxu0 %v771
      %991 = vmatprep.subr.bf16.mxu0 0
      %992 = vmatpush1.bf16.msra.mxu0 %v772
      %993 = vmatprep.subr.bf16.mxu0 0
      %994 = vmatpush1.bf16.msra.mxu0 0
      %995 = vmatprep.subr.bf16.mxu0 0
      %996 = vmatpush1.bf16.msra.mxu0 0
      %997 = vmatprep.subr.bf16.mxu0 0
      %998 = vmatpush1.bf16.msra.mxu0 0
      %999 = vmatprep.subr.bf16.mxu0 0
      %1000 = vmatpush1.bf16.msra.mxu0 0
      %1001 = vmatprep.subr.bf16.mxu0 0
      %1002 = vmatpush1.bf16.msra.mxu0 0
      %1003 = vmatprep.subr.bf16.mxu0 0
      %1004 = vmatpush1.bf16.msra.mxu0 0
      %1005 = vmatprep.subr.bf16.mxu0 0
      %1006 = vmatpush1.bf16.msra.mxu0 0
      %1007 = vmatprep.subr.bf16.mxu0 0
      %1008 = vmatpush1.bf16.msra.mxu0 0
      %1009 = vmatprep.mubr.bf16.mxu0 0
      %1010 = vmatmul.mubr.bf16.gmra.mrb[0].mxu0 %v972
      %v1011 = vpop.f32.mrb[0].mxu0
      %v1012 = vadd.f32 0.0, %v1011
      %v1013 = vpop.f32.mrb[0].mxu0
      %v1014 = vpop.f32.mrb[0].mxu0
      %v1015 = vpop.f32.mrb[0].mxu0
      %1016 = vdwg.mxu0
      %v1017 = vadd.f32 %v976, %v1012
      %v1018 = vmul.f32 %v971, 0.0
      %v1019 = vtanh.pop %v1017
      %v1020 = vadd.f32 %v1018, %v1019
      %v1021 = vpack.c.bf16 %v1020, %v1020
      %s1022 = scalar_lea.vmem [#allocation4], 20
      %1023 = vst [vmem:[%s1022] sm:$0xf] %v1021
      %s1024 = scalar_lea.vmem [#allocation3], 40
      %v1025 = vld [vmem:[%s1024] sm:$0xff]
      %1026 = vmatprep.subr.bf16.mxu0 0
      %1027 = vmatpush1.bf16.msra.mxu0 %v765
      %1028 = vmatprep.subr.bf16.mxu0 0
      %1029 = vmatpush1.bf16.msra.mxu0 %v766
      %1030 = vmatprep.subr.bf16.mxu0 0
      %1031 = vmatpush1.bf16.msra.mxu0 %v767
      %1032 = vmatprep.subr.bf16.mxu0 0
      %1033 = vmatpush1.bf16.msra.mxu0 %v768
      %1034 = vmatprep.subr.bf16.mxu0 0
      %1035 = vmatpush1.bf16.msra.mxu0 %v769
      %1036 = vmatprep.subr.bf16.mxu0 0
      %1037 = vmatpush1.bf16.msra.mxu0 %v770
      %1038 = vmatprep.subr.bf16.mxu0 0
      %1039 = vmatpush1.bf16.msra.mxu0 %v771
      %1040 = vmatprep.subr.bf16.mxu0 0
      %1041 = vmatpush1.bf16.msra.mxu0 %v772
      %1042 = vmatprep.subr.bf16.mxu0 0
      %1043 = vmatpush1.bf16.msra.mxu0 0
      %1044 = vmatprep.subr.bf16.mxu0 0
      %1045 = vmatpush1.bf16.msra.mxu0 0
      %1046 = vmatprep.subr.bf16.mxu0 0
      %1047 = vmatpush1.bf16.msra.mxu0 0
      %1048 = vmatprep.subr.bf16.mxu0 0
      %1049 = vmatpush1.bf16.msra.mxu0 0
      %1050 = vmatprep.subr.bf16.mxu0 0
      %1051 = vmatpush1.bf16.msra.mxu0 0
      %1052 = vmatprep.subr.bf16.mxu0 0
      %1053 = vmatpush1.bf16.msra.mxu0 0
      %1054 = vmatprep.subr.bf16.mxu0 0
      %1055 = vmatpush1.bf16.msra.mxu0 0
      %1056 = vmatprep.subr.bf16.mxu0 0
      %1057 = vmatpush1.bf16.msra.mxu0 0
      %1058 = vmatprep.mubr.bf16.mxu0 0
      %1059 = vmatmul.mubr.bf16.gmra.mrb[0].mxu0 %v1021
      %v1060 = vpop.f32.mrb[0].mxu0
      %v1061 = vadd.f32 0.0, %v1060
      %v1062 = vpop.f32.mrb[0].mxu0
      %v1063 = vpop.f32.mrb[0].mxu0
      %v1064 = vpop.f32.mrb[0].mxu0
      %1065 = vdwg.mxu0
      %v1066 = vadd.f32 %v1025, %v1061
      %v1067 = vmul.f32 %v1020, 0.0
      %v1068 = vtanh.pop %v1066
      %v1069 = vadd.f32 %v1067, %v1068
      %v1070 = vpack.c.bf16 %v1069, %v1069
      %s1071 = scalar_lea.vmem [#allocation4], 24
      %1072 = vst [vmem:[%s1071] sm:$0xf] %v1070
      %s1073 = scalar_lea.vmem [#allocation3], 48
      %v1074 = vld [vmem:[%s1073] sm:$0xff]
      %1075 = vmatprep.subr.bf16.mxu0 0
      %1076 = vmatpush1.bf16.msra.mxu0 %v765
      %1077 = vmatprep.subr.bf16.mxu0 0
      %1078 = vmatpush1.bf16.msra.mxu0 %v766
      %1079 = vmatprep.subr.bf16.mxu0 0
      %1080 = vmatpush1.bf16.msra.mxu0 %v767
      %1081 = vmatprep.subr.bf16.mxu0 0
      %1082 = vmatpush1.bf16.msra.mxu0 %v768
      %1083 = vmatprep.subr.bf16.mxu0 0
      %1084 = vmatpush1.bf16.msra.mxu0 %v769
      %1085 = vmatprep.subr.bf16.mxu0 0
      %1086 = vmatpush1.bf16.msra.mxu0 %v770
      %1087 = vmatprep.subr.bf16.mxu0 0
      %1088 = vmatpush1.bf16.msra.mxu0 %v771
      %1089 = vmatprep.subr.bf16.mxu0 0
      %1090 = vmatpush1.bf16.msra.mxu0 %v772
      %1091 = vmatprep.subr.bf16.mxu0 0
      %1092 = vmatpush1.bf16.msra.mxu0 0
      %1093 = vmatprep.subr.bf16.mxu0 0
      %1094 = vmatpush1.bf16.msra.mxu0 0
      %1095 = vmatprep.subr.bf16.mxu0 0
      %1096 = vmatpush1.bf16.msra.mxu0 0
      %1097 = vmatprep.subr.bf16.mxu0 0
      %1098 = vmatpush1.bf16.msra.mxu0 0
      %1099 = vmatprep.subr.bf16.mxu0 0
      %1100 = vmatpush1.bf16.msra.mxu0 0
      %1101 = vmatprep.subr.bf16.mxu0 0
      %1102 = vmatpush1.bf16.msra.mxu0 0
      %1103 = vmatprep.subr.bf16.mxu0 0
      %1104 = vmatpush1.bf16.msra.mxu0 0
      %1105 = vmatprep.subr.bf16.mxu0 0
      %1106 = vmatpush1.bf16.msra.mxu0 0
      %1107 = vmatprep.mubr.bf16.mxu0 0
      %1108 = vmatmul.mubr.bf16.gmra.mrb[0].mxu0 %v1070
      %v1109 = vpop.f32.mrb[0].mxu0
      %v1110 = vadd.f32 0.0, %v1109
      %v1111 = vpop.f32.mrb[0].mxu0
      %v1112 = vpop.f32.mrb[0].mxu0
      %v1113 = vpop.f32.mrb[0].mxu0
      %1114 = vdwg.mxu0
      %v1115 = vadd.f32 %v1074, %v1110
      %v1116 = vmul.f32 %v1069, 0.0
      %v1117 = vtanh.pop %v1115
      %v1118 = vadd.f32 %v1116, %v1117
      %v1119 = vpack.c.bf16 %v1118, %v1118
      %s1120 = scalar_lea.vmem [#allocation4], 28
      %1121 = vst [vmem:[%s1120] sm:$0xf] %v1119
      %s1122 = scalar_lea.vmem [#allocation3], 56
      %v1123 = vld [vmem:[%s1122] sm:$0xff]
      %1124 = vmatprep.subr.bf16.mxu0 0
      %1125 = vmatpush1.bf16.msra.mxu0 %v765
      %1126 = vmatprep.subr.bf16.mxu0 0
      %1127 = vmatpush1.bf16.msra.mxu0 %v766
      %1128 = vmatprep.subr.bf16.mxu0 0
      %1129 = vmatpush1.bf16.msra.mxu0 %v767
      %1130 = vmatprep.subr.bf16.mxu0 0
      %1131 = vmatpush1.bf16.msra.mxu0 %v768
      %1132 = vmatprep.subr.bf16.mxu0 0
      %1133 = vmatpush1.bf16.msra.mxu0 %v769
      %1134 = vmatprep.subr.bf16.mxu0 0
      %1135 = vmatpush1.bf16.msra.mxu0 %v770
      %1136 = vmatprep.subr.bf16.mxu0 0
      %1137 = vmatpush1.bf16.msra.mxu0 %v771
      %1138 = vmatprep.subr.bf16.mxu0 0
      %1139 = vmatpush1.bf16.msra.mxu0 %v772
      %1140 = vmatprep.subr.bf16.mxu0 0
      %1141 = vmatpush1.bf16.msra.mxu0 0
      %1142 = vmatprep.subr.bf16.mxu0 0
      %1143 = vmatpush1.bf16.msra.mxu0 0
      %1144 = vmatprep.subr.bf16.mxu0 0
      %1145 = vmatpush1.bf16.msra.mxu0 0
      %1146 = vmatprep.subr.bf16.mxu0 0
      %1147 = vmatpush1.bf16.msra.mxu0 0
      %1148 = vmatprep.subr.bf16.mxu0 0
      %1149 = vmatpush1.bf16.msra.mxu0 0
      %1150 = vmatprep.subr.bf16.mxu0 0
      %1151 = vmatpush1.bf16.msra.mxu0 0
      %1152 = vmatprep.subr.bf16.mxu0 0
      %1153 = vmatpush1.bf16.msra.mxu0 0
      %1154 = vmatprep.subr.bf16.mxu0 0
      %1155 = vmatpush1.bf16.msra.mxu0 0
      %1156 = vmatprep.mubr.bf16.mxu0 0
      %1157 = vmatmul.mubr.bf16.gmra.mrb[0].mxu0 %v1119
      %v1158 = vpop.f32.mrb[0].mxu0
      %v1159 = vadd.f32 0.0, %v1158
      %v1160 = vpop.f32.mrb[0].mxu0
      %v1161 = vpop.f32.mrb[0].mxu0
      %v1162 = vpop.f32.mrb[0].mxu0
      %1163 = vdwg.mxu0
      %v1164 = vadd.f32 %v1123, %v1159
      %v1165 = vmul.f32 %v1118, 0.0
      %v1166 = vtanh.pop %v1164
      %v1167 = vadd.f32 %v1165, %v1166
      %v1168 = vpack.c.bf16 %v1167, %v1167
      %s1169 = scalar_lea.vmem [#allocation4], 32
      %1170 = vst [vmem:[%s1169] sm:$0xf] %v1168
      %s1171 = scalar_lea.vmem [#allocation3], 64
      %v1172 = vld [vmem:[%s1171] sm:$0xff]
      %1173 = vmatprep.subr.bf16.mxu0 0
      %1174 = vmatpush1.bf16.msra.mxu0 %v765
      %1175 = vmatprep.subr.bf16.mxu0 0
      %1176 = vmatpush1.bf16.msra.mxu0 %v766
      %1177 = vmatprep.subr.bf16.mxu0 0
      %1178 = vmatpush1.bf16.msra.mxu0 %v767
      %1179 = vmatprep.subr.bf16.mxu0 0
      %1180 = vmatpush1.bf16.msra.mxu0 %v768
      %1181 = vmatprep.subr.bf16.mxu0 0
      %1182 = vmatpush1.bf16.msra.mxu0 %v769
      %1183 = vmatprep.subr.bf16.mxu0 0
      %1184 = vmatpush1.bf16.msra.mxu0 %v770
      %1185 = vmatprep.subr.bf16.mxu0 0
      %1186 = vmatpush1.bf16.msra.mxu0 %v771
      %1187 = vmatprep.subr.bf16.mxu0 0
      %1188 = vmatpush1.bf16.msra.mxu0 %v772
      %1189 = vmatprep.subr.bf16.mxu0 0
      %1190 = vmatpush1.bf16.msra.mxu0 0
      %1191 = vmatprep.subr.bf16.mxu0 0
      %1192 = vmatpush1.bf16.msra.mxu0 0
      %1193 = vmatprep.subr.bf16.mxu0 0
      %1194 = vmatpush1.bf16.msra.mxu0 0
      %1195 = vmatprep.subr.bf16.mxu0 0
      %1196 = vmatpush1.bf16.msra.mxu0 0
      %1197 = vmatprep.subr.bf16.mxu0 0
      %1198 = vmatpush1.bf16.msra.mxu0 0
      %1199 = vmatprep.subr.bf16.mxu0 0
      %1200 = vmatpush1.bf16.msra.mxu0 0
      %1201 = vmatprep.subr.bf16.mxu0 0
      %1202 = vmatpush1.bf16.msra.mxu0 0
      %1203 = vmatprep.subr.bf16.mxu0 0
      %1204 = vmatpush1.bf16.msra.mxu0 0
      %1205 = vmatprep.mubr.bf16.mxu0 0
      %1206 = vmatmul.mubr.bf16.gmra.mrb[0].mxu0 %v1168
      %v1207 = vpop.f32.mrb[0].mxu0
      %v1208 = vadd.f32 0.0, %v1207
      %v1209 = vpop.f32.mrb[0].mxu0
      %v1210 = vpop.f32.mrb[0].mxu0
      %v1211 = vpop.f32.mrb[0].mxu0
      %1212 = vdwg.mxu0
      %v1213 = vadd.f32 %v1172, %v1208
      %v1214 = vmul.f32 %v1167, 0.0
      %v1215 = vtanh.pop %v1213
      %v1216 = vadd.f32 %v1214, %v1215
      %v1217 = vpack.c.bf16 %v1216, %v1216
      %s1218 = scalar_lea.vmem [#allocation4], 36
      %1219 = vst [vmem:[%s1218] sm:$0xf] %v1217
      %s1220 = scalar_lea.vmem [#allocation3], 72
      %v1221 = vld [vmem:[%s1220] sm:$0xff]
      %1222 = vmatprep.subr.bf16.mxu0 0
      %1223 = vmatpush1.bf16.msra.mxu0 %v765
      %1224 = vmatprep.subr.bf16.mxu0 0
      %1225 = vmatpush1.bf16.msra.mxu0 %v766
      %1226 = vmatprep.subr.bf16.mxu0 0
      %1227 = vmatpush1.bf16.msra.mxu0 %v767
      %1228 = vmatprep.subr.bf16.mxu0 0
      %1229 = vmatpush1.bf16.msra.mxu0 %v768
      %1230 = vmatprep.subr.bf16.mxu0 0
      %1231 = vmatpush1.bf16.msra.mxu0 %v769
      %1232 = vmatprep.subr.bf16.mxu0 0
      %1233 = vmatpush1.bf16.msra.mxu0 %v770
      %1234 = vmatprep.subr.bf16.mxu0 0
      %1235 = vmatpush1.bf16.msra.mxu0 %v771
      %1236 = vmatprep.subr.bf16.mxu0 0
      %1237 = vmatpush1.bf16.msra.mxu0 %v772
      %1238 = vmatprep.subr.bf16.mxu0 0
      %1239 = vmatpush1.bf16.msra.mxu0 0
      %1240 = vmatprep.subr.bf16.mxu0 0
      %1241 = vmatpush1.bf16.msra.mxu0 0
      %1242 = vmatprep.subr.bf16.mxu0 0
      %1243 = vmatpush1.bf16.msra.mxu0 0
      %1244 = vmatprep.subr.bf16.mxu0 0
      %1245 = vmatpush1.bf16.msra.mxu0 0
      %1246 = vmatprep.subr.bf16.mxu0 0
      %1247 = vmatpush1.bf16.msra.mxu0 0
      %1248 = vmatprep.subr.bf16.mxu0 0
      %1249 = vmatpush1.bf16.msra.mxu0 0
      %1250 = vmatprep.subr.bf16.mxu0 0
      %1251 = vmatpush1.bf16.msra.mxu0 0
      %1252 = vmatprep.subr.bf16.mxu0 0
      %1253 = vmatpush1.bf16.msra.mxu0 0
      %1254 = vmatprep.mubr.bf16.mxu0 0
      %1255 = vmatmul.mubr.bf16.gmra.mrb[0].mxu0 %v1217
      %v1256 = vpop.f32.mrb[0].mxu0
      %v1257 = vadd.f32 0.0, %v1256
      %v1258 = vpop.f32.mrb[0].mxu0
      %v1259 = vpop.f32.mrb[0].mxu0
      %v1260 = vpop.f32.mrb[0].mxu0
      %1261 = vdwg.mxu0
      %v1262 = vadd.f32 %v1221, %v1257
      %v1263 = vmul.f32 %v1216, 0.0
      %v1264 = vtanh.pop %v1262
      %v1265 = vadd.f32 %v1263, %v1264
      %v1266 = vpack.c.bf16 %v1265, %v1265
      %s1267 = scalar_lea.vmem [#allocation4], 40
      %1268 = vst [vmem:[%s1267] sm:$0xf] %v1266
      %s1269 = scalar_lea.vmem [#allocation3], 80
      %v1270 = vld [vmem:[%s1269] sm:$0xff]
      %1271 = vmatprep.subr.bf16.mxu0 0
      %1272 = vmatpush1.bf16.msra.mxu0 %v765
      %1273 = vmatprep.subr.bf16.mxu0 0
      %1274 = vmatpush1.bf16.msra.mxu0 %v766
      %1275 = vmatprep.subr.bf16.mxu0 0
      %1276 = vmatpush1.bf16.msra.mxu0 %v767
      %1277 = vmatprep.subr.bf16.mxu0 0
      %1278 = vmatpush1.bf16.msra.mxu0 %v768
      %1279 = vmatprep.subr.bf16.mxu0 0
      %1280 = vmatpush1.bf16.msra.mxu0 %v769
      %1281 = vmatprep.subr.bf16.mxu0 0
      %1282 = vmatpush1.bf16.msra.mxu0 %v770
      %1283 = vmatprep.subr.bf16.mxu0 0
      %1284 = vmatpush1.bf16.msra.mxu0 %v771
      %1285 = vmatprep.subr.bf16.mxu0 0
      %1286 = vmatpush1.bf16.msra.mxu0 %v772
      %1287 = vmatprep.subr.bf16.mxu0 0
      %1288 = vmatpush1.bf16.msra.mxu0 0
      %1289 = vmatprep.subr.bf16.mxu0 0
      %1290 = vmatpush1.bf16.msra.mxu0 0
      %1291 = vmatprep.subr.bf16.mxu0 0
      %1292 = vmatpush1.bf16.msra.mxu0 0
      %1293 = vmatprep.subr.bf16.mxu0 0
      %1294 = vmatpush1.bf16.msra.mxu0 0
      %1295 = vmatprep.subr.bf16.mxu0 0
      %1296 = vmatpush1.bf16.msra.mxu0 0
      %1297 = vmatprep.subr.bf16.mxu0 0
      %1298 = vmatpush1.bf16.msra.mxu0 0
      %1299 = vmatprep.subr.bf16.mxu0 0
      %1300 = vmatpush1.bf16.msra.mxu0 0
      %1301 = vmatprep.subr.bf16.mxu0 0
      %1302 = vmatpush1.bf16.msra.mxu0 0
      %1303 = vmatprep.mubr.bf16.mxu0 0
      %1304 = vmatmul.mubr.bf16.gmra.mrb[0].mxu0 %v1266
      %v1305 = vpop.f32.mrb[0].mxu0
      %v1306 = vadd.f32 0.0, %v1305
      %v1307 = vpop.f32.mrb[0].mxu0
      %v1308 = vpop.f32.mrb[0].mxu0
      %v1309 = vpop.f32.mrb[0].mxu0
      %1310 = vdwg.mxu0
      %v1311 = vadd.f32 %v1270, %v1306
      %v1312 = vmul.f32 %v1265, 0.0
      %v1313 = vtanh.pop %v1311
      %v1314 = vadd.f32 %v1312, %v1313
      %v1315 = vpack.c.bf16 %v1314, %v1314
      %s1316 = scalar_lea.vmem [#allocation4], 44
      %1317 = vst [vmem:[%s1316] sm:$0xf] %v1315
      %s1318 = scalar_lea.vmem [#allocation3], 88
      %v1319 = vld [vmem:[%s1318] sm:$0xff]
      %1320 = vmatprep.subr.bf16.mxu0 0
      %1321 = vmatpush1.bf16.msra.mxu0 %v765
      %1322 = vmatprep.subr.bf16.mxu0 0
      %1323 = vmatpush1.bf16.msra.mxu0 %v766
      %1324 = vmatprep.subr.bf16.mxu0 0
      %1325 = vmatpush1.bf16.msra.mxu0 %v767
      %1326 = vmatprep.subr.bf16.mxu0 0
      %1327 = vmatpush1.bf16.msra.mxu0 %v768
      %1328 = vmatprep.subr.bf16.mxu0 0
      %1329 = vmatpush1.bf16.msra.mxu0 %v769
      %1330 = vmatprep.subr.bf16.mxu0 0
      %1331 = vmatpush1.bf16.msra.mxu0 %v770
      %1332 = vmatprep.subr.bf16.mxu0 0
      %1333 = vmatpush1.bf16.msra.mxu0 %v771
      %1334 = vmatprep.subr.bf16.mxu0 0
      %1335 = vmatpush1.bf16.msra.mxu0 %v772
      %1336 = vmatprep.subr.bf16.mxu0 0
      %1337 = vmatpush1.bf16.msra.mxu0 0
      %1338 = vmatprep.subr.bf16.mxu0 0
      %1339 = vmatpush1.bf16.msra.mxu0 0
      %1340 = vmatprep.subr.bf16.mxu0 0
      %1341 = vmatpush1.bf16.msra.mxu0 0
      %1342 = vmatprep.subr.bf16.mxu0 0
      %1343 = vmatpush1.bf16.msra.mxu0 0
      %1344 = vmatprep.subr.bf16.mxu0 0
      %1345 = vmatpush1.bf16.msra.mxu0 0
      %1346 = vmatprep.subr.bf16.mxu0 0
      %1347 = vmatpush1.bf16.msra.mxu0 0
      %1348 = vmatprep.subr.bf16.mxu0 0
      %1349 = vmatpush1.bf16.msra.mxu0 0
      %1350 = vmatprep.subr.bf16.mxu0 0
      %1351 = vmatpush1.bf16.msra.mxu0 0
      %1352 = vmatprep.mubr.bf16.mxu0 0
      %1353 = vmatmul.mubr.bf16.gmra.mrb[0].mxu0 %v1315
      %v1354 = vpop.f32.mrb[0].mxu0
      %v1355 = vadd.f32 0.0, %v1354
      %v1356 = vpop.f32.mrb[0].mxu0
      %v1357 = vpop.f32.mrb[0].mxu0
      %v1358 = vpop.f32.mrb[0].mxu0
      %1359 = vdwg.mxu0
      %v1360 = vadd.f32 %v1319, %v1355
      %v1361 = vmul.f32 %v1314, 0.0
      %v1362 = vtanh.pop %v1360
      %v1363 = vadd.f32 %v1361, %v1362
      %v1364 = vpack.c.bf16 %v1363, %v1363
      %s1365 = scalar_lea.vmem [#allocation4], 48
      %1366 = vst [vmem:[%s1365] sm:$0xf] %v1364
      %s1367 = scalar_lea.vmem [#allocation3], 96
      %v1368 = vld [vmem:[%s1367] sm:$0xff]
      %1369 = vmatprep.subr.bf16.mxu0 0
      %1370 = vmatpush1.bf16.msra.mxu0 %v765
      %1371 = vmatprep.subr.bf16.mxu0 0
      %1372 = vmatpush1.bf16.msra.mxu0 %v766
      %1373 = vmatprep.subr.bf16.mxu0 0
      %1374 = vmatpush1.bf16.msra.mxu0 %v767
      %1375 = vmatprep.subr.bf16.mxu0 0
      %1376 = vmatpush1.bf16.msra.mxu0 %v768
      %1377 = vmatprep.subr.bf16.mxu0 0
      %1378 = vmatpush1.bf16.msra.mxu0 %v769
      %1379 = vmatprep.subr.bf16.mxu0 0
      %1380 = vmatpush1.bf16.msra.mxu0 %v770
      %1381 = vmatprep.subr.bf16.mxu0 0
      %1382 = vmatpush1.bf16.msra.mxu0 %v771
      %1383 = vmatprep.subr.bf16.mxu0 0
      %1384 = vmatpush1.bf16.msra.mxu0 %v772
      %1385 = vmatprep.subr.bf16.mxu0 0
      %1386 = vmatpush1.bf16.msra.mxu0 0
      %1387 = vmatprep.subr.bf16.mxu0 0
      %1388 = vmatpush1.bf16.msra.mxu0 0
      %1389 = vmatprep.subr.bf16.mxu0 0
      %1390 = vmatpush1.bf16.msra.mxu0 0
      %1391 = vmatprep.subr.bf16.mxu0 0
      %1392 = vmatpush1.bf16.msra.mxu0 0
      %1393 = vmatprep.subr.bf16.mxu0 0
      %1394 = vmatpush1.bf16.msra.mxu0 0
      %1395 = vmatprep.subr.bf16.mxu0 0
      %1396 = vmatpush1.bf16.msra.mxu0 0
      %1397 = vmatprep.subr.bf16.mxu0 0
      %1398 = vmatpush1.bf16.msra.mxu0 0
      %1399 = vmatprep.subr.bf16.mxu0 0
      %1400 = vmatpush1.bf16.msra.mxu0 0
      %1401 = vmatprep.mubr.bf16.mxu0 0
      %1402 = vmatmul.mubr.bf16.gmra.mrb[0].mxu0 %v1364
      %v1403 = vpop.f32.mrb[0].mxu0
      %v1404 = vadd.f32 0.0, %v1403
      %v1405 = vpop.f32.mrb[0].mxu0
      %v1406 = vpop.f32.mrb[0].mxu0
      %v1407 = vpop.f32.mrb[0].mxu0
      %1408 = vdwg.mxu0
      %v1409 = vadd.f32 %v1368, %v1404
      %v1410 = vmul.f32 %v1363, 0.0
      %v1411 = vtanh.pop %v1409
      %v1412 = vadd.f32 %v1410, %v1411
      %v1413 = vpack.c.bf16 %v1412, %v1412
      %s1414 = scalar_lea.vmem [#allocation4], 52
      %1415 = vst [vmem:[%s1414] sm:$0xf] %v1413
      %s1416 = scalar_lea.vmem [#allocation3], 104
      %v1417 = vld [vmem:[%s1416] sm:$0xff]
      %1418 = vmatprep.subr.bf16.mxu0 0
      %1419 = vmatpush1.bf16.msra.mxu0 %v765
      %1420 = vmatprep.subr.bf16.mxu0 0
      %1421 = vmatpush1.bf16.msra.mxu0 %v766
      %1422 = vmatprep.subr.bf16.mxu0 0
      %1423 = vmatpush1.bf16.msra.mxu0 %v767
      %1424 = vmatprep.subr.bf16.mxu0 0
      %1425 = vmatpush1.bf16.msra.mxu0 %v768
      %1426 = vmatprep.subr.bf16.mxu0 0
      %1427 = vmatpush1.bf16.msra.mxu0 %v769
      %1428 = vmatprep.subr.bf16.mxu0 0
      %1429 = vmatpush1.bf16.msra.mxu0 %v770
      %1430 = vmatprep.subr.bf16.mxu0 0
      %1431 = vmatpush1.bf16.msra.mxu0 %v771
      %1432 = vmatprep.subr.bf16.mxu0 0
      %1433 = vmatpush1.bf16.msra.mxu0 %v772
      %1434 = vmatprep.subr.bf16.mxu0 0
      %1435 = vmatpush1.bf16.msra.mxu0 0
      %1436 = vmatprep.subr.bf16.mxu0 0
      %1437 = vmatpush1.bf16.msra.mxu0 0
      %1438 = vmatprep.subr.bf16.mxu0 0
      %1439 = vmatpush1.bf16.msra.mxu0 0
      %1440 = vmatprep.subr.bf16.mxu0 0
      %1441 = vmatpush1.bf16.msra.mxu0 0
      %1442 = vmatprep.subr.bf16.mxu0 0
      %1443 = vmatpush1.bf16.msra.mxu0 0
      %1444 = vmatprep.subr.bf16.mxu0 0
      %1445 = vmatpush1.bf16.msra.mxu0 0
      %1446 = vmatprep.subr.bf16.mxu0 0
      %1447 = vmatpush1.bf16.msra.mxu0 0
      %1448 = vmatprep.subr.bf16.mxu0 0
      %1449 = vmatpush1.bf16.msra.mxu0 0
      %1450 = vmatprep.mubr.bf16.mxu0 0
      %1451 = vmatmul.mubr.bf16.gmra.mrb[0].mxu0 %v1413
      %v1452 = vpop.f32.mrb[0].mxu0
      %v1453 = vadd.f32 0.0, %v1452
      %v1454 = vpop.f32.mrb[0].mxu0
      %v1455 = vpop.f32.mrb[0].mxu0
      %v1456 = vpop.f32.mrb[0].mxu0
      %1457 = vdwg.mxu0
      %v1458 = vadd.f32 %v1417, %v1453
      %v1459 = vmul.f32 %v1412, 0.0
      %v1460 = vtanh.pop %v1458
      %v1461 = vadd.f32 %v1459, %v1460
      %v1462 = vpack.c.bf16 %v1461, %v1461
      %s1463 = scalar_lea.vmem [#allocation4], 56
      %1464 = vst [vmem:[%s1463] sm:$0xf] %v1462
      %s1465 = scalar_lea.vmem [#allocation3], 112
      %v1466 = vld [vmem:[%s1465] sm:$0xff]
      %1467 = vmatprep.subr.bf16.mxu0 0
      %1468 = vmatpush1.bf16.msra.mxu0 %v765
      %1469 = vmatprep.subr.bf16.mxu0 0
      %1470 = vmatpush1.bf16.msra.mxu0 %v766
      %1471 = vmatprep.subr.bf16.mxu0 0
      %1472 = vmatpush1.bf16.msra.mxu0 %v767
      %1473 = vmatprep.subr.bf16.mxu0 0
      %1474 = vmatpush1.bf16.msra.mxu0 %v768
      %1475 = vmatprep.subr.bf16.mxu0 0
      %1476 = vmatpush1.bf16.msra.mxu0 %v769
      %1477 = vmatprep.subr.bf16.mxu0 0
      %1478 = vmatpush1.bf16.msra.mxu0 %v770
      %1479 = vmatprep.subr.bf16.mxu0 0
      %1480 = vmatpush1.bf16.msra.mxu0 %v771
      %1481 = vmatprep.subr.bf16.mxu0 0
      %1482 = vmatpush1.bf16.msra.mxu0 %v772
      %1483 = vmatprep.subr.bf16.mxu0 0
      %1484 = vmatpush1.bf16.msra.mxu0 0
      %1485 = vmatprep.subr.bf16.mxu0 0
      %1486 = vmatpush1.bf16.msra.mxu0 0
      %1487 = vmatprep.subr.bf16.mxu0 0
      %1488 = vmatpush1.bf16.msra.mxu0 0
      %1489 = vmatprep.subr.bf16.mxu0 0
      %1490 = vmatpush1.bf16.msra.mxu0 0
      %1491 = vmatprep.subr.bf16.mxu0 0
      %1492 = vmatpush1.bf16.msra.mxu0 0
      %1493 = vmatprep.subr.bf16.mxu0 0
      %1494 = vmatpush1.bf16.msra.mxu0 0
      %1495 = vmatprep.subr.bf16.mxu0 0
      %1496 = vmatpush1.bf16.msra.mxu0 0
      %1497 = vmatprep.subr.bf16.mxu0 0
      %1498 = vmatpush1.bf16.msra.mxu0 0
      %1499 = vmatprep.mubr.bf16.mxu0 0
      %1500 = vmatmul.mubr.bf16.gmra.mrb[0].mxu0 %v1462
      %v1501 = vpop.f32.mrb[0].mxu0
      %v1502 = vadd.f32 0.0, %v1501
      %v1503 = vpop.f32.mrb[0].mxu0
      %v1504 = vpop.f32.mrb[0].mxu0
      %v1505 = vpop.f32.mrb[0].mxu0
      %1506 = vdwg.mxu0
      %v1507 = vadd.f32 %v1466, %v1502
      %v1508 = vmul.f32 %v1461, 0.0
      %v1509 = vtanh.pop %v1507
      %v1510 = vadd.f32 %v1508, %v1509
      %v1511 = vpack.c.bf16 %v1510, %v1510
      %s1512 = scalar_lea.vmem [#allocation4], 60
      %1513 = vst [vmem:[%s1512] sm:$0xf] %v1511
      %s1514 = scalar_lea.vmem [#allocation3], 120
      %v1515 = vld [vmem:[%s1514] sm:$0xff]
      %1516 = vmatprep.subr.bf16.mxu0 0
      %1517 = vmatpush1.bf16.msra.mxu0 %v765
      %1518 = vmatprep.subr.bf16.mxu0 0
      %1519 = vmatpush1.bf16.msra.mxu0 %v766
      %1520 = vmatprep.subr.bf16.mxu0 0
      %1521 = vmatpush1.bf16.msra.mxu0 %v767
      %1522 = vmatprep.subr.bf16.mxu0 0
      %1523 = vmatpush1.bf16.msra.mxu0 %v768
      %1524 = vmatprep.subr.bf16.mxu0 0
      %1525 = vmatpush1.bf16.msra.mxu0 %v769
      %1526 = vmatprep.subr.bf16.mxu0 0
      %1527 = vmatpush1.bf16.msra.mxu0 %v770
      %1528 = vmatprep.subr.bf16.mxu0 0
      %1529 = vmatpush1.bf16.msra.mxu0 %v771
      %1530 = vmatprep.subr.bf16.mxu0 0
      %1531 = vmatpush1.bf16.msra.mxu0 %v772
      %1532 = vmatprep.subr.bf16.mxu0 0
      %1533 = vmatpush1.bf16.msra.mxu0 0
      %1534 = vmatprep.subr.bf16.mxu0 0
      %1535 = vmatpush1.bf16.msra.mxu0 0
      %1536 = vmatprep.subr.bf16.mxu0 0
      %1537 = vmatpush1.bf16.msra.mxu0 0
      %1538 = vmatprep.subr.bf16.mxu0 0
      %1539 = vmatpush1.bf16.msra.mxu0 0
      %1540 = vmatprep.subr.bf16.mxu0 0
      %1541 = vmatpush1.bf16.msra.mxu0 0
      %1542 = vmatprep.subr.bf16.mxu0 0
      %1543 = vmatpush1.bf16.msra.mxu0 0
      %1544 = vmatprep.subr.bf16.mxu0 0
      %1545 = vmatpush1.bf16.msra.mxu0 0
      %1546 = vmatprep.subr.bf16.mxu0 0
      %1547 = vmatpush1.bf16.msra.mxu0 0
      %1548 = vmatprep.mubr.bf16.mxu0 0
      %1549 = vmatmul.mubr.bf16.gmra.mrb[0].mxu0 %v1511
      %v1550 = vpop.f32.mrb[0].mxu0
      %v1551 = vadd.f32 0.0, %v1550
      %v1552 = vpop.f32.mrb[0].mxu0
      %v1553 = vpop.f32.mrb[0].mxu0
      %v1554 = vpop.f32.mrb[0].mxu0
      %1555 = vdwg.mxu0
      %v1556 = vadd.f32 %v1515, %v1551
      %v1557 = vmul.f32 %v1510, 0.0
      %v1558 = vtanh.pop %v1556
      %v1559 = vadd.f32 %v1557, %v1558
      %v1560 = vpack.c.bf16 %v1559, %v1559
      %s1561 = scalar_lea.vmem [#allocation4], 64
      %1562 = vst [vmem:[%s1561] sm:$0xf] %v1560
      %s1563 = scalar_lea.vmem [#allocation3], 128
      %v1564 = vld [vmem:[%s1563] sm:$0xff]
      %1565 = vmatprep.subr.bf16.mxu0 0
      %1566 = vmatpush1.bf16.msra.mxu0 %v765
      %1567 = vmatprep.subr.bf16.mxu0 0
      %1568 = vmatpush1.bf16.msra.mxu0 %v766
      %1569 = vmatprep.subr.bf16.mxu0 0
      %1570 = vmatpush1.bf16.msra.mxu0 %v767
      %1571 = vmatprep.subr.bf16.mxu0 0
      %1572 = vmatpush1.bf16.msra.mxu0 %v768
      %1573 = vmatprep.subr.bf16.mxu0 0
      %1574 = vmatpush1.bf16.msra.mxu0 %v769
      %1575 = vmatprep.subr.bf16.mxu0 0
      %1576 = vmatpush1.bf16.msra.mxu0 %v770
      %1577 = vmatprep.subr.bf16.mxu0 0
      %1578 = vmatpush1.bf16.msra.mxu0 %v771
      %1579 = vmatprep.subr.bf16.mxu0 0
      %1580 = vmatpush1.bf16.msra.mxu0 %v772
      %1581 = vmatprep.subr.bf16.mxu0 0
      %1582 = vmatpush1.bf16.msra.mxu0 0
      %1583 = vmatprep.subr.bf16.mxu0 0
      %1584 = vmatpush1.bf16.msra.mxu0 0
      %1585 = vmatprep.subr.bf16.mxu0 0
      %1586 = vmatpush1.bf16.msra.mxu0 0
      %1587 = vmatprep.subr.bf16.mxu0 0
      %1588 = vmatpush1.bf16.msra.mxu0 0
      %1589 = vmatprep.subr.bf16.mxu0 0
      %1590 = vmatpush1.bf16.msra.mxu0 0
      %1591 = vmatprep.subr.bf16.mxu0 0
      %1592 = vmatpush1.bf16.msra.mxu0 0
      %1593 = vmatprep.subr.bf16.mxu0 0
      %1594 = vmatpush1.bf16.msra.mxu0 0
      %1595 = vmatprep.subr.bf16.mxu0 0
      %1596 = vmatpush1.bf16.msra.mxu0 0
      %1597 = vmatprep.mubr.bf16.mxu0 0
      %1598 = vmatmul.mubr.bf16.gmra.mrb[0].mxu0 %v1560
      %v1599 = vpop.f32.mrb[0].mxu0
      %v1600 = vadd.f32 0.0, %v1599
      %v1601 = vpop.f32.mrb[0].mxu0
      %v1602 = vpop.f32.mrb[0].mxu0
      %v1603 = vpop.f32.mrb[0].mxu0
      %1604 = vdwg.mxu0
      %v1605 = vadd.f32 %v1564, %v1600
      %v1606 = vmul.f32 %v1559, 0.0
      %v1607 = vtanh.pop %v1605
      %v1608 = vadd.f32 %v1606, %v1607
      %v1609 = vpack.c.bf16 %v1608, %v1608
      %s1610 = scalar_lea.vmem [#allocation4], 68
      %1611 = vst [vmem:[%s1610] sm:$0xf] %v1609
      %s1612 = scalar_lea.vmem [#allocation3], 136
      %v1613 = vld [vmem:[%s1612] sm:$0xff]
      %1614 = vmatprep.subr.bf16.mxu0 0
      %1615 = vmatpush1.bf16.msra.mxu0 %v765
      %1616 = vmatprep.subr.bf16.mxu0 0
      %1617 = vmatpush1.bf16.msra.mxu0 %v766
      %1618 = vmatprep.subr.bf16.mxu0 0
      %1619 = vmatpush1.bf16.msra.mxu0 %v767
      %1620 = vmatprep.subr.bf16.mxu0 0
      %1621 = vmatpush1.bf16.msra.mxu0 %v768
      %1622 = vmatprep.subr.bf16.mxu0 0
      %1623 = vmatpush1.bf16.msra.mxu0 %v769
      %1624 = vmatprep.subr.bf16.mxu0 0
      %1625 = vmatpush1.bf16.msra.mxu0 %v770
      %1626 = vmatprep.subr.bf16.mxu0 0
      %1627 = vmatpush1.bf16.msra.mxu0 %v771
      %1628 = vmatprep.subr.bf16.mxu0 0
      %1629 = vmatpush1.bf16.msra.mxu0 %v772
      %1630 = vmatprep.subr.bf16.mxu0 0
      %1631 = vmatpush1.bf16.msra.mxu0 0
      %1632 = vmatprep.subr.bf16.mxu0 0
      %1633 = vmatpush1.bf16.msra.mxu0 0
      %1634 = vmatprep.subr.bf16.mxu0 0
      %1635 = vmatpush1.bf16.msra.mxu0 0
      %1636 = vmatprep.subr.bf16.mxu0 0
      %1637 = vmatpush1.bf16.msra.mxu0 0
      %1638 = vmatprep.subr.bf16.mxu0 0
      %1639 = vmatpush1.bf16.msra.mxu0 0
      %1640 = vmatprep.subr.bf16.mxu0 0
      %1641 = vmatpush1.bf16.msra.mxu0 0
      %1642 = vmatprep.subr.bf16.mxu0 0
      %1643 = vmatpush1.bf16.msra.mxu0 0
      %1644 = vmatprep.subr.bf16.mxu0 0
      %1645 = vmatpush1.bf16.msra.mxu0 0
      %1646 = vmatprep.mubr.bf16.mxu0 0
      %1647 = vmatmul.mubr.bf16.gmra.mrb[0].mxu0 %v1609
      %v1648 = vpop.f32.mrb[0].mxu0
      %v1649 = vadd.f32 0.0, %v1648
      %v1650 = vpop.f32.mrb[0].mxu0
      %v1651 = vpop.f32.mrb[0].mxu0
      %v1652 = vpop.f32.mrb[0].mxu0
      %1653 = vdwg.mxu0
      %v1654 = vadd.f32 %v1613, %v1649
      %v1655 = vmul.f32 %v1608, 0.0
      %v1656 = vtanh.pop %v1654
      %v1657 = vadd.f32 %v1655, %v1656
      %v1658 = vpack.c.bf16 %v1657, %v1657
      %s1659 = scalar_lea.vmem [#allocation4], 72
      %1660 = vst [vmem:[%s1659] sm:$0xf] %v1658
      %s1661 = scalar_lea.vmem [#allocation3], 144
      %v1662 = vld [vmem:[%s1661] sm:$0xff]
      %1663 = vmatprep.subr.bf16.mxu0 0
      %1664 = vmatpush1.bf16.msra.mxu0 %v765
      %1665 = vmatprep.subr.bf16.mxu0 0
      %1666 = vmatpush1.bf16.msra.mxu0 %v766
      %1667 = vmatprep.subr.bf16.mxu0 0
      %1668 = vmatpush1.bf16.msra.mxu0 %v767
      %1669 = vmatprep.subr.bf16.mxu0 0
      %1670 = vmatpush1.bf16.msra.mxu0 %v768
      %1671 = vmatprep.subr.bf16.mxu0 0
      %1672 = vmatpush1.bf16.msra.mxu0 %v769
      %1673 = vmatprep.subr.bf16.mxu0 0
      %1674 = vmatpush1.bf16.msra.mxu0 %v770
      %1675 = vmatprep.subr.bf16.mxu0 0
      %1676 = vmatpush1.bf16.msra.mxu0 %v771
      %1677 = vmatprep.subr.bf16.mxu0 0
      %1678 = vmatpush1.bf16.msra.mxu0 %v772
      %1679 = vmatprep.subr.bf16.mxu0 0
      %1680 = vmatpush1.bf16.msra.mxu0 0
      %1681 = vmatprep.subr.bf16.mxu0 0
      %1682 = vmatpush1.bf16.msra.mxu0 0
      %1683 = vmatprep.subr.bf16.mxu0 0
      %1684 = vmatpush1.bf16.msra.mxu0 0
      %1685 = vmatprep.subr.bf16.mxu0 0
      %1686 = vmatpush1.bf16.msra.mxu0 0
      %1687 = vmatprep.subr.bf16.mxu0 0
      %1688 = vmatpush1.bf16.msra.mxu0 0
      %1689 = vmatprep.subr.bf16.mxu0 0
      %1690 = vmatpush1.bf16.msra.mxu0 0
      %1691 = vmatprep.subr.bf16.mxu0 0
      %1692 = vmatpush1.bf16.msra.mxu0 0
      %1693 = vmatprep.subr.bf16.mxu0 0
      %1694 = vmatpush1.bf16.msra.mxu0 0
      %1695 = vmatprep.mubr.bf16.mxu0 0
      %1696 = vmatmul.mubr.bf16.gmra.mrb[0].mxu0 %v1658
      %v1697 = vpop.f32.mrb[0].mxu0
      %v1698 = vadd.f32 0.0, %v1697
      %v1699 = vpop.f32.mrb[0].mxu0
      %v1700 = vpop.f32.mrb[0].mxu0
      %v1701 = vpop.f32.mrb[0].mxu0
      %1702 = vdwg.mxu0
      %v1703 = vadd.f32 %v1662, %v1698
      %v1704 = vmul.f32 %v1657, 0.0
      %v1705 = vtanh.pop %v1703
      %v1706 = vadd.f32 %v1704, %v1705
      %v1707 = vpack.c.bf16 %v1706, %v1706
      %s1708 = scalar_lea.vmem [#allocation4], 76
      %1709 = vst [vmem:[%s1708] sm:$0xf] %v1707
      %s1710 = scalar_lea.vmem [#allocation3], 152
      %v1711 = vld [vmem:[%s1710] sm:$0xff]
      %1712 = vmatprep.subr.bf16.mxu0 0
      %1713 = vmatpush1.bf16.msra.mxu0 %v765
      %1714 = vmatprep.subr.bf16.mxu0 0
      %1715 = vmatpush1.bf16.msra.mxu0 %v766
      %1716 = vmatprep.subr.bf16.mxu0 0
      %1717 = vmatpush1.bf16.msra.mxu0 %v767
      %1718 = vmatprep.subr.bf16.mxu0 0
      %1719 = vmatpush1.bf16.msra.mxu0 %v768
      %1720 = vmatprep.subr.bf16.mxu0 0
      %1721 = vmatpush1.bf16.msra.mxu0 %v769
      %1722 = vmatprep.subr.bf16.mxu0 0
      %1723 = vmatpush1.bf16.msra.mxu0 %v770
      %1724 = vmatprep.subr.bf16.mxu0 0
      %1725 = vmatpush1.bf16.msra.mxu0 %v771
      %1726 = vmatprep.subr.bf16.mxu0 0
      %1727 = vmatpush1.bf16.msra.mxu0 %v772
      %1728 = vmatprep.subr.bf16.mxu0 0
      %1729 = vmatpush1.bf16.msra.mxu0 0
      %1730 = vmatprep.subr.bf16.mxu0 0
      %1731 = vmatpush1.bf16.msra.mxu0 0
      %1732 = vmatprep.subr.bf16.mxu0 0
      %1733 = vmatpush1.bf16.msra.mxu0 0
      %1734 = vmatprep.subr.bf16.mxu0 0
      %1735 = vmatpush1.bf16.msra.mxu0 0
      %1736 = vmatprep.subr.bf16.mxu0 0
      %1737 = vmatpush1.bf16.msra.mxu0 0
      %1738 = vmatprep.subr.bf16.mxu0 0
      %1739 = vmatpush1.bf16.msra.mxu0 0
      %1740 = vmatprep.subr.bf16.mxu0 0
      %1741 = vmatpush1.bf16.msra.mxu0 0
      %1742 = vmatprep.subr.bf16.mxu0 0
      %1743 = vmatpush1.bf16.msra.mxu0 0
      %1744 = vmatprep.mubr.bf16.mxu0 0
      %1745 = vmatmul.mubr.bf16.gmra.mrb[0].mxu0 %v1707
      %v1746 = vpop.f32.mrb[0].mxu0
      %v1747 = vadd.f32 0.0, %v1746
      %v1748 = vpop.f32.mrb[0].mxu0
      %v1749 = vpop.f32.mrb[0].mxu0
      %v1750 = vpop.f32.mrb[0].mxu0
      %1751 = vdwg.mxu0
      %v1752 = vadd.f32 %v1711, %v1747
      %v1753 = vmul.f32 %v1706, 0.0
      %v1754 = vtanh.pop %v1752
      %v1755 = vadd.f32 %v1753, %v1754
      %v1756 = vpack.c.bf16 %v1755, %v1755
      %s1757 = scalar_lea.vmem [#allocation4], 80
      %1758 = vst [vmem:[%s1757] sm:$0xf] %v1756
      %s1759 = scalar_lea.vmem [#allocation3], 160
      %v1760 = vld [vmem:[%s1759] sm:$0xff]
      %1761 = vmatprep.subr.bf16.mxu0 0
      %1762 = vmatpush1.bf16.msra.mxu0 %v765
      %1763 = vmatprep.subr.bf16.mxu0 0
      %1764 = vmatpush1.bf16.msra.mxu0 %v766
      %1765 = vmatprep.subr.bf16.mxu0 0
      %1766 = vmatpush1.bf16.msra.mxu0 %v767
      %1767 = vmatprep.subr.bf16.mxu0 0
      %1768 = vmatpush1.bf16.msra.mxu0 %v768
      %1769 = vmatprep.subr.bf16.mxu0 0
      %1770 = vmatpush1.bf16.msra.mxu0 %v769
      %1771 = vmatprep.subr.bf16.mxu0 0
      %1772 = vmatpush1.bf16.msra.mxu0 %v770
      %1773 = vmatprep.subr.bf16.mxu0 0
      %1774 = vmatpush1.bf16.msra.mxu0 %v771
      %1775 = vmatprep.subr.bf16.mxu0 0
      %1776 = vmatpush1.bf16.msra.mxu0 %v772
      %1777 = vmatprep.subr.bf16.mxu0 0
      %1778 = vmatpush1.bf16.msra.mxu0 0
      %1779 = vmatprep.subr.bf16.mxu0 0
      %1780 = vmatpush1.bf16.msra.mxu0 0
      %1781 = vmatprep.subr.bf16.mxu0 0
      %1782 = vmatpush1.bf16.msra.mxu0 0
      %1783 = vmatprep.subr.bf16.mxu0 0
      %1784 = vmatpush1.bf16.msra.mxu0 0
      %1785 = vmatprep.subr.bf16.mxu0 0
      %1786 = vmatpush1.bf16.msra.mxu0 0
      %1787 = vmatprep.subr.bf16.mxu0 0
      %1788 = vmatpush1.bf16.msra.mxu0 0
      %1789 = vmatprep.subr.bf16.mxu0 0
      %1790 = vmatpush1.bf16.msra.mxu0 0
      %1791 = vmatprep.subr.bf16.mxu0 0
      %1792 = vmatpush1.bf16.msra.mxu0 0
      %1793 = vmatprep.mubr.bf16.mxu0 0
      %1794 = vmatmul.mubr.bf16.gmra.mrb[0].mxu0 %v1756
      %v1795 = vpop.f32.mrb[0].mxu0
      %v1796 = vadd.f32 0.0, %v1795
      %v1797 = vpop.f32.mrb[0].mxu0
      %v1798 = vpop.f32.mrb[0].mxu0
      %v1799 = vpop.f32.mrb[0].mxu0
      %1800 = vdwg.mxu0
      %v1801 = vadd.f32 %v1760, %v1796
      %v1802 = vmul.f32 %v1755, 0.0
      %v1803 = vtanh.pop %v1801
      %v1804 = vadd.f32 %v1802, %v1803
      %v1805 = vpack.c.bf16 %v1804, %v1804
      %s1806 = scalar_lea.vmem [#allocation4], 84
      %1807 = vst [vmem:[%s1806] sm:$0xf] %v1805
      %s1808 = scalar_lea.vmem [#allocation3], 168
      %v1809 = vld [vmem:[%s1808] sm:$0xff]
      %1810 = vmatprep.subr.bf16.mxu0 0
      %1811 = vmatpush1.bf16.msra.mxu0 %v765
      %1812 = vmatprep.subr.bf16.mxu0 0
      %1813 = vmatpush1.bf16.msra.mxu0 %v766
      %1814 = vmatprep.subr.bf16.mxu0 0
      %1815 = vmatpush1.bf16.msra.mxu0 %v767
      %1816 = vmatprep.subr.bf16.mxu0 0
      %1817 = vmatpush1.bf16.msra.mxu0 %v768
      %1818 = vmatprep.subr.bf16.mxu0 0
      %1819 = vmatpush1.bf16.msra.mxu0 %v769
      %1820 = vmatprep.subr.bf16.mxu0 0
      %1821 = vmatpush1.bf16.msra.mxu0 %v770
      %1822 = vmatprep.subr.bf16.mxu0 0
      %1823 = vmatpush1.bf16.msra.mxu0 %v771
      %1824 = vmatprep.subr.bf16.mxu0 0
      %1825 = vmatpush1.bf16.msra.mxu0 %v772
      %1826 = vmatprep.subr.bf16.mxu0 0
      %1827 = vmatpush1.bf16.msra.mxu0 0
      %1828 = vmatprep.subr.bf16.mxu0 0
      %1829 = vmatpush1.bf16.msra.mxu0 0
      %1830 = vmatprep.subr.bf16.mxu0 0
      %1831 = vmatpush1.bf16.msra.mxu0 0
      %1832 = vmatprep.subr.bf16.mxu0 0
      %1833 = vmatpush1.bf16.msra.mxu0 0
      %1834 = vmatprep.subr.bf16.mxu0 0
      %1835 = vmatpush1.bf16.msra.mxu0 0
      %1836 = vmatprep.subr.bf16.mxu0 0
      %1837 = vmatpush1.bf16.msra.mxu0 0
      %1838 = vmatprep.subr.bf16.mxu0 0
      %1839 = vmatpush1.bf16.msra.mxu0 0
      %1840 = vmatprep.subr.bf16.mxu0 0
      %1841 = vmatpush1.bf16.msra.mxu0 0
      %1842 = vmatprep.mubr.bf16.mxu0 0
      %1843 = vmatmul.mubr.bf16.gmra.mrb[0].mxu0 %v1805
      %v1844 = vpop.f32.mrb[0].mxu0
      %v1845 = vadd.f32 0.0, %v1844
      %v1846 = vpop.f32.mrb[0].mxu0
      %v1847 = vpop.f32.mrb[0].mxu0
      %v1848 = vpop.f32.mrb[0].mxu0
      %1849 = vdwg.mxu0
      %v1850 = vadd.f32 %v1809, %v1845
      %v1851 = vmul.f32 %v1804, 0.0
      %v1852 = vtanh.pop %v1850
      %v1853 = vadd.f32 %v1851, %v1852
      %v1854 = vpack.c.bf16 %v1853, %v1853
      %s1855 = scalar_lea.vmem [#allocation4], 88
      %1856 = vst [vmem:[%s1855] sm:$0xf] %v1854
      %s1857 = scalar_lea.vmem [#allocation3], 176
      %v1858 = vld [vmem:[%s1857] sm:$0xff]
      %1859 = vmatprep.subr.bf16.mxu0 0
      %1860 = vmatpush1.bf16.msra.mxu0 %v765
      %1861 = vmatprep.subr.bf16.mxu0 0
      %1862 = vmatpush1.bf16.msra.mxu0 %v766
      %1863 = vmatprep.subr.bf16.mxu0 0
      %1864 = vmatpush1.bf16.msra.mxu0 %v767
      %1865 = vmatprep.subr.bf16.mxu0 0
      %1866 = vmatpush1.bf16.msra.mxu0 %v768
      %1867 = vmatprep.subr.bf16.mxu0 0
      %1868 = vmatpush1.bf16.msra.mxu0 %v769
      %1869 = vmatprep.subr.bf16.mxu0 0
      %1870 = vmatpush1.bf16.msra.mxu0 %v770
      %1871 = vmatprep.subr.bf16.mxu0 0
      %1872 = vmatpush1.bf16.msra.mxu0 %v771
      %1873 = vmatprep.subr.bf16.mxu0 0
      %1874 = vmatpush1.bf16.msra.mxu0 %v772
      %1875 = vmatprep.subr.bf16.mxu0 0
      %1876 = vmatpush1.bf16.msra.mxu0 0
      %1877 = vmatprep.subr.bf16.mxu0 0
      %1878 = vmatpush1.bf16.msra.mxu0 0
      %1879 = vmatprep.subr.bf16.mxu0 0
      %1880 = vmatpush1.bf16.msra.mxu0 0
      %1881 = vmatprep.subr.bf16.mxu0 0
      %1882 = vmatpush1.bf16.msra.mxu0 0
      %1883 = vmatprep.subr.bf16.mxu0 0
      %1884 = vmatpush1.bf16.msra.mxu0 0
      %1885 = vmatprep.subr.bf16.mxu0 0
      %1886 = vmatpush1.bf16.msra.mxu0 0
      %1887 = vmatprep.subr.bf16.mxu0 0
      %1888 = vmatpush1.bf16.msra.mxu0 0
      %1889 = vmatprep.subr.bf16.mxu0 0
      %1890 = vmatpush1.bf16.msra.mxu0 0
      %1891 = vmatprep.mubr.bf16.mxu0 0
      %1892 = vmatmul.mubr.bf16.gmra.mrb[0].mxu0 %v1854
      %v1893 = vpop.f32.mrb[0].mxu0
      %v1894 = vadd.f32 0.0, %v1893
      %v1895 = vpop.f32.mrb[0].mxu0
      %v1896 = vpop.f32.mrb[0].mxu0
      %v1897 = vpop.f32.mrb[0].mxu0
      %1898 = vdwg.mxu0
      %v1899 = vadd.f32 %v1858, %v1894
      %v1900 = vmul.f32 %v1853, 0.0
      %v1901 = vtanh.pop %v1899
      %v1902 = vadd.f32 %v1900, %v1901
      %v1903 = vpack.c.bf16 %v1902, %v1902
      %s1904 = scalar_lea.vmem [#allocation4], 92
      %1905 = vst [vmem:[%s1904] sm:$0xf] %v1903
      %s1906 = scalar_lea.vmem [#allocation3], 184
      %v1907 = vld [vmem:[%s1906] sm:$0xff]
      %1908 = vmatprep.subr.bf16.mxu0 0
      %1909 = vmatpush1.bf16.msra.mxu0 %v765
      %1910 = vmatprep.subr.bf16.mxu0 0
      %1911 = vmatpush1.bf16.msra.mxu0 %v766
      %1912 = vmatprep.subr.bf16.mxu0 0
      %1913 = vmatpush1.bf16.msra.mxu0 %v767
      %1914 = vmatprep.subr.bf16.mxu0 0
      %1915 = vmatpush1.bf16.msra.mxu0 %v768
      %1916 = vmatprep.subr.bf16.mxu0 0
      %1917 = vmatpush1.bf16.msra.mxu0 %v769
      %1918 = vmatprep.subr.bf16.mxu0 0
      %1919 = vmatpush1.bf16.msra.mxu0 %v770
      %1920 = vmatprep.subr.bf16.mxu0 0
      %1921 = vmatpush1.bf16.msra.mxu0 %v771
      %1922 = vmatprep.subr.bf16.mxu0 0
      %1923 = vmatpush1.bf16.msra.mxu0 %v772
      %1924 = vmatprep.subr.bf16.mxu0 0
      %1925 = vmatpush1.bf16.msra.mxu0 0
      %1926 = vmatprep.subr.bf16.mxu0 0
      %1927 = vmatpush1.bf16.msra.mxu0 0
      %1928 = vmatprep.subr.bf16.mxu0 0
      %1929 = vmatpush1.bf16.msra.mxu0 0
      %1930 = vmatprep.subr.bf16.mxu0 0
      %1931 = vmatpush1.bf16.msra.mxu0 0
      %1932 = vmatprep.subr.bf16.mxu0 0
      %1933 = vmatpush1.bf16.msra.mxu0 0
      %1934 = vmatprep.subr.bf16.mxu0 0
      %1935 = vmatpush1.bf16.msra.mxu0 0
      %1936 = vmatprep.subr.bf16.mxu0 0
      %1937 = vmatpush1.bf16.msra.mxu0 0
      %1938 = vmatprep.subr.bf16.mxu0 0
      %1939 = vmatpush1.bf16.msra.mxu0 0
      %1940 = vmatprep.mubr.bf16.mxu0 0
      %1941 = vmatmul.mubr.bf16.gmra.mrb[0].mxu0 %v1903
      %v1942 = vpop.f32.mrb[0].mxu0
      %v1943 = vadd.f32 0.0, %v1942
      %v1944 = vpop.f32.mrb[0].mxu0
      %v1945 = vpop.f32.mrb[0].mxu0
      %v1946 = vpop.f32.mrb[0].mxu0
      %1947 = vdwg.mxu0
      %v1948 = vadd.f32 %v1907, %v1943
      %v1949 = vmul.f32 %v1902, 0.0
      %v1950 = vtanh.pop %v1948
      %v1951 = vadd.f32 %v1949, %v1950
      %v1952 = vpack.c.bf16 %v1951, %v1951
      %s1953 = scalar_lea.vmem [#allocation4], 96
      %1954 = vst [vmem:[%s1953] sm:$0xf] %v1952
      %s1955 = scalar_lea.vmem [#allocation3], 192
      %v1956 = vld [vmem:[%s1955] sm:$0xff]
      %1957 = vmatprep.subr.bf16.mxu0 0
      %1958 = vmatpush1.bf16.msra.mxu0 %v765
      %1959 = vmatprep.subr.bf16.mxu0 0
      %1960 = vmatpush1.bf16.msra.mxu0 %v766
      %1961 = vmatprep.subr.bf16.mxu0 0
      %1962 = vmatpush1.bf16.msra.mxu0 %v767
      %1963 = vmatprep.subr.bf16.mxu0 0
      %1964 = vmatpush1.bf16.msra.mxu0 %v768
      %1965 = vmatprep.subr.bf16.mxu0 0
      %1966 = vmatpush1.bf16.msra.mxu0 %v769
      %1967 = vmatprep.subr.bf16.mxu0 0
      %1968 = vmatpush1.bf16.msra.mxu0 %v770
      %1969 = vmatprep.subr.bf16.mxu0 0
      %1970 = vmatpush1.bf16.msra.mxu0 %v771
      %1971 = vmatprep.subr.bf16.mxu0 0
      %1972 = vmatpush1.bf16.msra.mxu0 %v772
      %1973 = vmatprep.subr.bf16.mxu0 0
      %1974 = vmatpush1.bf16.msra.mxu0 0
      %1975 = vmatprep.subr.bf16.mxu0 0
      %1976 = vmatpush1.bf16.msra.mxu0 0
      %1977 = vmatprep.subr.bf16.mxu0 0
      %1978 = vmatpush1.bf16.msra.mxu0 0
      %1979 = vmatprep.subr.bf16.mxu0 0
      %1980 = vmatpush1.bf16.msra.mxu0 0
      %1981 = vmatprep.subr.bf16.mxu0 0
      %1982 = vmatpush1.bf16.msra.mxu0 0
      %1983 = vmatprep.subr.bf16.mxu0 0
      %1984 = vmatpush1.bf16.msra.mxu0 0
      %1985 = vmatprep.subr.bf16.mxu0 0
      %1986 = vmatpush1.bf16.msra.mxu0 0
      %1987 = vmatprep.subr.bf16.mxu0 0
      %1988 = vmatpush1.bf16.msra.mxu0 0
      %1989 = vmatprep.mubr.bf16.mxu0 0
      %1990 = vmatmul.mubr.bf16.gmra.mrb[0].mxu0 %v1952
      %v1991 = vpop.f32.mrb[0].mxu0
      %v1992 = vadd.f32 0.0, %v1991
      %v1993 = vpop.f32.mrb[0].mxu0
      %v1994 = vpop.f32.mrb[0].mxu0
      %v1995 = vpop.f32.mrb[0].mxu0
      %1996 = vdwg.mxu0
      %v1997 = vadd.f32 %v1956, %v1992
      %v1998 = vmul.f32 %v1951, 0.0
      %v1999 = vtanh.pop %v1997
      %v2000 = vadd.f32 %v1998, %v1999
      %v2001 = vpack.c.bf16 %v2000, %v2000
      %s2002 = scalar_lea.vmem [#allocation4], 100
      %2003 = vst [vmem:[%s2002] sm:$0xf] %v2001
      %s2004 = scalar_lea.vmem [#allocation3], 200
      %v2005 = vld [vmem:[%s2004] sm:$0xff]
      %2006 = vmatprep.subr.bf16.mxu0 0
      %2007 = vmatpush1.bf16.msra.mxu0 %v765
      %2008 = vmatprep.subr.bf16.mxu0 0
      %2009 = vmatpush1.bf16.msra.mxu0 %v766
      %2010 = vmatprep.subr.bf16.mxu0 0
      %2011 = vmatpush1.bf16.msra.mxu0 %v767
      %2012 = vmatprep.subr.bf16.mxu0 0
      %2013 = vmatpush1.bf16.msra.mxu0 %v768
      %2014 = vmatprep.subr.bf16.mxu0 0
      %2015 = vmatpush1.bf16.msra.mxu0 %v769
      %2016 = vmatprep.subr.bf16.mxu0 0
      %2017 = vmatpush1.bf16.msra.mxu0 %v770
      %2018 = vmatprep.subr.bf16.mxu0 0
      %2019 = vmatpush1.bf16.msra.mxu0 %v771
      %2020 = vmatprep.subr.bf16.mxu0 0
      %2021 = vmatpush1.bf16.msra.mxu0 %v772
      %2022 = vmatprep.subr.bf16.mxu0 0
      %2023 = vmatpush1.bf16.msra.mxu0 0
      %2024 = vmatprep.subr.bf16.mxu0 0
      %2025 = vmatpush1.bf16.msra.mxu0 0
      %2026 = vmatprep.subr.bf16.mxu0 0
      %2027 = vmatpush1.bf16.msra.mxu0 0
      %2028 = vmatprep.subr.bf16.mxu0 0
      %2029 = vmatpush1.bf16.msra.mxu0 0
      %2030 = vmatprep.subr.bf16.mxu0 0
      %2031 = vmatpush1.bf16.msra.mxu0 0
      %2032 = vmatprep.subr.bf16.mxu0 0
      %2033 = vmatpush1.bf16.msra.mxu0 0
      %2034 = vmatprep.subr.bf16.mxu0 0
      %2035 = vmatpush1.bf16.msra.mxu0 0
      %2036 = vmatprep.subr.bf16.mxu0 0
      %2037 = vmatpush1.bf16.msra.mxu0 0
      %2038 = vmatprep.mubr.bf16.mxu0 0
      %2039 = vmatmul.mubr.bf16.gmra.mrb[0].mxu0 %v2001
      %v2040 = vpop.f32.mrb[0].mxu0
      %v2041 = vadd.f32 0.0, %v2040
      %v2042 = vpop.f32.mrb[0].mxu0
      %v2043 = vpop.f32.mrb[0].mxu0
      %v2044 = vpop.f32.mrb[0].mxu0
      %2045 = vdwg.mxu0
      %v2046 = vadd.f32 %v2005, %v2041
      %v2047 = vmul.f32 %v2000, 0.0
      %v2048 = vtanh.pop %v2046
      %v2049 = vadd.f32 %v2047, %v2048
      %v2050 = vpack.c.bf16 %v2049, %v2049
      %s2051 = scalar_lea.vmem [#allocation4], 104
      %2052 = vst [vmem:[%s2051] sm:$0xf] %v2050
      %s2053 = scalar_lea.vmem [#allocation3], 208
      %v2054 = vld [vmem:[%s2053] sm:$0xff]
      %2055 = vmatprep.subr.bf16.mxu0 0
      %2056 = vmatpush1.bf16.msra.mxu0 %v765
      %2057 = vmatprep.subr.bf16.mxu0 0
      %2058 = vmatpush1.bf16.msra.mxu0 %v766
      %2059 = vmatprep.subr.bf16.mxu0 0
      %2060 = vmatpush1.bf16.msra.mxu0 %v767
      %2061 = vmatprep.subr.bf16.mxu0 0
      %2062 = vmatpush1.bf16.msra.mxu0 %v768
      %2063 = vmatprep.subr.bf16.mxu0 0
      %2064 = vmatpush1.bf16.msra.mxu0 %v769
      %2065 = vmatprep.subr.bf16.mxu0 0
      %2066 = vmatpush1.bf16.msra.mxu0 %v770
      %2067 = vmatprep.subr.bf16.mxu0 0
      %2068 = vmatpush1.bf16.msra.mxu0 %v771
      %2069 = vmatprep.subr.bf16.mxu0 0
      %2070 = vmatpush1.bf16.msra.mxu0 %v772
      %2071 = vmatprep.subr.bf16.mxu0 0
      %2072 = vmatpush1.bf16.msra.mxu0 0
      %2073 = vmatprep.subr.bf16.mxu0 0
      %2074 = vmatpush1.bf16.msra.mxu0 0
      %2075 = vmatprep.subr.bf16.mxu0 0
      %2076 = vmatpush1.bf16.msra.mxu0 0
      %2077 = vmatprep.subr.bf16.mxu0 0
      %2078 = vmatpush1.bf16.msra.mxu0 0
      %2079 = vmatprep.subr.bf16.mxu0 0
      %2080 = vmatpush1.bf16.msra.mxu0 0
      %2081 = vmatprep.subr.bf16.mxu0 0
      %2082 = vmatpush1.bf16.msra.mxu0 0
      %2083 = vmatprep.subr.bf16.mxu0 0
      %2084 = vmatpush1.bf16.msra.mxu0 0
      %2085 = vmatprep.subr.bf16.mxu0 0
      %2086 = vmatpush1.bf16.msra.mxu0 0
      %2087 = vmatprep.mubr.bf16.mxu0 0
      %2088 = vmatmul.mubr.bf16.gmra.mrb[0].mxu0 %v2050
      %v2089 = vpop.f32.mrb[0].mxu0
      %v2090 = vadd.f32 0.0, %v2089
      %v2091 = vpop.f32.mrb[0].mxu0
      %v2092 = vpop.f32.mrb[0].mxu0
      %v2093 = vpop.f32.mrb[0].mxu0
      %2094 = vdwg.mxu0
      %v2095 = vadd.f32 %v2054, %v2090
      %v2096 = vmul.f32 %v2049, 0.0
      %v2097 = vtanh.pop %v2095
      %v2098 = vadd.f32 %v2096, %v2097
      %v2099 = vpack.c.bf16 %v2098, %v2098
      %s2100 = scalar_lea.vmem [#allocation4], 108
      %2101 = vst [vmem:[%s2100] sm:$0xf] %v2099
      %s2102 = scalar_lea.vmem [#allocation3], 216
      %v2103 = vld [vmem:[%s2102] sm:$0xff]
      %2104 = vmatprep.subr.bf16.mxu0 0
      %2105 = vmatpush1.bf16.msra.mxu0 %v765
      %2106 = vmatprep.subr.bf16.mxu0 0
      %2107 = vmatpush1.bf16.msra.mxu0 %v766
      %2108 = vmatprep.subr.bf16.mxu0 0
      %2109 = vmatpush1.bf16.msra.mxu0 %v767
      %2110 = vmatprep.subr.bf16.mxu0 0
      %2111 = vmatpush1.bf16.msra.mxu0 %v768
      %2112 = vmatprep.subr.bf16.mxu0 0
      %2113 = vmatpush1.bf16.msra.mxu0 %v769
      %2114 = vmatprep.subr.bf16.mxu0 0
      %2115 = vmatpush1.bf16.msra.mxu0 %v770
      %2116 = vmatprep.subr.bf16.mxu0 0
      %2117 = vmatpush1.bf16.msra.mxu0 %v771
      %2118 = vmatprep.subr.bf16.mxu0 0
      %2119 = vmatpush1.bf16.msra.mxu0 %v772
      %2120 = vmatprep.subr.bf16.mxu0 0
      %2121 = vmatpush1.bf16.msra.mxu0 0
      %2122 = vmatprep.subr.bf16.mxu0 0
      %2123 = vmatpush1.bf16.msra.mxu0 0
      %2124 = vmatprep.subr.bf16.mxu0 0
      %2125 = vmatpush1.bf16.msra.mxu0 0
      %2126 = vmatprep.subr.bf16.mxu0 0
      %2127 = vmatpush1.bf16.msra.mxu0 0
      %2128 = vmatprep.subr.bf16.mxu0 0
      %2129 = vmatpush1.bf16.msra.mxu0 0
      %2130 = vmatprep.subr.bf16.mxu0 0
      %2131 = vmatpush1.bf16.msra.mxu0 0
      %2132 = vmatprep.subr.bf16.mxu0 0
      %2133 = vmatpush1.bf16.msra.mxu0 0
      %2134 = vmatprep.subr.bf16.mxu0 0
      %2135 = vmatpush1.bf16.msra.mxu0 0
      %2136 = vmatprep.mubr.bf16.mxu0 0
      %2137 = vmatmul.mubr.bf16.gmra.mrb[0].mxu0 %v2099
      %v2138 = vpop.f32.mrb[0].mxu0
      %v2139 = vadd.f32 0.0, %v2138
      %v2140 = vpop.f32.mrb[0].mxu0
      %v2141 = vpop.f32.mrb[0].mxu0
      %v2142 = vpop.f32.mrb[0].mxu0
      %2143 = vdwg.mxu0
      %v2144 = vadd.f32 %v2103, %v2139
      %v2145 = vmul.f32 %v2098, 0.0
      %v2146 = vtanh.pop %v2144
      %v2147 = vadd.f32 %v2145, %v2146
      %v2148 = vpack.c.bf16 %v2147, %v2147
      %s2149 = scalar_lea.vmem [#allocation4], 112
      %2150 = vst [vmem:[%s2149] sm:$0xf] %v2148
      %s2151 = scalar_lea.vmem [#allocation3], 224
      %v2152 = vld [vmem:[%s2151] sm:$0xff]
      %2153 = vmatprep.subr.bf16.mxu0 0
      %2154 = vmatpush1.bf16.msra.mxu0 %v765
      %2155 = vmatprep.subr.bf16.mxu0 0
      %2156 = vmatpush1.bf16.msra.mxu0 %v766
      %2157 = vmatprep.subr.bf16.mxu0 0
      %2158 = vmatpush1.bf16.msra.mxu0 %v767
      %2159 = vmatprep.subr.bf16.mxu0 0
      %2160 = vmatpush1.bf16.msra.mxu0 %v768
      %2161 = vmatprep.subr.bf16.mxu0 0
      %2162 = vmatpush1.bf16.msra.mxu0 %v769
      %2163 = vmatprep.subr.bf16.mxu0 0
      %2164 = vmatpush1.bf16.msra.mxu0 %v770
      %2165 = vmatprep.subr.bf16.mxu0 0
      %2166 = vmatpush1.bf16.msra.mxu0 %v771
      %2167 = vmatprep.subr.bf16.mxu0 0
      %2168 = vmatpush1.bf16.msra.mxu0 %v772
      %2169 = vmatprep.subr.bf16.mxu0 0
      %2170 = vmatpush1.bf16.msra.mxu0 0
      %2171 = vmatprep.subr.bf16.mxu0 0
      %2172 = vmatpush1.bf16.msra.mxu0 0
      %2173 = vmatprep.subr.bf16.mxu0 0
      %2174 = vmatpush1.bf16.msra.mxu0 0
      %2175 = vmatprep.subr.bf16.mxu0 0
      %2176 = vmatpush1.bf16.msra.mxu0 0
      %2177 = vmatprep.subr.bf16.mxu0 0
      %2178 = vmatpush1.bf16.msra.mxu0 0
      %2179 = vmatprep.subr.bf16.mxu0 0
      %2180 = vmatpush1.bf16.msra.mxu0 0
      %2181 = vmatprep.subr.bf16.mxu0 0
      %2182 = vmatpush1.bf16.msra.mxu0 0
      %2183 = vmatprep.subr.bf16.mxu0 0
      %2184 = vmatpush1.bf16.msra.mxu0 0
      %2185 = vmatprep.mubr.bf16.mxu0 0
      %2186 = vmatmul.mubr.bf16.gmra.mrb[0].mxu0 %v2148
      %v2187 = vpop.f32.mrb[0].mxu0
      %v2188 = vadd.f32 0.0, %v2187
      %v2189 = vpop.f32.mrb[0].mxu0
      %v2190 = vpop.f32.mrb[0].mxu0
      %v2191 = vpop.f32.mrb[0].mxu0
      %2192 = vdwg.mxu0
      %v2193 = vadd.f32 %v2152, %v2188
      %v2194 = vmul.f32 %v2147, 0.0
      %v2195 = vtanh.pop %v2193
      %v2196 = vadd.f32 %v2194, %v2195
      %v2197 = vpack.c.bf16 %v2196, %v2196
      %s2198 = scalar_lea.vmem [#allocation4], 116
      %2199 = vst [vmem:[%s2198] sm:$0xf] %v2197
      %s2200 = scalar_lea.vmem [#allocation3], 232
      %v2201 = vld [vmem:[%s2200] sm:$0xff]
      %2202 = vmatprep.subr.bf16.mxu0 0
      %2203 = vmatpush1.bf16.msra.mxu0 %v765
      %2204 = vmatprep.subr.bf16.mxu0 0
      %2205 = vmatpush1.bf16.msra.mxu0 %v766
      %2206 = vmatprep.subr.bf16.mxu0 0
      %2207 = vmatpush1.bf16.msra.mxu0 %v767
      %2208 = vmatprep.subr.bf16.mxu0 0
      %2209 = vmatpush1.bf16.msra.mxu0 %v768
      %2210 = vmatprep.subr.bf16.mxu0 0
      %2211 = vmatpush1.bf16.msra.mxu0 %v769
      %2212 = vmatprep.subr.bf16.mxu0 0
      %2213 = vmatpush1.bf16.msra.mxu0 %v770
      %2214 = vmatprep.subr.bf16.mxu0 0
      %2215 = vmatpush1.bf16.msra.mxu0 %v771
      %2216 = vmatprep.subr.bf16.mxu0 0
      %2217 = vmatpush1.bf16.msra.mxu0 %v772
      %2218 = vmatprep.subr.bf16.mxu0 0
      %2219 = vmatpush1.bf16.msra.mxu0 0
      %2220 = vmatprep.subr.bf16.mxu0 0
      %2221 = vmatpush1.bf16.msra.mxu0 0
      %2222 = vmatprep.subr.bf16.mxu0 0
      %2223 = vmatpush1.bf16.msra.mxu0 0
      %2224 = vmatprep.subr.bf16.mxu0 0
      %2225 = vmatpush1.bf16.msra.mxu0 0
      %2226 = vmatprep.subr.bf16.mxu0 0
      %2227 = vmatpush1.bf16.msra.mxu0 0
      %2228 = vmatprep.subr.bf16.mxu0 0
      %2229 = vmatpush1.bf16.msra.mxu0 0
      %2230 = vmatprep.subr.bf16.mxu0 0
      %2231 = vmatpush1.bf16.msra.mxu0 0
      %2232 = vmatprep.subr.bf16.mxu0 0
      %2233 = vmatpush1.bf16.msra.mxu0 0
      %2234 = vmatprep.mubr.bf16.mxu0 0
      %2235 = vmatmul.mubr.bf16.gmra.mrb[0].mxu0 %v2197
      %v2236 = vpop.f32.mrb[0].mxu0
      %v2237 = vadd.f32 0.0, %v2236
      %v2238 = vpop.f32.mrb[0].mxu0
      %v2239 = vpop.f32.mrb[0].mxu0
      %v2240 = vpop.f32.mrb[0].mxu0
      %2241 = vdwg.mxu0
      %v2242 = vadd.f32 %v2201, %v2237
      %v2243 = vmul.f32 %v2196, 0.0
      %v2244 = vtanh.pop %v2242
      %v2245 = vadd.f32 %v2243, %v2244
      %v2246 = vpack.c.bf16 %v2245, %v2245
      %s2247 = scalar_lea.vmem [#allocation4], 120
      %2248 = vst [vmem:[%s2247] sm:$0xf] %v2246
      %s2249 = scalar_lea.vmem [#allocation3], 240
      %v2250 = vld [vmem:[%s2249] sm:$0xff]
      %2251 = vmatprep.subr.bf16.mxu0 0
      %2252 = vmatpush1.bf16.msra.mxu0 %v765
      %2253 = vmatprep.subr.bf16.mxu0 0
      %2254 = vmatpush1.bf16.msra.mxu0 %v766
      %2255 = vmatprep.subr.bf16.mxu0 0
      %2256 = vmatpush1.bf16.msra.mxu0 %v767
      %2257 = vmatprep.subr.bf16.mxu0 0
      %2258 = vmatpush1.bf16.msra.mxu0 %v768
      %2259 = vmatprep.subr.bf16.mxu0 0
      %2260 = vmatpush1.bf16.msra.mxu0 %v769
      %2261 = vmatprep.subr.bf16.mxu0 0
      %2262 = vmatpush1.bf16.msra.mxu0 %v770
      %2263 = vmatprep.subr.bf16.mxu0 0
      %2264 = vmatpush1.bf16.msra.mxu0 %v771
      %2265 = vmatprep.subr.bf16.mxu0 0
      %2266 = vmatpush1.bf16.msra.mxu0 %v772
      %2267 = vmatprep.subr.bf16.mxu0 0
      %2268 = vmatpush1.bf16.msra.mxu0 0
      %2269 = vmatprep.subr.bf16.mxu0 0
      %2270 = vmatpush1.bf16.msra.mxu0 0
      %2271 = vmatprep.subr.bf16.mxu0 0
      %2272 = vmatpush1.bf16.msra.mxu0 0
      %2273 = vmatprep.subr.bf16.mxu0 0
      %2274 = vmatpush1.bf16.msra.mxu0 0
      %2275 = vmatprep.subr.bf16.mxu0 0
      %2276 = vmatpush1.bf16.msra.mxu0 0
      %2277 = vmatprep.subr.bf16.mxu0 0
      %2278 = vmatpush1.bf16.msra.mxu0 0
      %2279 = vmatprep.subr.bf16.mxu0 0
      %2280 = vmatpush1.bf16.msra.mxu0 0
      %2281 = vmatprep.subr.bf16.mxu0 0
      %2282 = vmatpush1.bf16.msra.mxu0 0
      %2283 = vmatprep.mubr.bf16.mxu0 0
      %2284 = vmatmul.mubr.bf16.gmra.mrb[0].mxu0 %v2246
      %v2285 = vpop.f32.mrb[0].mxu0
      %v2286 = vadd.f32 0.0, %v2285
      %v2287 = vpop.f32.mrb[0].mxu0
      %v2288 = vpop.f32.mrb[0].mxu0
      %v2289 = vpop.f32.mrb[0].mxu0
      %2290 = vdwg.mxu0
      %v2291 = vadd.f32 %v2250, %v2286
      %v2292 = vmul.f32 %v2245, 0.0
      %v2293 = vtanh.pop %v2291
      %v2294 = vadd.f32 %v2292, %v2293
      %v2295 = vpack.c.bf16 %v2294, %v2294
      %s2296 = scalar_lea.vmem [#allocation4], 124
      %2297 = vst [vmem:[%s2296] sm:$0xf] %v2295
      %s2298 = scalar_lea.vmem [#allocation3], 248
      %v2299 = vld [vmem:[%s2298] sm:$0xff]
      %2300 = vmatprep.subr.bf16.mxu0 0
      %2301 = vmatpush1.bf16.msra.mxu0 %v765
      %2302 = vmatprep.subr.bf16.mxu0 0
      %2303 = vmatpush1.bf16.msra.mxu0 %v766
      %2304 = vmatprep.subr.bf16.mxu0 0
      %2305 = vmatpush1.bf16.msra.mxu0 %v767
      %2306 = vmatprep.subr.bf16.mxu0 0
      %2307 = vmatpush1.bf16.msra.mxu0 %v768
      %2308 = vmatprep.subr.bf16.mxu0 0
      %2309 = vmatpush1.bf16.msra.mxu0 %v769
      %2310 = vmatprep.subr.bf16.mxu0 0
      %2311 = vmatpush1.bf16.msra.mxu0 %v770
      %2312 = vmatprep.subr.bf16.mxu0 0
      %2313 = vmatpush1.bf16.msra.mxu0 %v771
      %2314 = vmatprep.subr.bf16.mxu0 0
      %2315 = vmatpush1.bf16.msra.mxu0 %v772
      %2316 = vmatprep.subr.bf16.mxu0 0
      %2317 = vmatpush1.bf16.msra.mxu0 0
      %2318 = vmatprep.subr.bf16.mxu0 0
      %2319 = vmatpush1.bf16.msra.mxu0 0
      %2320 = vmatprep.subr.bf16.mxu0 0
      %2321 = vmatpush1.bf16.msra.mxu0 0
      %2322 = vmatprep.subr.bf16.mxu0 0
      %2323 = vmatpush1.bf16.msra.mxu0 0
      %2324 = vmatprep.subr.bf16.mxu0 0
      %2325 = vmatpush1.bf16.msra.mxu0 0
      %2326 = vmatprep.subr.bf16.mxu0 0
      %2327 = vmatpush1.bf16.msra.mxu0 0
      %2328 = vmatprep.subr.bf16.mxu0 0
      %2329 = vmatpush1.bf16.msra.mxu0 0
      %2330 = vmatprep.subr.bf16.mxu0 0
      %2331 = vmatpush1.bf16.msra.mxu0 0
      %2332 = vmatprep.mubr.bf16.mxu0 0
      %2333 = vmatmul.mubr.bf16.gmra.mrb[0].mxu0 %v2295
      %v2334 = vpop.f32.mrb[0].mxu0
      %v2335 = vadd.f32 0.0, %v2334
      %v2336 = vpop.f32.mrb[0].mxu0
      %v2337 = vpop.f32.mrb[0].mxu0
      %v2338 = vpop.f32.mrb[0].mxu0
      %2339 = vdwg.mxu0
      %v2340 = vadd.f32 %v2299, %v2335
      %v2341 = vmul.f32 %v2294, 0.0
      %v2342 = vtanh.pop %v2340
      %v2343 = vadd.f32 %v2341, %v2342
      %2344 = vst [vmem:[#allocation2] sm:$0xff] %v2343
      %v2345 = vld [vmem:[#allocation4] sm:$0xf]
      %v2346 = vld [vmem:[#allocation4 + $0x4] sm:$0xf]
      %v2347 = vld [vmem:[#allocation4 + $0x8] sm:$0xf]
      %v2348 = vld [vmem:[#allocation4 + $0xc] sm:$0xf]
      %v2349 = vld [vmem:[#allocation4 + $0x10] sm:$0xf]
      %v2350 = vld [vmem:[#allocation4 + $0x14] sm:$0xf]
      %v2351 = vld [vmem:[#allocation4 + $0x18] sm:$0xf]
      %v2352 = vld [vmem:[#allocation4 + $0x1c] sm:$0xf]
      %v2353 = vld [vmem:[#allocation4 + $0x20] sm:$0xf]
      %v2354 = vld [vmem:[#allocation4 + $0x24] sm:$0xf]
      %v2355 = vld [vmem:[#allocation4 + $0x28] sm:$0xf]
      %v2356 = vld [vmem:[#allocation4 + $0x2c] sm:$0xf]
      %v2357 = vld [vmem:[#allocation4 + $0x30] sm:$0xf]
      %v2358 = vld [vmem:[#allocation4 + $0x34] sm:$0xf]
      %v2359 = vld [vmem:[#allocation4 + $0x38] sm:$0xf]
      %v2360 = vld [vmem:[#allocation4 + $0x3c] sm:$0xf]
      %v2361 = vld [vmem:[#allocation4 + $0x40] sm:$0xf]
      %v2362 = vld [vmem:[#allocation4 + $0x44] sm:$0xf]
      %v2363 = vld [vmem:[#allocation4 + $0x48] sm:$0xf]
      %v2364 = vld [vmem:[#allocation4 + $0x4c] sm:$0xf]
      %v2365 = vld [vmem:[#allocation4 + $0x50] sm:$0xf]
      %v2366 = vld [vmem:[#allocation4 + $0x54] sm:$0xf]
      %v2367 = vld [vmem:[#allocation4 + $0x58] sm:$0xf]
      %v2368 = vld [vmem:[#allocation4 + $0x5c] sm:$0xf]
      %v2369 = vld [vmem:[#allocation4 + $0x60] sm:$0xf]
      %v2370 = vld [vmem:[#allocation4 + $0x64] sm:$0xf]
      %v2371 = vld [vmem:[#allocation4 + $0x68] sm:$0xf]
      %v2372 = vld [vmem:[#allocation4 + $0x6c] sm:$0xf]
      %v2373 = vld [vmem:[#allocation4 + $0x70] sm:$0xf]
      %v2374 = vld [vmem:[#allocation4 + $0x74] sm:$0xf]
      %v2375 = vld [vmem:[#allocation4 + $0x78] sm:$0xf]
      %v2376 = vld [vmem:[#allocation4 + $0x7c] sm:$0xf]
      %v2377 = vld [vmem:[%s7] sm:$0xff]
      %v2378 = vld [vmem:[%s7 + $0x8] sm:$0xff]
      %v2379 = vld [vmem:[%s7 + $0x10] sm:$0xff]
      %v2380 = vld [vmem:[%s7 + $0x18] sm:$0xff]
      %v2381 = vld [vmem:[%s7 + $0x20] sm:$0xff]
      %v2382 = vld [vmem:[%s7 + $0x28] sm:$0xff]
      %v2383 = vld [vmem:[%s7 + $0x30] sm:$0xff]
      %v2384 = vld [vmem:[%s7 + $0x38] sm:$0xff]
      %v2385 = vld [vmem:[%s7 + $0x40] sm:$0xff]
      %v2386 = vld [vmem:[%s7 + $0x48] sm:$0xff]
      %v2387 = vld [vmem:[%s7 + $0x50] sm:$0xff]
      %v2388 = vld [vmem:[%s7 + $0x58] sm:$0xff]
      %v2389 = vld [vmem:[%s7 + $0x60] sm:$0xff]
      %v2390 = vld [vmem:[%s7 + $0x68] sm:$0xff]
      %v2391 = vld [vmem:[%s7 + $0x70] sm:$0xff]
      %v2392 = vld [vmem:[%s7 + $0x78] sm:$0xff]
      %v2393 = vld [vmem:[%s7 + $0x80] sm:$0xff]
      %v2394 = vld [vmem:[%s7 + $0x88] sm:$0xff]
      %v2395 = vld [vmem:[%s7 + $0x90] sm:$0xff]
      %v2396 = vld [vmem:[%s7 + $0x98] sm:$0xff]
      %v2397 = vld [vmem:[%s7 + $0xa0] sm:$0xff]
      %v2398 = vld [vmem:[%s7 + $0xa8] sm:$0xff]
      %v2399 = vld [vmem:[%s7 + $0xb0] sm:$0xff]
      %v2400 = vld [vmem:[%s7 + $0xb8] sm:$0xff]
      %v2401 = vld [vmem:[%s7 + $0xc0] sm:$0xff]
      %v2402 = vld [vmem:[%s7 + $0xc8] sm:$0xff]
      %v2403 = vld [vmem:[%s7 + $0xd0] sm:$0xff]
      %v2404 = vld [vmem:[%s7 + $0xd8] sm:$0xff]
      %v2405 = vld [vmem:[%s7 + $0xe0] sm:$0xff]
      %v2406 = vld [vmem:[%s7 + $0xe8] sm:$0xff]
      %v2407 = vld [vmem:[%s7 + $0xf0] sm:$0xff]
      %v2408 = vld [vmem:[%s7 + $0xf8] sm:$0xff]
      %v2441 = vunpack.c.l.b16 %v2345
      %v2442 = vunpack.c.l.b16 %v2346
      %v2443 = vunpack.c.l.b16 %v2347
      %v2444 = vunpack.c.l.b16 %v2348
      %v2445 = vunpack.c.l.b16 %v2349
      %v2446 = vunpack.c.l.b16 %v2350
      %v2447 = vunpack.c.l.b16 %v2351
      %v2448 = vunpack.c.l.b16 %v2352
      %v2449 = vunpack.c.l.b16 %v2353
      %v2450 = vunpack.c.l.b16 %v2354
      %v2451 = vunpack.c.l.b16 %v2355
      %v2452 = vunpack.c.l.b16 %v2356
      %v2453 = vunpack.c.l.b16 %v2357
      %v2454 = vunpack.c.l.b16 %v2358
      %v2455 = vunpack.c.l.b16 %v2359
      %v2456 = vunpack.c.l.b16 %v2360
      %v2457 = vunpack.c.l.b16 %v2361
      %v2458 = vunpack.c.l.b16 %v2362
      %v2459 = vunpack.c.l.b16 %v2363
      %v2460 = vunpack.c.l.b16 %v2364
      %v2461 = vunpack.c.l.b16 %v2365
      %v2462 = vunpack.c.l.b16 %v2366
      %v2463 = vunpack.c.l.b16 %v2367
      %v2464 = vunpack.c.l.b16 %v2368
      %v2465 = vunpack.c.l.b16 %v2369
      %v2466 = vunpack.c.l.b16 %v2370
      %v2467 = vunpack.c.l.b16 %v2371
      %v2468 = vunpack.c.l.b16 %v2372
      %v2469 = vunpack.c.l.b16 %v2373
      %v2470 = vunpack.c.l.b16 %v2374
      %v2471 = vunpack.c.l.b16 %v2375
      %v2472 = vunpack.c.l.b16 %v2376
      %v2473 = vpack.c.b16 %v2442, %v2441
      %v2474 = vpack.c.b16 %v2444, %v2443
      %v2475 = vpack.c.b16 %v2446, %v2445
      %v2476 = vpack.c.b16 %v2448, %v2447
      %v2477 = vpack.c.b16 %v2450, %v2449
      %v2478 = vpack.c.b16 %v2452, %v2451
      %v2479 = vpack.c.b16 %v2454, %v2453
      %v2480 = vpack.c.b16 %v2456, %v2455
      %v2481 = vpack.c.b16 %v2458, %v2457
      %v2482 = vpack.c.b16 %v2460, %v2459
      %v2483 = vpack.c.b16 %v2462, %v2461
      %v2484 = vpack.c.b16 %v2464, %v2463
      %v2485 = vpack.c.b16 %v2466, %v2465
      %v2486 = vpack.c.b16 %v2468, %v2467
      %v2487 = vpack.c.b16 %v2470, %v2469
      %v2488 = vpack.c.b16 %v2472, %v2471
      %v2537 = vunpack.c.l.b16 %v2377
      %v2538 = vunpack.c.h.b16 %v2377
      %v2539 = vunpack.c.l.b16 %v2378
      %v2540 = vunpack.c.h.b16 %v2378
      %v2541 = vunpack.c.l.b16 %v2379
      %v2542 = vunpack.c.h.b16 %v2379
      %v2543 = vunpack.c.l.b16 %v2380
      %v2544 = vunpack.c.h.b16 %v2380
      %v2545 = vunpack.c.l.b16 %v2381
      %v2546 = vunpack.c.h.b16 %v2381
      %v2547 = vunpack.c.l.b16 %v2382
      %v2548 = vunpack.c.h.b16 %v2382
      %v2549 = vunpack.c.l.b16 %v2383
      %v2550 = vunpack.c.h.b16 %v2383
      %v2551 = vunpack.c.l.b16 %v2384
      %v2552 = vunpack.c.h.b16 %v2384
      %v2553 = vunpack.c.l.b16 %v2385
      %v2554 = vunpack.c.h.b16 %v2385
      %v2555 = vunpack.c.l.b16 %v2386
      %v2556 = vunpack.c.h.b16 %v2386
      %v2557 = vunpack.c.l.b16 %v2387
      %v2558 = vunpack.c.h.b16 %v2387
      %v2559 = vunpack.c.l.b16 %v2388
      %v2560 = vunpack.c.h.b16 %v2388
      %v2561 = vunpack.c.l.b16 %v2389
      %v2562 = vunpack.c.h.b16 %v2389
      %v2563 = vunpack.c.l.b16 %v2390
      %v2564 = vunpack.c.h.b16 %v2390
      %v2565 = vunpack.c.l.b16 %v2391
      %v2566 = vunpack.c.h.b16 %v2391
      %v2567 = vunpack.c.l.b16 %v2392
      %v2568 = vunpack.c.h.b16 %v2392
      %v2569 = vunpack.c.l.b16 %v2393
      %v2570 = vunpack.c.h.b16 %v2393
      %v2571 = vunpack.c.l.b16 %v2394
      %v2572 = vunpack.c.h.b16 %v2394
      %v2573 = vunpack.c.l.b16 %v2395
      %v2574 = vunpack.c.h.b16 %v2395
      %v2575 = vunpack.c.l.b16 %v2396
      %v2576 = vunpack.c.h.b16 %v2396
      %v2577 = vunpack.c.l.b16 %v2397
      %v2578 = vunpack.c.h.b16 %v2397
      %v2579 = vunpack.c.l.b16 %v2398
      %v2580 = vunpack.c.h.b16 %v2398
      %v2581 = vunpack.c.l.b16 %v2399
      %v2582 = vunpack.c.h.b16 %v2399
      %v2583 = vunpack.c.l.b16 %v2400
      %v2584 = vunpack.c.h.b16 %v2400
      %v2585 = vunpack.c.l.b16 %v2401
      %v2586 = vunpack.c.h.b16 %v2401
      %v2587 = vunpack.c.l.b16 %v2402
      %v2588 = vunpack.c.h.b16 %v2402
      %v2589 = vunpack.c.l.b16 %v2403
      %v2590 = vunpack.c.h.b16 %v2403
      %v2591 = vunpack.c.l.b16 %v2404
      %v2592 = vunpack.c.h.b16 %v2404
      %v2593 = vunpack.c.l.b16 %v2405
      %v2594 = vunpack.c.h.b16 %v2405
      %v2595 = vunpack.c.l.b16 %v2406
      %v2596 = vunpack.c.h.b16 %v2406
      %v2597 = vunpack.c.l.b16 %v2407
      %v2598 = vunpack.c.h.b16 %v2407
      %v2599 = vunpack.c.l.b16 %v2408
      %v2600 = vunpack.c.h.b16 %v2408
      %v2601 = vpack.c.b16 %v2541, %v2537
      %v2602 = vpack.c.b16 %v2542, %v2538
      %v2603 = vpack.c.b16 %v2543, %v2539
      %v2604 = vpack.c.b16 %v2544, %v2540
      %v2605 = vpack.c.b16 %v2549, %v2545
      %v2606 = vpack.c.b16 %v2550, %v2546
      %v2607 = vpack.c.b16 %v2551, %v2547
      %v2608 = vpack.c.b16 %v2552, %v2548
      %v2609 = vpack.c.b16 %v2557, %v2553
      %v2610 = vpack.c.b16 %v2558, %v2554
      %v2611 = vpack.c.b16 %v2559, %v2555
      %v2612 = vpack.c.b16 %v2560, %v2556
      %v2613 = vpack.c.b16 %v2565, %v2561
      %v2614 = vpack.c.b16 %v2566, %v2562
      %v2615 = vpack.c.b16 %v2567, %v2563
      %v2616 = vpack.c.b16 %v2568, %v2564
      %v2617 = vpack.c.b16 %v2573, %v2569
      %v2618 = vpack.c.b16 %v2574, %v2570
      %v2619 = vpack.c.b16 %v2575, %v2571
      %v2620 = vpack.c.b16 %v2576, %v2572
      %v2621 = vpack.c.b16 %v2581, %v2577
      %v2622 = vpack.c.b16 %v2582, %v2578
      %v2623 = vpack.c.b16 %v2583, %v2579
      %v2624 = vpack.c.b16 %v2584, %v2580
      %v2625 = vpack.c.b16 %v2589, %v2585
      %v2626 = vpack.c.b16 %v2590, %v2586
      %v2627 = vpack.c.b16 %v2591, %v2587
      %v2628 = vpack.c.b16 %v2592, %v2588
      %v2629 = vpack.c.b16 %v2597, %v2593
      %v2630 = vpack.c.b16 %v2598, %v2594
      %v2631 = vpack.c.b16 %v2599, %v2595
      %v2632 = vpack.c.b16 %v2600, %v2596
      %2665 = vmatprep.subr.bf16.mxu0 %v2602
      %2666 = vmatpush1.bf16.msra.mxu0 %v2601
      %2667 = vmatprep.subr.bf16.mxu0 %v2606
      %2668 = vmatpush1.bf16.msra.mxu0 %v2605
      %2669 = vmatprep.subr.bf16.mxu0 %v2610
      %2670 = vmatpush1.bf16.msra.mxu0 %v2609
      %2671 = vmatprep.subr.bf16.mxu0 %v2614
      %2672 = vmatpush1.bf16.msra.mxu0 %v2613
      %2673 = vmatprep.subr.bf16.mxu0 %v2618
      %2674 = vmatpush1.bf16.msra.mxu0 %v2617
      %2675 = vmatprep.subr.bf16.mxu0 %v2622
      %2676 = vmatpush1.bf16.msra.mxu0 %v2621
      %2677 = vmatprep.subr.bf16.mxu0 %v2626
      %2678 = vmatpush1.bf16.msra.mxu0 %v2625
      %2679 = vmatprep.subr.bf16.mxu0 %v2630
      %2680 = vmatpush1.bf16.msra.mxu0 %v2629
      %2681 = vmatprep.subr.bf16.mxu0 0
      %2682 = vmatpush1.bf16.msra.mxu0 0
      %2683 = vmatprep.subr.bf16.mxu0 0
      %2684 = vmatpush1.bf16.msra.mxu0 0
      %2685 = vmatprep.subr.bf16.mxu0 0
      %2686 = vmatpush1.bf16.msra.mxu0 0
      %2687 = vmatprep.subr.bf16.mxu0 0
      %2688 = vmatpush1.bf16.msra.mxu0 0
      %2689 = vmatprep.subr.bf16.mxu0 0
      %2690 = vmatpush1.bf16.msra.mxu0 0
      %2691 = vmatprep.subr.bf16.mxu0 0
      %2692 = vmatpush1.bf16.msra.mxu0 0
      %2693 = vmatprep.subr.bf16.mxu0 0
      %2694 = vmatpush1.bf16.msra.mxu0 0
      %2695 = vmatprep.subr.bf16.mxu0 0
      %2696 = vmatpush1.bf16.msra.mxu0 0
      %2697 = vmatprep.mubr.bf16.mxu0 0
      %2698 = vmatmul.mubr.bf16.gmra.mrb[0].mxu0 %v2473
      %v2699 = vpop.f32.mrb[0].mxu0
      %v2700 = vadd.f32 0.0, %v2699
      %v2701 = vpop.f32.mrb[0].mxu0
      %v2702 = vadd.f32 0.0, %v2701
      %v2703 = vpop.f32.mrb[0].mxu0
      %v2704 = vadd.f32 0.0, %v2703
      %v2705 = vpop.f32.mrb[0].mxu0
      %v2706 = vadd.f32 0.0, %v2705
      %2707 = vmatprep.mubr.bf16.mxu0 0
      %2708 = vmatmul.mubr.bf16.gmra.mrb[0].mxu0 %v2474
      %v2709 = vpop.f32.mrb[0].mxu0
      %v2710 = vadd.f32 0.0, %v2709
      %v2711 = vpop.f32.mrb[0].mxu0
      %v2712 = vadd.f32 0.0, %v2711
      %v2713 = vpop.f32.mrb[0].mxu0
      %v2714 = vadd.f32 0.0, %v2713
      %v2715 = vpop.f32.mrb[0].mxu0
      %v2716 = vadd.f32 0.0, %v2715
      %2717 = vmatprep.mubr.bf16.mxu0 0
      %2718 = vmatmul.mubr.bf16.gmra.mrb[0].mxu0 %v2475
      %v2719 = vpop.f32.mrb[0].mxu0
      %v2720 = vadd.f32 0.0, %v2719
      %v2721 = vpop.f32.mrb[0].mxu0
      %v2722 = vadd.f32 0.0, %v2721
      %v2723 = vpop.f32.mrb[0].mxu0
      %v2724 = vadd.f32 0.0, %v2723
      %v2725 = vpop.f32.mrb[0].mxu0
      %v2726 = vadd.f32 0.0, %v2725
      %2727 = vmatprep.mubr.bf16.mxu0 0
      %2728 = vmatmul.mubr.bf16.gmra.mrb[0].mxu0 %v2476
      %v2729 = vpop.f32.mrb[0].mxu0
      %v2730 = vadd.f32 0.0, %v2729
      %v2731 = vpop.f32.mrb[0].mxu0
      %v2732 = vadd.f32 0.0, %v2731
      %v2733 = vpop.f32.mrb[0].mxu0
      %v2734 = vadd.f32 0.0, %v2733
      %v2735 = vpop.f32.mrb[0].mxu0
      %v2736 = vadd.f32 0.0, %v2735
      %2737 = vmatprep.mubr.bf16.mxu0 0
      %2738 = vmatmul.mubr.bf16.gmra.mrb[0].mxu0 %v2477
      %v2739 = vpop.f32.mrb[0].mxu0
      %v2740 = vadd.f32 0.0, %v2739
      %v2741 = vpop.f32.mrb[0].mxu0
      %v2742 = vadd.f32 0.0, %v2741
      %v2743 = vpop.f32.mrb[0].mxu0
      %v2744 = vadd.f32 0.0, %v2743
      %v2745 = vpop.f32.mrb[0].mxu0
      %v2746 = vadd.f32 0.0, %v2745
      %2747 = vmatprep.mubr.bf16.mxu0 0
      %2748 = vmatmul.mubr.bf16.gmra.mrb[0].mxu0 %v2478
      %v2749 = vpop.f32.mrb[0].mxu0
      %v2750 = vadd.f32 0.0, %v2749
      %v2751 = vpop.f32.mrb[0].mxu0
      %v2752 = vadd.f32 0.0, %v2751
      %v2753 = vpop.f32.mrb[0].mxu0
      %v2754 = vadd.f32 0.0, %v2753
      %v2755 = vpop.f32.mrb[0].mxu0
      %v2756 = vadd.f32 0.0, %v2755
      %2757 = vmatprep.mubr.bf16.mxu0 0
      %2758 = vmatmul.mubr.bf16.gmra.mrb[0].mxu0 %v2479
      %v2759 = vpop.f32.mrb[0].mxu0
      %v2760 = vadd.f32 0.0, %v2759
      %v2761 = vpop.f32.mrb[0].mxu0
      %v2762 = vadd.f32 0.0, %v2761
      %v2763 = vpop.f32.mrb[0].mxu0
      %v2764 = vadd.f32 0.0, %v2763
      %v2765 = vpop.f32.mrb[0].mxu0
      %v2766 = vadd.f32 0.0, %v2765
      %2767 = vmatprep.mubr.bf16.mxu0 0
      %2768 = vmatmul.mubr.bf16.gmra.mrb[0].mxu0 %v2480
      %v2769 = vpop.f32.mrb[0].mxu0
      %v2770 = vadd.f32 0.0, %v2769
      %v2771 = vpop.f32.mrb[0].mxu0
      %v2772 = vadd.f32 0.0, %v2771
      %v2773 = vpop.f32.mrb[0].mxu0
      %v2774 = vadd.f32 0.0, %v2773
      %v2775 = vpop.f32.mrb[0].mxu0
      %v2776 = vadd.f32 0.0, %v2775
      %2777 = vmatprep.mubr.bf16.mxu0 0
      %2778 = vmatmul.mubr.bf16.gmra.mrb[0].mxu0 %v2481
      %v2779 = vpop.f32.mrb[0].mxu0
      %v2780 = vadd.f32 0.0, %v2779
      %v2781 = vpop.f32.mrb[0].mxu0
      %v2782 = vadd.f32 0.0, %v2781
      %v2783 = vpop.f32.mrb[0].mxu0
      %v2784 = vadd.f32 0.0, %v2783
      %v2785 = vpop.f32.mrb[0].mxu0
      %v2786 = vadd.f32 0.0, %v2785
      %2787 = vmatprep.mubr.bf16.mxu0 0
      %2788 = vmatmul.mubr.bf16.gmra.mrb[0].mxu0 %v2482
      %v2789 = vpop.f32.mrb[0].mxu0
      %v2790 = vadd.f32 0.0, %v2789
      %v2791 = vpop.f32.mrb[0].mxu0
      %v2792 = vadd.f32 0.0, %v2791
      %v2793 = vpop.f32.mrb[0].mxu0
      %v2794 = vadd.f32 0.0, %v2793
      %v2795 = vpop.f32.mrb[0].mxu0
      %v2796 = vadd.f32 0.0, %v2795
      %2797 = vmatprep.mubr.bf16.mxu0 0
      %2798 = vmatmul.mubr.bf16.gmra.mrb[0].mxu0 %v2483
      %v2799 = vpop.f32.mrb[0].mxu0
      %v2800 = vadd.f32 0.0, %v2799
      %v2801 = vpop.f32.mrb[0].mxu0
      %v2802 = vadd.f32 0.0, %v2801
      %v2803 = vpop.f32.mrb[0].mxu0
      %v2804 = vadd.f32 0.0, %v2803
      %v2805 = vpop.f32.mrb[0].mxu0
      %v2806 = vadd.f32 0.0, %v2805
      %2807 = vmatprep.mubr.bf16.mxu0 0
      %2808 = vmatmul.mubr.bf16.gmra.mrb[0].mxu0 %v2484
      %v2809 = vpop.f32.mrb[0].mxu0
      %v2810 = vadd.f32 0.0, %v2809
      %v2811 = vpop.f32.mrb[0].mxu0
      %v2812 = vadd.f32 0.0, %v2811
      %v2813 = vpop.f32.mrb[0].mxu0
      %v2814 = vadd.f32 0.0, %v2813
      %v2815 = vpop.f32.mrb[0].mxu0
      %v2816 = vadd.f32 0.0, %v2815
      %2817 = vmatprep.mubr.bf16.mxu0 0
      %2818 = vmatmul.mubr.bf16.gmra.mrb[0].mxu0 %v2485
      %v2819 = vpop.f32.mrb[0].mxu0
      %v2820 = vadd.f32 0.0, %v2819
      %v2821 = vpop.f32.mrb[0].mxu0
      %v2822 = vadd.f32 0.0, %v2821
      %v2823 = vpop.f32.mrb[0].mxu0
      %v2824 = vadd.f32 0.0, %v2823
      %v2825 = vpop.f32.mrb[0].mxu0
      %v2826 = vadd.f32 0.0, %v2825
      %2827 = vmatprep.mubr.bf16.mxu0 0
      %2828 = vmatmul.mubr.bf16.gmra.mrb[0].mxu0 %v2486
      %v2829 = vpop.f32.mrb[0].mxu0
      %v2830 = vadd.f32 0.0, %v2829
      %v2831 = vpop.f32.mrb[0].mxu0
      %v2832 = vadd.f32 0.0, %v2831
      %v2833 = vpop.f32.mrb[0].mxu0
      %v2834 = vadd.f32 0.0, %v2833
      %v2835 = vpop.f32.mrb[0].mxu0
      %v2836 = vadd.f32 0.0, %v2835
      %2837 = vmatprep.mubr.bf16.mxu0 0
      %2838 = vmatmul.mubr.bf16.gmra.mrb[0].mxu0 %v2487
      %v2839 = vpop.f32.mrb[0].mxu0
      %v2840 = vadd.f32 0.0, %v2839
      %v2841 = vpop.f32.mrb[0].mxu0
      %v2842 = vadd.f32 0.0, %v2841
      %v2843 = vpop.f32.mrb[0].mxu0
      %v2844 = vadd.f32 0.0, %v2843
      %v2845 = vpop.f32.mrb[0].mxu0
      %v2846 = vadd.f32 0.0, %v2845
      %2847 = vmatprep.mubr.bf16.mxu0 0
      %2848 = vmatmul.mubr.bf16.gmra.mrb[0].mxu0 %v2488
      %v2849 = vpop.f32.mrb[0].mxu0
      %v2850 = vadd.f32 0.0, %v2849
      %v2851 = vpop.f32.mrb[0].mxu0
      %v2852 = vadd.f32 0.0, %v2851
      %v2853 = vpop.f32.mrb[0].mxu0
      %v2854 = vadd.f32 0.0, %v2853
      %v2855 = vpop.f32.mrb[0].mxu0
      %v2856 = vadd.f32 0.0, %v2855
      %2857 = vdwg.mxu0
      %2858 = vmatprep.subr.bf16.mxu0 %v2604
      %2859 = vmatpush1.bf16.msra.mxu0 %v2603
      %2860 = vmatprep.subr.bf16.mxu0 %v2608
      %2861 = vmatpush1.bf16.msra.mxu0 %v2607
      %2862 = vmatprep.subr.bf16.mxu0 %v2612
      %2863 = vmatpush1.bf16.msra.mxu0 %v2611
      %2864 = vmatprep.subr.bf16.mxu0 %v2616
      %2865 = vmatpush1.bf16.msra.mxu0 %v2615
      %2866 = vmatprep.subr.bf16.mxu0 %v2620
      %2867 = vmatpush1.bf16.msra.mxu0 %v2619
      %2868 = vmatprep.subr.bf16.mxu0 %v2624
      %2869 = vmatpush1.bf16.msra.mxu0 %v2623
      %2870 = vmatprep.subr.bf16.mxu0 %v2628
      %2871 = vmatpush1.bf16.msra.mxu0 %v2627
      %2872 = vmatprep.subr.bf16.mxu0 %v2632
      %2873 = vmatpush1.bf16.msra.mxu0 %v2631
      %2874 = vmatprep.subr.bf16.mxu0 0
      %2875 = vmatpush1.bf16.msra.mxu0 0
      %2876 = vmatprep.subr.bf16.mxu0 0
      %2877 = vmatpush1.bf16.msra.mxu0 0
      %2878 = vmatprep.subr.bf16.mxu0 0
      %2879 = vmatpush1.bf16.msra.mxu0 0
      %2880 = vmatprep.subr.bf16.mxu0 0
      %2881 = vmatpush1.bf16.msra.mxu0 0
      %2882 = vmatprep.subr.bf16.mxu0 0
      %2883 = vmatpush1.bf16.msra.mxu0 0
      %2884 = vmatprep.subr.bf16.mxu0 0
      %2885 = vmatpush1.bf16.msra.mxu0 0
      %2886 = vmatprep.subr.bf16.mxu0 0
      %2887 = vmatpush1.bf16.msra.mxu0 0
      %2888 = vmatprep.subr.bf16.mxu0 0
      %2889 = vmatpush1.bf16.msra.mxu0 0
      %2890 = vmatprep.mubr.bf16.mxu0 0
      %2891 = vmatmul.mubr.bf16.gmra.mrb[0].mxu0 %v2473
      %v2892 = vpop.f32.mrb[0].mxu0
      %v2893 = vadd.f32 0.0, %v2892
      %v2894 = vpop.f32.mrb[0].mxu0
      %v2895 = vadd.f32 0.0, %v2894
      %v2896 = vpop.f32.mrb[0].mxu0
      %v2897 = vadd.f32 0.0, %v2896
      %v2898 = vpop.f32.mrb[0].mxu0
      %v2899 = vadd.f32 0.0, %v2898
      %2900 = vmatprep.mubr.bf16.mxu0 0
      %2901 = vmatmul.mubr.bf16.gmra.mrb[0].mxu0 %v2474
      %v2902 = vpop.f32.mrb[0].mxu0
      %v2903 = vadd.f32 0.0, %v2902
      %v2904 = vpop.f32.mrb[0].mxu0
      %v2905 = vadd.f32 0.0, %v2904
      %v2906 = vpop.f32.mrb[0].mxu0
      %v2907 = vadd.f32 0.0, %v2906
      %v2908 = vpop.f32.mrb[0].mxu0
      %v2909 = vadd.f32 0.0, %v2908
      %2910 = vmatprep.mubr.bf16.mxu0 0
      %2911 = vmatmul.mubr.bf16.gmra.mrb[0].mxu0 %v2475
      %v2912 = vpop.f32.mrb[0].mxu0
      %v2913 = vadd.f32 0.0, %v2912
      %v2914 = vpop.f32.mrb[0].mxu0
      %v2915 = vadd.f32 0.0, %v2914
      %v2916 = vpop.f32.mrb[0].mxu0
      %v2917 = vadd.f32 0.0, %v2916
      %v2918 = vpop.f32.mrb[0].mxu0
      %v2919 = vadd.f32 0.0, %v2918
      %2920 = vmatprep.mubr.bf16.mxu0 0
      %2921 = vmatmul.mubr.bf16.gmra.mrb[0].mxu0 %v2476
      %v2922 = vpop.f32.mrb[0].mxu0
      %v2923 = vadd.f32 0.0, %v2922
      %v2924 = vpop.f32.mrb[0].mxu0
      %v2925 = vadd.f32 0.0, %v2924
      %v2926 = vpop.f32.mrb[0].mxu0
      %v2927 = vadd.f32 0.0, %v2926
      %v2928 = vpop.f32.mrb[0].mxu0
      %v2929 = vadd.f32 0.0, %v2928
      %2930 = vmatprep.mubr.bf16.mxu0 0
      %2931 = vmatmul.mubr.bf16.gmra.mrb[0].mxu0 %v2477
      %v2932 = vpop.f32.mrb[0].mxu0
      %v2933 = vadd.f32 0.0, %v2932
      %v2934 = vpop.f32.mrb[0].mxu0
      %v2935 = vadd.f32 0.0, %v2934
      %v2936 = vpop.f32.mrb[0].mxu0
      %v2937 = vadd.f32 0.0, %v2936
      %v2938 = vpop.f32.mrb[0].mxu0
      %v2939 = vadd.f32 0.0, %v2938
      %2940 = vmatprep.mubr.bf16.mxu0 0
      %2941 = vmatmul.mubr.bf16.gmra.mrb[0].mxu0 %v2478
      %v2942 = vpop.f32.mrb[0].mxu0
      %v2943 = vadd.f32 0.0, %v2942
      %v2944 = vpop.f32.mrb[0].mxu0
      %v2945 = vadd.f32 0.0, %v2944
      %v2946 = vpop.f32.mrb[0].mxu0
      %v2947 = vadd.f32 0.0, %v2946
      %v2948 = vpop.f32.mrb[0].mxu0
      %v2949 = vadd.f32 0.0, %v2948
      %2950 = vmatprep.mubr.bf16.mxu0 0
      %2951 = vmatmul.mubr.bf16.gmra.mrb[0].mxu0 %v2479
      %v2952 = vpop.f32.mrb[0].mxu0
      %v2953 = vadd.f32 0.0, %v2952
      %v2954 = vpop.f32.mrb[0].mxu0
      %v2955 = vadd.f32 0.0, %v2954
      %v2956 = vpop.f32.mrb[0].mxu0
      %v2957 = vadd.f32 0.0, %v2956
      %v2958 = vpop.f32.mrb[0].mxu0
      %v2959 = vadd.f32 0.0, %v2958
      %2960 = vmatprep.mubr.bf16.mxu0 0
      %2961 = vmatmul.mubr.bf16.gmra.mrb[0].mxu0 %v2480
      %v2962 = vpop.f32.mrb[0].mxu0
      %v2963 = vadd.f32 0.0, %v2962
      %v2964 = vpop.f32.mrb[0].mxu0
      %v2965 = vadd.f32 0.0, %v2964
      %v2966 = vpop.f32.mrb[0].mxu0
      %v2967 = vadd.f32 0.0, %v2966
      %v2968 = vpop.f32.mrb[0].mxu0
      %v2969 = vadd.f32 0.0, %v2968
      %2970 = vmatprep.mubr.bf16.mxu0 0
      %2971 = vmatmul.mubr.bf16.gmra.mrb[0].mxu0 %v2481
      %v2972 = vpop.f32.mrb[0].mxu0
      %v2973 = vadd.f32 0.0, %v2972
      %v2974 = vpop.f32.mrb[0].mxu0
      %v2975 = vadd.f32 0.0, %v2974
      %v2976 = vpop.f32.mrb[0].mxu0
      %v2977 = vadd.f32 0.0, %v2976
      %v2978 = vpop.f32.mrb[0].mxu0
      %v2979 = vadd.f32 0.0, %v2978
      %2980 = vmatprep.mubr.bf16.mxu0 0
      %2981 = vmatmul.mubr.bf16.gmra.mrb[0].mxu0 %v2482
      %v2982 = vpop.f32.mrb[0].mxu0
      %v2983 = vadd.f32 0.0, %v2982
      %v2984 = vpop.f32.mrb[0].mxu0
      %v2985 = vadd.f32 0.0, %v2984
      %v2986 = vpop.f32.mrb[0].mxu0
      %v2987 = vadd.f32 0.0, %v2986
      %v2988 = vpop.f32.mrb[0].mxu0
      %v2989 = vadd.f32 0.0, %v2988
      %2990 = vmatprep.mubr.bf16.mxu0 0
      %2991 = vmatmul.mubr.bf16.gmra.mrb[0].mxu0 %v2483
      %v2992 = vpop.f32.mrb[0].mxu0
      %v2993 = vadd.f32 0.0, %v2992
      %v2994 = vpop.f32.mrb[0].mxu0
      %v2995 = vadd.f32 0.0, %v2994
      %v2996 = vpop.f32.mrb[0].mxu0
      %v2997 = vadd.f32 0.0, %v2996
      %v2998 = vpop.f32.mrb[0].mxu0
      %v2999 = vadd.f32 0.0, %v2998
      %3000 = vmatprep.mubr.bf16.mxu0 0
      %3001 = vmatmul.mubr.bf16.gmra.mrb[0].mxu0 %v2484
      %v3002 = vpop.f32.mrb[0].mxu0
      %v3003 = vadd.f32 0.0, %v3002
      %v3004 = vpop.f32.mrb[0].mxu0
      %v3005 = vadd.f32 0.0, %v3004
      %v3006 = vpop.f32.mrb[0].mxu0
      %v3007 = vadd.f32 0.0, %v3006
      %v3008 = vpop.f32.mrb[0].mxu0
      %v3009 = vadd.f32 0.0, %v3008
      %3010 = vmatprep.mubr.bf16.mxu0 0
      %3011 = vmatmul.mubr.bf16.gmra.mrb[0].mxu0 %v2485
      %v3012 = vpop.f32.mrb[0].mxu0
      %v3013 = vadd.f32 0.0, %v3012
      %v3014 = vpop.f32.mrb[0].mxu0
      %v3015 = vadd.f32 0.0, %v3014
      %v3016 = vpop.f32.mrb[0].mxu0
      %v3017 = vadd.f32 0.0, %v3016
      %v3018 = vpop.f32.mrb[0].mxu0
      %v3019 = vadd.f32 0.0, %v3018
      %3020 = vmatprep.mubr.bf16.mxu0 0
      %3021 = vmatmul.mubr.bf16.gmra.mrb[0].mxu0 %v2486
      %v3022 = vpop.f32.mrb[0].mxu0
      %v3023 = vadd.f32 0.0, %v3022
      %v3024 = vpop.f32.mrb[0].mxu0
      %v3025 = vadd.f32 0.0, %v3024
      %v3026 = vpop.f32.mrb[0].mxu0
      %v3027 = vadd.f32 0.0, %v3026
      %v3028 = vpop.f32.mrb[0].mxu0
      %v3029 = vadd.f32 0.0, %v3028
      %3030 = vmatprep.mubr.bf16.mxu0 0
      %3031 = vmatmul.mubr.bf16.gmra.mrb[0].mxu0 %v2487
      %v3032 = vpop.f32.mrb[0].mxu0
      %v3033 = vadd.f32 0.0, %v3032
      %v3034 = vpop.f32.mrb[0].mxu0
      %v3035 = vadd.f32 0.0, %v3034
      %v3036 = vpop.f32.mrb[0].mxu0
      %v3037 = vadd.f32 0.0, %v3036
      %v3038 = vpop.f32.mrb[0].mxu0
      %v3039 = vadd.f32 0.0, %v3038
      %3040 = vmatprep.mubr.bf16.mxu0 0
      %3041 = vmatmul.mubr.bf16.gmra.mrb[0].mxu0 %v2488
      %v3042 = vpop.f32.mrb[0].mxu0
      %v3043 = vadd.f32 0.0, %v3042
      %v3044 = vpop.f32.mrb[0].mxu0
      %v3045 = vadd.f32 0.0, %v3044
      %v3046 = vpop.f32.mrb[0].mxu0
      %v3047 = vadd.f32 0.0, %v3046
      %v3048 = vpop.f32.mrb[0].mxu0
      %v3049 = vadd.f32 0.0, %v3048
      %3050 = vdwg.mxu0
      %v3051 = vld [vmem:[%s4] sm:$0x1]
      %v3053 = vlaneseq
      %v3054 = vshrl.u32 %v3053, 7
      %v3055 = vsub.s32 0, %v3054
      %v3056 = vrot.slane %v3051, %v3055
      %v3058 = vld [vmem:[%s5] sm:$0x1]
      %v3060 = vlaneseq
      %v3061 = vshrl.u32 %v3060, 7
      %v3062 = vsub.s32 0, %v3061
      %v3063 = vrot.slane %v3058, %v3062
      %v3065 = vmul.f32 %v415, %v3056
      %v3066 = vmul.f32 %v416, %v3056
      %v3067 = vmul.f32 %v417, %v3056
      %v3068 = vmul.f32 %v418, %v3056
      %v3069 = vmul.f32 %v419, %v3056
      %v3070 = vmul.f32 %v420, %v3056
      %v3071 = vmul.f32 %v421, %v3056
      %v3072 = vmul.f32 %v422, %v3056
      %v3073 = vmul.f32 %v423, %v3056
      %v3074 = vmul.f32 %v424, %v3056
      %v3075 = vmul.f32 %v425, %v3056
      %v3076 = vmul.f32 %v426, %v3056
      %v3077 = vmul.f32 %v427, %v3056
      %v3078 = vmul.f32 %v428, %v3056
      %v3079 = vmul.f32 %v429, %v3056
      %v3080 = vmul.f32 %v430, %v3056
      %v3081 = vmul.f32 %v431, %v3056
      %v3082 = vmul.f32 %v432, %v3056
      %v3083 = vmul.f32 %v433, %v3056
      %v3084 = vmul.f32 %v434, %v3056
      %v3085 = vmul.f32 %v435, %v3056
      %v3086 = vmul.f32 %v436, %v3056
      %v3087 = vmul.f32 %v437, %v3056
      %v3088 = vmul.f32 %v438, %v3056
      %v3089 = vmul.f32 %v439, %v3056
      %v3090 = vmul.f32 %v440, %v3056
      %v3091 = vmul.f32 %v441, %v3056
      %v3092 = vmul.f32 %v442, %v3056
      %v3093 = vmul.f32 %v443, %v3056
      %v3094 = vmul.f32 %v444, %v3056
      %v3095 = vmul.f32 %v445, %v3056
      %v3096 = vmul.f32 %v446, %v3056
      %v3097 = vpack.c.bf16 %v3066, %v3065
      %v3098 = vpack.c.bf16 %v3068, %v3067
      %v3099 = vpack.c.bf16 %v3070, %v3069
      %v3100 = vpack.c.bf16 %v3072, %v3071
      %v3101 = vpack.c.bf16 %v3074, %v3073
      %v3102 = vpack.c.bf16 %v3076, %v3075
      %v3103 = vpack.c.bf16 %v3078, %v3077
      %v3104 = vpack.c.bf16 %v3080, %v3079
      %v3105 = vpack.c.bf16 %v3082, %v3081
      %v3106 = vpack.c.bf16 %v3084, %v3083
      %v3107 = vpack.c.bf16 %v3086, %v3085
      %v3108 = vpack.c.bf16 %v3088, %v3087
      %v3109 = vpack.c.bf16 %v3090, %v3089
      %v3110 = vpack.c.bf16 %v3092, %v3091
      %v3111 = vpack.c.bf16 %v3094, %v3093
      %v3112 = vpack.c.bf16 %v3096, %v3095
      %v3113 = vld [vmem:[%s6] sm:$0xf]
      %v3114 = vld [vmem:[%s6 + $0x4] sm:$0xf]
      %v3117 = vunpack.c.l.b16 %v3113
      %v3118 = vunpack.c.l.b16 %v3114
      %v3119 = vpack.c.b16 %v3118, %v3117
      %v3122 = vsel %vm471, %v3097, 0
      %v3125 = vsel %vm471, %v3098, 0
      %v3128 = vsel %vm471, %v3099, 0
      %v3131 = vsel %vm471, %v3100, 0
      %v3134 = vsel %vm471, %v3101, 0
      %v3137 = vsel %vm471, %v3102, 0
      %v3140 = vsel %vm471, %v3103, 0
      %v3143 = vsel %vm471, %v3104, 0
      %v3146 = vsel %vm471, %v3105, 0
      %v3149 = vsel %vm471, %v3106, 0
      %v3152 = vsel %vm471, %v3107, 0
      %v3155 = vsel %vm471, %v3108, 0
      %v3158 = vsel %vm471, %v3109, 0
      %v3161 = vsel %vm471, %v3110, 0
      %v3164 = vsel %vm471, %v3111, 0
      %v3167 = vsel %vm471, %v3112, 0
      %3169 = vmatprep.subr.bf16.mxu0 0
      %3170 = vmatpush1.bf16.msra.mxu0 %v3119
      %3171 = vmatprep.subr.bf16.mxu0 0
      %3172 = vmatpush1.bf16.msra.mxu0 0
      %3173 = vmatprep.subr.bf16.mxu0 0
      %3174 = vmatpush1.bf16.msra.mxu0 0
      %3175 = vmatprep.subr.bf16.mxu0 0
      %3176 = vmatpush1.bf16.msra.mxu0 0
      %3177 = vmatprep.subr.bf16.mxu0 0
      %3178 = vmatpush1.bf16.msra.mxu0 0
      %3179 = vmatprep.subr.bf16.mxu0 0
      %3180 = vmatpush1.bf16.msra.mxu0 0
      %3181 = vmatprep.subr.bf16.mxu0 0
      %3182 = vmatpush1.bf16.msra.mxu0 0
      %3183 = vmatprep.subr.bf16.mxu0 0
      %3184 = vmatpush1.bf16.msra.mxu0 0
      %3185 = vmatprep.subr.bf16.mxu0 0
      %3186 = vmatpush1.bf16.msra.mxu0 0
      %3187 = vmatprep.subr.bf16.mxu0 0
      %3188 = vmatpush1.bf16.msra.mxu0 0
      %3189 = vmatprep.subr.bf16.mxu0 0
      %3190 = vmatpush1.bf16.msra.mxu0 0
      %3191 = vmatprep.subr.bf16.mxu0 0
      %3192 = vmatpush1.bf16.msra.mxu0 0
      %3193 = vmatprep.subr.bf16.mxu0 0
      %3194 = vmatpush1.bf16.msra.mxu0 0
      %3195 = vmatprep.subr.bf16.mxu0 0
      %3196 = vmatpush1.bf16.msra.mxu0 0
      %3197 = vmatprep.subr.bf16.mxu0 0
      %3198 = vmatpush1.bf16.msra.mxu0 0
      %3199 = vmatprep.subr.bf16.mxu0 0
      %3200 = vmatpush1.bf16.msra.mxu0 0
      %3201 = vmatprep.mubr.bf16.mxu0 0
      %3202 = vmatmul.mubr.bf16.gmra.mrb[0].mxu0 %v3122
      %v3203 = vpop.f32.mrb[0].mxu0
      %v3204 = vadd.f32 %v2700, %v3203
      %v3205 = vpop.f32.mrb[0].mxu0
      %v3206 = vpop.f32.mrb[0].mxu0
      %v3207 = vadd.f32 %v2704, %v3206
      %v3208 = vpop.f32.mrb[0].mxu0
      %3209 = vmatprep.mubr.bf16.mxu0 0
      %3210 = vmatmul.mubr.bf16.gmra.mrb[0].mxu0 %v3125
      %v3211 = vpop.f32.mrb[0].mxu0
      %v3212 = vadd.f32 %v2710, %v3211
      %v3213 = vpop.f32.mrb[0].mxu0
      %v3214 = vpop.f32.mrb[0].mxu0
      %v3215 = vadd.f32 %v2714, %v3214
      %v3216 = vpop.f32.mrb[0].mxu0
      %3217 = vmatprep.mubr.bf16.mxu0 0
      %3218 = vmatmul.mubr.bf16.gmra.mrb[0].mxu0 %v3128
      %v3219 = vpop.f32.mrb[0].mxu0
      %v3220 = vadd.f32 %v2720, %v3219
      %v3221 = vpop.f32.mrb[0].mxu0
      %v3222 = vpop.f32.mrb[0].mxu0
      %v3223 = vadd.f32 %v2724, %v3222
      %v3224 = vpop.f32.mrb[0].mxu0
      %3225 = vmatprep.mubr.bf16.mxu0 0
      %3226 = vmatmul.mubr.bf16.gmra.mrb[0].mxu0 %v3131
      %v3227 = vpop.f32.mrb[0].mxu0
      %v3228 = vadd.f32 %v2730, %v3227
      %v3229 = vpop.f32.mrb[0].mxu0
      %v3230 = vpop.f32.mrb[0].mxu0
      %v3231 = vadd.f32 %v2734, %v3230
      %v3232 = vpop.f32.mrb[0].mxu0
      %3233 = vmatprep.mubr.bf16.mxu0 0
      %3234 = vmatmul.mubr.bf16.gmra.mrb[0].mxu0 %v3134
      %v3235 = vpop.f32.mrb[0].mxu0
      %v3236 = vadd.f32 %v2740, %v3235
      %v3237 = vpop.f32.mrb[0].mxu0
      %v3238 = vpop.f32.mrb[0].mxu0
      %v3239 = vadd.f32 %v2744, %v3238
      %v3240 = vpop.f32.mrb[0].mxu0
      %3241 = vmatprep.mubr.bf16.mxu0 0
      %3242 = vmatmul.mubr.bf16.gmra.mrb[0].mxu0 %v3137
      %v3243 = vpop.f32.mrb[0].mxu0
      %v3244 = vadd.f32 %v2750, %v3243
      %v3245 = vpop.f32.mrb[0].mxu0
      %v3246 = vpop.f32.mrb[0].mxu0
      %v3247 = vadd.f32 %v2754, %v3246
      %v3248 = vpop.f32.mrb[0].mxu0
      %3249 = vmatprep.mubr.bf16.mxu0 0
      %3250 = vmatmul.mubr.bf16.gmra.mrb[0].mxu0 %v3140
      %v3251 = vpop.f32.mrb[0].mxu0
      %v3252 = vadd.f32 %v2760, %v3251
      %v3253 = vpop.f32.mrb[0].mxu0
      %v3254 = vpop.f32.mrb[0].mxu0
      %v3255 = vadd.f32 %v2764, %v3254
      %v3256 = vpop.f32.mrb[0].mxu0
      %3257 = vmatprep.mubr.bf16.mxu0 0
      %3258 = vmatmul.mubr.bf16.gmra.mrb[0].mxu0 %v3143
      %v3259 = vpop.f32.mrb[0].mxu0
      %v3260 = vadd.f32 %v2770, %v3259
      %v3261 = vpop.f32.mrb[0].mxu0
      %v3262 = vpop.f32.mrb[0].mxu0
      %v3263 = vadd.f32 %v2774, %v3262
      %v3264 = vpop.f32.mrb[0].mxu0
      %3265 = vmatprep.mubr.bf16.mxu0 0
      %3266 = vmatmul.mubr.bf16.gmra.mrb[0].mxu0 %v3146
      %v3267 = vpop.f32.mrb[0].mxu0
      %v3268 = vadd.f32 %v2780, %v3267
      %v3269 = vpop.f32.mrb[0].mxu0
      %v3270 = vpop.f32.mrb[0].mxu0
      %v3271 = vadd.f32 %v2784, %v3270
      %v3272 = vpop.f32.mrb[0].mxu0
      %3273 = vmatprep.mubr.bf16.mxu0 0
      %3274 = vmatmul.mubr.bf16.gmra.mrb[0].mxu0 %v3149
      %v3275 = vpop.f32.mrb[0].mxu0
      %v3276 = vadd.f32 %v2790, %v3275
      %v3277 = vpop.f32.mrb[0].mxu0
      %v3278 = vpop.f32.mrb[0].mxu0
      %v3279 = vadd.f32 %v2794, %v3278
      %v3280 = vpop.f32.mrb[0].mxu0
      %3281 = vmatprep.mubr.bf16.mxu0 0
      %3282 = vmatmul.mubr.bf16.gmra.mrb[0].mxu0 %v3152
      %v3283 = vpop.f32.mrb[0].mxu0
      %v3284 = vadd.f32 %v2800, %v3283
      %v3285 = vpop.f32.mrb[0].mxu0
      %v3286 = vpop.f32.mrb[0].mxu0
      %v3287 = vadd.f32 %v2804, %v3286
      %v3288 = vpop.f32.mrb[0].mxu0
      %3289 = vmatprep.mubr.bf16.mxu0 0
      %3290 = vmatmul.mubr.bf16.gmra.mrb[0].mxu0 %v3155
      %v3291 = vpop.f32.mrb[0].mxu0
      %v3292 = vadd.f32 %v2810, %v3291
      %v3293 = vpop.f32.mrb[0].mxu0
      %v3294 = vpop.f32.mrb[0].mxu0
      %v3295 = vadd.f32 %v2814, %v3294
      %v3296 = vpop.f32.mrb[0].mxu0
      %3297 = vmatprep.mubr.bf16.mxu0 0
      %3298 = vmatmul.mubr.bf16.gmra.mrb[0].mxu0 %v3158
      %v3299 = vpop.f32.mrb[0].mxu0
      %v3300 = vadd.f32 %v2820, %v3299
      %v3301 = vpop.f32.mrb[0].mxu0
      %v3302 = vpop.f32.mrb[0].mxu0
      %v3303 = vadd.f32 %v2824, %v3302
      %v3304 = vpop.f32.mrb[0].mxu0
      %3305 = vmatprep.mubr.bf16.mxu0 0
      %3306 = vmatmul.mubr.bf16.gmra.mrb[0].mxu0 %v3161
      %v3307 = vpop.f32.mrb[0].mxu0
      %v3308 = vadd.f32 %v2830, %v3307
      %v3309 = vpop.f32.mrb[0].mxu0
      %v3310 = vpop.f32.mrb[0].mxu0
      %v3311 = vadd.f32 %v2834, %v3310
      %v3312 = vpop.f32.mrb[0].mxu0
      %3313 = vmatprep.mubr.bf16.mxu0 0
      %3314 = vmatmul.mubr.bf16.gmra.mrb[0].mxu0 %v3164
      %v3315 = vpop.f32.mrb[0].mxu0
      %v3316 = vadd.f32 %v2840, %v3315
      %v3317 = vpop.f32.mrb[0].mxu0
      %v3318 = vpop.f32.mrb[0].mxu0
      %v3319 = vadd.f32 %v2844, %v3318
      %v3320 = vpop.f32.mrb[0].mxu0
      %3321 = vmatprep.mubr.bf16.mxu0 0
      %3322 = vmatmul.mubr.bf16.gmra.mrb[0].mxu0 %v3167
      %v3323 = vpop.f32.mrb[0].mxu0
      %v3324 = vadd.f32 %v2850, %v3323
      %v3325 = vpop.f32.mrb[0].mxu0
      %v3326 = vpop.f32.mrb[0].mxu0
      %v3327 = vadd.f32 %v2854, %v3326
      %v3328 = vpop.f32.mrb[0].mxu0
      %3329 = vdwg.mxu0
      %v3330 = vld [vmem:[%s8] sm:$0x1]
      %v3332 = vlaneseq
      %v3333 = vshrl.u32 %v3332, 7
      %v3334 = vsub.s32 0, %v3333
      %v3335 = vrot.slane %v3330, %v3334
      %v3337 = vadd.f32 %v3204, %v3335
      %v3338 = vadd.f32 %v3207, %v3335
      %v3339 = vadd.f32 %v3212, %v3335
      %v3340 = vadd.f32 %v3215, %v3335
      %v3341 = vadd.f32 %v3220, %v3335
      %v3342 = vadd.f32 %v3223, %v3335
      %v3343 = vadd.f32 %v3228, %v3335
      %v3344 = vadd.f32 %v3231, %v3335
      %v3345 = vadd.f32 %v3236, %v3335
      %v3346 = vadd.f32 %v3239, %v3335
      %v3347 = vadd.f32 %v3244, %v3335
      %v3348 = vadd.f32 %v3247, %v3335
      %v3349 = vadd.f32 %v3252, %v3335
      %v3350 = vadd.f32 %v3255, %v3335
      %v3351 = vadd.f32 %v3260, %v3335
      %v3352 = vadd.f32 %v3263, %v3335
      %v3353 = vadd.f32 %v3268, %v3335
      %v3354 = vadd.f32 %v3271, %v3335
      %v3355 = vadd.f32 %v3276, %v3335
      %v3356 = vadd.f32 %v3279, %v3335
      %v3357 = vadd.f32 %v3284, %v3335
      %v3358 = vadd.f32 %v3287, %v3335
      %v3359 = vadd.f32 %v3292, %v3335
      %v3360 = vadd.f32 %v3295, %v3335
      %v3361 = vadd.f32 %v3300, %v3335
      %v3362 = vadd.f32 %v3303, %v3335
      %v3363 = vadd.f32 %v3308, %v3335
      %v3364 = vadd.f32 %v3311, %v3335
      %v3365 = vadd.f32 %v3316, %v3335
      %v3366 = vadd.f32 %v3319, %v3335
      %v3367 = vadd.f32 %v3324, %v3335
      %v3368 = vadd.f32 %v3327, %v3335
      %v3369 = vtanh.pop %v3337
      %v3370 = vtanh.pop %v3338
      %v3371 = vtanh.pop %v3339
      %v3372 = vtanh.pop %v3340
      %v3373 = vtanh.pop %v3341
      %v3374 = vtanh.pop %v3342
      %v3375 = vtanh.pop %v3343
      %v3376 = vtanh.pop %v3344
      %v3377 = vtanh.pop %v3345
      %v3378 = vtanh.pop %v3346
      %v3379 = vtanh.pop %v3347
      %v3380 = vtanh.pop %v3348
      %v3381 = vtanh.pop %v3349
      %v3382 = vtanh.pop %v3350
      %v3383 = vtanh.pop %v3351
      %v3384 = vtanh.pop %v3352
      %v3385 = vtanh.pop %v3353
      %v3386 = vtanh.pop %v3354
      %v3387 = vtanh.pop %v3355
      %v3388 = vtanh.pop %v3356
      %v3389 = vtanh.pop %v3357
      %v3390 = vtanh.pop %v3358
      %v3391 = vtanh.pop %v3359
      %v3392 = vtanh.pop %v3360
      %v3393 = vtanh.pop %v3361
      %v3394 = vtanh.pop %v3362
      %v3395 = vtanh.pop %v3363
      %v3396 = vtanh.pop %v3364
      %v3397 = vtanh.pop %v3365
      %v3398 = vtanh.pop %v3366
      %v3399 = vtanh.pop %v3367
      %v3400 = vtanh.pop %v3368
      %v3401 = vpack.c.bf16 %v3370, %v3369
      %v3402 = vpack.c.bf16 %v3372, %v3371
      %v3403 = vpack.c.bf16 %v3374, %v3373
      %v3404 = vpack.c.bf16 %v3376, %v3375
      %v3405 = vpack.c.bf16 %v3378, %v3377
      %v3406 = vpack.c.bf16 %v3380, %v3379
      %v3407 = vpack.c.bf16 %v3382, %v3381
      %v3408 = vpack.c.bf16 %v3384, %v3383
      %v3409 = vpack.c.bf16 %v3386, %v3385
      %v3410 = vpack.c.bf16 %v3388, %v3387
      %v3411 = vpack.c.bf16 %v3390, %v3389
      %v3412 = vpack.c.bf16 %v3392, %v3391
      %v3413 = vpack.c.bf16 %v3394, %v3393
      %v3414 = vpack.c.bf16 %v3396, %v3395
      %v3415 = vpack.c.bf16 %v3398, %v3397
      %v3416 = vpack.c.bf16 %v3400, %v3399
      %v3417 = vld [vmem:[%s9] sm:$0xf]
      %v3418 = vld [vmem:[%s9 + $0x4] sm:$0xf]
      %v3419 = vld [vmem:[%s9 + $0x8] sm:$0xf]
      %v3420 = vld [vmem:[%s9 + $0xc] sm:$0xf]
      %v3421 = vld [vmem:[%s9 + $0x10] sm:$0xf]
      %v3422 = vld [vmem:[%s9 + $0x14] sm:$0xf]
      %v3423 = vld [vmem:[%s9 + $0x18] sm:$0xf]
      %v3424 = vld [vmem:[%s9 + $0x1c] sm:$0xf]
      %v3425 = vld [vmem:[%s9 + $0x20] sm:$0xf]
      %v3426 = vld [vmem:[%s9 + $0x24] sm:$0xf]
      %v3427 = vld [vmem:[%s9 + $0x28] sm:$0xf]
      %v3428 = vld [vmem:[%s9 + $0x2c] sm:$0xf]
      %v3429 = vld [vmem:[%s9 + $0x30] sm:$0xf]
      %v3430 = vld [vmem:[%s9 + $0x34] sm:$0xf]
      %v3431 = vld [vmem:[%s9 + $0x38] sm:$0xf]
      %v3432 = vld [vmem:[%s9 + $0x3c] sm:$0xf]
      %v3433 = vld [vmem:[%s10] sm:$0x1]
      %v3435 = vlaneseq
      %v3436 = vshrl.u32 %v3435, 7
      %v3437 = vsub.s32 0, %v3436
      %v3438 = vrot.slane %v3433, %v3437
      %v3456 = vunpack.c.l.b16 %v3417
      %v3457 = vunpack.c.l.b16 %v3418
      %v3458 = vunpack.c.l.b16 %v3419
      %v3459 = vunpack.c.l.b16 %v3420
      %v3460 = vunpack.c.l.b16 %v3421
      %v3461 = vunpack.c.l.b16 %v3422
      %v3462 = vunpack.c.l.b16 %v3423
      %v3463 = vunpack.c.l.b16 %v3424
      %v3464 = vunpack.c.l.b16 %v3425
      %v3465 = vunpack.c.l.b16 %v3426
      %v3466 = vunpack.c.l.b16 %v3427
      %v3467 = vunpack.c.l.b16 %v3428
      %v3468 = vunpack.c.l.b16 %v3429
      %v3469 = vunpack.c.l.b16 %v3430
      %v3470 = vunpack.c.l.b16 %v3431
      %v3471 = vunpack.c.l.b16 %v3432
      %v3472 = vpack.c.b16 %v3457, %v3456
      %v3473 = vpack.c.b16 %v3459, %v3458
      %v3474 = vpack.c.b16 %v3461, %v3460
      %v3475 = vpack.c.b16 %v3463, %v3462
      %v3476 = vpack.c.b16 %v3465, %v3464
      %v3477 = vpack.c.b16 %v3467, %v3466
      %v3478 = vpack.c.b16 %v3469, %v3468
      %v3479 = vpack.c.b16 %v3471, %v3470
      %3488 = vmatprep.subr.bf16.mxu0 0
      %3489 = vmatpush1.bf16.msra.mxu0 %v3472
      %3490 = vmatprep.subr.bf16.mxu0 0
      %3491 = vmatpush1.bf16.msra.mxu0 %v3473
      %3492 = vmatprep.subr.bf16.mxu0 0
      %3493 = vmatpush1.bf16.msra.mxu0 %v3474
      %3494 = vmatprep.subr.bf16.mxu0 0
      %3495 = vmatpush1.bf16.msra.mxu0 %v3475
      %3496 = vmatprep.subr.bf16.mxu0 0
      %3497 = vmatpush1.bf16.msra.mxu0 %v3476
      %3498 = vmatprep.subr.bf16.mxu0 0
      %3499 = vmatpush1.bf16.msra.mxu0 %v3477
      %3500 = vmatprep.subr.bf16.mxu0 0
      %3501 = vmatpush1.bf16.msra.mxu0 %v3478
      %3502 = vmatprep.subr.bf16.mxu0 0
      %3503 = vmatpush1.bf16.msra.mxu0 %v3479
      %3504 = vmatprep.subr.bf16.mxu0 0
      %3505 = vmatpush1.bf16.msra.mxu0 0
      %3506 = vmatprep.subr.bf16.mxu0 0
      %3507 = vmatpush1.bf16.msra.mxu0 0
      %3508 = vmatprep.subr.bf16.mxu0 0
      %3509 = vmatpush1.bf16.msra.mxu0 0
      %3510 = vmatprep.subr.bf16.mxu0 0
      %3511 = vmatpush1.bf16.msra.mxu0 0
      %3512 = vmatprep.subr.bf16.mxu0 0
      %3513 = vmatpush1.bf16.msra.mxu0 0
      %3514 = vmatprep.subr.bf16.mxu0 0
      %3515 = vmatpush1.bf16.msra.mxu0 0
      %3516 = vmatprep.subr.bf16.mxu0 0
      %3517 = vmatpush1.bf16.msra.mxu0 0
      %3518 = vmatprep.subr.bf16.mxu0 0
      %3519 = vmatpush1.bf16.msra.mxu0 0
      %3520 = vmatprep.mubr.bf16.mxu0 0
      %3521 = vmatmul.mubr.bf16.gmra.mrb[0].mxu0 %v3401
      %v3522 = vpop.f32.mrb[0].mxu0
      %v3523 = vadd.f32 %v3438, %v3522
      %v3524 = vpop.f32.mrb[0].mxu0
      %v3525 = vpop.f32.mrb[0].mxu0
      %v3526 = vadd.f32 %v3438, %v3525
      %v3527 = vpop.f32.mrb[0].mxu0
      %3528 = vmatprep.mubr.bf16.mxu0 0
      %3529 = vmatmul.mubr.bf16.gmra.mrb[0].mxu0 %v3402
      %v3530 = vpop.f32.mrb[0].mxu0
      %v3531 = vadd.f32 %v3438, %v3530
      %v3532 = vpop.f32.mrb[0].mxu0
      %v3533 = vpop.f32.mrb[0].mxu0
      %v3534 = vadd.f32 %v3438, %v3533
      %v3535 = vpop.f32.mrb[0].mxu0
      %3536 = vmatprep.mubr.bf16.mxu0 0
      %3537 = vmatmul.mubr.bf16.gmra.mrb[0].mxu0 %v3403
      %v3538 = vpop.f32.mrb[0].mxu0
      %v3539 = vadd.f32 %v3438, %v3538
      %v3540 = vpop.f32.mrb[0].mxu0
      %v3541 = vpop.f32.mrb[0].mxu0
      %v3542 = vadd.f32 %v3438, %v3541
      %v3543 = vpop.f32.mrb[0].mxu0
      %3544 = vmatprep.mubr.bf16.mxu0 0
      %3545 = vmatmul.mubr.bf16.gmra.mrb[0].mxu0 %v3404
      %v3546 = vpop.f32.mrb[0].mxu0
      %v3547 = vadd.f32 %v3438, %v3546
      %v3548 = vpop.f32.mrb[0].mxu0
      %v3549 = vpop.f32.mrb[0].mxu0
      %v3550 = vadd.f32 %v3438, %v3549
      %v3551 = vpop.f32.mrb[0].mxu0
      %3552 = vmatprep.mubr.bf16.mxu0 0
      %3553 = vmatmul.mubr.bf16.gmra.mrb[0].mxu0 %v3405
      %v3554 = vpop.f32.mrb[0].mxu0
      %v3555 = vadd.f32 %v3438, %v3554
      %v3556 = vpop.f32.mrb[0].mxu0
      %v3557 = vpop.f32.mrb[0].mxu0
      %v3558 = vadd.f32 %v3438, %v3557
      %v3559 = vpop.f32.mrb[0].mxu0
      %3560 = vmatprep.mubr.bf16.mxu0 0
      %3561 = vmatmul.mubr.bf16.gmra.mrb[0].mxu0 %v3406
      %v3562 = vpop.f32.mrb[0].mxu0
      %v3563 = vadd.f32 %v3438, %v3562
      %v3564 = vpop.f32.mrb[0].mxu0
      %v3565 = vpop.f32.mrb[0].mxu0
      %v3566 = vadd.f32 %v3438, %v3565
      %v3567 = vpop.f32.mrb[0].mxu0
      %3568 = vmatprep.mubr.bf16.mxu0 0
      %3569 = vmatmul.mubr.bf16.gmra.mrb[0].mxu0 %v3407
      %v3570 = vpop.f32.mrb[0].mxu0
      %v3571 = vadd.f32 %v3438, %v3570
      %v3572 = vpop.f32.mrb[0].mxu0
      %v3573 = vpop.f32.mrb[0].mxu0
      %v3574 = vadd.f32 %v3438, %v3573
      %v3575 = vpop.f32.mrb[0].mxu0
      %3576 = vmatprep.mubr.bf16.mxu0 0
      %3577 = vmatmul.mubr.bf16.gmra.mrb[0].mxu0 %v3408
      %v3578 = vpop.f32.mrb[0].mxu0
      %v3579 = vadd.f32 %v3438, %v3578
      %v3580 = vpop.f32.mrb[0].mxu0
      %v3581 = vpop.f32.mrb[0].mxu0
      %v3582 = vadd.f32 %v3438, %v3581
      %v3583 = vpop.f32.mrb[0].mxu0
      %3584 = vmatprep.mubr.bf16.mxu0 0
      %3585 = vmatmul.mubr.bf16.gmra.mrb[0].mxu0 %v3409
      %v3586 = vpop.f32.mrb[0].mxu0
      %v3587 = vadd.f32 %v3438, %v3586
      %v3588 = vpop.f32.mrb[0].mxu0
      %v3589 = vpop.f32.mrb[0].mxu0
      %v3590 = vadd.f32 %v3438, %v3589
      %v3591 = vpop.f32.mrb[0].mxu0
      %3592 = vmatprep.mubr.bf16.mxu0 0
      %3593 = vmatmul.mubr.bf16.gmra.mrb[0].mxu0 %v3410
      %v3594 = vpop.f32.mrb[0].mxu0
      %v3595 = vadd.f32 %v3438, %v3594
      %v3596 = vpop.f32.mrb[0].mxu0
      %v3597 = vpop.f32.mrb[0].mxu0
      %v3598 = vadd.f32 %v3438, %v3597
      %v3599 = vpop.f32.mrb[0].mxu0
      %3600 = vmatprep.mubr.bf16.mxu0 0
      %3601 = vmatmul.mubr.bf16.gmra.mrb[0].mxu0 %v3411
      %v3602 = vpop.f32.mrb[0].mxu0
      %v3603 = vadd.f32 %v3438, %v3602
      %v3604 = vpop.f32.mrb[0].mxu0
      %v3605 = vpop.f32.mrb[0].mxu0
      %v3606 = vadd.f32 %v3438, %v3605
      %v3607 = vpop.f32.mrb[0].mxu0
      %3608 = vmatprep.mubr.bf16.mxu0 0
      %3609 = vmatmul.mubr.bf16.gmra.mrb[0].mxu0 %v3412
      %v3610 = vpop.f32.mrb[0].mxu0
      %v3611 = vadd.f32 %v3438, %v3610
      %v3612 = vpop.f32.mrb[0].mxu0
      %v3613 = vpop.f32.mrb[0].mxu0
      %v3614 = vadd.f32 %v3438, %v3613
      %v3615 = vpop.f32.mrb[0].mxu0
      %3616 = vmatprep.mubr.bf16.mxu0 0
      %3617 = vmatmul.mubr.bf16.gmra.mrb[0].mxu0 %v3413
      %v3618 = vpop.f32.mrb[0].mxu0
      %v3619 = vadd.f32 %v3438, %v3618
      %v3620 = vpop.f32.mrb[0].mxu0
      %v3621 = vpop.f32.mrb[0].mxu0
      %v3622 = vadd.f32 %v3438, %v3621
      %v3623 = vpop.f32.mrb[0].mxu0
      %3624 = vmatprep.mubr.bf16.mxu0 0
      %3625 = vmatmul.mubr.bf16.gmra.mrb[0].mxu0 %v3414
      %v3626 = vpop.f32.mrb[0].mxu0
      %v3627 = vadd.f32 %v3438, %v3626
      %v3628 = vpop.f32.mrb[0].mxu0
      %v3629 = vpop.f32.mrb[0].mxu0
      %v3630 = vadd.f32 %v3438, %v3629
      %v3631 = vpop.f32.mrb[0].mxu0
      %3632 = vmatprep.mubr.bf16.mxu0 0
      %3633 = vmatmul.mubr.bf16.gmra.mrb[0].mxu0 %v3415
      %v3634 = vpop.f32.mrb[0].mxu0
      %v3635 = vadd.f32 %v3438, %v3634
      %v3636 = vpop.f32.mrb[0].mxu0
      %v3637 = vpop.f32.mrb[0].mxu0
      %v3638 = vadd.f32 %v3438, %v3637
      %v3639 = vpop.f32.mrb[0].mxu0
      %3640 = vmatprep.mubr.bf16.mxu0 0
      %3641 = vmatmul.mubr.bf16.gmra.mrb[0].mxu0 %v3416
      %v3642 = vpop.f32.mrb[0].mxu0
      %v3643 = vadd.f32 %v3438, %v3642
      %v3644 = vpop.f32.mrb[0].mxu0
      %v3645 = vpop.f32.mrb[0].mxu0
      %v3646 = vadd.f32 %v3438, %v3645
      %v3647 = vpop.f32.mrb[0].mxu0
      %3648 = vdwg.mxu0
      %v3649 = vmul.f32 %v3523, %v3063
      %v3650 = vmul.f32 %v3526, %v3063
      %v3651 = vmul.f32 %v3531, %v3063
      %v3652 = vmul.f32 %v3534, %v3063
      %v3653 = vmul.f32 %v3539, %v3063
      %v3654 = vmul.f32 %v3542, %v3063
      %v3655 = vmul.f32 %v3547, %v3063
      %v3656 = vmul.f32 %v3550, %v3063
      %v3657 = vmul.f32 %v3555, %v3063
      %v3658 = vmul.f32 %v3558, %v3063
      %v3659 = vmul.f32 %v3563, %v3063
      %v3660 = vmul.f32 %v3566, %v3063
      %v3661 = vmul.f32 %v3571, %v3063
      %v3662 = vmul.f32 %v3574, %v3063
      %v3663 = vmul.f32 %v3579, %v3063
      %v3664 = vmul.f32 %v3582, %v3063
      %v3665 = vmul.f32 %v3587, %v3063
      %v3666 = vmul.f32 %v3590, %v3063
      %v3667 = vmul.f32 %v3595, %v3063
      %v3668 = vmul.f32 %v3598, %v3063
      %v3669 = vmul.f32 %v3603, %v3063
      %v3670 = vmul.f32 %v3606, %v3063
      %v3671 = vmul.f32 %v3611, %v3063
      %v3672 = vmul.f32 %v3614, %v3063
      %v3673 = vmul.f32 %v3619, %v3063
      %v3674 = vmul.f32 %v3622, %v3063
      %v3675 = vmul.f32 %v3627, %v3063
      %v3676 = vmul.f32 %v3630, %v3063
      %v3677 = vmul.f32 %v3635, %v3063
      %v3678 = vmul.f32 %v3638, %v3063
      %v3679 = vmul.f32 %v3643, %v3063
      %v3680 = vmul.f32 %v3646, %v3063
      %3681 = vrot.lane.b32.xlu0 %v3063, 16
      %v3682 = vpop.permute.xlu0 %3681
      %v3684 = vmul.f32 %v3523, %v3682
      %v3685 = vmul.f32 %v3526, %v3682
      %v3686 = vmul.f32 %v3531, %v3682
      %v3687 = vmul.f32 %v3534, %v3682
      %v3688 = vmul.f32 %v3539, %v3682
      %v3689 = vmul.f32 %v3542, %v3682
      %v3690 = vmul.f32 %v3547, %v3682
      %v3691 = vmul.f32 %v3550, %v3682
      %v3692 = vmul.f32 %v3555, %v3682
      %v3693 = vmul.f32 %v3558, %v3682
      %v3694 = vmul.f32 %v3563, %v3682
      %v3695 = vmul.f32 %v3566, %v3682
      %v3696 = vmul.f32 %v3571, %v3682
      %v3697 = vmul.f32 %v3574, %v3682
      %v3698 = vmul.f32 %v3579, %v3682
      %v3699 = vmul.f32 %v3582, %v3682
      %v3700 = vmul.f32 %v3587, %v3682
      %v3701 = vmul.f32 %v3590, %v3682
      %v3702 = vmul.f32 %v3595, %v3682
      %v3703 = vmul.f32 %v3598, %v3682
      %v3704 = vmul.f32 %v3603, %v3682
      %v3705 = vmul.f32 %v3606, %v3682
      %v3706 = vmul.f32 %v3611, %v3682
      %v3707 = vmul.f32 %v3614, %v3682
      %v3708 = vmul.f32 %v3619, %v3682
      %v3709 = vmul.f32 %v3622, %v3682
      %v3710 = vmul.f32 %v3627, %v3682
      %v3711 = vmul.f32 %v3630, %v3682
      %v3712 = vmul.f32 %v3635, %v3682
      %v3713 = vmul.f32 %v3638, %v3682
      %v3714 = vmul.f32 %v3643, %v3682
      %v3715 = vmul.f32 %v3646, %v3682
      %v3716 = vmul.f32 %v3649, 1.442695
      %v3717 = vpow.pop %v3716
      %v3718 = vmul.f32 %v3650, 1.442695
      %v3719 = vpow.pop %v3718
      %v3720 = vmul.f32 %v3651, 1.442695
      %v3721 = vpow.pop %v3720
      %v3722 = vmul.f32 %v3652, 1.442695
      %v3723 = vpow.pop %v3722
      %v3724 = vmul.f32 %v3653, 1.442695
      %v3725 = vpow.pop %v3724
      %v3726 = vmul.f32 %v3654, 1.442695
      %v3727 = vpow.pop %v3726
      %v3728 = vmul.f32 %v3655, 1.442695
      %v3729 = vpow.pop %v3728
      %v3730 = vmul.f32 %v3656, 1.442695
      %v3731 = vpow.pop %v3730
      %v3732 = vmul.f32 %v3657, 1.442695
      %v3733 = vpow.pop %v3732
      %v3734 = vmul.f32 %v3658, 1.442695
      %v3735 = vpow.pop %v3734
      %v3736 = vmul.f32 %v3659, 1.442695
      %v3737 = vpow.pop %v3736
      %v3738 = vmul.f32 %v3660, 1.442695
      %v3739 = vpow.pop %v3738
      %v3740 = vmul.f32 %v3661, 1.442695
      %v3741 = vpow.pop %v3740
      %v3742 = vmul.f32 %v3662, 1.442695
      %v3743 = vpow.pop %v3742
      %v3744 = vmul.f32 %v3663, 1.442695
      %v3745 = vpow.pop %v3744
      %v3746 = vmul.f32 %v3664, 1.442695
      %v3747 = vpow.pop %v3746
      %v3748 = vmul.f32 %v3665, 1.442695
      %v3749 = vpow.pop %v3748
      %v3750 = vmul.f32 %v3666, 1.442695
      %v3751 = vpow.pop %v3750
      %v3752 = vmul.f32 %v3667, 1.442695
      %v3753 = vpow.pop %v3752
      %v3754 = vmul.f32 %v3668, 1.442695
      %v3755 = vpow.pop %v3754
      %v3756 = vmul.f32 %v3669, 1.442695
      %v3757 = vpow.pop %v3756
      %v3758 = vmul.f32 %v3670, 1.442695
      %v3759 = vpow.pop %v3758
      %v3760 = vmul.f32 %v3671, 1.442695
      %v3761 = vpow.pop %v3760
      %v3762 = vmul.f32 %v3672, 1.442695
      %v3763 = vpow.pop %v3762
      %v3764 = vmul.f32 %v3673, 1.442695
      %v3765 = vpow.pop %v3764
      %v3766 = vmul.f32 %v3674, 1.442695
      %v3767 = vpow.pop %v3766
      %v3768 = vmul.f32 %v3675, 1.442695
      %v3769 = vpow.pop %v3768
      %v3770 = vmul.f32 %v3676, 1.442695
      %v3771 = vpow.pop %v3770
      %v3772 = vmul.f32 %v3677, 1.442695
      %v3773 = vpow.pop %v3772
      %v3774 = vmul.f32 %v3678, 1.442695
      %v3775 = vpow.pop %v3774
      %v3776 = vmul.f32 %v3679, 1.442695
      %v3777 = vpow.pop %v3776
      %v3778 = vmul.f32 %v3680, 1.442695
      %v3779 = vpow.pop %v3778
      %v3780 = vmul.f32 %v415, %v3717
      %v3781 = vmul.f32 %v416, %v3719
      %v3782 = vmul.f32 %v417, %v3721
      %v3783 = vmul.f32 %v418, %v3723
      %v3784 = vmul.f32 %v419, %v3725
      %v3785 = vmul.f32 %v420, %v3727
      %v3786 = vmul.f32 %v421, %v3729
      %v3787 = vmul.f32 %v422, %v3731
      %v3788 = vmul.f32 %v423, %v3733
      %v3789 = vmul.f32 %v424, %v3735
      %v3790 = vmul.f32 %v425, %v3737
      %v3791 = vmul.f32 %v426, %v3739
      %v3792 = vmul.f32 %v427, %v3741
      %v3793 = vmul.f32 %v428, %v3743
      %v3794 = vmul.f32 %v429, %v3745
      %v3795 = vmul.f32 %v430, %v3747
      %v3796 = vmul.f32 %v431, %v3749
      %v3797 = vmul.f32 %v432, %v3751
      %v3798 = vmul.f32 %v433, %v3753
      %v3799 = vmul.f32 %v434, %v3755
      %v3800 = vmul.f32 %v435, %v3757
      %v3801 = vmul.f32 %v436, %v3759
      %v3802 = vmul.f32 %v437, %v3761
      %v3803 = vmul.f32 %v438, %v3763
      %v3804 = vmul.f32 %v439, %v3765
      %v3805 = vmul.f32 %v440, %v3767
      %v3806 = vmul.f32 %v441, %v3769
      %v3807 = vmul.f32 %v442, %v3771
      %v3808 = vmul.f32 %v443, %v3773
      %v3809 = vmul.f32 %v444, %v3775
      %v3810 = vmul.f32 %v445, %v3777
      %v3811 = vmul.f32 %v446, %v3779
      %3844 = vrot.lane.b32.xlu0 %v3684, 112
      %v3845 = vpop.permute.xlu0 %3844
      %3846 = vrot.lane.b32.xlu0 %v3685, 112
      %v3847 = vpop.permute.xlu0 %3846
      %3848 = vrot.lane.b32.xlu0 %v3686, 112
      %v3849 = vpop.permute.xlu0 %3848
      %3850 = vrot.lane.b32.xlu0 %v3687, 112
      %v3851 = vpop.permute.xlu0 %3850
      %3852 = vrot.lane.b32.xlu0 %v3688, 112
      %v3853 = vpop.permute.xlu0 %3852
      %3854 = vrot.lane.b32.xlu0 %v3689, 112
      %v3855 = vpop.permute.xlu0 %3854
      %3856 = vrot.lane.b32.xlu0 %v3690, 112
      %v3857 = vpop.permute.xlu0 %3856
      %3858 = vrot.lane.b32.xlu0 %v3691, 112
      %v3859 = vpop.permute.xlu0 %3858
      %3860 = vrot.lane.b32.xlu0 %v3692, 112
      %v3861 = vpop.permute.xlu0 %3860
      %3862 = vrot.lane.b32.xlu0 %v3693, 112
      %v3863 = vpop.permute.xlu0 %3862
      %3864 = vrot.lane.b32.xlu0 %v3694, 112
      %v3865 = vpop.permute.xlu0 %3864
      %3866 = vrot.lane.b32.xlu0 %v3695, 112
      %v3867 = vpop.permute.xlu0 %3866
      %3868 = vrot.lane.b32.xlu0 %v3696, 112
      %v3869 = vpop.permute.xlu0 %3868
      %3870 = vrot.lane.b32.xlu0 %v3697, 112
      %v3871 = vpop.permute.xlu0 %3870
      %3872 = vrot.lane.b32.xlu0 %v3698, 112
      %v3873 = vpop.permute.xlu0 %3872
      %3874 = vrot.lane.b32.xlu0 %v3699, 112
      %v3875 = vpop.permute.xlu0 %3874
      %3876 = vrot.lane.b32.xlu0 %v3700, 112
      %v3877 = vpop.permute.xlu0 %3876
      %3878 = vrot.lane.b32.xlu0 %v3701, 112
      %v3879 = vpop.permute.xlu0 %3878
      %3880 = vrot.lane.b32.xlu0 %v3702, 112
      %v3881 = vpop.permute.xlu0 %3880
      %3882 = vrot.lane.b32.xlu0 %v3703, 112
      %v3883 = vpop.permute.xlu0 %3882
      %3884 = vrot.lane.b32.xlu0 %v3704, 112
      %v3885 = vpop.permute.xlu0 %3884
      %3886 = vrot.lane.b32.xlu0 %v3705, 112
      %v3887 = vpop.permute.xlu0 %3886
      %3888 = vrot.lane.b32.xlu0 %v3706, 112
      %v3889 = vpop.permute.xlu0 %3888
      %3890 = vrot.lane.b32.xlu0 %v3707, 112
      %v3891 = vpop.permute.xlu0 %3890
      %3892 = vrot.lane.b32.xlu0 %v3708, 112
      %v3893 = vpop.permute.xlu0 %3892
      %3894 = vrot.lane.b32.xlu0 %v3709, 112
      %v3895 = vpop.permute.xlu0 %3894
      %3896 = vrot.lane.b32.xlu0 %v3710, 112
      %v3897 = vpop.permute.xlu0 %3896
      %3898 = vrot.lane.b32.xlu0 %v3711, 112
      %v3899 = vpop.permute.xlu0 %3898
      %3900 = vrot.lane.b32.xlu0 %v3712, 112
      %v3901 = vpop.permute.xlu0 %3900
      %3902 = vrot.lane.b32.xlu0 %v3713, 112
      %v3903 = vpop.permute.xlu0 %3902
      %3904 = vrot.lane.b32.xlu0 %v3714, 112
      %v3905 = vpop.permute.xlu0 %3904
      %3906 = vrot.lane.b32.xlu0 %v3715, 112
      %v3907 = vpop.permute.xlu0 %3906
      %v3940 = vadd.f32 %v3780, %v3845
      %v3941 = vadd.f32 %v3781, %v3847
      %v3942 = vadd.f32 %v3782, %v3849
      %v3943 = vadd.f32 %v3783, %v3851
      %v3944 = vadd.f32 %v3784, %v3853
      %v3945 = vadd.f32 %v3785, %v3855
      %v3946 = vadd.f32 %v3786, %v3857
      %v3947 = vadd.f32 %v3787, %v3859
      %v3948 = vadd.f32 %v3788, %v3861
      %v3949 = vadd.f32 %v3789, %v3863
      %v3950 = vadd.f32 %v3790, %v3865
      %v3951 = vadd.f32 %v3791, %v3867
      %v3952 = vadd.f32 %v3792, %v3869
      %v3953 = vadd.f32 %v3793, %v3871
      %v3954 = vadd.f32 %v3794, %v3873
      %v3955 = vadd.f32 %v3795, %v3875
      %v3956 = vadd.f32 %v3796, %v3877
      %v3957 = vadd.f32 %v3797, %v3879
      %v3958 = vadd.f32 %v3798, %v3881
      %v3959 = vadd.f32 %v3799, %v3883
      %v3960 = vadd.f32 %v3800, %v3885
      %v3961 = vadd.f32 %v3801, %v3887
      %v3962 = vadd.f32 %v3802, %v3889
      %v3963 = vadd.f32 %v3803, %v3891
      %v3964 = vadd.f32 %v3804, %v3893
      %v3965 = vadd.f32 %v3805, %v3895
      %v3966 = vadd.f32 %v3806, %v3897
      %v3967 = vadd.f32 %v3807, %v3899
      %v3968 = vadd.f32 %v3808, %v3901
      %v3969 = vadd.f32 %v3809, %v3903
      %v3970 = vadd.f32 %v3810, %v3905
      %v3971 = vadd.f32 %v3811, %v3907
      %v3972 = vmul.f32 %v3063, %v3940
      %v3973 = vmul.f32 %v3063, %v3941
      %v3974 = vmul.f32 %v3063, %v3942
      %v3975 = vmul.f32 %v3063, %v3943
      %v3976 = vmul.f32 %v3063, %v3944
      %v3977 = vmul.f32 %v3063, %v3945
      %v3978 = vmul.f32 %v3063, %v3946
      %v3979 = vmul.f32 %v3063, %v3947
      %v3980 = vmul.f32 %v3063, %v3948
      %v3981 = vmul.f32 %v3063, %v3949
      %v3982 = vmul.f32 %v3063, %v3950
      %v3983 = vmul.f32 %v3063, %v3951
      %v3984 = vmul.f32 %v3063, %v3952
      %v3985 = vmul.f32 %v3063, %v3953
      %v3986 = vmul.f32 %v3063, %v3954
      %v3987 = vmul.f32 %v3063, %v3955
      %v3988 = vmul.f32 %v3063, %v3956
      %v3989 = vmul.f32 %v3063, %v3957
      %v3990 = vmul.f32 %v3063, %v3958
      %v3991 = vmul.f32 %v3063, %v3959
      %v3992 = vmul.f32 %v3063, %v3960
      %v3993 = vmul.f32 %v3063, %v3961
      %v3994 = vmul.f32 %v3063, %v3962
      %v3995 = vmul.f32 %v3063, %v3963
      %v3996 = vmul.f32 %v3063, %v3964
      %v3997 = vmul.f32 %v3063, %v3965
      %v3998 = vmul.f32 %v3063, %v3966
      %v3999 = vmul.f32 %v3063, %v3967
      %v4000 = vmul.f32 %v3063, %v3968
      %v4001 = vmul.f32 %v3063, %v3969
      %v4002 = vmul.f32 %v3063, %v3970
      %v4003 = vmul.f32 %v3063, %v3971
      %v4004 = vadd.f32 %v3065, %v3972
      %v4005 = vadd.f32 %v3066, %v3973
      %v4006 = vadd.f32 %v3067, %v3974
      %v4007 = vadd.f32 %v3068, %v3975
      %v4008 = vadd.f32 %v3069, %v3976
      %v4009 = vadd.f32 %v3070, %v3977
      %v4010 = vadd.f32 %v3071, %v3978
      %v4011 = vadd.f32 %v3072, %v3979
      %v4012 = vadd.f32 %v3073, %v3980
      %v4013 = vadd.f32 %v3074, %v3981
      %v4014 = vadd.f32 %v3075, %v3982
      %v4015 = vadd.f32 %v3076, %v3983
      %v4016 = vadd.f32 %v3077, %v3984
      %v4017 = vadd.f32 %v3078, %v3985
      %v4018 = vadd.f32 %v3079, %v3986
      %v4019 = vadd.f32 %v3080, %v3987
      %v4020 = vadd.f32 %v3081, %v3988
      %v4021 = vadd.f32 %v3082, %v3989
      %v4022 = vadd.f32 %v3083, %v3990
      %v4023 = vadd.f32 %v3084, %v3991
      %v4024 = vadd.f32 %v3085, %v3992
      %v4025 = vadd.f32 %v3086, %v3993
      %v4026 = vadd.f32 %v3087, %v3994
      %v4027 = vadd.f32 %v3088, %v3995
      %v4028 = vadd.f32 %v3089, %v3996
      %v4029 = vadd.f32 %v3090, %v3997
      %v4030 = vadd.f32 %v3091, %v3998
      %v4031 = vadd.f32 %v3092, %v3999
      %v4032 = vadd.f32 %v3093, %v4000
      %v4033 = vadd.f32 %v3094, %v4001
      %v4034 = vadd.f32 %v3095, %v4002
      %v4035 = vadd.f32 %v3096, %v4003
      %v4036 = vadd.f32 %v3649, 0.0
      %v4037 = vadd.f32 %v3650, 0.0
      %v4038 = vadd.f32 %v3651, 0.0
      %v4039 = vadd.f32 %v3652, 0.0
      %v4040 = vadd.f32 %v3653, 0.0
      %v4041 = vadd.f32 %v3654, 0.0
      %v4042 = vadd.f32 %v3655, 0.0
      %v4043 = vadd.f32 %v3656, 0.0
      %v4044 = vadd.f32 %v3657, 0.0
      %v4045 = vadd.f32 %v3658, 0.0
      %v4046 = vadd.f32 %v3659, 0.0
      %v4047 = vadd.f32 %v3660, 0.0
      %v4048 = vadd.f32 %v3661, 0.0
      %v4049 = vadd.f32 %v3662, 0.0
      %v4050 = vadd.f32 %v3663, 0.0
      %v4051 = vadd.f32 %v3664, 0.0
      %v4052 = vadd.f32 %v3665, 0.0
      %v4053 = vadd.f32 %v3666, 0.0
      %v4054 = vadd.f32 %v3667, 0.0
      %v4055 = vadd.f32 %v3668, 0.0
      %v4056 = vadd.f32 %v3669, 0.0
      %v4057 = vadd.f32 %v3670, 0.0
      %v4058 = vadd.f32 %v3671, 0.0
      %v4059 = vadd.f32 %v3672, 0.0
      %v4060 = vadd.f32 %v3673, 0.0
      %v4061 = vadd.f32 %v3674, 0.0
      %v4062 = vadd.f32 %v3675, 0.0
      %v4063 = vadd.f32 %v3676, 0.0
      %v4064 = vadd.f32 %v3677, 0.0
      %v4065 = vadd.f32 %v3678, 0.0
      %v4066 = vadd.f32 %v3679, 0.0
      %v4067 = vadd.f32 %v3680, 0.0
      %s4068 = scalar_lea.vmem %s4, 1
      %v4069 = vld [vmem:[%s4068] sm:$0x1]
      %v4071 = vlaneseq
      %v4072 = vshrl.u32 %v4071, 7
      %v4073 = vsub.s32 0, %v4072
      %v4074 = vrot.slane %v4069, %v4073
      %s4076 = scalar_lea.vmem %s5, 1
      %v4077 = vld [vmem:[%s4076] sm:$0x1]
      %v4079 = vlaneseq
      %v4080 = vshrl.u32 %v4079, 7
      %v4081 = vsub.s32 0, %v4080
      %v4082 = vrot.slane %v4077, %v4081
      %v4084 = vmul.f32 %v4004, %v4074
      %v4085 = vmul.f32 %v4005, %v4074
      %v4086 = vmul.f32 %v4006, %v4074
      %v4087 = vmul.f32 %v4007, %v4074
      %v4088 = vmul.f32 %v4008, %v4074
      %v4089 = vmul.f32 %v4009, %v4074
      %v4090 = vmul.f32 %v4010, %v4074
      %v4091 = vmul.f32 %v4011, %v4074
      %v4092 = vmul.f32 %v4012, %v4074
      %v4093 = vmul.f32 %v4013, %v4074
      %v4094 = vmul.f32 %v4014, %v4074
      %v4095 = vmul.f32 %v4015, %v4074
      %v4096 = vmul.f32 %v4016, %v4074
      %v4097 = vmul.f32 %v4017, %v4074
      %v4098 = vmul.f32 %v4018, %v4074
      %v4099 = vmul.f32 %v4019, %v4074
      %v4100 = vmul.f32 %v4020, %v4074
      %v4101 = vmul.f32 %v4021, %v4074
      %v4102 = vmul.f32 %v4022, %v4074
      %v4103 = vmul.f32 %v4023, %v4074
      %v4104 = vmul.f32 %v4024, %v4074
      %v4105 = vmul.f32 %v4025, %v4074
      %v4106 = vmul.f32 %v4026, %v4074
      %v4107 = vmul.f32 %v4027, %v4074
      %v4108 = vmul.f32 %v4028, %v4074
      %v4109 = vmul.f32 %v4029, %v4074
      %v4110 = vmul.f32 %v4030, %v4074
      %v4111 = vmul.f32 %v4031, %v4074
      %v4112 = vmul.f32 %v4032, %v4074
      %v4113 = vmul.f32 %v4033, %v4074
      %v4114 = vmul.f32 %v4034, %v4074
      %v4115 = vmul.f32 %v4035, %v4074
      %v4116 = vpack.c.bf16 %v4085, %v4084
      %v4117 = vpack.c.bf16 %v4087, %v4086
      %v4118 = vpack.c.bf16 %v4089, %v4088
      %v4119 = vpack.c.bf16 %v4091, %v4090
      %v4120 = vpack.c.bf16 %v4093, %v4092
      %v4121 = vpack.c.bf16 %v4095, %v4094
      %v4122 = vpack.c.bf16 %v4097, %v4096
      %v4123 = vpack.c.bf16 %v4099, %v4098
      %v4124 = vpack.c.bf16 %v4101, %v4100
      %v4125 = vpack.c.bf16 %v4103, %v4102
      %v4126 = vpack.c.bf16 %v4105, %v4104
      %v4127 = vpack.c.bf16 %v4107, %v4106
      %v4128 = vpack.c.bf16 %v4109, %v4108
      %v4129 = vpack.c.bf16 %v4111, %v4110
      %v4130 = vpack.c.bf16 %v4113, %v4112
      %v4131 = vpack.c.bf16 %v4115, %v4114
      %s4132 = scalar_lea.vmem %s6, 8
      %v4133 = vld [vmem:[%s4132] sm:$0xf]
      %v4134 = vld [vmem:[%s4132 + $0x4] sm:$0xf]
      %v4137 = vunpack.c.l.b16 %v4133
      %v4138 = vunpack.c.l.b16 %v4134
      %v4139 = vpack.c.b16 %v4138, %v4137
      %v4142 = vsel %vm471, %v4116, 0
      %v4145 = vsel %vm471, %v4117, 0
      %v4148 = vsel %vm471, %v4118, 0
      %v4151 = vsel %vm471, %v4119, 0
      %v4154 = vsel %vm471, %v4120, 0
      %v4157 = vsel %vm471, %v4121, 0
      %v4160 = vsel %vm471, %v4122, 0
      %v4163 = vsel %vm471, %v4123, 0
      %v4166 = vsel %vm471, %v4124, 0
      %v4169 = vsel %vm471, %v4125, 0
      %v4172 = vsel %vm471, %v4126, 0
      %v4175 = vsel %vm471, %v4127, 0
      %v4178 = vsel %vm471, %v4128, 0
      %v4181 = vsel %vm471, %v4129, 0
      %v4184 = vsel %vm471, %v4130, 0
      %v4187 = vsel %vm471, %v4131, 0
      %4189 = vmatprep.subr.bf16.mxu0 0
      %4190 = vmatpush1.bf16.msra.mxu0 %v4139
      %4191 = vmatprep.subr.bf16.mxu0 0
      %4192 = vmatpush1.bf16.msra.mxu0 0
      %4193 = vmatprep.subr.bf16.mxu0 0
      %4194 = vmatpush1.bf16.msra.mxu0 0
      %4195 = vmatprep.subr.bf16.mxu0 0
      %4196 = vmatpush1.bf16.msra.mxu0 0
      %4197 = vmatprep.subr.bf16.mxu0 0
      %4198 = vmatpush1.bf16.msra.mxu0 0
      %4199 = vmatprep.subr.bf16.mxu0 0
      %4200 = vmatpush1.bf16.msra.mxu0 0
      %4201 = vmatprep.subr.bf16.mxu0 0
      %4202 = vmatpush1.bf16.msra.mxu0 0
      %4203 = vmatprep.subr.bf16.mxu0 0
      %4204 = vmatpush1.bf16.msra.mxu0 0
      %4205 = vmatprep.subr.bf16.mxu0 0
      %4206 = vmatpush1.bf16.msra.mxu0 0
      %4207 = vmatprep.subr.bf16.mxu0 0
      %4208 = vmatpush1.bf16.msra.mxu0 0
      %4209 = vmatprep.subr.bf16.mxu0 0
      %4210 = vmatpush1.bf16.msra.mxu0 0
      %4211 = vmatprep.subr.bf16.mxu0 0
      %4212 = vmatpush1.bf16.msra.mxu0 0
      %4213 = vmatprep.subr.bf16.mxu0 0
      %4214 = vmatpush1.bf16.msra.mxu0 0
      %4215 = vmatprep.subr.bf16.mxu0 0
      %4216 = vmatpush1.bf16.msra.mxu0 0
      %4217 = vmatprep.subr.bf16.mxu0 0
      %4218 = vmatpush1.bf16.msra.mxu0 0
      %4219 = vmatprep.subr.bf16.mxu0 0
      %4220 = vmatpush1.bf16.msra.mxu0 0
      %4221 = vmatprep.mubr.bf16.mxu0 0
      %4222 = vmatmul.mubr.bf16.gmra.mrb[0].mxu0 %v4142
      %v4223 = vpop.f32.mrb[0].mxu0
      %v4224 = vadd.f32 %v2702, %v4223
      %v4225 = vpop.f32.mrb[0].mxu0
      %v4226 = vpop.f32.mrb[0].mxu0
      %v4227 = vadd.f32 %v2706, %v4226
      %v4228 = vpop.f32.mrb[0].mxu0
      %4229 = vmatprep.mubr.bf16.mxu0 0
      %4230 = vmatmul.mubr.bf16.gmra.mrb[0].mxu0 %v4145
      %v4231 = vpop.f32.mrb[0].mxu0
      %v4232 = vadd.f32 %v2712, %v4231
      %v4233 = vpop.f32.mrb[0].mxu0
      %v4234 = vpop.f32.mrb[0].mxu0
      %v4235 = vadd.f32 %v2716, %v4234
      %v4236 = vpop.f32.mrb[0].mxu0
      %4237 = vmatprep.mubr.bf16.mxu0 0
      %4238 = vmatmul.mubr.bf16.gmra.mrb[0].mxu0 %v4148
      %v4239 = vpop.f32.mrb[0].mxu0
      %v4240 = vadd.f32 %v2722, %v4239
      %v4241 = vpop.f32.mrb[0].mxu0
      %v4242 = vpop.f32.mrb[0].mxu0
      %v4243 = vadd.f32 %v2726, %v4242
      %v4244 = vpop.f32.mrb[0].mxu0
      %4245 = vmatprep.mubr.bf16.mxu0 0
      %4246 = vmatmul.mubr.bf16.gmra.mrb[0].mxu0 %v4151
      %v4247 = vpop.f32.mrb[0].mxu0
      %v4248 = vadd.f32 %v2732, %v4247
      %v4249 = vpop.f32.mrb[0].mxu0
      %v4250 = vpop.f32.mrb[0].mxu0
      %v4251 = vadd.f32 %v2736, %v4250
      %v4252 = vpop.f32.mrb[0].mxu0
      %4253 = vmatprep.mubr.bf16.mxu0 0
      %4254 = vmatmul.mubr.bf16.gmra.mrb[0].mxu0 %v4154
      %v4255 = vpop.f32.mrb[0].mxu0
      %v4256 = vadd.f32 %v2742, %v4255
      %v4257 = vpop.f32.mrb[0].mxu0
      %v4258 = vpop.f32.mrb[0].mxu0
      %v4259 = vadd.f32 %v2746, %v4258
      %v4260 = vpop.f32.mrb[0].mxu0
      %4261 = vmatprep.mubr.bf16.mxu0 0
      %4262 = vmatmul.mubr.bf16.gmra.mrb[0].mxu0 %v4157
      %v4263 = vpop.f32.mrb[0].mxu0
      %v4264 = vadd.f32 %v2752, %v4263
      %v4265 = vpop.f32.mrb[0].mxu0
      %v4266 = vpop.f32.mrb[0].mxu0
      %v4267 = vadd.f32 %v2756, %v4266
      %v4268 = vpop.f32.mrb[0].mxu0
      %4269 = vmatprep.mubr.bf16.mxu0 0
      %4270 = vmatmul.mubr.bf16.gmra.mrb[0].mxu0 %v4160
      %v4271 = vpop.f32.mrb[0].mxu0
      %v4272 = vadd.f32 %v2762, %v4271
      %v4273 = vpop.f32.mrb[0].mxu0
      %v4274 = vpop.f32.mrb[0].mxu0
      %v4275 = vadd.f32 %v2766, %v4274
      %v4276 = vpop.f32.mrb[0].mxu0
      %4277 = vmatprep.mubr.bf16.mxu0 0
      %4278 = vmatmul.mubr.bf16.gmra.mrb[0].mxu0 %v4163
      %v4279 = vpop.f32.mrb[0].mxu0
      %v4280 = vadd.f32 %v2772, %v4279
      %v4281 = vpop.f32.mrb[0].mxu0
      %v4282 = vpop.f32.mrb[0].mxu0
      %v4283 = vadd.f32 %v2776, %v4282
      %v4284 = vpop.f32.mrb[0].mxu0
      %4285 = vmatprep.mubr.bf16.mxu0 0
      %4286 = vmatmul.mubr.bf16.gmra.mrb[0].mxu0 %v4166
      %v4287 = vpop.f32.mrb[0].mxu0
      %v4288 = vadd.f32 %v2782, %v4287
      %v4289 = vpop.f32.mrb[0].mxu0
      %v4290 = vpop.f32.mrb[0].mxu0
      %v4291 = vadd.f32 %v2786, %v4290
      %v4292 = vpop.f32.mrb[0].mxu0
      %4293 = vmatprep.mubr.bf16.mxu0 0
      %4294 = vmatmul.mubr.bf16.gmra.mrb[0].mxu0 %v4169
      %v4295 = vpop.f32.mrb[0].mxu0
      %v4296 = vadd.f32 %v2792, %v4295
      %v4297 = vpop.f32.mrb[0].mxu0
      %v4298 = vpop.f32.mrb[0].mxu0
      %v4299 = vadd.f32 %v2796, %v4298
      %v4300 = vpop.f32.mrb[0].mxu0
      %4301 = vmatprep.mubr.bf16.mxu0 0
      %4302 = vmatmul.mubr.bf16.gmra.mrb[0].mxu0 %v4172
      %v4303 = vpop.f32.mrb[0].mxu0
      %v4304 = vadd.f32 %v2802, %v4303
      %v4305 = vpop.f32.mrb[0].mxu0
      %v4306 = vpop.f32.mrb[0].mxu0
      %v4307 = vadd.f32 %v2806, %v4306
      %v4308 = vpop.f32.mrb[0].mxu0
      %4309 = vmatprep.mubr.bf16.mxu0 0
      %4310 = vmatmul.mubr.bf16.gmra.mrb[0].mxu0 %v4175
      %v4311 = vpop.f32.mrb[0].mxu0
      %v4312 = vadd.f32 %v2812, %v4311
      %v4313 = vpop.f32.mrb[0].mxu0
      %v4314 = vpop.f32.mrb[0].mxu0
      %v4315 = vadd.f32 %v2816, %v4314
      %v4316 = vpop.f32.mrb[0].mxu0
      %4317 = vmatprep.mubr.bf16.mxu0 0
      %4318 = vmatmul.mubr.bf16.gmra.mrb[0].mxu0 %v4178
      %v4319 = vpop.f32.mrb[0].mxu0
      %v4320 = vadd.f32 %v2822, %v4319
      %v4321 = vpop.f32.mrb[0].mxu0
      %v4322 = vpop.f32.mrb[0].mxu0
      %v4323 = vadd.f32 %v2826, %v4322
      %v4324 = vpop.f32.mrb[0].mxu0
      %4325 = vmatprep.mubr.bf16.mxu0 0
      %4326 = vmatmul.mubr.bf16.gmra.mrb[0].mxu0 %v4181
      %v4327 = vpop.f32.mrb[0].mxu0
      %v4328 = vadd.f32 %v2832, %v4327
      %v4329 = vpop.f32.mrb[0].mxu0
      %v4330 = vpop.f32.mrb[0].mxu0
      %v4331 = vadd.f32 %v2836, %v4330
      %v4332 = vpop.f32.mrb[0].mxu0
      %4333 = vmatprep.mubr.bf16.mxu0 0
      %4334 = vmatmul.mubr.bf16.gmra.mrb[0].mxu0 %v4184
      %v4335 = vpop.f32.mrb[0].mxu0
      %v4336 = vadd.f32 %v2842, %v4335
      %v4337 = vpop.f32.mrb[0].mxu0
      %v4338 = vpop.f32.mrb[0].mxu0
      %v4339 = vadd.f32 %v2846, %v4338
      %v4340 = vpop.f32.mrb[0].mxu0
      %4341 = vmatprep.mubr.bf16.mxu0 0
      %4342 = vmatmul.mubr.bf16.gmra.mrb[0].mxu0 %v4187
      %v4343 = vpop.f32.mrb[0].mxu0
      %v4344 = vadd.f32 %v2852, %v4343
      %v4345 = vpop.f32.mrb[0].mxu0
      %v4346 = vpop.f32.mrb[0].mxu0
      %v4347 = vadd.f32 %v2856, %v4346
      %v4348 = vpop.f32.mrb[0].mxu0
      %4349 = vdwg.mxu0
      %s4350 = scalar_lea.vmem %s8, 1
      %v4351 = vld [vmem:[%s4350] sm:$0x1]
      %v4353 = vlaneseq
      %v4354 = vshrl.u32 %v4353, 7
      %v4355 = vsub.s32 0, %v4354
      %v4356 = vrot.slane %v4351, %v4355
      %v4358 = vadd.f32 %v4224, %v4356
      %v4359 = vadd.f32 %v4227, %v4356
      %v4360 = vadd.f32 %v4232, %v4356
      %v4361 = vadd.f32 %v4235, %v4356
      %v4362 = vadd.f32 %v4240, %v4356
      %v4363 = vadd.f32 %v4243, %v4356
      %v4364 = vadd.f32 %v4248, %v4356
      %v4365 = vadd.f32 %v4251, %v4356
      %v4366 = vadd.f32 %v4256, %v4356
      %v4367 = vadd.f32 %v4259, %v4356
      %v4368 = vadd.f32 %v4264, %v4356
      %v4369 = vadd.f32 %v4267, %v4356
      %v4370 = vadd.f32 %v4272, %v4356
      %v4371 = vadd.f32 %v4275, %v4356
      %v4372 = vadd.f32 %v4280, %v4356
      %v4373 = vadd.f32 %v4283, %v4356
      %v4374 = vadd.f32 %v4288, %v4356
      %v4375 = vadd.f32 %v4291, %v4356
      %v4376 = vadd.f32 %v4296, %v4356
      %v4377 = vadd.f32 %v4299, %v4356
      %v4378 = vadd.f32 %v4304, %v4356
      %v4379 = vadd.f32 %v4307, %v4356
      %v4380 = vadd.f32 %v4312, %v4356
      %v4381 = vadd.f32 %v4315, %v4356
      %v4382 = vadd.f32 %v4320, %v4356
      %v4383 = vadd.f32 %v4323, %v4356
      %v4384 = vadd.f32 %v4328, %v4356
      %v4385 = vadd.f32 %v4331, %v4356
      %v4386 = vadd.f32 %v4336, %v4356
      %v4387 = vadd.f32 %v4339, %v4356
      %v4388 = vadd.f32 %v4344, %v4356
      %v4389 = vadd.f32 %v4347, %v4356
      %v4390 = vtanh.pop %v4358
      %v4391 = vtanh.pop %v4359
      %v4392 = vtanh.pop %v4360
      %v4393 = vtanh.pop %v4361
      %v4394 = vtanh.pop %v4362
      %v4395 = vtanh.pop %v4363
      %v4396 = vtanh.pop %v4364
      %v4397 = vtanh.pop %v4365
      %v4398 = vtanh.pop %v4366
      %v4399 = vtanh.pop %v4367
      %v4400 = vtanh.pop %v4368
      %v4401 = vtanh.pop %v4369
      %v4402 = vtanh.pop %v4370
      %v4403 = vtanh.pop %v4371
      %v4404 = vtanh.pop %v4372
      %v4405 = vtanh.pop %v4373
      %v4406 = vtanh.pop %v4374
      %v4407 = vtanh.pop %v4375
      %v4408 = vtanh.pop %v4376
      %v4409 = vtanh.pop %v4377
      %v4410 = vtanh.pop %v4378
      %v4411 = vtanh.pop %v4379
      %v4412 = vtanh.pop %v4380
      %v4413 = vtanh.pop %v4381
      %v4414 = vtanh.pop %v4382
      %v4415 = vtanh.pop %v4383
      %v4416 = vtanh.pop %v4384
      %v4417 = vtanh.pop %v4385
      %v4418 = vtanh.pop %v4386
      %v4419 = vtanh.pop %v4387
      %v4420 = vtanh.pop %v4388
      %v4421 = vtanh.pop %v4389
      %v4422 = vpack.c.bf16 %v4391, %v4390
      %v4423 = vpack.c.bf16 %v4393, %v4392
      %v4424 = vpack.c.bf16 %v4395, %v4394
      %v4425 = vpack.c.bf16 %v4397, %v4396
      %v4426 = vpack.c.bf16 %v4399, %v4398
      %v4427 = vpack.c.bf16 %v4401, %v4400
      %v4428 = vpack.c.bf16 %v4403, %v4402
      %v4429 = vpack.c.bf16 %v4405, %v4404
      %v4430 = vpack.c.bf16 %v4407, %v4406
      %v4431 = vpack.c.bf16 %v4409, %v4408
      %v4432 = vpack.c.bf16 %v4411, %v4410
      %v4433 = vpack.c.bf16 %v4413, %v4412
      %v4434 = vpack.c.bf16 %v4415, %v4414
      %v4435 = vpack.c.bf16 %v4417, %v4416
      %v4436 = vpack.c.bf16 %v4419, %v4418
      %v4437 = vpack.c.bf16 %v4421, %v4420
      %s4438 = scalar_lea.vmem %s9, 64
      %v4439 = vld [vmem:[%s4438] sm:$0xf]
      %v4440 = vld [vmem:[%s4438 + $0x4] sm:$0xf]
      %v4441 = vld [vmem:[%s4438 + $0x8] sm:$0xf]
      %v4442 = vld [vmem:[%s4438 + $0xc] sm:$0xf]
      %v4443 = vld [vmem:[%s4438 + $0x10] sm:$0xf]
      %v4444 = vld [vmem:[%s4438 + $0x14] sm:$0xf]
      %v4445 = vld [vmem:[%s4438 + $0x18] sm:$0xf]
      %v4446 = vld [vmem:[%s4438 + $0x1c] sm:$0xf]
      %v4447 = vld [vmem:[%s4438 + $0x20] sm:$0xf]
      %v4448 = vld [vmem:[%s4438 + $0x24] sm:$0xf]
      %v4449 = vld [vmem:[%s4438 + $0x28] sm:$0xf]
      %v4450 = vld [vmem:[%s4438 + $0x2c] sm:$0xf]
      %v4451 = vld [vmem:[%s4438 + $0x30] sm:$0xf]
      %v4452 = vld [vmem:[%s4438 + $0x34] sm:$0xf]
      %v4453 = vld [vmem:[%s4438 + $0x38] sm:$0xf]
      %v4454 = vld [vmem:[%s4438 + $0x3c] sm:$0xf]
      %s4455 = scalar_lea.vmem %s10, 1
      %v4456 = vld [vmem:[%s4455] sm:$0x1]
      %v4458 = vlaneseq
      %v4459 = vshrl.u32 %v4458, 7
      %v4460 = vsub.s32 0, %v4459
      %v4461 = vrot.slane %v4456, %v4460
      %v4479 = vunpack.c.l.b16 %v4439
      %v4480 = vunpack.c.l.b16 %v4440
      %v4481 = vunpack.c.l.b16 %v4441
      %v4482 = vunpack.c.l.b16 %v4442
      %v4483 = vunpack.c.l.b16 %v4443
      %v4484 = vunpack.c.l.b16 %v4444
      %v4485 = vunpack.c.l.b16 %v4445
      %v4486 = vunpack.c.l.b16 %v4446
      %v4487 = vunpack.c.l.b16 %v4447
      %v4488 = vunpack.c.l.b16 %v4448
      %v4489 = vunpack.c.l.b16 %v4449
      %v4490 = vunpack.c.l.b16 %v4450
      %v4491 = vunpack.c.l.b16 %v4451
      %v4492 = vunpack.c.l.b16 %v4452
      %v4493 = vunpack.c.l.b16 %v4453
      %v4494 = vunpack.c.l.b16 %v4454
      %v4495 = vpack.c.b16 %v4480, %v4479
      %v4496 = vpack.c.b16 %v4482, %v4481
      %v4497 = vpack.c.b16 %v4484, %v4483
      %v4498 = vpack.c.b16 %v4486, %v4485
      %v4499 = vpack.c.b16 %v4488, %v4487
      %v4500 = vpack.c.b16 %v4490, %v4489
      %v4501 = vpack.c.b16 %v4492, %v4491
      %v4502 = vpack.c.b16 %v4494, %v4493
      %4511 = vmatprep.subr.bf16.mxu0 0
      %4512 = vmatpush1.bf16.msra.mxu0 %v4495
      %4513 = vmatprep.subr.bf16.mxu0 0
      %4514 = vmatpush1.bf16.msra.mxu0 %v4496
      %4515 = vmatprep.subr.bf16.mxu0 0
      %4516 = vmatpush1.bf16.msra.mxu0 %v4497
      %4517 = vmatprep.subr.bf16.mxu0 0
      %4518 = vmatpush1.bf16.msra.mxu0 %v4498
      %4519 = vmatprep.subr.bf16.mxu0 0
      %4520 = vmatpush1.bf16.msra.mxu0 %v4499
      %4521 = vmatprep.subr.bf16.mxu0 0
      %4522 = vmatpush1.bf16.msra.mxu0 %v4500
      %4523 = vmatprep.subr.bf16.mxu0 0
      %4524 = vmatpush1.bf16.msra.mxu0 %v4501
      %4525 = vmatprep.subr.bf16.mxu0 0
      %4526 = vmatpush1.bf16.msra.mxu0 %v4502
      %4527 = vmatprep.subr.bf16.mxu0 0
      %4528 = vmatpush1.bf16.msra.mxu0 0
      %4529 = vmatprep.subr.bf16.mxu0 0
      %4530 = vmatpush1.bf16.msra.mxu0 0
      %4531 = vmatprep.subr.bf16.mxu0 0
      %4532 = vmatpush1.bf16.msra.mxu0 0
      %4533 = vmatprep.subr.bf16.mxu0 0
      %4534 = vmatpush1.bf16.msra.mxu0 0
      %4535 = vmatprep.subr.bf16.mxu0 0
      %4536 = vmatpush1.bf16.msra.mxu0 0
      %4537 = vmatprep.subr.bf16.mxu0 0
      %4538 = vmatpush1.bf16.msra.mxu0 0
      %4539 = vmatprep.subr.bf16.mxu0 0
      %4540 = vmatpush1.bf16.msra.mxu0 0
      %4541 = vmatprep.subr.bf16.mxu0 0
      %4542 = vmatpush1.bf16.msra.mxu0 0
      %4543 = vmatprep.mubr.bf16.mxu0 0
      %4544 = vmatmul.mubr.bf16.gmra.mrb[0].mxu0 %v4422
      %v4545 = vpop.f32.mrb[0].mxu0
      %v4546 = vadd.f32 %v4461, %v4545
      %v4547 = vpop.f32.mrb[0].mxu0
      %v4548 = vpop.f32.mrb[0].mxu0
      %v4549 = vadd.f32 %v4461, %v4548
      %v4550 = vpop.f32.mrb[0].mxu0
      %4551 = vmatprep.mubr.bf16.mxu0 0
      %4552 = vmatmul.mubr.bf16.gmra.mrb[0].mxu0 %v4423
      %v4553 = vpop.f32.mrb[0].mxu0
      %v4554 = vadd.f32 %v4461, %v4553
      %v4555 = vpop.f32.mrb[0].mxu0
      %v4556 = vpop.f32.mrb[0].mxu0
      %v4557 = vadd.f32 %v4461, %v4556
      %v4558 = vpop.f32.mrb[0].mxu0
      %4559 = vmatprep.mubr.bf16.mxu0 0
      %4560 = vmatmul.mubr.bf16.gmra.mrb[0].mxu0 %v4424
      %v4561 = vpop.f32.mrb[0].mxu0
      %v4562 = vadd.f32 %v4461, %v4561
      %v4563 = vpop.f32.mrb[0].mxu0
      %v4564 = vpop.f32.mrb[0].mxu0
      %v4565 = vadd.f32 %v4461, %v4564
      %v4566 = vpop.f32.mrb[0].mxu0
      %4567 = vmatprep.mubr.bf16.mxu0 0
      %4568 = vmatmul.mubr.bf16.gmra.mrb[0].mxu0 %v4425
      %v4569 = vpop.f32.mrb[0].mxu0
      %v4570 = vadd.f32 %v4461, %v4569
      %v4571 = vpop.f32.mrb[0].mxu0
      %v4572 = vpop.f32.mrb[0].mxu0
      %v4573 = vadd.f32 %v4461, %v4572
      %v4574 = vpop.f32.mrb[0].mxu0
      %4575 = vmatprep.mubr.bf16.mxu0 0
      %4576 = vmatmul.mubr.bf16.gmra.mrb[0].mxu0 %v4426
      %v4577 = vpop.f32.mrb[0].mxu0
      %v4578 = vadd.f32 %v4461, %v4577
      %v4579 = vpop.f32.mrb[0].mxu0
      %v4580 = vpop.f32.mrb[0].mxu0
      %v4581 = vadd.f32 %v4461, %v4580
      %v4582 = vpop.f32.mrb[0].mxu0
      %4583 = vmatprep.mubr.bf16.mxu0 0
      %4584 = vmatmul.mubr.bf16.gmra.mrb[0].mxu0 %v4427
      %v4585 = vpop.f32.mrb[0].mxu0
      %v4586 = vadd.f32 %v4461, %v4585
      %v4587 = vpop.f32.mrb[0].mxu0
      %v4588 = vpop.f32.mrb[0].mxu0
      %v4589 = vadd.f32 %v4461, %v4588
      %v4590 = vpop.f32.mrb[0].mxu0
      %4591 = vmatprep.mubr.bf16.mxu0 0
      %4592 = vmatmul.mubr.bf16.gmra.mrb[0].mxu0 %v4428
      %v4593 = vpop.f32.mrb[0].mxu0
      %v4594 = vadd.f32 %v4461, %v4593
      %v4595 = vpop.f32.mrb[0].mxu0
      %v4596 = vpop.f32.mrb[0].mxu0
      %v4597 = vadd.f32 %v4461, %v4596
      %v4598 = vpop.f32.mrb[0].mxu0
      %4599 = vmatprep.mubr.bf16.mxu0 0
      %4600 = vmatmul.mubr.bf16.gmra.mrb[0].mxu0 %v4429
      %v4601 = vpop.f32.mrb[0].mxu0
      %v4602 = vadd.f32 %v4461, %v4601
      %v4603 = vpop.f32.mrb[0].mxu0
      %v4604 = vpop.f32.mrb[0].mxu0
      %v4605 = vadd.f32 %v4461, %v4604
      %v4606 = vpop.f32.mrb[0].mxu0
      %4607 = vmatprep.mubr.bf16.mxu0 0
      %4608 = vmatmul.mubr.bf16.gmra.mrb[0].mxu0 %v4430
      %v4609 = vpop.f32.mrb[0].mxu0
      %v4610 = vadd.f32 %v4461, %v4609
      %v4611 = vpop.f32.mrb[0].mxu0
      %v4612 = vpop.f32.mrb[0].mxu0
      %v4613 = vadd.f32 %v4461, %v4612
      %v4614 = vpop.f32.mrb[0].mxu0
      %4615 = vmatprep.mubr.bf16.mxu0 0
      %4616 = vmatmul.mubr.bf16.gmra.mrb[0].mxu0 %v4431
      %v4617 = vpop.f32.mrb[0].mxu0
      %v4618 = vadd.f32 %v4461, %v4617
      %v4619 = vpop.f32.mrb[0].mxu0
      %v4620 = vpop.f32.mrb[0].mxu0
      %v4621 = vadd.f32 %v4461, %v4620
      %v4622 = vpop.f32.mrb[0].mxu0
      %4623 = vmatprep.mubr.bf16.mxu0 0
      %4624 = vmatmul.mubr.bf16.gmra.mrb[0].mxu0 %v4432
      %v4625 = vpop.f32.mrb[0].mxu0
      %v4626 = vadd.f32 %v4461, %v4625
      %v4627 = vpop.f32.mrb[0].mxu0
      %v4628 = vpop.f32.mrb[0].mxu0
      %v4629 = vadd.f32 %v4461, %v4628
      %v4630 = vpop.f32.mrb[0].mxu0
      %4631 = vmatprep.mubr.bf16.mxu0 0
      %4632 = vmatmul.mubr.bf16.gmra.mrb[0].mxu0 %v4433
      %v4633 = vpop.f32.mrb[0].mxu0
      %v4634 = vadd.f32 %v4461, %v4633
      %v4635 = vpop.f32.mrb[0].mxu0
      %v4636 = vpop.f32.mrb[0].mxu0
      %v4637 = vadd.f32 %v4461, %v4636
      %v4638 = vpop.f32.mrb[0].mxu0
      %4639 = vmatprep.mubr.bf16.mxu0 0
      %4640 = vmatmul.mubr.bf16.gmra.mrb[0].mxu0 %v4434
      %v4641 = vpop.f32.mrb[0].mxu0
      %v4642 = vadd.f32 %v4461, %v4641
      %v4643 = vpop.f32.mrb[0].mxu0
      %v4644 = vpop.f32.mrb[0].mxu0
      %v4645 = vadd.f32 %v4461, %v4644
      %v4646 = vpop.f32.mrb[0].mxu0
      %4647 = vmatprep.mubr.bf16.mxu0 0
      %4648 = vmatmul.mubr.bf16.gmra.mrb[0].mxu0 %v4435
      %v4649 = vpop.f32.mrb[0].mxu0
      %v4650 = vadd.f32 %v4461, %v4649
      %v4651 = vpop.f32.mrb[0].mxu0
      %v4652 = vpop.f32.mrb[0].mxu0
      %v4653 = vadd.f32 %v4461, %v4652
      %v4654 = vpop.f32.mrb[0].mxu0
      %4655 = vmatprep.mubr.bf16.mxu0 0
      %4656 = vmatmul.mubr.bf16.gmra.mrb[0].mxu0 %v4436
      %v4657 = vpop.f32.mrb[0].mxu0
      %v4658 = vadd.f32 %v4461, %v4657
      %v4659 = vpop.f32.mrb[0].mxu0
      %v4660 = vpop.f32.mrb[0].mxu0
      %v4661 = vadd.f32 %v4461, %v4660
      %v4662 = vpop.f32.mrb[0].mxu0
      %4663 = vmatprep.mubr.bf16.mxu0 0
      %4664 = vmatmul.mubr.bf16.gmra.mrb[0].mxu0 %v4437
      %v4665 = vpop.f32.mrb[0].mxu0
      %v4666 = vadd.f32 %v4461, %v4665
      %v4667 = vpop.f32.mrb[0].mxu0
      %v4668 = vpop.f32.mrb[0].mxu0
      %v4669 = vadd.f32 %v4461, %v4668
      %v4670 = vpop.f32.mrb[0].mxu0
      %4671 = vdwg.mxu0
      %v4672 = vmul.f32 %v4546, %v4082
      %v4673 = vmul.f32 %v4549, %v4082
      %v4674 = vmul.f32 %v4554, %v4082
      %v4675 = vmul.f32 %v4557, %v4082
      %v4676 = vmul.f32 %v4562, %v4082
      %v4677 = vmul.f32 %v4565, %v4082
      %v4678 = vmul.f32 %v4570, %v4082
      %v4679 = vmul.f32 %v4573, %v4082
      %v4680 = vmul.f32 %v4578, %v4082
      %v4681 = vmul.f32 %v4581, %v4082
      %v4682 = vmul.f32 %v4586, %v4082
      %v4683 = vmul.f32 %v4589, %v4082
      %v4684 = vmul.f32 %v4594, %v4082
      %v4685 = vmul.f32 %v4597, %v4082
      %v4686 = vmul.f32 %v4602, %v4082
      %v4687 = vmul.f32 %v4605, %v4082
      %v4688 = vmul.f32 %v4610, %v4082
      %v4689 = vmul.f32 %v4613, %v4082
      %v4690 = vmul.f32 %v4618, %v4082
      %v4691 = vmul.f32 %v4621, %v4082
      %v4692 = vmul.f32 %v4626, %v4082
      %v4693 = vmul.f32 %v4629, %v4082
      %v4694 = vmul.f32 %v4634, %v4082
      %v4695 = vmul.f32 %v4637, %v4082
      %v4696 = vmul.f32 %v4642, %v4082
      %v4697 = vmul.f32 %v4645, %v4082
      %v4698 = vmul.f32 %v4650, %v4082
      %v4699 = vmul.f32 %v4653, %v4082
      %v4700 = vmul.f32 %v4658, %v4082
      %v4701 = vmul.f32 %v4661, %v4082
      %v4702 = vmul.f32 %v4666, %v4082
      %v4703 = vmul.f32 %v4669, %v4082
      %4704 = vrot.lane.b32.xlu0 %v4082, 16
      %v4705 = vpop.permute.xlu0 %4704
      %v4707 = vmul.f32 %v4546, %v4705
      %v4708 = vmul.f32 %v4549, %v4705
      %v4709 = vmul.f32 %v4554, %v4705
      %v4710 = vmul.f32 %v4557, %v4705
      %v4711 = vmul.f32 %v4562, %v4705
      %v4712 = vmul.f32 %v4565, %v4705
      %v4713 = vmul.f32 %v4570, %v4705
      %v4714 = vmul.f32 %v4573, %v4705
      %v4715 = vmul.f32 %v4578, %v4705
      %v4716 = vmul.f32 %v4581, %v4705
      %v4717 = vmul.f32 %v4586, %v4705
      %v4718 = vmul.f32 %v4589, %v4705
      %v4719 = vmul.f32 %v4594, %v4705
      %v4720 = vmul.f32 %v4597, %v4705
      %v4721 = vmul.f32 %v4602, %v4705
      %v4722 = vmul.f32 %v4605, %v4705
      %v4723 = vmul.f32 %v4610, %v4705
      %v4724 = vmul.f32 %v4613, %v4705
      %v4725 = vmul.f32 %v4618, %v4705
      %v4726 = vmul.f32 %v4621, %v4705
      %v4727 = vmul.f32 %v4626, %v4705
      %v4728 = vmul.f32 %v4629, %v4705
      %v4729 = vmul.f32 %v4634, %v4705
      %v4730 = vmul.f32 %v4637, %v4705
      %v4731 = vmul.f32 %v4642, %v4705
      %v4732 = vmul.f32 %v4645, %v4705
      %v4733 = vmul.f32 %v4650, %v4705
      %v4734 = vmul.f32 %v4653, %v4705
      %v4735 = vmul.f32 %v4658, %v4705
      %v4736 = vmul.f32 %v4661, %v4705
      %v4737 = vmul.f32 %v4666, %v4705
      %v4738 = vmul.f32 %v4669, %v4705
      %v4739 = vmul.f32 %v4672, 1.442695
      %v4740 = vpow.pop %v4739
      %v4741 = vmul.f32 %v4673, 1.442695
      %v4742 = vpow.pop %v4741
      %v4743 = vmul.f32 %v4674, 1.442695
      %v4744 = vpow.pop %v4743
      %v4745 = vmul.f32 %v4675, 1.442695
      %v4746 = vpow.pop %v4745
      %v4747 = vmul.f32 %v4676, 1.442695
      %v4748 = vpow.pop %v4747
      %v4749 = vmul.f32 %v4677, 1.442695
      %v4750 = vpow.pop %v4749
      %v4751 = vmul.f32 %v4678, 1.442695
      %v4752 = vpow.pop %v4751
      %v4753 = vmul.f32 %v4679, 1.442695
      %v4754 = vpow.pop %v4753
      %v4755 = vmul.f32 %v4680, 1.442695
      %v4756 = vpow.pop %v4755
      %v4757 = vmul.f32 %v4681, 1.442695
      %v4758 = vpow.pop %v4757
      %v4759 = vmul.f32 %v4682, 1.442695
      %v4760 = vpow.pop %v4759
      %v4761 = vmul.f32 %v4683, 1.442695
      %v4762 = vpow.pop %v4761
      %v4763 = vmul.f32 %v4684, 1.442695
      %v4764 = vpow.pop %v4763
      %v4765 = vmul.f32 %v4685, 1.442695
      %v4766 = vpow.pop %v4765
      %v4767 = vmul.f32 %v4686, 1.442695
      %v4768 = vpow.pop %v4767
      %v4769 = vmul.f32 %v4687, 1.442695
      %v4770 = vpow.pop %v4769
      %v4771 = vmul.f32 %v4688, 1.442695
      %v4772 = vpow.pop %v4771
      %v4773 = vmul.f32 %v4689, 1.442695
      %v4774 = vpow.pop %v4773
      %v4775 = vmul.f32 %v4690, 1.442695
      %v4776 = vpow.pop %v4775
      %v4777 = vmul.f32 %v4691, 1.442695
      %v4778 = vpow.pop %v4777
      %v4779 = vmul.f32 %v4692, 1.442695
      %v4780 = vpow.pop %v4779
      %v4781 = vmul.f32 %v4693, 1.442695
      %v4782 = vpow.pop %v4781
      %v4783 = vmul.f32 %v4694, 1.442695
      %v4784 = vpow.pop %v4783
      %v4785 = vmul.f32 %v4695, 1.442695
      %v4786 = vpow.pop %v4785
      %v4787 = vmul.f32 %v4696, 1.442695
      %v4788 = vpow.pop %v4787
      %v4789 = vmul.f32 %v4697, 1.442695
      %v4790 = vpow.pop %v4789
      %v4791 = vmul.f32 %v4698, 1.442695
      %v4792 = vpow.pop %v4791
      %v4793 = vmul.f32 %v4699, 1.442695
      %v4794 = vpow.pop %v4793
      %v4795 = vmul.f32 %v4700, 1.442695
      %v4796 = vpow.pop %v4795
      %v4797 = vmul.f32 %v4701, 1.442695
      %v4798 = vpow.pop %v4797
      %v4799 = vmul.f32 %v4702, 1.442695
      %v4800 = vpow.pop %v4799
      %v4801 = vmul.f32 %v4703, 1.442695
      %v4802 = vpow.pop %v4801
      %v4803 = vmul.f32 %v4004, %v4740
      %v4804 = vmul.f32 %v4005, %v4742
      %v4805 = vmul.f32 %v4006, %v4744
      %v4806 = vmul.f32 %v4007, %v4746
      %v4807 = vmul.f32 %v4008, %v4748
      %v4808 = vmul.f32 %v4009, %v4750
      %v4809 = vmul.f32 %v4010, %v4752
      %v4810 = vmul.f32 %v4011, %v4754
      %v4811 = vmul.f32 %v4012, %v4756
      %v4812 = vmul.f32 %v4013, %v4758
      %v4813 = vmul.f32 %v4014, %v4760
      %v4814 = vmul.f32 %v4015, %v4762
      %v4815 = vmul.f32 %v4016, %v4764
      %v4816 = vmul.f32 %v4017, %v4766
      %v4817 = vmul.f32 %v4018, %v4768
      %v4818 = vmul.f32 %v4019, %v4770
      %v4819 = vmul.f32 %v4020, %v4772
      %v4820 = vmul.f32 %v4021, %v4774
      %v4821 = vmul.f32 %v4022, %v4776
      %v4822 = vmul.f32 %v4023, %v4778
      %v4823 = vmul.f32 %v4024, %v4780
      %v4824 = vmul.f32 %v4025, %v4782
      %v4825 = vmul.f32 %v4026, %v4784
      %v4826 = vmul.f32 %v4027, %v4786
      %v4827 = vmul.f32 %v4028, %v4788
      %v4828 = vmul.f32 %v4029, %v4790
      %v4829 = vmul.f32 %v4030, %v4792
      %v4830 = vmul.f32 %v4031, %v4794
      %v4831 = vmul.f32 %v4032, %v4796
      %v4832 = vmul.f32 %v4033, %v4798
      %v4833 = vmul.f32 %v4034, %v4800
      %v4834 = vmul.f32 %v4035, %v4802
      %4867 = vrot.lane.b32.xlu0 %v4707, 112
      %v4868 = vpop.permute.xlu0 %4867
      %4869 = vrot.lane.b32.xlu0 %v4708, 112
      %v4870 = vpop.permute.xlu0 %4869
      %4871 = vrot.lane.b32.xlu0 %v4709, 112
      %v4872 = vpop.permute.xlu0 %4871
      %4873 = vrot.lane.b32.xlu0 %v4710, 112
      %v4874 = vpop.permute.xlu0 %4873
      %4875 = vrot.lane.b32.xlu0 %v4711, 112
      %v4876 = vpop.permute.xlu0 %4875
      %4877 = vrot.lane.b32.xlu0 %v4712, 112
      %v4878 = vpop.permute.xlu0 %4877
      %4879 = vrot.lane.b32.xlu0 %v4713, 112
      %v4880 = vpop.permute.xlu0 %4879
      %4881 = vrot.lane.b32.xlu0 %v4714, 112
      %v4882 = vpop.permute.xlu0 %4881
      %4883 = vrot.lane.b32.xlu0 %v4715, 112
      %v4884 = vpop.permute.xlu0 %4883
      %4885 = vrot.lane.b32.xlu0 %v4716, 112
      %v4886 = vpop.permute.xlu0 %4885
      %4887 = vrot.lane.b32.xlu0 %v4717, 112
      %v4888 = vpop.permute.xlu0 %4887
      %4889 = vrot.lane.b32.xlu0 %v4718, 112
      %v4890 = vpop.permute.xlu0 %4889
      %4891 = vrot.lane.b32.xlu0 %v4719, 112
      %v4892 = vpop.permute.xlu0 %4891
      %4893 = vrot.lane.b32.xlu0 %v4720, 112
      %v4894 = vpop.permute.xlu0 %4893
      %4895 = vrot.lane.b32.xlu0 %v4721, 112
      %v4896 = vpop.permute.xlu0 %4895
      %4897 = vrot.lane.b32.xlu0 %v4722, 112
      %v4898 = vpop.permute.xlu0 %4897
      %4899 = vrot.lane.b32.xlu0 %v4723, 112
      %v4900 = vpop.permute.xlu0 %4899
      %4901 = vrot.lane.b32.xlu0 %v4724, 112
      %v4902 = vpop.permute.xlu0 %4901
      %4903 = vrot.lane.b32.xlu0 %v4725, 112
      %v4904 = vpop.permute.xlu0 %4903
      %4905 = vrot.lane.b32.xlu0 %v4726, 112
      %v4906 = vpop.permute.xlu0 %4905
      %4907 = vrot.lane.b32.xlu0 %v4727, 112
      %v4908 = vpop.permute.xlu0 %4907
      %4909 = vrot.lane.b32.xlu0 %v4728, 112
      %v4910 = vpop.permute.xlu0 %4909
      %4911 = vrot.lane.b32.xlu0 %v4729, 112
      %v4912 = vpop.permute.xlu0 %4911
      %4913 = vrot.lane.b32.xlu0 %v4730, 112
      %v4914 = vpop.permute.xlu0 %4913
      %4915 = vrot.lane.b32.xlu0 %v4731, 112
      %v4916 = vpop.permute.xlu0 %4915
      %4917 = vrot.lane.b32.xlu0 %v4732, 112
      %v4918 = vpop.permute.xlu0 %4917
      %4919 = vrot.lane.b32.xlu0 %v4733, 112
      %v4920 = vpop.permute.xlu0 %4919
      %4921 = vrot.lane.b32.xlu0 %v4734, 112
      %v4922 = vpop.permute.xlu0 %4921
      %4923 = vrot.lane.b32.xlu0 %v4735, 112
      %v4924 = vpop.permute.xlu0 %4923
      %4925 = vrot.lane.b32.xlu0 %v4736, 112
      %v4926 = vpop.permute.xlu0 %4925
      %4927 = vrot.lane.b32.xlu0 %v4737, 112
      %v4928 = vpop.permute.xlu0 %4927
      %4929 = vrot.lane.b32.xlu0 %v4738, 112
      %v4930 = vpop.permute.xlu0 %4929
      %v4963 = vadd.f32 %v4803, %v4868
      %v4964 = vadd.f32 %v4804, %v4870
      %v4965 = vadd.f32 %v4805, %v4872
      %v4966 = vadd.f32 %v4806, %v4874
      %v4967 = vadd.f32 %v4807, %v4876
      %v4968 = vadd.f32 %v4808, %v4878
      %v4969 = vadd.f32 %v4809, %v4880
      %v4970 = vadd.f32 %v4810, %v4882
      %v4971 = vadd.f32 %v4811, %v4884
      %v4972 = vadd.f32 %v4812, %v4886
      %v4973 = vadd.f32 %v4813, %v4888
      %v4974 = vadd.f32 %v4814, %v4890
      %v4975 = vadd.f32 %v4815, %v4892
      %v4976 = vadd.f32 %v4816, %v4894
      %v4977 = vadd.f32 %v4817, %v4896
      %v4978 = vadd.f32 %v4818, %v4898
      %v4979 = vadd.f32 %v4819, %v4900
      %v4980 = vadd.f32 %v4820, %v4902
      %v4981 = vadd.f32 %v4821, %v4904
      %v4982 = vadd.f32 %v4822, %v4906
      %v4983 = vadd.f32 %v4823, %v4908
      %v4984 = vadd.f32 %v4824, %v4910
      %v4985 = vadd.f32 %v4825, %v4912
      %v4986 = vadd.f32 %v4826, %v4914
      %v4987 = vadd.f32 %v4827, %v4916
      %v4988 = vadd.f32 %v4828, %v4918
      %v4989 = vadd.f32 %v4829, %v4920
      %v4990 = vadd.f32 %v4830, %v4922
      %v4991 = vadd.f32 %v4831, %v4924
      %v4992 = vadd.f32 %v4832, %v4926
      %v4993 = vadd.f32 %v4833, %v4928
      %v4994 = vadd.f32 %v4834, %v4930
      %v4995 = vmul.f32 %v4082, %v4963
      %v4996 = vmul.f32 %v4082, %v4964
      %v4997 = vmul.f32 %v4082, %v4965
      %v4998 = vmul.f32 %v4082, %v4966
      %v4999 = vmul.f32 %v4082, %v4967
      %v5000 = vmul.f32 %v4082, %v4968
      %v5001 = vmul.f32 %v4082, %v4969
      %v5002 = vmul.f32 %v4082, %v4970
      %v5003 = vmul.f32 %v4082, %v4971
      %v5004 = vmul.f32 %v4082, %v4972
      %v5005 = vmul.f32 %v4082, %v4973
      %v5006 = vmul.f32 %v4082, %v4974
      %v5007 = vmul.f32 %v4082, %v4975
      %v5008 = vmul.f32 %v4082, %v4976
      %v5009 = vmul.f32 %v4082, %v4977
      %v5010 = vmul.f32 %v4082, %v4978
      %v5011 = vmul.f32 %v4082, %v4979
      %v5012 = vmul.f32 %v4082, %v4980
      %v5013 = vmul.f32 %v4082, %v4981
      %v5014 = vmul.f32 %v4082, %v4982
      %v5015 = vmul.f32 %v4082, %v4983
      %v5016 = vmul.f32 %v4082, %v4984
      %v5017 = vmul.f32 %v4082, %v4985
      %v5018 = vmul.f32 %v4082, %v4986
      %v5019 = vmul.f32 %v4082, %v4987
      %v5020 = vmul.f32 %v4082, %v4988
      %v5021 = vmul.f32 %v4082, %v4989
      %v5022 = vmul.f32 %v4082, %v4990
      %v5023 = vmul.f32 %v4082, %v4991
      %v5024 = vmul.f32 %v4082, %v4992
      %v5025 = vmul.f32 %v4082, %v4993
      %v5026 = vmul.f32 %v4082, %v4994
      %v5027 = vadd.f32 %v4084, %v4995
      %v5028 = vadd.f32 %v4085, %v4996
      %v5029 = vadd.f32 %v4086, %v4997
      %v5030 = vadd.f32 %v4087, %v4998
      %v5031 = vadd.f32 %v4088, %v4999
      %v5032 = vadd.f32 %v4089, %v5000
      %v5033 = vadd.f32 %v4090, %v5001
      %v5034 = vadd.f32 %v4091, %v5002
      %v5035 = vadd.f32 %v4092, %v5003
      %v5036 = vadd.f32 %v4093, %v5004
      %v5037 = vadd.f32 %v4094, %v5005
      %v5038 = vadd.f32 %v4095, %v5006
      %v5039 = vadd.f32 %v4096, %v5007
      %v5040 = vadd.f32 %v4097, %v5008
      %v5041 = vadd.f32 %v4098, %v5009
      %v5042 = vadd.f32 %v4099, %v5010
      %v5043 = vadd.f32 %v4100, %v5011
      %v5044 = vadd.f32 %v4101, %v5012
      %v5045 = vadd.f32 %v4102, %v5013
      %v5046 = vadd.f32 %v4103, %v5014
      %v5047 = vadd.f32 %v4104, %v5015
      %v5048 = vadd.f32 %v4105, %v5016
      %v5049 = vadd.f32 %v4106, %v5017
      %v5050 = vadd.f32 %v4107, %v5018
      %v5051 = vadd.f32 %v4108, %v5019
      %v5052 = vadd.f32 %v4109, %v5020
      %v5053 = vadd.f32 %v4110, %v5021
      %v5054 = vadd.f32 %v4111, %v5022
      %v5055 = vadd.f32 %v4112, %v5023
      %v5056 = vadd.f32 %v4113, %v5024
      %v5057 = vadd.f32 %v4114, %v5025
      %v5058 = vadd.f32 %v4115, %v5026
      %v5059 = vadd.f32 %v4036, %v4672
      %v5060 = vadd.f32 %v4037, %v4673
      %v5061 = vadd.f32 %v4038, %v4674
      %v5062 = vadd.f32 %v4039, %v4675
      %v5063 = vadd.f32 %v4040, %v4676
      %v5064 = vadd.f32 %v4041, %v4677
      %v5065 = vadd.f32 %v4042, %v4678
      %v5066 = vadd.f32 %v4043, %v4679
      %v5067 = vadd.f32 %v4044, %v4680
      %v5068 = vadd.f32 %v4045, %v4681
      %v5069 = vadd.f32 %v4046, %v4682
      %v5070 = vadd.f32 %v4047, %v4683
      %v5071 = vadd.f32 %v4048, %v4684
      %v5072 = vadd.f32 %v4049, %v4685
      %v5073 = vadd.f32 %v4050, %v4686
      %v5074 = vadd.f32 %v4051, %v4687
      %v5075 = vadd.f32 %v4052, %v4688
      %v5076 = vadd.f32 %v4053, %v4689
      %v5077 = vadd.f32 %v4054, %v4690
      %v5078 = vadd.f32 %v4055, %v4691
      %v5079 = vadd.f32 %v4056, %v4692
      %v5080 = vadd.f32 %v4057, %v4693
      %v5081 = vadd.f32 %v4058, %v4694
      %v5082 = vadd.f32 %v4059, %v4695
      %v5083 = vadd.f32 %v4060, %v4696
      %v5084 = vadd.f32 %v4061, %v4697
      %v5085 = vadd.f32 %v4062, %v4698
      %v5086 = vadd.f32 %v4063, %v4699
      %v5087 = vadd.f32 %v4064, %v4700
      %v5088 = vadd.f32 %v4065, %v4701
      %v5089 = vadd.f32 %v4066, %v4702
      %v5090 = vadd.f32 %v4067, %v4703
      %s5091 = scalar_lea.vmem %s4, 2
      %v5092 = vld [vmem:[%s5091] sm:$0x1]
      %v5094 = vlaneseq
      %v5095 = vshrl.u32 %v5094, 7
      %v5096 = vsub.s32 0, %v5095
      %v5097 = vrot.slane %v5092, %v5096
      %s5099 = scalar_lea.vmem %s5, 2
      %v5100 = vld [vmem:[%s5099] sm:$0x1]
      %v5102 = vlaneseq
      %v5103 = vshrl.u32 %v5102, 7
      %v5104 = vsub.s32 0, %v5103
      %v5105 = vrot.slane %v5100, %v5104
      %v5107 = vmul.f32 %v5027, %v5097
      %v5108 = vmul.f32 %v5028, %v5097
      %v5109 = vmul.f32 %v5029, %v5097
      %v5110 = vmul.f32 %v5030, %v5097
      %v5111 = vmul.f32 %v5031, %v5097
      %v5112 = vmul.f32 %v5032, %v5097
      %v5113 = vmul.f32 %v5033, %v5097
      %v5114 = vmul.f32 %v5034, %v5097
      %v5115 = vmul.f32 %v5035, %v5097
      %v5116 = vmul.f32 %v5036, %v5097
      %v5117 = vmul.f32 %v5037, %v5097
      %v5118 = vmul.f32 %v5038, %v5097
      %v5119 = vmul.f32 %v5039, %v5097
      %v5120 = vmul.f32 %v5040, %v5097
      %v5121 = vmul.f32 %v5041, %v5097
      %v5122 = vmul.f32 %v5042, %v5097
      %v5123 = vmul.f32 %v5043, %v5097
      %v5124 = vmul.f32 %v5044, %v5097
      %v5125 = vmul.f32 %v5045, %v5097
      %v5126 = vmul.f32 %v5046, %v5097
      %v5127 = vmul.f32 %v5047, %v5097
      %v5128 = vmul.f32 %v5048, %v5097
      %v5129 = vmul.f32 %v5049, %v5097
      %v5130 = vmul.f32 %v5050, %v5097
      %v5131 = vmul.f32 %v5051, %v5097
      %v5132 = vmul.f32 %v5052, %v5097
      %v5133 = vmul.f32 %v5053, %v5097
      %v5134 = vmul.f32 %v5054, %v5097
      %v5135 = vmul.f32 %v5055, %v5097
      %v5136 = vmul.f32 %v5056, %v5097
      %v5137 = vmul.f32 %v5057, %v5097
      %v5138 = vmul.f32 %v5058, %v5097
      %v5139 = vpack.c.bf16 %v5108, %v5107
      %v5140 = vpack.c.bf16 %v5110, %v5109
      %v5141 = vpack.c.bf16 %v5112, %v5111
      %v5142 = vpack.c.bf16 %v5114, %v5113
      %v5143 = vpack.c.bf16 %v5116, %v5115
      %v5144 = vpack.c.bf16 %v5118, %v5117
      %v5145 = vpack.c.bf16 %v5120, %v5119
      %v5146 = vpack.c.bf16 %v5122, %v5121
      %v5147 = vpack.c.bf16 %v5124, %v5123
      %v5148 = vpack.c.bf16 %v5126, %v5125
      %v5149 = vpack.c.bf16 %v5128, %v5127
      %v5150 = vpack.c.bf16 %v5130, %v5129
      %v5151 = vpack.c.bf16 %v5132, %v5131
      %v5152 = vpack.c.bf16 %v5134, %v5133
      %v5153 = vpack.c.bf16 %v5136, %v5135
      %v5154 = vpack.c.bf16 %v5138, %v5137
      %s5155 = scalar_lea.vmem %s6, 16
      %v5156 = vld [vmem:[%s5155] sm:$0xf]
      %v5157 = vld [vmem:[%s5155 + $0x4] sm:$0xf]
      %v5160 = vunpack.c.l.b16 %v5156
      %v5161 = vunpack.c.l.b16 %v5157
      %v5162 = vpack.c.b16 %v5161, %v5160
      %v5165 = vsel %vm471, %v5139, 0
      %v5168 = vsel %vm471, %v5140, 0
      %v5171 = vsel %vm471, %v5141, 0
      %v5174 = vsel %vm471, %v5142, 0
      %v5177 = vsel %vm471, %v5143, 0
      %v5180 = vsel %vm471, %v5144, 0
      %v5183 = vsel %vm471, %v5145, 0
      %v5186 = vsel %vm471, %v5146, 0
      %v5189 = vsel %vm471, %v5147, 0
      %v5192 = vsel %vm471, %v5148, 0
      %v5195 = vsel %vm471, %v5149, 0
      %v5198 = vsel %vm471, %v5150, 0
      %v5201 = vsel %vm471, %v5151, 0
      %v5204 = vsel %vm471, %v5152, 0
      %v5207 = vsel %vm471, %v5153, 0
      %v5210 = vsel %vm471, %v5154, 0
      %5212 = vmatprep.subr.bf16.mxu0 0
      %5213 = vmatpush1.bf16.msra.mxu0 %v5162
      %5214 = vmatprep.subr.bf16.mxu0 0
      %5215 = vmatpush1.bf16.msra.mxu0 0
      %5216 = vmatprep.subr.bf16.mxu0 0
      %5217 = vmatpush1.bf16.msra.mxu0 0
      %5218 = vmatprep.subr.bf16.mxu0 0
      %5219 = vmatpush1.bf16.msra.mxu0 0
      %5220 = vmatprep.subr.bf16.mxu0 0
      %5221 = vmatpush1.bf16.msra.mxu0 0
      %5222 = vmatprep.subr.bf16.mxu0 0
      %5223 = vmatpush1.bf16.msra.mxu0 0
      %5224 = vmatprep.subr.bf16.mxu0 0
      %5225 = vmatpush1.bf16.msra.mxu0 0
      %5226 = vmatprep.subr.bf16.mxu0 0
      %5227 = vmatpush1.bf16.msra.mxu0 0
      %5228 = vmatprep.subr.bf16.mxu0 0
      %5229 = vmatpush1.bf16.msra.mxu0 0
      %5230 = vmatprep.subr.bf16.mxu0 0
      %5231 = vmatpush1.bf16.msra.mxu0 0
      %5232 = vmatprep.subr.bf16.mxu0 0
      %5233 = vmatpush1.bf16.msra.mxu0 0
      %5234 = vmatprep.subr.bf16.mxu0 0
      %5235 = vmatpush1.bf16.msra.mxu0 0
      %5236 = vmatprep.subr.bf16.mxu0 0
      %5237 = vmatpush1.bf16.msra.mxu0 0
      %5238 = vmatprep.subr.bf16.mxu0 0
      %5239 = vmatpush1.bf16.msra.mxu0 0
      %5240 = vmatprep.subr.bf16.mxu0 0
      %5241 = vmatpush1.bf16.msra.mxu0 0
      %5242 = vmatprep.subr.bf16.mxu0 0
      %5243 = vmatpush1.bf16.msra.mxu0 0
      %5244 = vmatprep.mubr.bf16.mxu0 0
      %5245 = vmatmul.mubr.bf16.gmra.mrb[0].mxu0 %v5165
      %v5246 = vpop.f32.mrb[0].mxu0
      %v5247 = vadd.f32 %v2893, %v5246
      %v5248 = vpop.f32.mrb[0].mxu0
      %v5249 = vpop.f32.mrb[0].mxu0
      %v5250 = vadd.f32 %v2897, %v5249
      %v5251 = vpop.f32.mrb[0].mxu0
      %5252 = vmatprep.mubr.bf16.mxu0 0
      %5253 = vmatmul.mubr.bf16.gmra.mrb[0].mxu0 %v5168
      %v5254 = vpop.f32.mrb[0].mxu0
      %v5255 = vadd.f32 %v2903, %v5254
      %v5256 = vpop.f32.mrb[0].mxu0
      %v5257 = vpop.f32.mrb[0].mxu0
      %v5258 = vadd.f32 %v2907, %v5257
      %v5259 = vpop.f32.mrb[0].mxu0
      %5260 = vmatprep.mubr.bf16.mxu0 0
      %5261 = vmatmul.mubr.bf16.gmra.mrb[0].mxu0 %v5171
      %v5262 = vpop.f32.mrb[0].mxu0
      %v5263 = vadd.f32 %v2913, %v5262
      %v5264 = vpop.f32.mrb[0].mxu0
      %v5265 = vpop.f32.mrb[0].mxu0
      %v5266 = vadd.f32 %v2917, %v5265
      %v5267 = vpop.f32.mrb[0].mxu0
      %5268 = vmatprep.mubr.bf16.mxu0 0
      %5269 = vmatmul.mubr.bf16.gmra.mrb[0].mxu0 %v5174
      %v5270 = vpop.f32.mrb[0].mxu0
      %v5271 = vadd.f32 %v2923, %v5270
      %v5272 = vpop.f32.mrb[0].mxu0
      %v5273 = vpop.f32.mrb[0].mxu0
      %v5274 = vadd.f32 %v2927, %v5273
      %v5275 = vpop.f32.mrb[0].mxu0
      %5276 = vmatprep.mubr.bf16.mxu0 0
      %5277 = vmatmul.mubr.bf16.gmra.mrb[0].mxu0 %v5177
      %v5278 = vpop.f32.mrb[0].mxu0
      %v5279 = vadd.f32 %v2933, %v5278
      %v5280 = vpop.f32.mrb[0].mxu0
      %v5281 = vpop.f32.mrb[0].mxu0
      %v5282 = vadd.f32 %v2937, %v5281
      %v5283 = vpop.f32.mrb[0].mxu0
      %5284 = vmatprep.mubr.bf16.mxu0 0
      %5285 = vmatmul.mubr.bf16.gmra.mrb[0].mxu0 %v5180
      %v5286 = vpop.f32.mrb[0].mxu0
      %v5287 = vadd.f32 %v2943, %v5286
      %v5288 = vpop.f32.mrb[0].mxu0
      %v5289 = vpop.f32.mrb[0].mxu0
      %v5290 = vadd.f32 %v2947, %v5289
      %v5291 = vpop.f32.mrb[0].mxu0
      %5292 = vmatprep.mubr.bf16.mxu0 0
      %5293 = vmatmul.mubr.bf16.gmra.mrb[0].mxu0 %v5183
      %v5294 = vpop.f32.mrb[0].mxu0
      %v5295 = vadd.f32 %v2953, %v5294
      %v5296 = vpop.f32.mrb[0].mxu0
      %v5297 = vpop.f32.mrb[0].mxu0
      %v5298 = vadd.f32 %v2957, %v5297
      %v5299 = vpop.f32.mrb[0].mxu0
      %5300 = vmatprep.mubr.bf16.mxu0 0
      %5301 = vmatmul.mubr.bf16.gmra.mrb[0].mxu0 %v5186
      %v5302 = vpop.f32.mrb[0].mxu0
      %v5303 = vadd.f32 %v2963, %v5302
      %v5304 = vpop.f32.mrb[0].mxu0
      %v5305 = vpop.f32.mrb[0].mxu0
      %v5306 = vadd.f32 %v2967, %v5305
      %v5307 = vpop.f32.mrb[0].mxu0
      %5308 = vmatprep.mubr.bf16.mxu0 0
      %5309 = vmatmul.mubr.bf16.gmra.mrb[0].mxu0 %v5189
      %v5310 = vpop.f32.mrb[0].mxu0
      %v5311 = vadd.f32 %v2973, %v5310
      %v5312 = vpop.f32.mrb[0].mxu0
      %v5313 = vpop.f32.mrb[0].mxu0
      %v5314 = vadd.f32 %v2977, %v5313
      %v5315 = vpop.f32.mrb[0].mxu0
      %5316 = vmatprep.mubr.bf16.mxu0 0
      %5317 = vmatmul.mubr.bf16.gmra.mrb[0].mxu0 %v5192
      %v5318 = vpop.f32.mrb[0].mxu0
      %v5319 = vadd.f32 %v2983, %v5318
      %v5320 = vpop.f32.mrb[0].mxu0
      %v5321 = vpop.f32.mrb[0].mxu0
      %v5322 = vadd.f32 %v2987, %v5321
      %v5323 = vpop.f32.mrb[0].mxu0
      %5324 = vmatprep.mubr.bf16.mxu0 0
      %5325 = vmatmul.mubr.bf16.gmra.mrb[0].mxu0 %v5195
      %v5326 = vpop.f32.mrb[0].mxu0
      %v5327 = vadd.f32 %v2993, %v5326
      %v5328 = vpop.f32.mrb[0].mxu0
      %v5329 = vpop.f32.mrb[0].mxu0
      %v5330 = vadd.f32 %v2997, %v5329
      %v5331 = vpop.f32.mrb[0].mxu0
      %5332 = vmatprep.mubr.bf16.mxu0 0
      %5333 = vmatmul.mubr.bf16.gmra.mrb[0].mxu0 %v5198
      %v5334 = vpop.f32.mrb[0].mxu0
      %v5335 = vadd.f32 %v3003, %v5334
      %v5336 = vpop.f32.mrb[0].mxu0
      %v5337 = vpop.f32.mrb[0].mxu0
      %v5338 = vadd.f32 %v3007, %v5337
      %v5339 = vpop.f32.mrb[0].mxu0
      %5340 = vmatprep.mubr.bf16.mxu0 0
      %5341 = vmatmul.mubr.bf16.gmra.mrb[0].mxu0 %v5201
      %v5342 = vpop.f32.mrb[0].mxu0
      %v5343 = vadd.f32 %v3013, %v5342
      %v5344 = vpop.f32.mrb[0].mxu0
      %v5345 = vpop.f32.mrb[0].mxu0
      %v5346 = vadd.f32 %v3017, %v5345
      %v5347 = vpop.f32.mrb[0].mxu0
      %5348 = vmatprep.mubr.bf16.mxu0 0
      %5349 = vmatmul.mubr.bf16.gmra.mrb[0].mxu0 %v5204
      %v5350 = vpop.f32.mrb[0].mxu0
      %v5351 = vadd.f32 %v3023, %v5350
      %v5352 = vpop.f32.mrb[0].mxu0
      %v5353 = vpop.f32.mrb[0].mxu0
      %v5354 = vadd.f32 %v3027, %v5353
      %v5355 = vpop.f32.mrb[0].mxu0
      %5356 = vmatprep.mubr.bf16.mxu0 0
      %5357 = vmatmul.mubr.bf16.gmra.mrb[0].mxu0 %v5207
      %v5358 = vpop.f32.mrb[0].mxu0
      %v5359 = vadd.f32 %v3033, %v5358
      %v5360 = vpop.f32.mrb[0].mxu0
      %v5361 = vpop.f32.mrb[0].mxu0
      %v5362 = vadd.f32 %v3037, %v5361
      %v5363 = vpop.f32.mrb[0].mxu0
      %5364 = vmatprep.mubr.bf16.mxu0 0
      %5365 = vmatmul.mubr.bf16.gmra.mrb[0].mxu0 %v5210
      %v5366 = vpop.f32.mrb[0].mxu0
      %v5367 = vadd.f32 %v3043, %v5366
      %v5368 = vpop.f32.mrb[0].mxu0
      %v5369 = vpop.f32.mrb[0].mxu0
      %v5370 = vadd.f32 %v3047, %v5369
      %v5371 = vpop.f32.mrb[0].mxu0
      %5372 = vdwg.mxu0
      %s5373 = scalar_lea.vmem %s8, 2
      %v5374 = vld [vmem:[%s5373] sm:$0x1]
      %v5376 = vlaneseq
      %v5377 = vshrl.u32 %v5376, 7
      %v5378 = vsub.s32 0, %v5377
      %v5379 = vrot.slane %v5374, %v5378
      %v5381 = vadd.f32 %v5247, %v5379
      %v5382 = vadd.f32 %v5250, %v5379
      %v5383 = vadd.f32 %v5255, %v5379
      %v5384 = vadd.f32 %v5258, %v5379
      %v5385 = vadd.f32 %v5263, %v5379
      %v5386 = vadd.f32 %v5266, %v5379
      %v5387 = vadd.f32 %v5271, %v5379
      %v5388 = vadd.f32 %v5274, %v5379
      %v5389 = vadd.f32 %v5279, %v5379
      %v5390 = vadd.f32 %v5282, %v5379
      %v5391 = vadd.f32 %v5287, %v5379
      %v5392 = vadd.f32 %v5290, %v5379
      %v5393 = vadd.f32 %v5295, %v5379
      %v5394 = vadd.f32 %v5298, %v5379
      %v5395 = vadd.f32 %v5303, %v5379
      %v5396 = vadd.f32 %v5306, %v5379
      %v5397 = vadd.f32 %v5311, %v5379
      %v5398 = vadd.f32 %v5314, %v5379
      %v5399 = vadd.f32 %v5319, %v5379
      %v5400 = vadd.f32 %v5322, %v5379
      %v5401 = vadd.f32 %v5327, %v5379
      %v5402 = vadd.f32 %v5330, %v5379
      %v5403 = vadd.f32 %v5335, %v5379
      %v5404 = vadd.f32 %v5338, %v5379
      %v5405 = vadd.f32 %v5343, %v5379
      %v5406 = vadd.f32 %v5346, %v5379
      %v5407 = vadd.f32 %v5351, %v5379
      %v5408 = vadd.f32 %v5354, %v5379
      %v5409 = vadd.f32 %v5359, %v5379
      %v5410 = vadd.f32 %v5362, %v5379
      %v5411 = vadd.f32 %v5367, %v5379
      %v5412 = vadd.f32 %v5370, %v5379
      %v5413 = vtanh.pop %v5381
      %v5414 = vtanh.pop %v5382
      %v5415 = vtanh.pop %v5383
      %v5416 = vtanh.pop %v5384
      %v5417 = vtanh.pop %v5385
      %v5418 = vtanh.pop %v5386
      %v5419 = vtanh.pop %v5387
      %v5420 = vtanh.pop %v5388
      %v5421 = vtanh.pop %v5389
      %v5422 = vtanh.pop %v5390
      %v5423 = vtanh.pop %v5391
      %v5424 = vtanh.pop %v5392
      %v5425 = vtanh.pop %v5393
      %v5426 = vtanh.pop %v5394
      %v5427 = vtanh.pop %v5395
      %v5428 = vtanh.pop %v5396
      %v5429 = vtanh.pop %v5397
      %v5430 = vtanh.pop %v5398
      %v5431 = vtanh.pop %v5399
      %v5432 = vtanh.pop %v5400
      %v5433 = vtanh.pop %v5401
      %v5434 = vtanh.pop %v5402
      %v5435 = vtanh.pop %v5403
      %v5436 = vtanh.pop %v5404
      %v5437 = vtanh.pop %v5405
      %v5438 = vtanh.pop %v5406
      %v5439 = vtanh.pop %v5407
      %v5440 = vtanh.pop %v5408
      %v5441 = vtanh.pop %v5409
      %v5442 = vtanh.pop %v5410
      %v5443 = vtanh.pop %v5411
      %v5444 = vtanh.pop %v5412
      %v5445 = vpack.c.bf16 %v5414, %v5413
      %v5446 = vpack.c.bf16 %v5416, %v5415
      %v5447 = vpack.c.bf16 %v5418, %v5417
      %v5448 = vpack.c.bf16 %v5420, %v5419
      %v5449 = vpack.c.bf16 %v5422, %v5421
      %v5450 = vpack.c.bf16 %v5424, %v5423
      %v5451 = vpack.c.bf16 %v5426, %v5425
      %v5452 = vpack.c.bf16 %v5428, %v5427
      %v5453 = vpack.c.bf16 %v5430, %v5429
      %v5454 = vpack.c.bf16 %v5432, %v5431
      %v5455 = vpack.c.bf16 %v5434, %v5433
      %v5456 = vpack.c.bf16 %v5436, %v5435
      %v5457 = vpack.c.bf16 %v5438, %v5437
      %v5458 = vpack.c.bf16 %v5440, %v5439
      %v5459 = vpack.c.bf16 %v5442, %v5441
      %v5460 = vpack.c.bf16 %v5444, %v5443
      %s5461 = scalar_lea.vmem %s9, 128
      %v5462 = vld [vmem:[%s5461] sm:$0xf]
      %v5463 = vld [vmem:[%s5461 + $0x4] sm:$0xf]
      %v5464 = vld [vmem:[%s5461 + $0x8] sm:$0xf]
      %v5465 = vld [vmem:[%s5461 + $0xc] sm:$0xf]
      %v5466 = vld [vmem:[%s5461 + $0x10] sm:$0xf]
      %v5467 = vld [vmem:[%s5461 + $0x14] sm:$0xf]
      %v5468 = vld [vmem:[%s5461 + $0x18] sm:$0xf]
      %v5469 = vld [vmem:[%s5461 + $0x1c] sm:$0xf]
      %v5470 = vld [vmem:[%s5461 + $0x20] sm:$0xf]
      %v5471 = vld [vmem:[%s5461 + $0x24] sm:$0xf]
      %v5472 = vld [vmem:[%s5461 + $0x28] sm:$0xf]
      %v5473 = vld [vmem:[%s5461 + $0x2c] sm:$0xf]
      %v5474 = vld [vmem:[%s5461 + $0x30] sm:$0xf]
      %v5475 = vld [vmem:[%s5461 + $0x34] sm:$0xf]
      %v5476 = vld [vmem:[%s5461 + $0x38] sm:$0xf]
      %v5477 = vld [vmem:[%s5461 + $0x3c] sm:$0xf]
      %s5478 = scalar_lea.vmem %s10, 2
      %v5479 = vld [vmem:[%s5478] sm:$0x1]
      %v5481 = vlaneseq
      %v5482 = vshrl.u32 %v5481, 7
      %v5483 = vsub.s32 0, %v5482
      %v5484 = vrot.slane %v5479, %v5483
      %v5502 = vunpack.c.l.b16 %v5462
      %v5503 = vunpack.c.l.b16 %v5463
      %v5504 = vunpack.c.l.b16 %v5464
      %v5505 = vunpack.c.l.b16 %v5465
      %v5506 = vunpack.c.l.b16 %v5466
      %v5507 = vunpack.c.l.b16 %v5467
      %v5508 = vunpack.c.l.b16 %v5468
      %v5509 = vunpack.c.l.b16 %v5469
      %v5510 = vunpack.c.l.b16 %v5470
      %v5511 = vunpack.c.l.b16 %v5471
      %v5512 = vunpack.c.l.b16 %v5472
      %v5513 = vunpack.c.l.b16 %v5473
      %v5514 = vunpack.c.l.b16 %v5474
      %v5515 = vunpack.c.l.b16 %v5475
      %v5516 = vunpack.c.l.b16 %v5476
      %v5517 = vunpack.c.l.b16 %v5477
      %v5518 = vpack.c.b16 %v5503, %v5502
      %v5519 = vpack.c.b16 %v5505, %v5504
      %v5520 = vpack.c.b16 %v5507, %v5506
      %v5521 = vpack.c.b16 %v5509, %v5508
      %v5522 = vpack.c.b16 %v5511, %v5510
      %v5523 = vpack.c.b16 %v5513, %v5512
      %v5524 = vpack.c.b16 %v5515, %v5514
      %v5525 = vpack.c.b16 %v5517, %v5516
      %5534 = vmatprep.subr.bf16.mxu0 0
      %5535 = vmatpush1.bf16.msra.mxu0 %v5518
      %5536 = vmatprep.subr.bf16.mxu0 0
      %5537 = vmatpush1.bf16.msra.mxu0 %v5519
      %5538 = vmatprep.subr.bf16.mxu0 0
      %5539 = vmatpush1.bf16.msra.mxu0 %v5520
      %5540 = vmatprep.subr.bf16.mxu0 0
      %5541 = vmatpush1.bf16.msra.mxu0 %v5521
      %5542 = vmatprep.subr.bf16.mxu0 0
      %5543 = vmatpush1.bf16.msra.mxu0 %v5522
      %5544 = vmatprep.subr.bf16.mxu0 0
      %5545 = vmatpush1.bf16.msra.mxu0 %v5523
      %5546 = vmatprep.subr.bf16.mxu0 0
      %5547 = vmatpush1.bf16.msra.mxu0 %v5524
      %5548 = vmatprep.subr.bf16.mxu0 0
      %5549 = vmatpush1.bf16.msra.mxu0 %v5525
      %5550 = vmatprep.subr.bf16.mxu0 0
      %5551 = vmatpush1.bf16.msra.mxu0 0
      %5552 = vmatprep.subr.bf16.mxu0 0
      %5553 = vmatpush1.bf16.msra.mxu0 0
      %5554 = vmatprep.subr.bf16.mxu0 0
      %5555 = vmatpush1.bf16.msra.mxu0 0
      %5556 = vmatprep.subr.bf16.mxu0 0
      %5557 = vmatpush1.bf16.msra.mxu0 0
      %5558 = vmatprep.subr.bf16.mxu0 0
      %5559 = vmatpush1.bf16.msra.mxu0 0
      %5560 = vmatprep.subr.bf16.mxu0 0
      %5561 = vmatpush1.bf16.msra.mxu0 0
      %5562 = vmatprep.subr.bf16.mxu0 0
      %5563 = vmatpush1.bf16.msra.mxu0 0
      %5564 = vmatprep.subr.bf16.mxu0 0
      %5565 = vmatpush1.bf16.msra.mxu0 0
      %5566 = vmatprep.mubr.bf16.mxu0 0
      %5567 = vmatmul.mubr.bf16.gmra.mrb[0].mxu0 %v5445
      %v5568 = vpop.f32.mrb[0].mxu0
      %v5569 = vadd.f32 %v5484, %v5568
      %v5570 = vpop.f32.mrb[0].mxu0
      %v5571 = vpop.f32.mrb[0].mxu0
      %v5572 = vadd.f32 %v5484, %v5571
      %v5573 = vpop.f32.mrb[0].mxu0
      %5574 = vmatprep.mubr.bf16.mxu0 0
      %5575 = vmatmul.mubr.bf16.gmra.mrb[0].mxu0 %v5446
      %v5576 = vpop.f32.mrb[0].mxu0
      %v5577 = vadd.f32 %v5484, %v5576
      %v5578 = vpop.f32.mrb[0].mxu0
      %v5579 = vpop.f32.mrb[0].mxu0
      %v5580 = vadd.f32 %v5484, %v5579
      %v5581 = vpop.f32.mrb[0].mxu0
      %5582 = vmatprep.mubr.bf16.mxu0 0
      %5583 = vmatmul.mubr.bf16.gmra.mrb[0].mxu0 %v5447
      %v5584 = vpop.f32.mrb[0].mxu0
      %v5585 = vadd.f32 %v5484, %v5584
      %v5586 = vpop.f32.mrb[0].mxu0
      %v5587 = vpop.f32.mrb[0].mxu0
      %v5588 = vadd.f32 %v5484, %v5587
      %v5589 = vpop.f32.mrb[0].mxu0
      %5590 = vmatprep.mubr.bf16.mxu0 0
      %5591 = vmatmul.mubr.bf16.gmra.mrb[0].mxu0 %v5448
      %v5592 = vpop.f32.mrb[0].mxu0
      %v5593 = vadd.f32 %v5484, %v5592
      %v5594 = vpop.f32.mrb[0].mxu0
      %v5595 = vpop.f32.mrb[0].mxu0
      %v5596 = vadd.f32 %v5484, %v5595
      %v5597 = vpop.f32.mrb[0].mxu0
      %5598 = vmatprep.mubr.bf16.mxu0 0
      %5599 = vmatmul.mubr.bf16.gmra.mrb[0].mxu0 %v5449
      %v5600 = vpop.f32.mrb[0].mxu0
      %v5601 = vadd.f32 %v5484, %v5600
      %v5602 = vpop.f32.mrb[0].mxu0
      %v5603 = vpop.f32.mrb[0].mxu0
      %v5604 = vadd.f32 %v5484, %v5603
      %v5605 = vpop.f32.mrb[0].mxu0
      %5606 = vmatprep.mubr.bf16.mxu0 0
      %5607 = vmatmul.mubr.bf16.gmra.mrb[0].mxu0 %v5450
      %v5608 = vpop.f32.mrb[0].mxu0
      %v5609 = vadd.f32 %v5484, %v5608
      %v5610 = vpop.f32.mrb[0].mxu0
      %v5611 = vpop.f32.mrb[0].mxu0
      %v5612 = vadd.f32 %v5484, %v5611
      %v5613 = vpop.f32.mrb[0].mxu0
      %5614 = vmatprep.mubr.bf16.mxu0 0
      %5615 = vmatmul.mubr.bf16.gmra.mrb[0].mxu0 %v5451
      %v5616 = vpop.f32.mrb[0].mxu0
      %v5617 = vadd.f32 %v5484, %v5616
      %v5618 = vpop.f32.mrb[0].mxu0
      %v5619 = vpop.f32.mrb[0].mxu0
      %v5620 = vadd.f32 %v5484, %v5619
      %v5621 = vpop.f32.mrb[0].mxu0
      %5622 = vmatprep.mubr.bf16.mxu0 0
      %5623 = vmatmul.mubr.bf16.gmra.mrb[0].mxu0 %v5452
      %v5624 = vpop.f32.mrb[0].mxu0
      %v5625 = vadd.f32 %v5484, %v5624
      %v5626 = vpop.f32.mrb[0].mxu0
      %v5627 = vpop.f32.mrb[0].mxu0
      %v5628 = vadd.f32 %v5484, %v5627
      %v5629 = vpop.f32.mrb[0].mxu0
      %5630 = vmatprep.mubr.bf16.mxu0 0
      %5631 = vmatmul.mubr.bf16.gmra.mrb[0].mxu0 %v5453
      %v5632 = vpop.f32.mrb[0].mxu0
      %v5633 = vadd.f32 %v5484, %v5632
      %v5634 = vpop.f32.mrb[0].mxu0
      %v5635 = vpop.f32.mrb[0].mxu0
      %v5636 = vadd.f32 %v5484, %v5635
      %v5637 = vpop.f32.mrb[0].mxu0
      %5638 = vmatprep.mubr.bf16.mxu0 0
      %5639 = vmatmul.mubr.bf16.gmra.mrb[0].mxu0 %v5454
      %v5640 = vpop.f32.mrb[0].mxu0
      %v5641 = vadd.f32 %v5484, %v5640
      %v5642 = vpop.f32.mrb[0].mxu0
      %v5643 = vpop.f32.mrb[0].mxu0
      %v5644 = vadd.f32 %v5484, %v5643
      %v5645 = vpop.f32.mrb[0].mxu0
      %5646 = vmatprep.mubr.bf16.mxu0 0
      %5647 = vmatmul.mubr.bf16.gmra.mrb[0].mxu0 %v5455
      %v5648 = vpop.f32.mrb[0].mxu0
      %v5649 = vadd.f32 %v5484, %v5648
      %v5650 = vpop.f32.mrb[0].mxu0
      %v5651 = vpop.f32.mrb[0].mxu0
      %v5652 = vadd.f32 %v5484, %v5651
      %v5653 = vpop.f32.mrb[0].mxu0
      %5654 = vmatprep.mubr.bf16.mxu0 0
      %5655 = vmatmul.mubr.bf16.gmra.mrb[0].mxu0 %v5456
      %v5656 = vpop.f32.mrb[0].mxu0
      %v5657 = vadd.f32 %v5484, %v5656
      %v5658 = vpop.f32.mrb[0].mxu0
      %v5659 = vpop.f32.mrb[0].mxu0
      %v5660 = vadd.f32 %v5484, %v5659
      %v5661 = vpop.f32.mrb[0].mxu0
      %5662 = vmatprep.mubr.bf16.mxu0 0
      %5663 = vmatmul.mubr.bf16.gmra.mrb[0].mxu0 %v5457
      %v5664 = vpop.f32.mrb[0].mxu0
      %v5665 = vadd.f32 %v5484, %v5664
      %v5666 = vpop.f32.mrb[0].mxu0
      %v5667 = vpop.f32.mrb[0].mxu0
      %v5668 = vadd.f32 %v5484, %v5667
      %v5669 = vpop.f32.mrb[0].mxu0
      %5670 = vmatprep.mubr.bf16.mxu0 0
      %5671 = vmatmul.mubr.bf16.gmra.mrb[0].mxu0 %v5458
      %v5672 = vpop.f32.mrb[0].mxu0
      %v5673 = vadd.f32 %v5484, %v5672
      %v5674 = vpop.f32.mrb[0].mxu0
      %v5675 = vpop.f32.mrb[0].mxu0
      %v5676 = vadd.f32 %v5484, %v5675
      %v5677 = vpop.f32.mrb[0].mxu0
      %5678 = vmatprep.mubr.bf16.mxu0 0
      %5679 = vmatmul.mubr.bf16.gmra.mrb[0].mxu0 %v5459
      %v5680 = vpop.f32.mrb[0].mxu0
      %v5681 = vadd.f32 %v5484, %v5680
      %v5682 = vpop.f32.mrb[0].mxu0
      %v5683 = vpop.f32.mrb[0].mxu0
      %v5684 = vadd.f32 %v5484, %v5683
      %v5685 = vpop.f32.mrb[0].mxu0
      %5686 = vmatprep.mubr.bf16.mxu0 0
      %5687 = vmatmul.mubr.bf16.gmra.mrb[0].mxu0 %v5460
      %v5688 = vpop.f32.mrb[0].mxu0
      %v5689 = vadd.f32 %v5484, %v5688
      %v5690 = vpop.f32.mrb[0].mxu0
      %v5691 = vpop.f32.mrb[0].mxu0
      %v5692 = vadd.f32 %v5484, %v5691
      %v5693 = vpop.f32.mrb[0].mxu0
      %5694 = vdwg.mxu0
      %v5695 = vmul.f32 %v5569, %v5105
      %v5696 = vmul.f32 %v5572, %v5105
      %v5697 = vmul.f32 %v5577, %v5105
      %v5698 = vmul.f32 %v5580, %v5105
      %v5699 = vmul.f32 %v5585, %v5105
      %v5700 = vmul.f32 %v5588, %v5105
      %v5701 = vmul.f32 %v5593, %v5105
      %v5702 = vmul.f32 %v5596, %v5105
      %v5703 = vmul.f32 %v5601, %v5105
      %v5704 = vmul.f32 %v5604, %v5105
      %v5705 = vmul.f32 %v5609, %v5105
      %v5706 = vmul.f32 %v5612, %v5105
      %v5707 = vmul.f32 %v5617, %v5105
      %v5708 = vmul.f32 %v5620, %v5105
      %v5709 = vmul.f32 %v5625, %v5105
      %v5710 = vmul.f32 %v5628, %v5105
      %v5711 = vmul.f32 %v5633, %v5105
      %v5712 = vmul.f32 %v5636, %v5105
      %v5713 = vmul.f32 %v5641, %v5105
      %v5714 = vmul.f32 %v5644, %v5105
      %v5715 = vmul.f32 %v5649, %v5105
      %v5716 = vmul.f32 %v5652, %v5105
      %v5717 = vmul.f32 %v5657, %v5105
      %v5718 = vmul.f32 %v5660, %v5105
      %v5719 = vmul.f32 %v5665, %v5105
      %v5720 = vmul.f32 %v5668, %v5105
      %v5721 = vmul.f32 %v5673, %v5105
      %v5722 = vmul.f32 %v5676, %v5105
      %v5723 = vmul.f32 %v5681, %v5105
      %v5724 = vmul.f32 %v5684, %v5105
      %v5725 = vmul.f32 %v5689, %v5105
      %v5726 = vmul.f32 %v5692, %v5105
      %5727 = vrot.lane.b32.xlu0 %v5105, 16
      %v5728 = vpop.permute.xlu0 %5727
      %v5730 = vmul.f32 %v5569, %v5728
      %v5731 = vmul.f32 %v5572, %v5728
      %v5732 = vmul.f32 %v5577, %v5728
      %v5733 = vmul.f32 %v5580, %v5728
      %v5734 = vmul.f32 %v5585, %v5728
      %v5735 = vmul.f32 %v5588, %v5728
      %v5736 = vmul.f32 %v5593, %v5728
      %v5737 = vmul.f32 %v5596, %v5728
      %v5738 = vmul.f32 %v5601, %v5728
      %v5739 = vmul.f32 %v5604, %v5728
      %v5740 = vmul.f32 %v5609, %v5728
      %v5741 = vmul.f32 %v5612, %v5728
      %v5742 = vmul.f32 %v5617, %v5728
      %v5743 = vmul.f32 %v5620, %v5728
      %v5744 = vmul.f32 %v5625, %v5728
      %v5745 = vmul.f32 %v5628, %v5728
      %v5746 = vmul.f32 %v5633, %v5728
      %v5747 = vmul.f32 %v5636, %v5728
      %v5748 = vmul.f32 %v5641, %v5728
      %v5749 = vmul.f32 %v5644, %v5728
      %v5750 = vmul.f32 %v5649, %v5728
      %v5751 = vmul.f32 %v5652, %v5728
      %v5752 = vmul.f32 %v5657, %v5728
      %v5753 = vmul.f32 %v5660, %v5728
      %v5754 = vmul.f32 %v5665, %v5728
      %v5755 = vmul.f32 %v5668, %v5728
      %v5756 = vmul.f32 %v5673, %v5728
      %v5757 = vmul.f32 %v5676, %v5728
      %v5758 = vmul.f32 %v5681, %v5728
      %v5759 = vmul.f32 %v5684, %v5728
      %v5760 = vmul.f32 %v5689, %v5728
      %v5761 = vmul.f32 %v5692, %v5728
      %v5762 = vmul.f32 %v5695, 1.442695
      %v5763 = vpow.pop %v5762
      %v5764 = vmul.f32 %v5696, 1.442695
      %v5765 = vpow.pop %v5764
      %v5766 = vmul.f32 %v5697, 1.442695
      %v5767 = vpow.pop %v5766
      %v5768 = vmul.f32 %v5698, 1.442695
      %v5769 = vpow.pop %v5768
      %v5770 = vmul.f32 %v5699, 1.442695
      %v5771 = vpow.pop %v5770
      %v5772 = vmul.f32 %v5700, 1.442695
      %v5773 = vpow.pop %v5772
      %v5774 = vmul.f32 %v5701, 1.442695
      %v5775 = vpow.pop %v5774
      %v5776 = vmul.f32 %v5702, 1.442695
      %v5777 = vpow.pop %v5776
      %v5778 = vmul.f32 %v5703, 1.442695
      %v5779 = vpow.pop %v5778
      %v5780 = vmul.f32 %v5704, 1.442695
      %v5781 = vpow.pop %v5780
      %v5782 = vmul.f32 %v5705, 1.442695
      %v5783 = vpow.pop %v5782
      %v5784 = vmul.f32 %v5706, 1.442695
      %v5785 = vpow.pop %v5784
      %v5786 = vmul.f32 %v5707, 1.442695
      %v5787 = vpow.pop %v5786
      %v5788 = vmul.f32 %v5708, 1.442695
      %v5789 = vpow.pop %v5788
      %v5790 = vmul.f32 %v5709, 1.442695
      %v5791 = vpow.pop %v5790
      %v5792 = vmul.f32 %v5710, 1.442695
      %v5793 = vpow.pop %v5792
      %v5794 = vmul.f32 %v5711, 1.442695
      %v5795 = vpow.pop %v5794
      %v5796 = vmul.f32 %v5712, 1.442695
      %v5797 = vpow.pop %v5796
      %v5798 = vmul.f32 %v5713, 1.442695
      %v5799 = vpow.pop %v5798
      %v5800 = vmul.f32 %v5714, 1.442695
      %v5801 = vpow.pop %v5800
      %v5802 = vmul.f32 %v5715, 1.442695
      %v5803 = vpow.pop %v5802
      %v5804 = vmul.f32 %v5716, 1.442695
      %v5805 = vpow.pop %v5804
      %v5806 = vmul.f32 %v5717, 1.442695
      %v5807 = vpow.pop %v5806
      %v5808 = vmul.f32 %v5718, 1.442695
      %v5809 = vpow.pop %v5808
      %v5810 = vmul.f32 %v5719, 1.442695
      %v5811 = vpow.pop %v5810
      %v5812 = vmul.f32 %v5720, 1.442695
      %v5813 = vpow.pop %v5812
      %v5814 = vmul.f32 %v5721, 1.442695
      %v5815 = vpow.pop %v5814
      %v5816 = vmul.f32 %v5722, 1.442695
      %v5817 = vpow.pop %v5816
      %v5818 = vmul.f32 %v5723, 1.442695
      %v5819 = vpow.pop %v5818
      %v5820 = vmul.f32 %v5724, 1.442695
      %v5821 = vpow.pop %v5820
      %v5822 = vmul.f32 %v5725, 1.442695
      %v5823 = vpow.pop %v5822
      %v5824 = vmul.f32 %v5726, 1.442695
      %v5825 = vpow.pop %v5824
      %v5826 = vmul.f32 %v5027, %v5763
      %v5827 = vmul.f32 %v5028, %v5765
      %v5828 = vmul.f32 %v5029, %v5767
      %v5829 = vmul.f32 %v5030, %v5769
      %v5830 = vmul.f32 %v5031, %v5771
      %v5831 = vmul.f32 %v5032, %v5773
      %v5832 = vmul.f32 %v5033, %v5775
      %v5833 = vmul.f32 %v5034, %v5777
      %v5834 = vmul.f32 %v5035, %v5779
      %v5835 = vmul.f32 %v5036, %v5781
      %v5836 = vmul.f32 %v5037, %v5783
      %v5837 = vmul.f32 %v5038, %v5785
      %v5838 = vmul.f32 %v5039, %v5787
      %v5839 = vmul.f32 %v5040, %v5789
      %v5840 = vmul.f32 %v5041, %v5791
      %v5841 = vmul.f32 %v5042, %v5793
      %v5842 = vmul.f32 %v5043, %v5795
      %v5843 = vmul.f32 %v5044, %v5797
      %v5844 = vmul.f32 %v5045, %v5799
      %v5845 = vmul.f32 %v5046, %v5801
      %v5846 = vmul.f32 %v5047, %v5803
      %v5847 = vmul.f32 %v5048, %v5805
      %v5848 = vmul.f32 %v5049, %v5807
      %v5849 = vmul.f32 %v5050, %v5809
      %v5850 = vmul.f32 %v5051, %v5811
      %v5851 = vmul.f32 %v5052, %v5813
      %v5852 = vmul.f32 %v5053, %v5815
      %v5853 = vmul.f32 %v5054, %v5817
      %v5854 = vmul.f32 %v5055, %v5819
      %v5855 = vmul.f32 %v5056, %v5821
      %v5856 = vmul.f32 %v5057, %v5823
      %v5857 = vmul.f32 %v5058, %v5825
      %5890 = vrot.lane.b32.xlu0 %v5730, 112
      %v5891 = vpop.permute.xlu0 %5890
      %5892 = vrot.lane.b32.xlu0 %v5731, 112
      %v5893 = vpop.permute.xlu0 %5892
      %5894 = vrot.lane.b32.xlu0 %v5732, 112
      %v5895 = vpop.permute.xlu0 %5894
      %5896 = vrot.lane.b32.xlu0 %v5733, 112
      %v5897 = vpop.permute.xlu0 %5896
      %5898 = vrot.lane.b32.xlu0 %v5734, 112
      %v5899 = vpop.permute.xlu0 %5898
      %5900 = vrot.lane.b32.xlu0 %v5735, 112
      %v5901 = vpop.permute.xlu0 %5900
      %5902 = vrot.lane.b32.xlu0 %v5736, 112
      %v5903 = vpop.permute.xlu0 %5902
      %5904 = vrot.lane.b32.xlu0 %v5737, 112
      %v5905 = vpop.permute.xlu0 %5904
      %5906 = vrot.lane.b32.xlu0 %v5738, 112
      %v5907 = vpop.permute.xlu0 %5906
      %5908 = vrot.lane.b32.xlu0 %v5739, 112
      %v5909 = vpop.permute.xlu0 %5908
      %5910 = vrot.lane.b32.xlu0 %v5740, 112
      %v5911 = vpop.permute.xlu0 %5910
      %5912 = vrot.lane.b32.xlu0 %v5741, 112
      %v5913 = vpop.permute.xlu0 %5912
      %5914 = vrot.lane.b32.xlu0 %v5742, 112
      %v5915 = vpop.permute.xlu0 %5914
      %5916 = vrot.lane.b32.xlu0 %v5743, 112
      %v5917 = vpop.permute.xlu0 %5916
      %5918 = vrot.lane.b32.xlu0 %v5744, 112
      %v5919 = vpop.permute.xlu0 %5918
      %5920 = vrot.lane.b32.xlu0 %v5745, 112
      %v5921 = vpop.permute.xlu0 %5920
      %5922 = vrot.lane.b32.xlu0 %v5746, 112
      %v5923 = vpop.permute.xlu0 %5922
      %5924 = vrot.lane.b32.xlu0 %v5747, 112
      %v5925 = vpop.permute.xlu0 %5924
      %5926 = vrot.lane.b32.xlu0 %v5748, 112
      %v5927 = vpop.permute.xlu0 %5926
      %5928 = vrot.lane.b32.xlu0 %v5749, 112
      %v5929 = vpop.permute.xlu0 %5928
      %5930 = vrot.lane.b32.xlu0 %v5750, 112
      %v5931 = vpop.permute.xlu0 %5930
      %5932 = vrot.lane.b32.xlu0 %v5751, 112
      %v5933 = vpop.permute.xlu0 %5932
      %5934 = vrot.lane.b32.xlu0 %v5752, 112
      %v5935 = vpop.permute.xlu0 %5934
      %5936 = vrot.lane.b32.xlu0 %v5753, 112
      %v5937 = vpop.permute.xlu0 %5936
      %5938 = vrot.lane.b32.xlu0 %v5754, 112
      %v5939 = vpop.permute.xlu0 %5938
      %5940 = vrot.lane.b32.xlu0 %v5755, 112
      %v5941 = vpop.permute.xlu0 %5940
      %5942 = vrot.lane.b32.xlu0 %v5756, 112
      %v5943 = vpop.permute.xlu0 %5942
      %5944 = vrot.lane.b32.xlu0 %v5757, 112
      %v5945 = vpop.permute.xlu0 %5944
      %5946 = vrot.lane.b32.xlu0 %v5758, 112
      %v5947 = vpop.permute.xlu0 %5946
      %5948 = vrot.lane.b32.xlu0 %v5759, 112
      %v5949 = vpop.permute.xlu0 %5948
      %5950 = vrot.lane.b32.xlu0 %v5760, 112
      %v5951 = vpop.permute.xlu0 %5950
      %5952 = vrot.lane.b32.xlu0 %v5761, 112
      %v5953 = vpop.permute.xlu0 %5952
      %v5986 = vadd.f32 %v5826, %v5891
      %v5987 = vadd.f32 %v5827, %v5893
      %v5988 = vadd.f32 %v5828, %v5895
      %v5989 = vadd.f32 %v5829, %v5897
      %v5990 = vadd.f32 %v5830, %v5899
      %v5991 = vadd.f32 %v5831, %v5901
      %v5992 = vadd.f32 %v5832, %v5903
      %v5993 = vadd.f32 %v5833, %v5905
      %v5994 = vadd.f32 %v5834, %v5907
      %v5995 = vadd.f32 %v5835, %v5909
      %v5996 = vadd.f32 %v5836, %v5911
      %v5997 = vadd.f32 %v5837, %v5913
      %v5998 = vadd.f32 %v5838, %v5915
      %v5999 = vadd.f32 %v5839, %v5917
      %v6000 = vadd.f32 %v5840, %v5919
      %v6001 = vadd.f32 %v5841, %v5921
      %v6002 = vadd.f32 %v5842, %v5923
      %v6003 = vadd.f32 %v5843, %v5925
      %v6004 = vadd.f32 %v5844, %v5927
      %v6005 = vadd.f32 %v5845, %v5929
      %v6006 = vadd.f32 %v5846, %v5931
      %v6007 = vadd.f32 %v5847, %v5933
      %v6008 = vadd.f32 %v5848, %v5935
      %v6009 = vadd.f32 %v5849, %v5937
      %v6010 = vadd.f32 %v5850, %v5939
      %v6011 = vadd.f32 %v5851, %v5941
      %v6012 = vadd.f32 %v5852, %v5943
      %v6013 = vadd.f32 %v5853, %v5945
      %v6014 = vadd.f32 %v5854, %v5947
      %v6015 = vadd.f32 %v5855, %v5949
      %v6016 = vadd.f32 %v5856, %v5951
      %v6017 = vadd.f32 %v5857, %v5953
      %v6018 = vmul.f32 %v5105, %v5986
      %v6019 = vmul.f32 %v5105, %v5987
      %v6020 = vmul.f32 %v5105, %v5988
      %v6021 = vmul.f32 %v5105, %v5989
      %v6022 = vmul.f32 %v5105, %v5990
      %v6023 = vmul.f32 %v5105, %v5991
      %v6024 = vmul.f32 %v5105, %v5992
      %v6025 = vmul.f32 %v5105, %v5993
      %v6026 = vmul.f32 %v5105, %v5994
      %v6027 = vmul.f32 %v5105, %v5995
      %v6028 = vmul.f32 %v5105, %v5996
      %v6029 = vmul.f32 %v5105, %v5997
      %v6030 = vmul.f32 %v5105, %v5998
      %v6031 = vmul.f32 %v5105, %v5999
      %v6032 = vmul.f32 %v5105, %v6000
      %v6033 = vmul.f32 %v5105, %v6001
      %v6034 = vmul.f32 %v5105, %v6002
      %v6035 = vmul.f32 %v5105, %v6003
      %v6036 = vmul.f32 %v5105, %v6004
      %v6037 = vmul.f32 %v5105, %v6005
      %v6038 = vmul.f32 %v5105, %v6006
      %v6039 = vmul.f32 %v5105, %v6007
      %v6040 = vmul.f32 %v5105, %v6008
      %v6041 = vmul.f32 %v5105, %v6009
      %v6042 = vmul.f32 %v5105, %v6010
      %v6043 = vmul.f32 %v5105, %v6011
      %v6044 = vmul.f32 %v5105, %v6012
      %v6045 = vmul.f32 %v5105, %v6013
      %v6046 = vmul.f32 %v5105, %v6014
      %v6047 = vmul.f32 %v5105, %v6015
      %v6048 = vmul.f32 %v5105, %v6016
      %v6049 = vmul.f32 %v5105, %v6017
      %v6050 = vadd.f32 %v5107, %v6018
      %v6051 = vadd.f32 %v5108, %v6019
      %v6052 = vadd.f32 %v5109, %v6020
      %v6053 = vadd.f32 %v5110, %v6021
      %v6054 = vadd.f32 %v5111, %v6022
      %v6055 = vadd.f32 %v5112, %v6023
      %v6056 = vadd.f32 %v5113, %v6024
      %v6057 = vadd.f32 %v5114, %v6025
      %v6058 = vadd.f32 %v5115, %v6026
      %v6059 = vadd.f32 %v5116, %v6027
      %v6060 = vadd.f32 %v5117, %v6028
      %v6061 = vadd.f32 %v5118, %v6029
      %v6062 = vadd.f32 %v5119, %v6030
      %v6063 = vadd.f32 %v5120, %v6031
      %v6064 = vadd.f32 %v5121, %v6032
      %v6065 = vadd.f32 %v5122, %v6033
      %v6066 = vadd.f32 %v5123, %v6034
      %v6067 = vadd.f32 %v5124, %v6035
      %v6068 = vadd.f32 %v5125, %v6036
      %v6069 = vadd.f32 %v5126, %v6037
      %v6070 = vadd.f32 %v5127, %v6038
      %v6071 = vadd.f32 %v5128, %v6039
      %v6072 = vadd.f32 %v5129, %v6040
      %v6073 = vadd.f32 %v5130, %v6041
      %v6074 = vadd.f32 %v5131, %v6042
      %v6075 = vadd.f32 %v5132, %v6043
      %v6076 = vadd.f32 %v5133, %v6044
      %v6077 = vadd.f32 %v5134, %v6045
      %v6078 = vadd.f32 %v5135, %v6046
      %v6079 = vadd.f32 %v5136, %v6047
      %v6080 = vadd.f32 %v5137, %v6048
      %v6081 = vadd.f32 %v5138, %v6049
      %v6082 = vadd.f32 %v5059, %v5695
      %v6083 = vadd.f32 %v5060, %v5696
      %v6084 = vadd.f32 %v5061, %v5697
      %v6085 = vadd.f32 %v5062, %v5698
      %v6086 = vadd.f32 %v5063, %v5699
      %v6087 = vadd.f32 %v5064, %v5700
      %v6088 = vadd.f32 %v5065, %v5701
      %v6089 = vadd.f32 %v5066, %v5702
      %v6090 = vadd.f32 %v5067, %v5703
      %v6091 = vadd.f32 %v5068, %v5704
      %v6092 = vadd.f32 %v5069, %v5705
      %v6093 = vadd.f32 %v5070, %v5706
      %v6094 = vadd.f32 %v5071, %v5707
      %v6095 = vadd.f32 %v5072, %v5708
      %v6096 = vadd.f32 %v5073, %v5709
      %v6097 = vadd.f32 %v5074, %v5710
      %v6098 = vadd.f32 %v5075, %v5711
      %v6099 = vadd.f32 %v5076, %v5712
      %v6100 = vadd.f32 %v5077, %v5713
      %v6101 = vadd.f32 %v5078, %v5714
      %v6102 = vadd.f32 %v5079, %v5715
      %v6103 = vadd.f32 %v5080, %v5716
      %v6104 = vadd.f32 %v5081, %v5717
      %v6105 = vadd.f32 %v5082, %v5718
      %v6106 = vadd.f32 %v5083, %v5719
      %v6107 = vadd.f32 %v5084, %v5720
      %v6108 = vadd.f32 %v5085, %v5721
      %v6109 = vadd.f32 %v5086, %v5722
      %v6110 = vadd.f32 %v5087, %v5723
      %v6111 = vadd.f32 %v5088, %v5724
      %v6112 = vadd.f32 %v5089, %v5725
      %v6113 = vadd.f32 %v5090, %v5726
      %s6114 = scalar_lea.vmem %s4, 3
      %v6115 = vld [vmem:[%s6114] sm:$0x1]
      %v6117 = vlaneseq
      %v6118 = vshrl.u32 %v6117, 7
      %v6119 = vsub.s32 0, %v6118
      %v6120 = vrot.slane %v6115, %v6119
      %s6122 = scalar_lea.vmem %s5, 3
      %v6123 = vld [vmem:[%s6122] sm:$0x1]
      %v6125 = vlaneseq
      %v6126 = vshrl.u32 %v6125, 7
      %v6127 = vsub.s32 0, %v6126
      %v6128 = vrot.slane %v6123, %v6127
      %v6130 = vmul.f32 %v6050, %v6120
      %v6131 = vmul.f32 %v6051, %v6120
      %v6132 = vmul.f32 %v6052, %v6120
      %v6133 = vmul.f32 %v6053, %v6120
      %v6134 = vmul.f32 %v6054, %v6120
      %v6135 = vmul.f32 %v6055, %v6120
      %v6136 = vmul.f32 %v6056, %v6120
      %v6137 = vmul.f32 %v6057, %v6120
      %v6138 = vmul.f32 %v6058, %v6120
      %v6139 = vmul.f32 %v6059, %v6120
      %v6140 = vmul.f32 %v6060, %v6120
      %v6141 = vmul.f32 %v6061, %v6120
      %v6142 = vmul.f32 %v6062, %v6120
      %v6143 = vmul.f32 %v6063, %v6120
      %v6144 = vmul.f32 %v6064, %v6120
      %v6145 = vmul.f32 %v6065, %v6120
      %v6146 = vmul.f32 %v6066, %v6120
      %v6147 = vmul.f32 %v6067, %v6120
      %v6148 = vmul.f32 %v6068, %v6120
      %v6149 = vmul.f32 %v6069, %v6120
      %v6150 = vmul.f32 %v6070, %v6120
      %v6151 = vmul.f32 %v6071, %v6120
      %v6152 = vmul.f32 %v6072, %v6120
      %v6153 = vmul.f32 %v6073, %v6120
      %v6154 = vmul.f32 %v6074, %v6120
      %v6155 = vmul.f32 %v6075, %v6120
      %v6156 = vmul.f32 %v6076, %v6120
      %v6157 = vmul.f32 %v6077, %v6120
      %v6158 = vmul.f32 %v6078, %v6120
      %v6159 = vmul.f32 %v6079, %v6120
      %v6160 = vmul.f32 %v6080, %v6120
      %v6161 = vmul.f32 %v6081, %v6120
      %v6162 = vpack.c.bf16 %v6131, %v6130
      %v6163 = vpack.c.bf16 %v6133, %v6132
      %v6164 = vpack.c.bf16 %v6135, %v6134
      %v6165 = vpack.c.bf16 %v6137, %v6136
      %v6166 = vpack.c.bf16 %v6139, %v6138
      %v6167 = vpack.c.bf16 %v6141, %v6140
      %v6168 = vpack.c.bf16 %v6143, %v6142
      %v6169 = vpack.c.bf16 %v6145, %v6144
      %v6170 = vpack.c.bf16 %v6147, %v6146
      %v6171 = vpack.c.bf16 %v6149, %v6148
      %v6172 = vpack.c.bf16 %v6151, %v6150
      %v6173 = vpack.c.bf16 %v6153, %v6152
      %v6174 = vpack.c.bf16 %v6155, %v6154
      %v6175 = vpack.c.bf16 %v6157, %v6156
      %v6176 = vpack.c.bf16 %v6159, %v6158
      %v6177 = vpack.c.bf16 %v6161, %v6160
      %s6178 = scalar_lea.vmem %s6, 24
      %v6179 = vld [vmem:[%s6178] sm:$0xf]
      %v6180 = vld [vmem:[%s6178 + $0x4] sm:$0xf]
      %v6183 = vunpack.c.l.b16 %v6179
      %v6184 = vunpack.c.l.b16 %v6180
      %v6185 = vpack.c.b16 %v6184, %v6183
      %v6188 = vsel %vm471, %v6162, 0
      %v6191 = vsel %vm471, %v6163, 0
      %v6194 = vsel %vm471, %v6164, 0
      %v6197 = vsel %vm471, %v6165, 0
      %v6200 = vsel %vm471, %v6166, 0
      %v6203 = vsel %vm471, %v6167, 0
      %v6206 = vsel %vm471, %v6168, 0
      %v6209 = vsel %vm471, %v6169, 0
      %v6212 = vsel %vm471, %v6170, 0
      %v6215 = vsel %vm471, %v6171, 0
      %v6218 = vsel %vm471, %v6172, 0
      %v6221 = vsel %vm471, %v6173, 0
      %v6224 = vsel %vm471, %v6174, 0
      %v6227 = vsel %vm471, %v6175, 0
      %v6230 = vsel %vm471, %v6176, 0
      %v6233 = vsel %vm471, %v6177, 0
      %6235 = vmatprep.subr.bf16.mxu0 0
      %6236 = vmatpush1.bf16.msra.mxu0 %v6185
      %6237 = vmatprep.subr.bf16.mxu0 0
      %6238 = vmatpush1.bf16.msra.mxu0 0
      %6239 = vmatprep.subr.bf16.mxu0 0
      %6240 = vmatpush1.bf16.msra.mxu0 0
      %6241 = vmatprep.subr.bf16.mxu0 0
      %6242 = vmatpush1.bf16.msra.mxu0 0
      %6243 = vmatprep.subr.bf16.mxu0 0
      %6244 = vmatpush1.bf16.msra.mxu0 0
      %6245 = vmatprep.subr.bf16.mxu0 0
      %6246 = vmatpush1.bf16.msra.mxu0 0
      %6247 = vmatprep.subr.bf16.mxu0 0
      %6248 = vmatpush1.bf16.msra.mxu0 0
      %6249 = vmatprep.subr.bf16.mxu0 0
      %6250 = vmatpush1.bf16.msra.mxu0 0
      %6251 = vmatprep.subr.bf16.mxu0 0
      %6252 = vmatpush1.bf16.msra.mxu0 0
      %6253 = vmatprep.subr.bf16.mxu0 0
      %6254 = vmatpush1.bf16.msra.mxu0 0
      %6255 = vmatprep.subr.bf16.mxu0 0
      %6256 = vmatpush1.bf16.msra.mxu0 0
      %6257 = vmatprep.subr.bf16.mxu0 0
      %6258 = vmatpush1.bf16.msra.mxu0 0
      %6259 = vmatprep.subr.bf16.mxu0 0
      %6260 = vmatpush1.bf16.msra.mxu0 0
      %6261 = vmatprep.subr.bf16.mxu0 0
      %6262 = vmatpush1.bf16.msra.mxu0 0
      %6263 = vmatprep.subr.bf16.mxu0 0
      %6264 = vmatpush1.bf16.msra.mxu0 0
      %6265 = vmatprep.subr.bf16.mxu0 0
      %6266 = vmatpush1.bf16.msra.mxu0 0
      %6267 = vmatprep.mubr.bf16.mxu0 0
      %6268 = vmatmul.mubr.bf16.gmra.mrb[0].mxu0 %v6188
      %v6269 = vpop.f32.mrb[0].mxu0
      %v6270 = vadd.f32 %v2895, %v6269
      %v6271 = vpop.f32.mrb[0].mxu0
      %v6272 = vpop.f32.mrb[0].mxu0
      %v6273 = vadd.f32 %v2899, %v6272
      %v6274 = vpop.f32.mrb[0].mxu0
      %6275 = vmatprep.mubr.bf16.mxu0 0
      %6276 = vmatmul.mubr.bf16.gmra.mrb[0].mxu0 %v6191
      %v6277 = vpop.f32.mrb[0].mxu0
      %v6278 = vadd.f32 %v2905, %v6277
      %v6279 = vpop.f32.mrb[0].mxu0
      %v6280 = vpop.f32.mrb[0].mxu0
      %v6281 = vadd.f32 %v2909, %v6280
      %v6282 = vpop.f32.mrb[0].mxu0
      %6283 = vmatprep.mubr.bf16.mxu0 0
      %6284 = vmatmul.mubr.bf16.gmra.mrb[0].mxu0 %v6194
      %v6285 = vpop.f32.mrb[0].mxu0
      %v6286 = vadd.f32 %v2915, %v6285
      %v6287 = vpop.f32.mrb[0].mxu0
      %v6288 = vpop.f32.mrb[0].mxu0
      %v6289 = vadd.f32 %v2919, %v6288
      %v6290 = vpop.f32.mrb[0].mxu0
      %6291 = vmatprep.mubr.bf16.mxu0 0
      %6292 = vmatmul.mubr.bf16.gmra.mrb[0].mxu0 %v6197
      %v6293 = vpop.f32.mrb[0].mxu0
      %v6294 = vadd.f32 %v2925, %v6293
      %v6295 = vpop.f32.mrb[0].mxu0
      %v6296 = vpop.f32.mrb[0].mxu0
      %v6297 = vadd.f32 %v2929, %v6296
      %v6298 = vpop.f32.mrb[0].mxu0
      %6299 = vmatprep.mubr.bf16.mxu0 0
      %6300 = vmatmul.mubr.bf16.gmra.mrb[0].mxu0 %v6200
      %v6301 = vpop.f32.mrb[0].mxu0
      %v6302 = vadd.f32 %v2935, %v6301
      %v6303 = vpop.f32.mrb[0].mxu0
      %v6304 = vpop.f32.mrb[0].mxu0
      %v6305 = vadd.f32 %v2939, %v6304
      %v6306 = vpop.f32.mrb[0].mxu0
      %6307 = vmatprep.mubr.bf16.mxu0 0
      %6308 = vmatmul.mubr.bf16.gmra.mrb[0].mxu0 %v6203
      %v6309 = vpop.f32.mrb[0].mxu0
      %v6310 = vadd.f32 %v2945, %v6309
      %v6311 = vpop.f32.mrb[0].mxu0
      %v6312 = vpop.f32.mrb[0].mxu0
      %v6313 = vadd.f32 %v2949, %v6312
      %v6314 = vpop.f32.mrb[0].mxu0
      %6315 = vmatprep.mubr.bf16.mxu0 0
      %6316 = vmatmul.mubr.bf16.gmra.mrb[0].mxu0 %v6206
      %v6317 = vpop.f32.mrb[0].mxu0
      %v6318 = vadd.f32 %v2955, %v6317
      %v6319 = vpop.f32.mrb[0].mxu0
      %v6320 = vpop.f32.mrb[0].mxu0
      %v6321 = vadd.f32 %v2959, %v6320
      %v6322 = vpop.f32.mrb[0].mxu0
      %6323 = vmatprep.mubr.bf16.mxu0 0
      %6324 = vmatmul.mubr.bf16.gmra.mrb[0].mxu0 %v6209
      %v6325 = vpop.f32.mrb[0].mxu0
      %v6326 = vadd.f32 %v2965, %v6325
      %v6327 = vpop.f32.mrb[0].mxu0
      %v6328 = vpop.f32.mrb[0].mxu0
      %v6329 = vadd.f32 %v2969, %v6328
      %v6330 = vpop.f32.mrb[0].mxu0
      %6331 = vmatprep.mubr.bf16.mxu0 0
      %6332 = vmatmul.mubr.bf16.gmra.mrb[0].mxu0 %v6212
      %v6333 = vpop.f32.mrb[0].mxu0
      %v6334 = vadd.f32 %v2975, %v6333
      %v6335 = vpop.f32.mrb[0].mxu0
      %v6336 = vpop.f32.mrb[0].mxu0
      %v6337 = vadd.f32 %v2979, %v6336
      %v6338 = vpop.f32.mrb[0].mxu0
      %6339 = vmatprep.mubr.bf16.mxu0 0
      %6340 = vmatmul.mubr.bf16.gmra.mrb[0].mxu0 %v6215
      %v6341 = vpop.f32.mrb[0].mxu0
      %v6342 = vadd.f32 %v2985, %v6341
      %v6343 = vpop.f32.mrb[0].mxu0
      %v6344 = vpop.f32.mrb[0].mxu0
      %v6345 = vadd.f32 %v2989, %v6344
      %v6346 = vpop.f32.mrb[0].mxu0
      %6347 = vmatprep.mubr.bf16.mxu0 0
      %6348 = vmatmul.mubr.bf16.gmra.mrb[0].mxu0 %v6218
      %v6349 = vpop.f32.mrb[0].mxu0
      %v6350 = vadd.f32 %v2995, %v6349
      %v6351 = vpop.f32.mrb[0].mxu0
      %v6352 = vpop.f32.mrb[0].mxu0
      %v6353 = vadd.f32 %v2999, %v6352
      %v6354 = vpop.f32.mrb[0].mxu0
      %6355 = vmatprep.mubr.bf16.mxu0 0
      %6356 = vmatmul.mubr.bf16.gmra.mrb[0].mxu0 %v6221
      %v6357 = vpop.f32.mrb[0].mxu0
      %v6358 = vadd.f32 %v3005, %v6357
      %v6359 = vpop.f32.mrb[0].mxu0
      %v6360 = vpop.f32.mrb[0].mxu0
      %v6361 = vadd.f32 %v3009, %v6360
      %v6362 = vpop.f32.mrb[0].mxu0
      %6363 = vmatprep.mubr.bf16.mxu0 0
      %6364 = vmatmul.mubr.bf16.gmra.mrb[0].mxu0 %v6224
      %v6365 = vpop.f32.mrb[0].mxu0
      %v6366 = vadd.f32 %v3015, %v6365
      %v6367 = vpop.f32.mrb[0].mxu0
      %v6368 = vpop.f32.mrb[0].mxu0
      %v6369 = vadd.f32 %v3019, %v6368
      %v6370 = vpop.f32.mrb[0].mxu0
      %6371 = vmatprep.mubr.bf16.mxu0 0
      %6372 = vmatmul.mubr.bf16.gmra.mrb[0].mxu0 %v6227
      %v6373 = vpop.f32.mrb[0].mxu0
      %v6374 = vadd.f32 %v3025, %v6373
      %v6375 = vpop.f32.mrb[0].mxu0
      %v6376 = vpop.f32.mrb[0].mxu0
      %v6377 = vadd.f32 %v3029, %v6376
      %v6378 = vpop.f32.mrb[0].mxu0
      %6379 = vmatprep.mubr.bf16.mxu0 0
      %6380 = vmatmul.mubr.bf16.gmra.mrb[0].mxu0 %v6230
      %v6381 = vpop.f32.mrb[0].mxu0
      %v6382 = vadd.f32 %v3035, %v6381
      %v6383 = vpop.f32.mrb[0].mxu0
      %v6384 = vpop.f32.mrb[0].mxu0
      %v6385 = vadd.f32 %v3039, %v6384
      %v6386 = vpop.f32.mrb[0].mxu0
      %6387 = vmatprep.mubr.bf16.mxu0 0
      %6388 = vmatmul.mubr.bf16.gmra.mrb[0].mxu0 %v6233
      %v6389 = vpop.f32.mrb[0].mxu0
      %v6390 = vadd.f32 %v3045, %v6389
      %v6391 = vpop.f32.mrb[0].mxu0
      %v6392 = vpop.f32.mrb[0].mxu0
      %v6393 = vadd.f32 %v3049, %v6392
      %v6394 = vpop.f32.mrb[0].mxu0
      %6395 = vdwg.mxu0
      %s6396 = scalar_lea.vmem %s8, 3
      %v6397 = vld [vmem:[%s6396] sm:$0x1]
      %v6399 = vlaneseq
      %v6400 = vshrl.u32 %v6399, 7
      %v6401 = vsub.s32 0, %v6400
      %v6402 = vrot.slane %v6397, %v6401
      %v6404 = vadd.f32 %v6270, %v6402
      %v6405 = vadd.f32 %v6273, %v6402
      %v6406 = vadd.f32 %v6278, %v6402
      %v6407 = vadd.f32 %v6281, %v6402
      %v6408 = vadd.f32 %v6286, %v6402
      %v6409 = vadd.f32 %v6289, %v6402
      %v6410 = vadd.f32 %v6294, %v6402
      %v6411 = vadd.f32 %v6297, %v6402
      %v6412 = vadd.f32 %v6302, %v6402
      %v6413 = vadd.f32 %v6305, %v6402
      %v6414 = vadd.f32 %v6310, %v6402
      %v6415 = vadd.f32 %v6313, %v6402
      %v6416 = vadd.f32 %v6318, %v6402
      %v6417 = vadd.f32 %v6321, %v6402
      %v6418 = vadd.f32 %v6326, %v6402
      %v6419 = vadd.f32 %v6329, %v6402
      %v6420 = vadd.f32 %v6334, %v6402
      %v6421 = vadd.f32 %v6337, %v6402
      %v6422 = vadd.f32 %v6342, %v6402
      %v6423 = vadd.f32 %v6345, %v6402
      %v6424 = vadd.f32 %v6350, %v6402
      %v6425 = vadd.f32 %v6353, %v6402
      %v6426 = vadd.f32 %v6358, %v6402
      %v6427 = vadd.f32 %v6361, %v6402
      %v6428 = vadd.f32 %v6366, %v6402
      %v6429 = vadd.f32 %v6369, %v6402
      %v6430 = vadd.f32 %v6374, %v6402
      %v6431 = vadd.f32 %v6377, %v6402
      %v6432 = vadd.f32 %v6382, %v6402
      %v6433 = vadd.f32 %v6385, %v6402
      %v6434 = vadd.f32 %v6390, %v6402
      %v6435 = vadd.f32 %v6393, %v6402
      %v6436 = vtanh.pop %v6404
      %v6437 = vtanh.pop %v6405
      %v6438 = vtanh.pop %v6406
      %v6439 = vtanh.pop %v6407
      %v6440 = vtanh.pop %v6408
      %v6441 = vtanh.pop %v6409
      %v6442 = vtanh.pop %v6410
      %v6443 = vtanh.pop %v6411
      %v6444 = vtanh.pop %v6412
      %v6445 = vtanh.pop %v6413
      %v6446 = vtanh.pop %v6414
      %v6447 = vtanh.pop %v6415
      %v6448 = vtanh.pop %v6416
      %v6449 = vtanh.pop %v6417
      %v6450 = vtanh.pop %v6418
      %v6451 = vtanh.pop %v6419
      %v6452 = vtanh.pop %v6420
      %v6453 = vtanh.pop %v6421
      %v6454 = vtanh.pop %v6422
      %v6455 = vtanh.pop %v6423
      %v6456 = vtanh.pop %v6424
      %v6457 = vtanh.pop %v6425
      %v6458 = vtanh.pop %v6426
      %v6459 = vtanh.pop %v6427
      %v6460 = vtanh.pop %v6428
      %v6461 = vtanh.pop %v6429
      %v6462 = vtanh.pop %v6430
      %v6463 = vtanh.pop %v6431
      %v6464 = vtanh.pop %v6432
      %v6465 = vtanh.pop %v6433
      %v6466 = vtanh.pop %v6434
      %v6467 = vtanh.pop %v6435
      %v6468 = vpack.c.bf16 %v6437, %v6436
      %v6469 = vpack.c.bf16 %v6439, %v6438
      %v6470 = vpack.c.bf16 %v6441, %v6440
      %v6471 = vpack.c.bf16 %v6443, %v6442
      %v6472 = vpack.c.bf16 %v6445, %v6444
      %v6473 = vpack.c.bf16 %v6447, %v6446
      %v6474 = vpack.c.bf16 %v6449, %v6448
      %v6475 = vpack.c.bf16 %v6451, %v6450
      %v6476 = vpack.c.bf16 %v6453, %v6452
      %v6477 = vpack.c.bf16 %v6455, %v6454
      %v6478 = vpack.c.bf16 %v6457, %v6456
      %v6479 = vpack.c.bf16 %v6459, %v6458
      %v6480 = vpack.c.bf16 %v6461, %v6460
      %v6481 = vpack.c.bf16 %v6463, %v6462
      %v6482 = vpack.c.bf16 %v6465, %v6464
      %v6483 = vpack.c.bf16 %v6467, %v6466
      %s6484 = scalar_lea.vmem %s9, 192
      %v6485 = vld [vmem:[%s6484] sm:$0xf]
      %v6486 = vld [vmem:[%s6484 + $0x4] sm:$0xf]
      %v6487 = vld [vmem:[%s6484 + $0x8] sm:$0xf]
      %v6488 = vld [vmem:[%s6484 + $0xc] sm:$0xf]
      %v6489 = vld [vmem:[%s6484 + $0x10] sm:$0xf]
      %v6490 = vld [vmem:[%s6484 + $0x14] sm:$0xf]
      %v6491 = vld [vmem:[%s6484 + $0x18] sm:$0xf]
      %v6492 = vld [vmem:[%s6484 + $0x1c] sm:$0xf]
      %v6493 = vld [vmem:[%s6484 + $0x20] sm:$0xf]
      %v6494 = vld [vmem:[%s6484 + $0x24] sm:$0xf]
      %v6495 = vld [vmem:[%s6484 + $0x28] sm:$0xf]
      %v6496 = vld [vmem:[%s6484 + $0x2c] sm:$0xf]
      %v6497 = vld [vmem:[%s6484 + $0x30] sm:$0xf]
      %v6498 = vld [vmem:[%s6484 + $0x34] sm:$0xf]
      %v6499 = vld [vmem:[%s6484 + $0x38] sm:$0xf]
      %v6500 = vld [vmem:[%s6484 + $0x3c] sm:$0xf]
      %s6501 = scalar_lea.vmem %s10, 3
      %v6502 = vld [vmem:[%s6501] sm:$0x1]
      %v6504 = vlaneseq
      %v6505 = vshrl.u32 %v6504, 7
      %v6506 = vsub.s32 0, %v6505
      %v6507 = vrot.slane %v6502, %v6506
      %v6525 = vunpack.c.l.b16 %v6485
      %v6526 = vunpack.c.l.b16 %v6486
      %v6527 = vunpack.c.l.b16 %v6487
      %v6528 = vunpack.c.l.b16 %v6488
      %v6529 = vunpack.c.l.b16 %v6489
      %v6530 = vunpack.c.l.b16 %v6490
      %v6531 = vunpack.c.l.b16 %v6491
      %v6532 = vunpack.c.l.b16 %v6492
      %v6533 = vunpack.c.l.b16 %v6493
      %v6534 = vunpack.c.l.b16 %v6494
      %v6535 = vunpack.c.l.b16 %v6495
      %v6536 = vunpack.c.l.b16 %v6496
      %v6537 = vunpack.c.l.b16 %v6497
      %v6538 = vunpack.c.l.b16 %v6498
      %v6539 = vunpack.c.l.b16 %v6499
      %v6540 = vunpack.c.l.b16 %v6500
      %v6541 = vpack.c.b16 %v6526, %v6525
      %v6542 = vpack.c.b16 %v6528, %v6527
      %v6543 = vpack.c.b16 %v6530, %v6529
      %v6544 = vpack.c.b16 %v6532, %v6531
      %v6545 = vpack.c.b16 %v6534, %v6533
      %v6546 = vpack.c.b16 %v6536, %v6535
      %v6547 = vpack.c.b16 %v6538, %v6537
      %v6548 = vpack.c.b16 %v6540, %v6539
      %6557 = vmatprep.subr.bf16.mxu0 0
      %6558 = vmatpush1.bf16.msra.mxu0 %v6541
      %6559 = vmatprep.subr.bf16.mxu0 0
      %6560 = vmatpush1.bf16.msra.mxu0 %v6542
      %6561 = vmatprep.subr.bf16.mxu0 0
      %6562 = vmatpush1.bf16.msra.mxu0 %v6543
      %6563 = vmatprep.subr.bf16.mxu0 0
      %6564 = vmatpush1.bf16.msra.mxu0 %v6544
      %6565 = vmatprep.subr.bf16.mxu0 0
      %6566 = vmatpush1.bf16.msra.mxu0 %v6545
      %6567 = vmatprep.subr.bf16.mxu0 0
      %6568 = vmatpush1.bf16.msra.mxu0 %v6546
      %6569 = vmatprep.subr.bf16.mxu0 0
      %6570 = vmatpush1.bf16.msra.mxu0 %v6547
      %6571 = vmatprep.subr.bf16.mxu0 0
      %6572 = vmatpush1.bf16.msra.mxu0 %v6548
      %6573 = vmatprep.subr.bf16.mxu0 0
      %6574 = vmatpush1.bf16.msra.mxu0 0
      %6575 = vmatprep.subr.bf16.mxu0 0
      %6576 = vmatpush1.bf16.msra.mxu0 0
      %6577 = vmatprep.subr.bf16.mxu0 0
      %6578 = vmatpush1.bf16.msra.mxu0 0
      %6579 = vmatprep.subr.bf16.mxu0 0
      %6580 = vmatpush1.bf16.msra.mxu0 0
      %6581 = vmatprep.subr.bf16.mxu0 0
      %6582 = vmatpush1.bf16.msra.mxu0 0
      %6583 = vmatprep.subr.bf16.mxu0 0
      %6584 = vmatpush1.bf16.msra.mxu0 0
      %6585 = vmatprep.subr.bf16.mxu0 0
      %6586 = vmatpush1.bf16.msra.mxu0 0
      %6587 = vmatprep.subr.bf16.mxu0 0
      %6588 = vmatpush1.bf16.msra.mxu0 0
      %6589 = vmatprep.mubr.bf16.mxu0 0
      %6590 = vmatmul.mubr.bf16.gmra.mrb[0].mxu0 %v6468
      %v6591 = vpop.f32.mrb[0].mxu0
      %v6592 = vadd.f32 %v6507, %v6591
      %v6593 = vpop.f32.mrb[0].mxu0
      %v6594 = vpop.f32.mrb[0].mxu0
      %v6595 = vadd.f32 %v6507, %v6594
      %v6596 = vpop.f32.mrb[0].mxu0
      %6597 = vmatprep.mubr.bf16.mxu0 0
      %6598 = vmatmul.mubr.bf16.gmra.mrb[0].mxu0 %v6469
      %v6599 = vpop.f32.mrb[0].mxu0
      %v6600 = vadd.f32 %v6507, %v6599
      %v6601 = vpop.f32.mrb[0].mxu0
      %v6602 = vpop.f32.mrb[0].mxu0
      %v6603 = vadd.f32 %v6507, %v6602
      %v6604 = vpop.f32.mrb[0].mxu0
      %6605 = vmatprep.mubr.bf16.mxu0 0
      %6606 = vmatmul.mubr.bf16.gmra.mrb[0].mxu0 %v6470
      %v6607 = vpop.f32.mrb[0].mxu0
      %v6608 = vadd.f32 %v6507, %v6607
      %v6609 = vpop.f32.mrb[0].mxu0
      %v6610 = vpop.f32.mrb[0].mxu0
      %v6611 = vadd.f32 %v6507, %v6610
      %v6612 = vpop.f32.mrb[0].mxu0
      %6613 = vmatprep.mubr.bf16.mxu0 0
      %6614 = vmatmul.mubr.bf16.gmra.mrb[0].mxu0 %v6471
      %v6615 = vpop.f32.mrb[0].mxu0
      %v6616 = vadd.f32 %v6507, %v6615
      %v6617 = vpop.f32.mrb[0].mxu0
      %v6618 = vpop.f32.mrb[0].mxu0
      %v6619 = vadd.f32 %v6507, %v6618
      %v6620 = vpop.f32.mrb[0].mxu0
      %6621 = vmatprep.mubr.bf16.mxu0 0
      %6622 = vmatmul.mubr.bf16.gmra.mrb[0].mxu0 %v6472
      %v6623 = vpop.f32.mrb[0].mxu0
      %v6624 = vadd.f32 %v6507, %v6623
      %v6625 = vpop.f32.mrb[0].mxu0
      %v6626 = vpop.f32.mrb[0].mxu0
      %v6627 = vadd.f32 %v6507, %v6626
      %v6628 = vpop.f32.mrb[0].mxu0
      %6629 = vmatprep.mubr.bf16.mxu0 0
      %6630 = vmatmul.mubr.bf16.gmra.mrb[0].mxu0 %v6473
      %v6631 = vpop.f32.mrb[0].mxu0
      %v6632 = vadd.f32 %v6507, %v6631
      %v6633 = vpop.f32.mrb[0].mxu0
      %v6634 = vpop.f32.mrb[0].mxu0
      %v6635 = vadd.f32 %v6507, %v6634
      %v6636 = vpop.f32.mrb[0].mxu0
      %6637 = vmatprep.mubr.bf16.mxu0 0
      %6638 = vmatmul.mubr.bf16.gmra.mrb[0].mxu0 %v6474
      %v6639 = vpop.f32.mrb[0].mxu0
      %v6640 = vadd.f32 %v6507, %v6639
      %v6641 = vpop.f32.mrb[0].mxu0
      %v6642 = vpop.f32.mrb[0].mxu0
      %v6643 = vadd.f32 %v6507, %v6642
      %v6644 = vpop.f32.mrb[0].mxu0
      %6645 = vmatprep.mubr.bf16.mxu0 0
      %6646 = vmatmul.mubr.bf16.gmra.mrb[0].mxu0 %v6475
      %v6647 = vpop.f32.mrb[0].mxu0
      %v6648 = vadd.f32 %v6507, %v6647
      %v6649 = vpop.f32.mrb[0].mxu0
      %v6650 = vpop.f32.mrb[0].mxu0
      %v6651 = vadd.f32 %v6507, %v6650
      %v6652 = vpop.f32.mrb[0].mxu0
      %6653 = vmatprep.mubr.bf16.mxu0 0
      %6654 = vmatmul.mubr.bf16.gmra.mrb[0].mxu0 %v6476
      %v6655 = vpop.f32.mrb[0].mxu0
      %v6656 = vadd.f32 %v6507, %v6655
      %v6657 = vpop.f32.mrb[0].mxu0
      %v6658 = vpop.f32.mrb[0].mxu0
      %v6659 = vadd.f32 %v6507, %v6658
      %v6660 = vpop.f32.mrb[0].mxu0
      %6661 = vmatprep.mubr.bf16.mxu0 0
      %6662 = vmatmul.mubr.bf16.gmra.mrb[0].mxu0 %v6477
      %v6663 = vpop.f32.mrb[0].mxu0
      %v6664 = vadd.f32 %v6507, %v6663
      %v6665 = vpop.f32.mrb[0].mxu0
      %v6666 = vpop.f32.mrb[0].mxu0
      %v6667 = vadd.f32 %v6507, %v6666
      %v6668 = vpop.f32.mrb[0].mxu0
      %6669 = vmatprep.mubr.bf16.mxu0 0
      %6670 = vmatmul.mubr.bf16.gmra.mrb[0].mxu0 %v6478
      %v6671 = vpop.f32.mrb[0].mxu0
      %v6672 = vadd.f32 %v6507, %v6671
      %v6673 = vpop.f32.mrb[0].mxu0
      %v6674 = vpop.f32.mrb[0].mxu0
      %v6675 = vadd.f32 %v6507, %v6674
      %v6676 = vpop.f32.mrb[0].mxu0
      %6677 = vmatprep.mubr.bf16.mxu0 0
      %6678 = vmatmul.mubr.bf16.gmra.mrb[0].mxu0 %v6479
      %v6679 = vpop.f32.mrb[0].mxu0
      %v6680 = vadd.f32 %v6507, %v6679
      %v6681 = vpop.f32.mrb[0].mxu0
      %v6682 = vpop.f32.mrb[0].mxu0
      %v6683 = vadd.f32 %v6507, %v6682
      %v6684 = vpop.f32.mrb[0].mxu0
      %6685 = vmatprep.mubr.bf16.mxu0 0
      %6686 = vmatmul.mubr.bf16.gmra.mrb[0].mxu0 %v6480
      %v6687 = vpop.f32.mrb[0].mxu0
      %v6688 = vadd.f32 %v6507, %v6687
      %v6689 = vpop.f32.mrb[0].mxu0
      %v6690 = vpop.f32.mrb[0].mxu0
      %v6691 = vadd.f32 %v6507, %v6690
      %v6692 = vpop.f32.mrb[0].mxu0
      %6693 = vmatprep.mubr.bf16.mxu0 0
      %6694 = vmatmul.mubr.bf16.gmra.mrb[0].mxu0 %v6481
      %v6695 = vpop.f32.mrb[0].mxu0
      %v6696 = vadd.f32 %v6507, %v6695
      %v6697 = vpop.f32.mrb[0].mxu0
      %v6698 = vpop.f32.mrb[0].mxu0
      %v6699 = vadd.f32 %v6507, %v6698
      %v6700 = vpop.f32.mrb[0].mxu0
      %6701 = vmatprep.mubr.bf16.mxu0 0
      %6702 = vmatmul.mubr.bf16.gmra.mrb[0].mxu0 %v6482
      %v6703 = vpop.f32.mrb[0].mxu0
      %v6704 = vadd.f32 %v6507, %v6703
      %v6705 = vpop.f32.mrb[0].mxu0
      %v6706 = vpop.f32.mrb[0].mxu0
      %v6707 = vadd.f32 %v6507, %v6706
      %v6708 = vpop.f32.mrb[0].mxu0
      %6709 = vmatprep.mubr.bf16.mxu0 0
      %6710 = vmatmul.mubr.bf16.gmra.mrb[0].mxu0 %v6483
      %v6711 = vpop.f32.mrb[0].mxu0
      %v6712 = vadd.f32 %v6507, %v6711
      %v6713 = vpop.f32.mrb[0].mxu0
      %v6714 = vpop.f32.mrb[0].mxu0
      %v6715 = vadd.f32 %v6507, %v6714
      %v6716 = vpop.f32.mrb[0].mxu0
      %6717 = vdwg.mxu0
      %v6718 = vmul.f32 %v6592, %v6128
      %v6719 = vmul.f32 %v6595, %v6128
      %v6720 = vmul.f32 %v6600, %v6128
      %v6721 = vmul.f32 %v6603, %v6128
      %v6722 = vmul.f32 %v6608, %v6128
      %v6723 = vmul.f32 %v6611, %v6128
      %v6724 = vmul.f32 %v6616, %v6128
      %v6725 = vmul.f32 %v6619, %v6128
      %v6726 = vmul.f32 %v6624, %v6128
      %v6727 = vmul.f32 %v6627, %v6128
      %v6728 = vmul.f32 %v6632, %v6128
      %v6729 = vmul.f32 %v6635, %v6128
      %v6730 = vmul.f32 %v6640, %v6128
      %v6731 = vmul.f32 %v6643, %v6128
      %v6732 = vmul.f32 %v6648, %v6128
      %v6733 = vmul.f32 %v6651, %v6128
      %v6734 = vmul.f32 %v6656, %v6128
      %v6735 = vmul.f32 %v6659, %v6128
      %v6736 = vmul.f32 %v6664, %v6128
      %v6737 = vmul.f32 %v6667, %v6128
      %v6738 = vmul.f32 %v6672, %v6128
      %v6739 = vmul.f32 %v6675, %v6128
      %v6740 = vmul.f32 %v6680, %v6128
      %v6741 = vmul.f32 %v6683, %v6128
      %v6742 = vmul.f32 %v6688, %v6128
      %v6743 = vmul.f32 %v6691, %v6128
      %v6744 = vmul.f32 %v6696, %v6128
      %v6745 = vmul.f32 %v6699, %v6128
      %v6746 = vmul.f32 %v6704, %v6128
      %v6747 = vmul.f32 %v6707, %v6128
      %v6748 = vmul.f32 %v6712, %v6128
      %v6749 = vmul.f32 %v6715, %v6128
      %6750 = vrot.lane.b32.xlu0 %v6128, 16
      %v6751 = vpop.permute.xlu0 %6750
      %v6753 = vmul.f32 %v6592, %v6751
      %v6754 = vmul.f32 %v6595, %v6751
      %v6755 = vmul.f32 %v6600, %v6751
      %v6756 = vmul.f32 %v6603, %v6751
      %v6757 = vmul.f32 %v6608, %v6751
      %v6758 = vmul.f32 %v6611, %v6751
      %v6759 = vmul.f32 %v6616, %v6751
      %v6760 = vmul.f32 %v6619, %v6751
      %v6761 = vmul.f32 %v6624, %v6751
      %v6762 = vmul.f32 %v6627, %v6751
      %v6763 = vmul.f32 %v6632, %v6751
      %v6764 = vmul.f32 %v6635, %v6751
      %v6765 = vmul.f32 %v6640, %v6751
      %v6766 = vmul.f32 %v6643, %v6751
      %v6767 = vmul.f32 %v6648, %v6751
      %v6768 = vmul.f32 %v6651, %v6751
      %v6769 = vmul.f32 %v6656, %v6751
      %v6770 = vmul.f32 %v6659, %v6751
      %v6771 = vmul.f32 %v6664, %v6751
      %v6772 = vmul.f32 %v6667, %v6751
      %v6773 = vmul.f32 %v6672, %v6751
      %v6774 = vmul.f32 %v6675, %v6751
      %v6775 = vmul.f32 %v6680, %v6751
      %v6776 = vmul.f32 %v6683, %v6751
      %v6777 = vmul.f32 %v6688, %v6751
      %v6778 = vmul.f32 %v6691, %v6751
      %v6779 = vmul.f32 %v6696, %v6751
      %v6780 = vmul.f32 %v6699, %v6751
      %v6781 = vmul.f32 %v6704, %v6751
      %v6782 = vmul.f32 %v6707, %v6751
      %v6783 = vmul.f32 %v6712, %v6751
      %v6784 = vmul.f32 %v6715, %v6751
      %v6785 = vmul.f32 %v6718, 1.442695
      %v6786 = vpow.pop %v6785
      %v6787 = vmul.f32 %v6719, 1.442695
      %v6788 = vpow.pop %v6787
      %v6789 = vmul.f32 %v6720, 1.442695
      %v6790 = vpow.pop %v6789
      %v6791 = vmul.f32 %v6721, 1.442695
      %v6792 = vpow.pop %v6791
      %v6793 = vmul.f32 %v6722, 1.442695
      %v6794 = vpow.pop %v6793
      %v6795 = vmul.f32 %v6723, 1.442695
      %v6796 = vpow.pop %v6795
      %v6797 = vmul.f32 %v6724, 1.442695
      %v6798 = vpow.pop %v6797
      %v6799 = vmul.f32 %v6725, 1.442695
      %v6800 = vpow.pop %v6799
      %v6801 = vmul.f32 %v6726, 1.442695
      %v6802 = vpow.pop %v6801
      %v6803 = vmul.f32 %v6727, 1.442695
      %v6804 = vpow.pop %v6803
      %v6805 = vmul.f32 %v6728, 1.442695
      %v6806 = vpow.pop %v6805
      %v6807 = vmul.f32 %v6729, 1.442695
      %v6808 = vpow.pop %v6807
      %v6809 = vmul.f32 %v6730, 1.442695
      %v6810 = vpow.pop %v6809
      %v6811 = vmul.f32 %v6731, 1.442695
      %v6812 = vpow.pop %v6811
      %v6813 = vmul.f32 %v6732, 1.442695
      %v6814 = vpow.pop %v6813
      %v6815 = vmul.f32 %v6733, 1.442695
      %v6816 = vpow.pop %v6815
      %v6817 = vmul.f32 %v6734, 1.442695
      %v6818 = vpow.pop %v6817
      %v6819 = vmul.f32 %v6735, 1.442695
      %v6820 = vpow.pop %v6819
      %v6821 = vmul.f32 %v6736, 1.442695
      %v6822 = vpow.pop %v6821
      %v6823 = vmul.f32 %v6737, 1.442695
      %v6824 = vpow.pop %v6823
      %v6825 = vmul.f32 %v6738, 1.442695
      %v6826 = vpow.pop %v6825
      %v6827 = vmul.f32 %v6739, 1.442695
      %v6828 = vpow.pop %v6827
      %v6829 = vmul.f32 %v6740, 1.442695
      %v6830 = vpow.pop %v6829
      %v6831 = vmul.f32 %v6741, 1.442695
      %v6832 = vpow.pop %v6831
      %v6833 = vmul.f32 %v6742, 1.442695
      %v6834 = vpow.pop %v6833
      %v6835 = vmul.f32 %v6743, 1.442695
      %v6836 = vpow.pop %v6835
      %v6837 = vmul.f32 %v6744, 1.442695
      %v6838 = vpow.pop %v6837
      %v6839 = vmul.f32 %v6745, 1.442695
      %v6840 = vpow.pop %v6839
      %v6841 = vmul.f32 %v6746, 1.442695
      %v6842 = vpow.pop %v6841
      %v6843 = vmul.f32 %v6747, 1.442695
      %v6844 = vpow.pop %v6843
      %v6845 = vmul.f32 %v6748, 1.442695
      %v6846 = vpow.pop %v6845
      %v6847 = vmul.f32 %v6749, 1.442695
      %v6848 = vpow.pop %v6847
      %v6849 = vmul.f32 %v6050, %v6786
      %v6850 = vmul.f32 %v6051, %v6788
      %v6851 = vmul.f32 %v6052, %v6790
      %v6852 = vmul.f32 %v6053, %v6792
      %v6853 = vmul.f32 %v6054, %v6794
      %v6854 = vmul.f32 %v6055, %v6796
      %v6855 = vmul.f32 %v6056, %v6798
      %v6856 = vmul.f32 %v6057, %v6800
      %v6857 = vmul.f32 %v6058, %v6802
      %v6858 = vmul.f32 %v6059, %v6804
      %v6859 = vmul.f32 %v6060, %v6806
      %v6860 = vmul.f32 %v6061, %v6808
      %v6861 = vmul.f32 %v6062, %v6810
      %v6862 = vmul.f32 %v6063, %v6812
      %v6863 = vmul.f32 %v6064, %v6814
      %v6864 = vmul.f32 %v6065, %v6816
      %v6865 = vmul.f32 %v6066, %v6818
      %v6866 = vmul.f32 %v6067, %v6820
      %v6867 = vmul.f32 %v6068, %v6822
      %v6868 = vmul.f32 %v6069, %v6824
      %v6869 = vmul.f32 %v6070, %v6826
      %v6870 = vmul.f32 %v6071, %v6828
      %v6871 = vmul.f32 %v6072, %v6830
      %v6872 = vmul.f32 %v6073, %v6832
      %v6873 = vmul.f32 %v6074, %v6834
      %v6874 = vmul.f32 %v6075, %v6836
      %v6875 = vmul.f32 %v6076, %v6838
      %v6876 = vmul.f32 %v6077, %v6840
      %v6877 = vmul.f32 %v6078, %v6842
      %v6878 = vmul.f32 %v6079, %v6844
      %v6879 = vmul.f32 %v6080, %v6846
      %v6880 = vmul.f32 %v6081, %v6848
      %6913 = vrot.lane.b32.xlu0 %v6753, 112
      %v6914 = vpop.permute.xlu0 %6913
      %6915 = vrot.lane.b32.xlu0 %v6754, 112
      %v6916 = vpop.permute.xlu0 %6915
      %6917 = vrot.lane.b32.xlu0 %v6755, 112
      %v6918 = vpop.permute.xlu0 %6917
      %6919 = vrot.lane.b32.xlu0 %v6756, 112
      %v6920 = vpop.permute.xlu0 %6919
      %6921 = vrot.lane.b32.xlu0 %v6757, 112
      %v6922 = vpop.permute.xlu0 %6921
      %6923 = vrot.lane.b32.xlu0 %v6758, 112
      %v6924 = vpop.permute.xlu0 %6923
      %6925 = vrot.lane.b32.xlu0 %v6759, 112
      %v6926 = vpop.permute.xlu0 %6925
      %6927 = vrot.lane.b32.xlu0 %v6760, 112
      %v6928 = vpop.permute.xlu0 %6927
      %6929 = vrot.lane.b32.xlu0 %v6761, 112
      %v6930 = vpop.permute.xlu0 %6929
      %6931 = vrot.lane.b32.xlu0 %v6762, 112
      %v6932 = vpop.permute.xlu0 %6931
      %6933 = vrot.lane.b32.xlu0 %v6763, 112
      %v6934 = vpop.permute.xlu0 %6933
      %6935 = vrot.lane.b32.xlu0 %v6764, 112
      %v6936 = vpop.permute.xlu0 %6935
      %6937 = vrot.lane.b32.xlu0 %v6765, 112
      %v6938 = vpop.permute.xlu0 %6937
      %6939 = vrot.lane.b32.xlu0 %v6766, 112
      %v6940 = vpop.permute.xlu0 %6939
      %6941 = vrot.lane.b32.xlu0 %v6767, 112
      %v6942 = vpop.permute.xlu0 %6941
      %6943 = vrot.lane.b32.xlu0 %v6768, 112
      %v6944 = vpop.permute.xlu0 %6943
      %6945 = vrot.lane.b32.xlu0 %v6769, 112
      %v6946 = vpop.permute.xlu0 %6945
      %6947 = vrot.lane.b32.xlu0 %v6770, 112
      %v6948 = vpop.permute.xlu0 %6947
      %6949 = vrot.lane.b32.xlu0 %v6771, 112
      %v6950 = vpop.permute.xlu0 %6949
      %6951 = vrot.lane.b32.xlu0 %v6772, 112
      %v6952 = vpop.permute.xlu0 %6951
      %6953 = vrot.lane.b32.xlu0 %v6773, 112
      %v6954 = vpop.permute.xlu0 %6953
      %6955 = vrot.lane.b32.xlu0 %v6774, 112
      %v6956 = vpop.permute.xlu0 %6955
      %6957 = vrot.lane.b32.xlu0 %v6775, 112
      %v6958 = vpop.permute.xlu0 %6957
      %6959 = vrot.lane.b32.xlu0 %v6776, 112
      %v6960 = vpop.permute.xlu0 %6959
      %6961 = vrot.lane.b32.xlu0 %v6777, 112
      %v6962 = vpop.permute.xlu0 %6961
      %6963 = vrot.lane.b32.xlu0 %v6778, 112
      %v6964 = vpop.permute.xlu0 %6963
      %6965 = vrot.lane.b32.xlu0 %v6779, 112
      %v6966 = vpop.permute.xlu0 %6965
      %6967 = vrot.lane.b32.xlu0 %v6780, 112
      %v6968 = vpop.permute.xlu0 %6967
      %6969 = vrot.lane.b32.xlu0 %v6781, 112
      %v6970 = vpop.permute.xlu0 %6969
      %6971 = vrot.lane.b32.xlu0 %v6782, 112
      %v6972 = vpop.permute.xlu0 %6971
      %6973 = vrot.lane.b32.xlu0 %v6783, 112
      %v6974 = vpop.permute.xlu0 %6973
      %6975 = vrot.lane.b32.xlu0 %v6784, 112
      %v6976 = vpop.permute.xlu0 %6975
      %v7009 = vadd.f32 %v6849, %v6914
      %v7010 = vadd.f32 %v6850, %v6916
      %v7011 = vadd.f32 %v6851, %v6918
      %v7012 = vadd.f32 %v6852, %v6920
      %v7013 = vadd.f32 %v6853, %v6922
      %v7014 = vadd.f32 %v6854, %v6924
      %v7015 = vadd.f32 %v6855, %v6926
      %v7016 = vadd.f32 %v6856, %v6928
      %v7017 = vadd.f32 %v6857, %v6930
      %v7018 = vadd.f32 %v6858, %v6932
      %v7019 = vadd.f32 %v6859, %v6934
      %v7020 = vadd.f32 %v6860, %v6936
      %v7021 = vadd.f32 %v6861, %v6938
      %v7022 = vadd.f32 %v6862, %v6940
      %v7023 = vadd.f32 %v6863, %v6942
      %v7024 = vadd.f32 %v6864, %v6944
      %v7025 = vadd.f32 %v6865, %v6946
      %v7026 = vadd.f32 %v6866, %v6948
      %v7027 = vadd.f32 %v6867, %v6950
      %v7028 = vadd.f32 %v6868, %v6952
      %v7029 = vadd.f32 %v6869, %v6954
      %v7030 = vadd.f32 %v6870, %v6956
      %v7031 = vadd.f32 %v6871, %v6958
      %v7032 = vadd.f32 %v6872, %v6960
      %v7033 = vadd.f32 %v6873, %v6962
      %v7034 = vadd.f32 %v6874, %v6964
      %v7035 = vadd.f32 %v6875, %v6966
      %v7036 = vadd.f32 %v6876, %v6968
      %v7037 = vadd.f32 %v6877, %v6970
      %v7038 = vadd.f32 %v6878, %v6972
      %v7039 = vadd.f32 %v6879, %v6974
      %v7040 = vadd.f32 %v6880, %v6976
      %v7041 = vmul.f32 %v6128, %v7009
      %v7042 = vmul.f32 %v6128, %v7010
      %v7043 = vmul.f32 %v6128, %v7011
      %v7044 = vmul.f32 %v6128, %v7012
      %v7045 = vmul.f32 %v6128, %v7013
      %v7046 = vmul.f32 %v6128, %v7014
      %v7047 = vmul.f32 %v6128, %v7015
      %v7048 = vmul.f32 %v6128, %v7016
      %v7049 = vmul.f32 %v6128, %v7017
      %v7050 = vmul.f32 %v6128, %v7018
      %v7051 = vmul.f32 %v6128, %v7019
      %v7052 = vmul.f32 %v6128, %v7020
      %v7053 = vmul.f32 %v6128, %v7021
      %v7054 = vmul.f32 %v6128, %v7022
      %v7055 = vmul.f32 %v6128, %v7023
      %v7056 = vmul.f32 %v6128, %v7024
      %v7057 = vmul.f32 %v6128, %v7025
      %v7058 = vmul.f32 %v6128, %v7026
      %v7059 = vmul.f32 %v6128, %v7027
      %v7060 = vmul.f32 %v6128, %v7028
      %v7061 = vmul.f32 %v6128, %v7029
      %v7062 = vmul.f32 %v6128, %v7030
      %v7063 = vmul.f32 %v6128, %v7031
      %v7064 = vmul.f32 %v6128, %v7032
      %v7065 = vmul.f32 %v6128, %v7033
      %v7066 = vmul.f32 %v6128, %v7034
      %v7067 = vmul.f32 %v6128, %v7035
      %v7068 = vmul.f32 %v6128, %v7036
      %v7069 = vmul.f32 %v6128, %v7037
      %v7070 = vmul.f32 %v6128, %v7038
      %v7071 = vmul.f32 %v6128, %v7039
      %v7072 = vmul.f32 %v6128, %v7040
      %v7073 = vadd.f32 %v6130, %v7041
      %v7074 = vadd.f32 %v6131, %v7042
      %v7075 = vadd.f32 %v6132, %v7043
      %v7076 = vadd.f32 %v6133, %v7044
      %v7077 = vadd.f32 %v6134, %v7045
      %v7078 = vadd.f32 %v6135, %v7046
      %v7079 = vadd.f32 %v6136, %v7047
      %v7080 = vadd.f32 %v6137, %v7048
      %v7081 = vadd.f32 %v6138, %v7049
      %v7082 = vadd.f32 %v6139, %v7050
      %v7083 = vadd.f32 %v6140, %v7051
      %v7084 = vadd.f32 %v6141, %v7052
      %v7085 = vadd.f32 %v6142, %v7053
      %v7086 = vadd.f32 %v6143, %v7054
      %v7087 = vadd.f32 %v6144, %v7055
      %v7088 = vadd.f32 %v6145, %v7056
      %v7089 = vadd.f32 %v6146, %v7057
      %v7090 = vadd.f32 %v6147, %v7058
      %v7091 = vadd.f32 %v6148, %v7059
      %v7092 = vadd.f32 %v6149, %v7060
      %v7093 = vadd.f32 %v6150, %v7061
      %v7094 = vadd.f32 %v6151, %v7062
      %v7095 = vadd.f32 %v6152, %v7063
      %v7096 = vadd.f32 %v6153, %v7064
      %v7097 = vadd.f32 %v6154, %v7065
      %v7098 = vadd.f32 %v6155, %v7066
      %v7099 = vadd.f32 %v6156, %v7067
      %v7100 = vadd.f32 %v6157, %v7068
      %v7101 = vadd.f32 %v6158, %v7069
      %v7102 = vadd.f32 %v6159, %v7070
      %v7103 = vadd.f32 %v6160, %v7071
      %v7104 = vadd.f32 %v6161, %v7072
      %v7105 = vadd.f32 %v6082, %v6718
      %v7106 = vadd.f32 %v6083, %v6719
      %v7107 = vadd.f32 %v6084, %v6720
      %v7108 = vadd.f32 %v6085, %v6721
      %v7109 = vadd.f32 %v6086, %v6722
      %v7110 = vadd.f32 %v6087, %v6723
      %v7111 = vadd.f32 %v6088, %v6724
      %v7112 = vadd.f32 %v6089, %v6725
      %v7113 = vadd.f32 %v6090, %v6726
      %v7114 = vadd.f32 %v6091, %v6727
      %v7115 = vadd.f32 %v6092, %v6728
      %v7116 = vadd.f32 %v6093, %v6729
      %v7117 = vadd.f32 %v6094, %v6730
      %v7118 = vadd.f32 %v6095, %v6731
      %v7119 = vadd.f32 %v6096, %v6732
      %v7120 = vadd.f32 %v6097, %v6733
      %v7121 = vadd.f32 %v6098, %v6734
      %v7122 = vadd.f32 %v6099, %v6735
      %v7123 = vadd.f32 %v6100, %v6736
      %v7124 = vadd.f32 %v6101, %v6737
      %v7125 = vadd.f32 %v6102, %v6738
      %v7126 = vadd.f32 %v6103, %v6739
      %v7127 = vadd.f32 %v6104, %v6740
      %v7128 = vadd.f32 %v6105, %v6741
      %v7129 = vadd.f32 %v6106, %v6742
      %v7130 = vadd.f32 %v6107, %v6743
      %v7131 = vadd.f32 %v6108, %v6744
      %v7132 = vadd.f32 %v6109, %v6745
      %v7133 = vadd.f32 %v6110, %v6746
      %v7134 = vadd.f32 %v6111, %v6747
      %v7135 = vadd.f32 %v6112, %v6748
      %v7136 = vadd.f32 %v6113, %v6749
      %v7137 = vmul.f32 %v7073, %v7073
      %v7138 = vmul.f32 %v7074, %v7074
      %v7139 = vmul.f32 %v7075, %v7075
      %v7140 = vmul.f32 %v7076, %v7076
      %v7141 = vmul.f32 %v7077, %v7077
      %v7142 = vmul.f32 %v7078, %v7078
      %v7143 = vmul.f32 %v7079, %v7079
      %v7144 = vmul.f32 %v7080, %v7080
      %v7145 = vmul.f32 %v7081, %v7081
      %v7146 = vmul.f32 %v7082, %v7082
      %v7147 = vmul.f32 %v7083, %v7083
      %v7148 = vmul.f32 %v7084, %v7084
      %v7149 = vmul.f32 %v7085, %v7085
      %v7150 = vmul.f32 %v7086, %v7086
      %v7151 = vmul.f32 %v7087, %v7087
      %v7152 = vmul.f32 %v7088, %v7088
      %v7153 = vmul.f32 %v7089, %v7089
      %v7154 = vmul.f32 %v7090, %v7090
      %v7155 = vmul.f32 %v7091, %v7091
      %v7156 = vmul.f32 %v7092, %v7092
      %v7157 = vmul.f32 %v7093, %v7093
      %v7158 = vmul.f32 %v7094, %v7094
      %v7159 = vmul.f32 %v7095, %v7095
      %v7160 = vmul.f32 %v7096, %v7096
      %v7161 = vmul.f32 %v7097, %v7097
      %v7162 = vmul.f32 %v7098, %v7098
      %v7163 = vmul.f32 %v7099, %v7099
      %v7164 = vmul.f32 %v7100, %v7100
      %v7165 = vmul.f32 %v7101, %v7101
      %v7166 = vmul.f32 %v7102, %v7102
      %v7167 = vmul.f32 %v7103, %v7103
      %v7168 = vmul.f32 %v7104, %v7104
      %v7169 = vmul.f32 %v7137, 0.5
      %v7170 = vmul.f32 %v7138, 0.5
      %v7171 = vmul.f32 %v7139, 0.5
      %v7172 = vmul.f32 %v7140, 0.5
      %v7173 = vmul.f32 %v7141, 0.5
      %v7174 = vmul.f32 %v7142, 0.5
      %v7175 = vmul.f32 %v7143, 0.5
      %v7176 = vmul.f32 %v7144, 0.5
      %v7177 = vmul.f32 %v7145, 0.5
      %v7178 = vmul.f32 %v7146, 0.5
      %v7179 = vmul.f32 %v7147, 0.5
      %v7180 = vmul.f32 %v7148, 0.5
      %v7181 = vmul.f32 %v7149, 0.5
      %v7182 = vmul.f32 %v7150, 0.5
      %v7183 = vmul.f32 %v7151, 0.5
      %v7184 = vmul.f32 %v7152, 0.5
      %v7185 = vmul.f32 %v7153, 0.5
      %v7186 = vmul.f32 %v7154, 0.5
      %v7187 = vmul.f32 %v7155, 0.5
      %v7188 = vmul.f32 %v7156, 0.5
      %v7189 = vmul.f32 %v7157, 0.5
      %v7190 = vmul.f32 %v7158, 0.5
      %v7191 = vmul.f32 %v7159, 0.5
      %v7192 = vmul.f32 %v7160, 0.5
      %v7193 = vmul.f32 %v7161, 0.5
      %v7194 = vmul.f32 %v7162, 0.5
      %v7195 = vmul.f32 %v7163, 0.5
      %v7196 = vmul.f32 %v7164, 0.5
      %v7197 = vmul.f32 %v7165, 0.5
      %v7198 = vmul.f32 %v7166, 0.5
      %v7199 = vmul.f32 %v7167, 0.5
      %v7200 = vmul.f32 %v7168, 0.5
      %v7201 = vsub.f32 %v7105, %v7169
      %v7202 = vsub.f32 %v7106, %v7170
      %v7203 = vsub.f32 %v7107, %v7171
      %v7204 = vsub.f32 %v7108, %v7172
      %v7205 = vsub.f32 %v7109, %v7173
      %v7206 = vsub.f32 %v7110, %v7174
      %v7207 = vsub.f32 %v7111, %v7175
      %v7208 = vsub.f32 %v7112, %v7176
      %v7209 = vsub.f32 %v7113, %v7177
      %v7210 = vsub.f32 %v7114, %v7178
      %v7211 = vsub.f32 %v7115, %v7179
      %v7212 = vsub.f32 %v7116, %v7180
      %v7213 = vsub.f32 %v7117, %v7181
      %v7214 = vsub.f32 %v7118, %v7182
      %v7215 = vsub.f32 %v7119, %v7183
      %v7216 = vsub.f32 %v7120, %v7184
      %v7217 = vsub.f32 %v7121, %v7185
      %v7218 = vsub.f32 %v7122, %v7186
      %v7219 = vsub.f32 %v7123, %v7187
      %v7220 = vsub.f32 %v7124, %v7188
      %v7221 = vsub.f32 %v7125, %v7189
      %v7222 = vsub.f32 %v7126, %v7190
      %v7223 = vsub.f32 %v7127, %v7191
      %v7224 = vsub.f32 %v7128, %v7192
      %v7225 = vsub.f32 %v7129, %v7193
      %v7226 = vsub.f32 %v7130, %v7194
      %v7227 = vsub.f32 %v7131, %v7195
      %v7228 = vsub.f32 %v7132, %v7196
      %v7229 = vsub.f32 %v7133, %v7197
      %v7230 = vsub.f32 %v7134, %v7198
      %v7231 = vsub.f32 %v7135, %v7199
      %v7232 = vsub.f32 %v7136, %v7200
      %v7233 = vsub.f32 %v7201, 0.9189385
      %v7234 = vsub.f32 %v7202, 0.9189385
      %v7235 = vsub.f32 %v7203, 0.9189385
      %v7236 = vsub.f32 %v7204, 0.9189385
      %v7237 = vsub.f32 %v7205, 0.9189385
      %v7238 = vsub.f32 %v7206, 0.9189385
      %v7239 = vsub.f32 %v7207, 0.9189385
      %v7240 = vsub.f32 %v7208, 0.9189385
      %v7241 = vsub.f32 %v7209, 0.9189385
      %v7242 = vsub.f32 %v7210, 0.9189385
      %v7243 = vsub.f32 %v7211, 0.9189385
      %v7244 = vsub.f32 %v7212, 0.9189385
      %v7245 = vsub.f32 %v7213, 0.9189385
      %v7246 = vsub.f32 %v7214, 0.9189385
      %v7247 = vsub.f32 %v7215, 0.9189385
      %v7248 = vsub.f32 %v7216, 0.9189385
      %v7249 = vsub.f32 %v7217, 0.9189385
      %v7250 = vsub.f32 %v7218, 0.9189385
      %v7251 = vsub.f32 %v7219, 0.9189385
      %v7252 = vsub.f32 %v7220, 0.9189385
      %v7253 = vsub.f32 %v7221, 0.9189385
      %v7254 = vsub.f32 %v7222, 0.9189385
      %v7255 = vsub.f32 %v7223, 0.9189385
      %v7256 = vsub.f32 %v7224, 0.9189385
      %v7257 = vsub.f32 %v7225, 0.9189385
      %v7258 = vsub.f32 %v7226, 0.9189385
      %v7259 = vsub.f32 %v7227, 0.9189385
      %v7260 = vsub.f32 %v7228, 0.9189385
      %v7261 = vsub.f32 %v7229, 0.9189385
      %v7262 = vsub.f32 %v7230, 0.9189385
      %v7263 = vsub.f32 %v7231, 0.9189385
      %v7264 = vsub.f32 %v7232, 0.9189385
      %v7265 = vsel %vm471, %v7233, 0.0
      %7266 = vadd.xlane.f32.xlu0 %v7265
      %v7267 = vpop.xlane.xlu0 %7266
      %v7268 = vsel %vm471, %v7234, 0.0
      %7269 = vadd.xlane.f32.xlu0 %v7268
      %v7270 = vpop.xlane.xlu0 %7269
      %v7271 = vsel %vm471, %v7235, 0.0
      %7272 = vadd.xlane.f32.xlu0 %v7271
      %v7273 = vpop.xlane.xlu0 %7272
      %v7274 = vsel %vm471, %v7236, 0.0
      %7275 = vadd.xlane.f32.xlu0 %v7274
      %v7276 = vpop.xlane.xlu0 %7275
      %v7277 = vsel %vm471, %v7237, 0.0
      %7278 = vadd.xlane.f32.xlu0 %v7277
      %v7279 = vpop.xlane.xlu0 %7278
      %v7280 = vsel %vm471, %v7238, 0.0
      %7281 = vadd.xlane.f32.xlu0 %v7280
      %v7282 = vpop.xlane.xlu0 %7281
      %v7283 = vsel %vm471, %v7239, 0.0
      %7284 = vadd.xlane.f32.xlu0 %v7283
      %v7285 = vpop.xlane.xlu0 %7284
      %v7286 = vsel %vm471, %v7240, 0.0
      %7287 = vadd.xlane.f32.xlu0 %v7286
      %v7288 = vpop.xlane.xlu0 %7287
      %v7289 = vsel %vm471, %v7241, 0.0
      %7290 = vadd.xlane.f32.xlu0 %v7289
      %v7291 = vpop.xlane.xlu0 %7290
      %v7292 = vsel %vm471, %v7242, 0.0
      %7293 = vadd.xlane.f32.xlu0 %v7292
      %v7294 = vpop.xlane.xlu0 %7293
      %v7295 = vsel %vm471, %v7243, 0.0
      %7296 = vadd.xlane.f32.xlu0 %v7295
      %v7297 = vpop.xlane.xlu0 %7296
      %v7298 = vsel %vm471, %v7244, 0.0
      %7299 = vadd.xlane.f32.xlu0 %v7298
      %v7300 = vpop.xlane.xlu0 %7299
      %v7301 = vsel %vm471, %v7245, 0.0
      %7302 = vadd.xlane.f32.xlu0 %v7301
      %v7303 = vpop.xlane.xlu0 %7302
      %v7304 = vsel %vm471, %v7246, 0.0
      %7305 = vadd.xlane.f32.xlu0 %v7304
      %v7306 = vpop.xlane.xlu0 %7305
      %v7307 = vsel %vm471, %v7247, 0.0
      %7308 = vadd.xlane.f32.xlu0 %v7307
      %v7309 = vpop.xlane.xlu0 %7308
      %v7310 = vsel %vm471, %v7248, 0.0
      %7311 = vadd.xlane.f32.xlu0 %v7310
      %v7312 = vpop.xlane.xlu0 %7311
      %v7313 = vsel %vm471, %v7249, 0.0
      %7314 = vadd.xlane.f32.xlu0 %v7313
      %v7315 = vpop.xlane.xlu0 %7314
      %v7316 = vsel %vm471, %v7250, 0.0
      %7317 = vadd.xlane.f32.xlu0 %v7316
      %v7318 = vpop.xlane.xlu0 %7317
      %v7319 = vsel %vm471, %v7251, 0.0
      %7320 = vadd.xlane.f32.xlu0 %v7319
      %v7321 = vpop.xlane.xlu0 %7320
      %v7322 = vsel %vm471, %v7252, 0.0
      %7323 = vadd.xlane.f32.xlu0 %v7322
      %v7324 = vpop.xlane.xlu0 %7323
      %v7325 = vsel %vm471, %v7253, 0.0
      %7326 = vadd.xlane.f32.xlu0 %v7325
      %v7327 = vpop.xlane.xlu0 %7326
      %v7328 = vsel %vm471, %v7254, 0.0
      %7329 = vadd.xlane.f32.xlu0 %v7328
      %v7330 = vpop.xlane.xlu0 %7329
      %v7331 = vsel %vm471, %v7255, 0.0
      %7332 = vadd.xlane.f32.xlu0 %v7331
      %v7333 = vpop.xlane.xlu0 %7332
      %v7334 = vsel %vm471, %v7256, 0.0
      %7335 = vadd.xlane.f32.xlu0 %v7334
      %v7336 = vpop.xlane.xlu0 %7335
      %v7337 = vsel %vm471, %v7257, 0.0
      %7338 = vadd.xlane.f32.xlu0 %v7337
      %v7339 = vpop.xlane.xlu0 %7338
      %v7340 = vsel %vm471, %v7258, 0.0
      %7341 = vadd.xlane.f32.xlu0 %v7340
      %v7342 = vpop.xlane.xlu0 %7341
      %v7343 = vsel %vm471, %v7259, 0.0
      %7344 = vadd.xlane.f32.xlu0 %v7343
      %v7345 = vpop.xlane.xlu0 %7344
      %v7346 = vsel %vm471, %v7260, 0.0
      %7347 = vadd.xlane.f32.xlu0 %v7346
      %v7348 = vpop.xlane.xlu0 %7347
      %v7349 = vsel %vm471, %v7261, 0.0
      %7350 = vadd.xlane.f32.xlu0 %v7349
      %v7351 = vpop.xlane.xlu0 %7350
      %v7352 = vsel %vm471, %v7262, 0.0
      %7353 = vadd.xlane.f32.xlu0 %v7352
      %v7354 = vpop.xlane.xlu0 %7353
      %v7355 = vsel %vm471, %v7263, 0.0
      %7356 = vadd.xlane.f32.xlu0 %v7355
      %v7357 = vpop.xlane.xlu0 %7356
      %v7358 = vsel %vm471, %v7264, 0.0
      %7359 = vadd.xlane.f32.xlu0 %v7358
      %v7360 = vpop.xlane.xlu0 %7359
      %v7361 = vld [vmem:[%s397] sm:$0xff]
      %v7362 = vld [vmem:[%s397 + $0x8] sm:$0xff]
      %v7363 = vld [vmem:[%s397 + $0x10] sm:$0xff]
      %v7364 = vld [vmem:[%s397 + $0x18] sm:$0xff]
      %v7365 = vld [vmem:[%s397 + $0x20] sm:$0xff]
      %v7366 = vld [vmem:[%s397 + $0x28] sm:$0xff]
      %v7367 = vld [vmem:[%s397 + $0x30] sm:$0xff]
      %v7368 = vld [vmem:[%s397 + $0x38] sm:$0xff]
      %v7369 = vld [vmem:[%s397 + $0x40] sm:$0xff]
      %v7370 = vld [vmem:[%s397 + $0x48] sm:$0xff]
      %v7371 = vld [vmem:[%s397 + $0x50] sm:$0xff]
      %v7372 = vld [vmem:[%s397 + $0x58] sm:$0xff]
      %v7373 = vld [vmem:[%s397 + $0x60] sm:$0xff]
      %v7374 = vld [vmem:[%s397 + $0x68] sm:$0xff]
      %v7375 = vld [vmem:[%s397 + $0x70] sm:$0xff]
      %v7376 = vld [vmem:[%s397 + $0x78] sm:$0xff]
      %v7377 = vld [vmem:[%s397 + $0x80] sm:$0xff]
      %v7378 = vld [vmem:[%s397 + $0x88] sm:$0xff]
      %v7379 = vld [vmem:[%s397 + $0x90] sm:$0xff]
      %v7380 = vld [vmem:[%s397 + $0x98] sm:$0xff]
      %v7381 = vld [vmem:[%s397 + $0xa0] sm:$0xff]
      %v7382 = vld [vmem:[%s397 + $0xa8] sm:$0xff]
      %v7383 = vld [vmem:[%s397 + $0xb0] sm:$0xff]
      %v7384 = vld [vmem:[%s397 + $0xb8] sm:$0xff]
      %v7385 = vld [vmem:[%s397 + $0xc0] sm:$0xff]
      %v7386 = vld [vmem:[%s397 + $0xc8] sm:$0xff]
      %v7387 = vld [vmem:[%s397 + $0xd0] sm:$0xff]
      %v7388 = vld [vmem:[%s397 + $0xd8] sm:$0xff]
      %v7389 = vld [vmem:[%s397 + $0xe0] sm:$0xff]
      %v7390 = vld [vmem:[%s397 + $0xe8] sm:$0xff]
      %v7391 = vld [vmem:[%s397 + $0xf0] sm:$0xff]
      %v7392 = vld [vmem:[%s397 + $0xf8] sm:$0xff]
      %v7393 = vmul.f32 %v7267, %v7361
      %v7394 = vmul.f32 %v7270, %v7362
      %v7395 = vmul.f32 %v7273, %v7363
      %v7396 = vmul.f32 %v7276, %v7364
      %v7397 = vmul.f32 %v7279, %v7365
      %v7398 = vmul.f32 %v7282, %v7366
      %v7399 = vmul.f32 %v7285, %v7367
      %v7400 = vmul.f32 %v7288, %v7368
      %v7401 = vmul.f32 %v7291, %v7369
      %v7402 = vmul.f32 %v7294, %v7370
      %v7403 = vmul.f32 %v7297, %v7371
      %v7404 = vmul.f32 %v7300, %v7372
      %v7405 = vmul.f32 %v7303, %v7373
      %v7406 = vmul.f32 %v7306, %v7374
      %v7407 = vmul.f32 %v7309, %v7375
      %v7408 = vmul.f32 %v7312, %v7376
      %v7409 = vmul.f32 %v7315, %v7377
      %v7410 = vmul.f32 %v7318, %v7378
      %v7411 = vmul.f32 %v7321, %v7379
      %v7412 = vmul.f32 %v7324, %v7380
      %v7413 = vmul.f32 %v7327, %v7381
      %v7414 = vmul.f32 %v7330, %v7382
      %v7415 = vmul.f32 %v7333, %v7383
      %v7416 = vmul.f32 %v7336, %v7384
      %v7417 = vmul.f32 %v7339, %v7385
      %v7418 = vmul.f32 %v7342, %v7386
      %v7419 = vmul.f32 %v7345, %v7387
      %v7420 = vmul.f32 %v7348, %v7388
      %v7421 = vmul.f32 %v7351, %v7389
      %v7422 = vmul.f32 %v7354, %v7390
      %v7423 = vmul.f32 %v7357, %v7391
      %v7424 = vmul.f32 %v7360, %v7392
      %vm7425 = vcmask 7168
      %v7426 = vsel %vm7425, %v7393, 0.0
      %v7427 = vsel %vm7425, %v7394, 0.0
      %v7428 = vadd.f32 %v7426, %v7427
      %v7429 = vsel %vm7425, %v7395, 0.0
      %v7430 = vadd.f32 %v7428, %v7429
      %v7431 = vsel %vm7425, %v7396, 0.0
      %v7432 = vadd.f32 %v7430, %v7431
      %v7433 = vsel %vm7425, %v7397, 0.0
      %v7434 = vadd.f32 %v7432, %v7433
      %v7435 = vsel %vm7425, %v7398, 0.0
      %v7436 = vadd.f32 %v7434, %v7435
      %v7437 = vsel %vm7425, %v7399, 0.0
      %v7438 = vadd.f32 %v7436, %v7437
      %v7439 = vsel %vm7425, %v7400, 0.0
      %v7440 = vadd.f32 %v7438, %v7439
      %v7441 = vsel %vm7425, %v7401, 0.0
      %v7442 = vadd.f32 %v7440, %v7441
      %v7443 = vsel %vm7425, %v7402, 0.0
      %v7444 = vadd.f32 %v7442, %v7443
      %v7445 = vsel %vm7425, %v7403, 0.0
      %v7446 = vadd.f32 %v7444, %v7445
      %v7447 = vsel %vm7425, %v7404, 0.0
      %v7448 = vadd.f32 %v7446, %v7447
      %v7449 = vsel %vm7425, %v7405, 0.0
      %v7450 = vadd.f32 %v7448, %v7449
      %v7451 = vsel %vm7425, %v7406, 0.0
      %v7452 = vadd.f32 %v7450, %v7451
      %v7453 = vsel %vm7425, %v7407, 0.0
      %v7454 = vadd.f32 %v7452, %v7453
      %v7455 = vsel %vm7425, %v7408, 0.0
      %v7456 = vadd.f32 %v7454, %v7455
      %v7457 = vsel %vm7425, %v7409, 0.0
      %v7458 = vadd.f32 %v7456, %v7457
      %v7459 = vsel %vm7425, %v7410, 0.0
      %v7460 = vadd.f32 %v7458, %v7459
      %v7461 = vsel %vm7425, %v7411, 0.0
      %v7462 = vadd.f32 %v7460, %v7461
      %v7463 = vsel %vm7425, %v7412, 0.0
      %v7464 = vadd.f32 %v7462, %v7463
      %v7465 = vsel %vm7425, %v7413, 0.0
      %v7466 = vadd.f32 %v7464, %v7465
      %v7467 = vsel %vm7425, %v7414, 0.0
      %v7468 = vadd.f32 %v7466, %v7467
      %v7469 = vsel %vm7425, %v7415, 0.0
      %v7470 = vadd.f32 %v7468, %v7469
      %v7471 = vsel %vm7425, %v7416, 0.0
      %v7472 = vadd.f32 %v7470, %v7471
      %v7473 = vsel %vm7425, %v7417, 0.0
      %v7474 = vadd.f32 %v7472, %v7473
      %v7475 = vsel %vm7425, %v7418, 0.0
      %v7476 = vadd.f32 %v7474, %v7475
      %v7477 = vsel %vm7425, %v7419, 0.0
      %v7478 = vadd.f32 %v7476, %v7477
      %v7479 = vsel %vm7425, %v7420, 0.0
      %v7480 = vadd.f32 %v7478, %v7479
      %v7481 = vsel %vm7425, %v7421, 0.0
      %v7482 = vadd.f32 %v7480, %v7481
      %v7483 = vsel %vm7425, %v7422, 0.0
      %v7484 = vadd.f32 %v7482, %v7483
      %v7485 = vsel %vm7425, %v7423, 0.0
      %v7486 = vadd.f32 %v7484, %v7485
      %v7487 = vsel %vm7425, %v7424, 0.0
      %v7488 = vadd.f32 %v7486, %v7487
      %7489 = vst.msk [vmem:[%s408] sm:$0xff] %vm7425, %v7488
      %p7490 = scmp.lt.s32.totalorder %s22, 1
      %s7491 = scalar_select %p7490, %s22, 1
      %s7492 = smul.addr %s7491, 8
      %s7493 = scalar_lea.vmem %s11, %s7492
      // Predicated region
      $region69: #{tpu_custom_call.1} parent=63 // pred_check
        %p7494 = pneg %p281
      $region70: #{tpu_custom_call.1} parent=63 // pred_check_branch
        %7496 = sbr.rel (%p7494) target = $region72
      $region71: #{tpu_custom_call.1} parent=63 // pred_region
        _
      $region72: #{tpu_custom_call.1} parent=63 // pred_fallthru
        _
    $region64: #{tpu_custom_call.1} parent=5 // pred_fallthru
      _
    %p7497 = scmp.le.s32.totalorder 2, %s17
    // Predicated region
    $region73: #{tpu_custom_call.1} parent=5 // pred_check
      %p7498 = pneg %p7497
    $region74: #{tpu_custom_call.1} parent=5 // pred_check_branch
      %7500 = sbr.rel (%p7498) target = $region76
    $region75: #{tpu_custom_call.1} parent=5 // pred_region
      %s7501 = ssub.s32 %s17, 2
      // Predicated region
      $region77: #{tpu_custom_call.1} parent=75 // pred_check
        %p7502 = pneg %p287
      $region78: #{tpu_custom_call.1} parent=75 // pred_check_branch
        %7504 = sbr.rel (%p7502) target = $region80
      $region79: #{tpu_custom_call.1} parent=75 // pred_region
        %p7505 = scmp.lt.s32.totalorder %s23, 1
        %s7506 = scalar_select %p7505, %s23, 1
        %s7507 = smul.addr %s7506, 8
        %s7508 = scalar_lea.vmem %s11, %s7507
      $region80: #{tpu_custom_call.1} parent=75 // pred_fallthru
        _
    $region76: #{tpu_custom_call.1} parent=5 // pred_fallthru
      _
  $region6: #{tpu_custom_call.1} parent=0 // loop_footer
    %s21 = sadd.s32 1, %s17
  $region7: #{tpu_custom_call.1} parent=0 // loop_footer_branch
    %16 = sbr.rel target = $region3
  $region8: #{tpu_custom_call.1} parent=0 // loop_exit
    _

</llo_original>
